<compile_context>
chip_gen: v7x
topology: tpu7x:2x2x1
jax: 0.10.0
libtpu: 0.0.40
codegen_flags: <defaults>
</compile_context>

<pallas_src>
import jax
import jax.numpy as jnp
from jax.experimental import pallas as pl
from jax.experimental.pallas import tpu as pltpu

# ---------------- small synthetic config ----------------
B = 2              # batch
C = 1              # image channels
IMG = 16           # image H = W
PATCH = 8          # patch size -> NP = 4 image tokens
NP = (IMG // PATCH) ** 2
CPP = C * PATCH * PATCH
DIM = 32           # model dim
HEADS = 4
HEAD_DIM = DIM // HEADS
FFN_DIM = 64
VOCAB = 128        # num_tokens
PAD = 0            # pad_index
SEQ = 8            # text length
NQ = 7             # num_image_queries (image_queries has NQ+1 rows)
NLAYERS = 2
NEG_INF = -1e9

NUM_LN = 2 + 3 * NLAYERS        # pool LN, (ln1,ln2,ln3) per layer, logits LN
NUM_ATTN = 1 + 2 * NLAYERS      # pool attn, (self, cross) per layer

# TODO(synk): ToLatent / text_cls branches (to_latents, to_text_cls_features,
# text_cls_token) are not reachable from forward(); they are not instantiated.


# ---------------- in-kernel helpers (pure array functions) ----------------
def _ln(x, g, b):
    """Row-wise LayerNorm in f32. g, b are [1, D]."""
    mean = jnp.mean(x, axis=-1, keepdims=True)
    var = jnp.mean(jnp.square(x - mean), axis=-1, keepdims=True)
    return (x - mean) * jax.lax.rsqrt(var + 1e-5) * g + b


def _mha(xq, xkv, wq3, wk3, wv3, wo3, bias=None):
    """Multi-head attention with heads as a batched contraction.

    xq: [Sq, D] f32, xkv: [Sk, D] f32
    wq3/wk3/wv3: [H, D, E] bf16 (wq3 pre-scaled by 1/sqrt(E)),
    wo3: [H, E, D] bf16, bias: [Sq, Sk] f32 additive or None.
    Returns [Sq, D] (f32).
    """
    bf = jnp.bfloat16
    h_n = wq3.shape[0]
    xqb = jnp.broadcast_to(xq[None].astype(bf), (h_n,) + xq.shape)
    xkb = jnp.broadcast_to(xkv[None].astype(bf), (h_n,) + xkv.shape)
    q = jnp.einsum('hsd,hde->hse', xqb, wq3,
                   preferred_element_type=jnp.float32)
    k = jnp.einsum('hsd,hde->hse', xkb, wk3,
                   preferred_element_type=jnp.float32)
    v = jnp.einsum('hsd,hde->hse', xkb, wv3,
                   preferred_element_type=jnp.float32)
    # scale is pre-folded into wq3 -> no extra VPU multiply here
    s = jnp.einsum('hqe,hke->hqk', q.astype(bf), k.astype(bf),
                   preferred_element_type=jnp.float32)
    if bias is not None:
        s = s + bias[None]
    s = s - jnp.max(s, axis=-1, keepdims=True)
    p = jnp.exp(s)
    p = p * pl.reciprocal(jnp.sum(p, axis=-1, keepdims=True), approx=True)
    o = jnp.einsum('hqk,hke->hqe', p.astype(bf), v.astype(bf),
                   preferred_element_type=jnp.float32)
    oh = jnp.einsum('hqe,hed->hqd', o.astype(bf), wo3,
                    preferred_element_type=jnp.float32)  # per-head contribution
    out = oh[0]
    for hh in range(1, h_n):                             # sum heads (no concat)
        out = out + oh[hh]
    return out


def _ffn(x, w1, b1, w2, b2):
    bf = jnp.bfloat16
    h = jnp.dot(x.astype(bf), w1, preferred_element_type=jnp.float32) + b1
    # TODO(synk): PyTorch nn.GELU defaults to exact erf; tanh approx used here
    # (the injected Decoder's FFN activation is unspecified in the reference).
    h = jax.nn.gelu(h)
    return jnp.dot(h.astype(bf), w2, preferred_element_type=jnp.float32) + b2


# ---------------- fused forward kernel (one grid step per batch element) ---
def _mammut_kernel(patches_ref, tokens_ref, self_bias_ref,
                   w_patch_ref, b_patch_ref, img_q_ref,
                   ln_g_ref, ln_b_ref,
                   wq_ref, wk_ref, wv_ref, wo_ref,
                   w1_ref, b1_ref, w2_ref, b2_ref,
                   emb_ref, o_ref):
    bf = jnp.bfloat16

    # ---- encoder: patch-embed conv(k=s=PATCH) realised as a matmul ----
    # TODO(synk): the reference encoder is an injected nn.Module; a ViT-style
    # patch-embedding stem producing [NP, DIM] image tokens is modeled here.
    img_tok = jnp.dot(patches_ref[0].astype(bf), w_patch_ref[...],
                      preferred_element_type=jnp.float32) + b_patch_ref[...]

    # ---- image attention pooling (queries attend to image tokens) + LN ----
    pooled = _mha(img_q_ref[...], img_tok,
                  wq_ref[0], wk_ref[0], wv_ref[0], wo_ref[0])
    pooled = _ln(pooled, ln_g_ref[0], ln_b_ref[0])
    image_features = pooled[1:, :]            # encode() returns queries[:, 1:]

    # ---- decoder: pre-LN self-attn -> cross-attn -> FFN, with residuals ----
    h = tokens_ref[0]
    self_bias = self_bias_ref[0]
    for l in range(NLAYERS):
        y = _ln(h, ln_g_ref[1 + 3 * l], ln_b_ref[1 + 3 * l])
        h = h + _mha(y, y, wq_ref[1 + 2 * l], wk_ref[1 + 2 * l],
                     wv_ref[1 + 2 * l], wo_ref[1 + 2 * l], bias=self_bias)
        y = _ln(h, ln_g_ref[2 + 3 * l], ln_b_ref[2 + 3 * l])
        h = h + _mha(y, image_features, wq_ref[2 + 2 * l], wk_ref[2 + 2 * l],
                     wv_ref[2 + 2 * l], wo_ref[2 + 2 * l])
        y = _ln(h, ln_g_ref[3 + 3 * l], ln_b_ref[3 + 3 * l])
        h = h + _ffn(y, w1_ref[l], b1_ref[l], w2_ref[l], b2_ref[l])

    # ---- to_logits: LN + weight-tied linear (contract DIM; no emb.T copy) --
    y = _ln(h, ln_g_ref[NUM_LN - 1], ln_b_ref[NUM_LN - 1])
    logits = jax.lax.dot_general(
        y.astype(bf), emb_ref[...],
        (((1,), (1,)), ((), ())), preferred_element_type=jnp.float32)
    o_ref[0] = logits                          # [SEQ, VOCAB=128] lane-dense


# ---------------- parameter init (deterministic, synthetic) ----------------
def init_params(key):
    keys = iter(jax.random.split(key, 64))

    def nrm(shape, std=0.02):
        return jax.random.normal(next(keys), shape, jnp.float32) * std

    p = {}
    # encoder: patch-embed conv2d(C, DIM, kernel=PATCH, stride=PATCH) as matmul
    p["w_patch"] = nrm((CPP, DIM))
    p["b_patch"] = jnp.zeros((DIM,), jnp.float32)
    # image queries + attention pool
    p["image_queries"] = jax.random.normal(next(keys), (NQ + 1, DIM), jnp.float32)
    for n in ("pool_wq", "pool_wk", "pool_wv", "pool_wo"):
        p[n] = nrm((DIM, DIM))
    p["pool_ln_g"] = jnp.ones((DIM,), jnp.float32)
    p["pool_ln_b"] = jnp.zeros((DIM,), jnp.float32)
    # token embeddings (weight-tied with to_logits linear), std=0.02
    p["emb"] = nrm((VOCAB, DIM))
    # decoder layers
    layers = []
    for _ in range(NLAYERS):
        layers.append({
            "ln1_g": jnp.ones((DIM,), jnp.float32), "ln1_b": jnp.zeros((DIM,), jnp.float32),
            "sa_wq": nrm((DIM, DIM)), "sa_wk": nrm((DIM, DIM)),
            "sa_wv": nrm((DIM, DIM)), "sa_wo": nrm((DIM, DIM)),
            "ln2_g": jnp.ones((DIM,), jnp.float32), "ln2_b": jnp.zeros((DIM,), jnp.float32),
            "ca_wq": nrm((DIM, DIM)), "ca_wk": nrm((DIM, DIM)),
            "ca_wv": nrm((DIM, DIM)), "ca_wo": nrm((DIM, DIM)),
            "ln3_g": jnp.ones((DIM,), jnp.float32), "ln3_b": jnp.zeros((DIM,), jnp.float32),
            "w1": nrm((DIM, FFN_DIM)), "b1": jnp.zeros((FFN_DIM,), jnp.float32),
            "w2": nrm((FFN_DIM, DIM)), "b2": jnp.zeros((DIM,), jnp.float32),
        })
    p["layers"] = layers
    # to_logits = LayerNorm + weight-tied Linear(dim, num_tokens, bias=False)
    p["logit_ln_g"] = jnp.ones((DIM,), jnp.float32)
    p["logit_ln_b"] = jnp.zeros((DIM,), jnp.float32)
    return p


def pack_params(p):
    """Stack per-module weights, pre-split heads, fold the attention scale
    into Q, and pre-cast matmul weights to bf16 (host-side, done once)."""
    bf = jnp.bfloat16
    scale = 1.0 / (HEAD_DIM ** 0.5)

    def heads_in(w, s=1.0):   # [D, D] -> [H, D, E]
        return (w * s).reshape(DIM, HEADS, HEAD_DIM).transpose(1, 0, 2)

    def heads_out(w):         # [D, D] ( = [H*E, D]) -> [H, E, D]
        return w.reshape(HEADS, HEAD_DIM, DIM)

    ln_g, ln_b = [p["pool_ln_g"]], [p["pool_ln_b"]]
    wq = [heads_in(p["pool_wq"], scale)]
    wk = [heads_in(p["pool_wk"])]
    wv = [heads_in(p["pool_wv"])]
    wo = [heads_out(p["pool_wo"])]
    w1, b1, w2, b2 = [], [], [], []
    for layer in p["layers"]:
        ln_g += [layer["ln1_g"], layer["ln2_g"], layer["ln3_g"]]
        ln_b += [layer["ln1_b"], layer["ln2_b"], layer["ln3_b"]]
        wq += [heads_in(layer["sa_wq"], scale), heads_in(layer["ca_wq"], scale)]
        wk += [heads_in(layer["sa_wk"]), heads_in(layer["ca_wk"])]
        wv += [heads_in(layer["sa_wv"]), heads_in(layer["ca_wv"])]
        wo += [heads_out(layer["sa_wo"]), heads_out(layer["ca_wo"])]
        w1.append(layer["w1"]); b1.append(layer["b1"])
        w2.append(layer["w2"]); b2.append(layer["b2"])
    ln_g.append(p["logit_ln_g"]); ln_b.append(p["logit_ln_b"])
    return {
        "w_patch": p["w_patch"].astype(bf),
        "b_patch": p["b_patch"].reshape(1, DIM),
        "image_queries": p["image_queries"],
        "ln_g": jnp.stack(ln_g)[:, None, :],                  # [NUM_LN, 1, DIM]
        "ln_b": jnp.stack(ln_b)[:, None, :],
        "wq": jnp.stack(wq).astype(bf),                       # [NUM_ATTN, H, D, E]
        "wk": jnp.stack(wk).astype(bf),
        "wv": jnp.stack(wv).astype(bf),
        "wo": jnp.stack(wo).astype(bf),                       # [NUM_ATTN, H, E, D]
        "w1": jnp.stack(w1).astype(bf), "b1": jnp.stack(b1)[:, None, :],
        "w2": jnp.stack(w2).astype(bf), "b2": jnp.stack(b2)[:, None, :],
        "emb_table": p["emb"],                                # f32, host gather
        "emb": p["emb"].astype(bf),                           # bf16, logits matmul
    }


# ---------------- MaMMUT forward ----------------
def mammut_forward(pp, images, text):
    Bb = images.shape[0]

    # --- glue: patchify NCHW images -> [B, NP, C*PATCH*PATCH] ---
    x = images.reshape(Bb, C, IMG // PATCH, PATCH, IMG // PATCH, PATCH)
    patches = x.transpose(0, 2, 4, 1, 3, 5).reshape(Bb, NP, CPP)

    # --- glue: token embedding gather + causal/pad additive self-attn bias ---
    text = text.astype(jnp.int32)
    tokens = jnp.take(pp["emb_table"], text, axis=0)          # [B, SEQ, DIM] f32
    pad_mask = text != PAD
    causal = jnp.tril(jnp.ones((SEQ, SEQ), dtype=bool))
    allowed = causal[None, :, :] & pad_mask[:, None, :]
    self_bias = jnp.where(allowed, 0.0, NEG_INF).astype(jnp.float32)

    in_specs = [
        pl.BlockSpec((1, NP, CPP), lambda b: (b, 0, 0)),                         # patches
        pl.BlockSpec((1, SEQ, DIM), lambda b: (b, 0, 0)),                        # tokens
        pl.BlockSpec((1, SEQ, SEQ), lambda b: (b, 0, 0)),                        # self_bias
        pl.BlockSpec((CPP, DIM), lambda b: (0, 0)),                              # w_patch
        pl.BlockSpec((1, DIM), lambda b: (0, 0)),                                # b_patch
        pl.BlockSpec((NQ + 1, DIM), lambda b: (0, 0)),                           # image_queries
        pl.BlockSpec((NUM_LN, 1, DIM), lambda b: (0, 0, 0)),                     # ln_g
        pl.BlockSpec((NUM_LN, 1, DIM), lambda b: (0, 0, 0)),                     # ln_b
        pl.BlockSpec((NUM_ATTN, HEADS, DIM, HEAD_DIM), lambda b: (0, 0, 0, 0)),  # wq
        pl.BlockSpec((NUM_ATTN, HEADS, DIM, HEAD_DIM), lambda b: (0, 0, 0, 0)),  # wk
        pl.BlockSpec((NUM_ATTN, HEADS, DIM, HEAD_DIM), lambda b: (0, 0, 0, 0)),  # wv
        pl.BlockSpec((NUM_ATTN, HEADS, HEAD_DIM, DIM), lambda b: (0, 0, 0, 0)),  # wo
        pl.BlockSpec((NLAYERS, DIM, FFN_DIM), lambda b: (0, 0, 0)),              # w1
        pl.BlockSpec((NLAYERS, 1, FFN_DIM), lambda b: (0, 0, 0)),                # b1
        pl.BlockSpec((NLAYERS, FFN_DIM, DIM), lambda b: (0, 0, 0)),              # w2
        pl.BlockSpec((NLAYERS, 1, DIM), lambda b: (0, 0, 0)),                    # b2
        pl.BlockSpec((VOCAB, DIM), lambda b: (0, 0)),                            # emb (bf16)
    ]
    out_specs = pl.BlockSpec((1, SEQ, VOCAB), lambda b: (b, 0, 0))

    logits = pl.pallas_call(
        _mammut_kernel,
        out_shape=jax.ShapeDtypeStruct((Bb, SEQ, VOCAB), jnp.float32),
        grid=(Bb,),
        in_specs=in_specs,
        out_specs=out_specs,
        compiler_params=pltpu.CompilerParams(dimension_semantics=("parallel",)),
    )(patches, tokens, self_bias,
      pp["w_patch"], pp["b_patch"], pp["image_queries"],
      pp["ln_g"], pp["ln_b"],
      pp["wq"], pp["wk"], pp["wv"], pp["wo"],
      pp["w1"], pp["b1"], pp["w2"], pp["b2"],
      pp["emb"])
    return logits


if __name__ == "__main__":
    key = jax.random.PRNGKey(0)
    kp, ki, kt = jax.random.split(key, 3)
    params = init_params(kp)
    packed = pack_params(params)
    images = jax.random.normal(ki, (B, C, IMG, IMG), jnp.float32)   # NCHW
    text = jax.random.randint(kt, (B, SEQ), 0, VOCAB)

    logits = jax.jit(mammut_forward)(packed, images, text)
    jax.block_until_ready(logits)
    assert logits.shape == (B, SEQ, VOCAB)
    assert bool(jnp.all(jnp.isfinite(logits)))
    print("KERNEL_OK")
</pallas_src>

<mosaic_0001>
module attributes {stable_mosaic.version = 11 : i64} {
  func.func @_mammut_kernel(%arg0: i32, %arg1: memref<1x4x64xf32, #tpu.memory_space<vmem>>, %arg2: memref<1x8x32xf32, #tpu.memory_space<vmem>>, %arg3: memref<1x8x8xf32, #tpu.memory_space<vmem>>, %arg4: memref<64x32xbf16, #tpu.memory_space<vmem>>, %arg5: memref<1x32xf32, #tpu.memory_space<vmem>>, %arg6: memref<8x32xf32, #tpu.memory_space<vmem>>, %arg7: memref<8x1x32xf32, #tpu.memory_space<vmem>>, %arg8: memref<8x1x32xf32, #tpu.memory_space<vmem>>, %arg9: memref<5x4x32x8xbf16, #tpu.memory_space<vmem>>, %arg10: memref<5x4x32x8xbf16, #tpu.memory_space<vmem>>, %arg11: memref<5x4x32x8xbf16, #tpu.memory_space<vmem>>, %arg12: memref<5x4x8x32xbf16, #tpu.memory_space<vmem>>, %arg13: memref<2x32x64xbf16, #tpu.memory_space<vmem>>, %arg14: memref<2x1x64xf32, #tpu.memory_space<vmem>>, %arg15: memref<2x64x32xbf16, #tpu.memory_space<vmem>>, %arg16: memref<2x1x32xf32, #tpu.memory_space<vmem>>, %arg17: memref<128x32xbf16, #tpu.memory_space<vmem>>, %arg18: memref<1x8x128xf32, #tpu.memory_space<vmem>>) attributes {dimension_semantics = [#tpu.dimension_semantics<parallel>], iteration_bounds = array<i64: 2>, scalar_prefetch = 0 : i64, scratch_operands = 0 : i64, tpu.core_type = #tpu.core_type<tc>, window_params = [{transform_indices = @transform_0, window_bounds = array<i64: 1, 4, 64>}, {transform_indices = @transform_1, window_bounds = array<i64: 1, 8, 32>}, {transform_indices = @transform_2, window_bounds = array<i64: 1, 8, 8>}, {pipeline_mode = #tpu.pipeline_mode<synchronous>, transform_indices = @transform_3, window_bounds = array<i64: 64, 32>}, {pipeline_mode = #tpu.pipeline_mode<synchronous>, transform_indices = @transform_4, window_bounds = array<i64: 1, 32>}, {pipeline_mode = #tpu.pipeline_mode<synchronous>, transform_indices = @transform_5, window_bounds = array<i64: 8, 32>}, {pipeline_mode = #tpu.pipeline_mode<synchronous>, transform_indices = @transform_6, window_bounds = array<i64: 8, 1, 32>}, {pipeline_mode = #tpu.pipeline_mode<synchronous>, transform_indices = @transform_7, window_bounds = array<i64: 8, 1, 32>}, {pipeline_mode = #tpu.pipeline_mode<synchronous>, transform_indices = @transform_8, window_bounds = array<i64: 5, 4, 32, 8>}, {pipeline_mode = #tpu.pipeline_mode<synchronous>, transform_indices = @transform_9, window_bounds = array<i64: 5, 4, 32, 8>}, {pipeline_mode = #tpu.pipeline_mode<synchronous>, transform_indices = @transform_10, window_bounds = array<i64: 5, 4, 32, 8>}, {pipeline_mode = #tpu.pipeline_mode<synchronous>, transform_indices = @transform_11, window_bounds = array<i64: 5, 4, 8, 32>}, {pipeline_mode = #tpu.pipeline_mode<synchronous>, transform_indices = @transform_12, window_bounds = array<i64: 2, 32, 64>}, {pipeline_mode = #tpu.pipeline_mode<synchronous>, transform_indices = @transform_13, window_bounds = array<i64: 2, 1, 64>}, {pipeline_mode = #tpu.pipeline_mode<synchronous>, transform_indices = @transform_14, window_bounds = array<i64: 2, 64, 32>}, {pipeline_mode = #tpu.pipeline_mode<synchronous>, transform_indices = @transform_15, window_bounds = array<i64: 2, 1, 32>}, {pipeline_mode = #tpu.pipeline_mode<synchronous>, transform_indices = @transform_16, window_bounds = array<i64: 128, 32>}, {transform_indices = @transform_17, window_bounds = array<i64: 1, 8, 128>}]} {
    %c0 = arith.constant 0 : index
    %c0_0 = arith.constant 0 : index
    %c0_1 = arith.constant 0 : index
    %0 = vector.load %arg1[%c0, %c0_0, %c0_1] : memref<1x4x64xf32, #tpu.memory_space<vmem>>, vector<1x4x64xf32>
    %1 = vector.shape_cast %0 : vector<1x4x64xf32> to vector<4x64xf32>
    %2 = arith.truncf %1 : vector<4x64xf32> to vector<4x64xbf16>
    %c0_2 = arith.constant 0 : index
    %c0_3 = arith.constant 0 : index
    %3 = vector.load %arg4[%c0_2, %c0_3] : memref<64x32xbf16, #tpu.memory_space<vmem>>, vector<64x32xbf16>
    %cst = arith.constant dense<0.000000e+00> : vector<4x32xf32>
    %4 = tpu.matmul %2, %3, %cst {dimension_numbers = #tpu.dot_dimension_numbers<[1], [0], [0], [1], [0, 0, 1, 1], [], []>} : vector<4x64xbf16>, vector<64x32xbf16>, vector<4x32xf32> -> vector<4x32xf32>
    %c0_4 = arith.constant 0 : index
    %c0_5 = arith.constant 0 : index
    %5 = vector.load %arg5[%c0_4, %c0_5] : memref<1x32xf32, #tpu.memory_space<vmem>>, vector<1x32xf32>
    %6 = vector.broadcast %5 : vector<1x32xf32> to vector<4x32xf32>
    %7 = arith.addf %4, %6 : vector<4x32xf32>
    %c0_6 = arith.constant 0 : index
    %c0_7 = arith.constant 0 : index
    %8 = vector.load %arg6[%c0_6, %c0_7] : memref<8x32xf32, #tpu.memory_space<vmem>>, vector<8x32xf32>
    %c0_8 = arith.constant 0 : index
    %c0_9 = arith.constant 0 : index
    %c0_10 = arith.constant 0 : index
    %c0_11 = arith.constant 0 : index
    %9 = vector.load %arg9[%c0_8, %c0_9, %c0_10, %c0_11] : memref<5x4x32x8xbf16, #tpu.memory_space<vmem>>, vector<1x4x32x8xbf16>
    %10 = vector.shape_cast %9 : vector<1x4x32x8xbf16> to vector<4x32x8xbf16>
    %c0_12 = arith.constant 0 : index
    %c0_13 = arith.constant 0 : index
    %c0_14 = arith.constant 0 : index
    %c0_15 = arith.constant 0 : index
    %11 = vector.load %arg10[%c0_12, %c0_13, %c0_14, %c0_15] : memref<5x4x32x8xbf16, #tpu.memory_space<vmem>>, vector<1x4x32x8xbf16>
    %12 = vector.shape_cast %11 : vector<1x4x32x8xbf16> to vector<4x32x8xbf16>
    %c0_16 = arith.constant 0 : index
    %c0_17 = arith.constant 0 : index
    %c0_18 = arith.constant 0 : index
    %c0_19 = arith.constant 0 : index
    %13 = vector.load %arg11[%c0_16, %c0_17, %c0_18, %c0_19] : memref<5x4x32x8xbf16, #tpu.memory_space<vmem>>, vector<1x4x32x8xbf16>
    %14 = vector.shape_cast %13 : vector<1x4x32x8xbf16> to vector<4x32x8xbf16>
    %c0_20 = arith.constant 0 : index
    %c0_21 = arith.constant 0 : index
    %c0_22 = arith.constant 0 : index
    %c0_23 = arith.constant 0 : index
    %15 = vector.load %arg12[%c0_20, %c0_21, %c0_22, %c0_23] : memref<5x4x8x32xbf16, #tpu.memory_space<vmem>>, vector<1x4x8x32xbf16>
    %16 = vector.shape_cast %15 : vector<1x4x8x32xbf16> to vector<4x8x32xbf16>
    %17 = vector.shape_cast %8 : vector<8x32xf32> to vector<1x8x32xf32>
    %18 = arith.truncf %17 : vector<1x8x32xf32> to vector<1x8x32xbf16>
    %19 = vector.shape_cast %18 : vector<1x8x32xbf16> to vector<1x8x32xbf16>
    %20 = vector.broadcast %19 : vector<1x8x32xbf16> to vector<4x8x32xbf16>
    %21 = vector.shape_cast %7 : vector<4x32xf32> to vector<1x4x32xf32>
    %22 = arith.truncf %21 : vector<1x4x32xf32> to vector<1x4x32xbf16>
    %23 = vector.shape_cast %22 : vector<1x4x32xbf16> to vector<1x4x32xbf16>
    %24 = vector.broadcast %23 : vector<1x4x32xbf16> to vector<4x4x32xbf16>
    "tpu.trace_start"() <{level = 10 : i32, message = "hsd,hde->hse"}> : () -> ()
    %cst_24 = arith.constant dense<0.000000e+00> : vector<4x8x8xf32>
    %25 = tpu.matmul %20, %10, %cst_24 {dimension_numbers = #tpu.dot_dimension_numbers<[2], [1], [1], [2], [0, 0, 0, 1, 1, 2], [0], [0]>} : vector<4x8x32xbf16>, vector<4x32x8xbf16>, vector<4x8x8xf32> -> vector<4x8x8xf32>
    %cst_25 = arith.constant dense<0.000000e+00> : vector<4x4x8xf32>
    %26 = tpu.matmul %24, %12, %cst_25 {dimension_numbers = #tpu.dot_dimension_numbers<[2], [1], [1], [2], [0, 0, 0, 1, 1, 2], [0], [0]>} : vector<4x4x32xbf16>, vector<4x32x8xbf16>, vector<4x4x8xf32> -> vector<4x4x8xf32>
    %cst_26 = arith.constant dense<0.000000e+00> : vector<4x4x8xf32>
    %27 = tpu.matmul %24, %14, %cst_26 {dimension_numbers = #tpu.dot_dimension_numbers<[2], [1], [1], [2], [0, 0, 0, 1, 1, 2], [0], [0]>} : vector<4x4x32xbf16>, vector<4x32x8xbf16>, vector<4x4x8xf32> -> vector<4x4x8xf32>
    "tpu.trace_stop"() : () -> ()
    %28 = arith.truncf %25 : vector<4x8x8xf32> to vector<4x8x8xbf16>
    %29 = arith.truncf %26 : vector<4x4x8xf32> to vector<4x4x8xbf16>
    "tpu.trace_start"() <{level = 10 : i32, message = "hqe,hke->hqk"}> : () -> ()
    %cst_27 = arith.constant dense<0.000000e+00> : vector<4x8x4xf32>
    %30 = tpu.matmul %28, %29, %cst_27 {dimension_numbers = #tpu.dot_dimension_numbers<[2], [2], [1], [1], [0, 0, 0, 1, 1, 1], [0], [0]>} : vector<4x8x8xbf16>, vector<4x4x8xbf16>, vector<4x8x4xf32> -> vector<4x8x4xf32>
    "tpu.trace_stop"() : () -> ()
    %cst_28 = arith.constant dense<0xFF800000> : vector<4x8xf32>
    %31 = vector.multi_reduction <maximumf>, %30, %cst_28 [2] : vector<4x8x4xf32> to vector<4x8xf32>
    %32 = vector.shape_cast %31 : vector<4x8xf32> to vector<4x8x1xf32>
    %33 = vector.broadcast %32 : vector<4x8x1xf32> to vector<4x8x4xf32>
    %34 = arith.subf %30, %33 : vector<4x8x4xf32>
    %35 = math.exp %34 : vector<4x8x4xf32>
    %cst_29 = arith.constant dense<0.000000e+00> : vector<4x8xf32>
    %36 = vector.multi_reduction <add>, %35, %cst_29 [2] : vector<4x8x4xf32> to vector<4x8xf32>
    %37 = vector.shape_cast %36 : vector<4x8xf32> to vector<4x8x1xf32>
    %38 = tpu.reciprocal %37 {approx = true} : vector<4x8x1xf32> -> vector<4x8x1xf32>
    %39 = vector.broadcast %38 : vector<4x8x1xf32> to vector<4x8x4xf32>
    %40 = arith.mulf %35, %39 : vector<4x8x4xf32>
    %41 = arith.truncf %40 : vector<4x8x4xf32> to vector<4x8x4xbf16>
    %42 = arith.truncf %27 : vector<4x4x8xf32> to vector<4x4x8xbf16>
    "tpu.trace_start"() <{level = 10 : i32, message = "hqk,hke->hqe"}> : () -> ()
    %cst_30 = arith.constant dense<0.000000e+00> : vector<4x8x8xf32>
    %43 = tpu.matmul %41, %42, %cst_30 {dimension_numbers = #tpu.dot_dimension_numbers<[2], [1], [1], [2], [0, 0, 0, 1, 1, 2], [0], [0]>} : vector<4x8x4xbf16>, vector<4x4x8xbf16>, vector<4x8x8xf32> -> vector<4x8x8xf32>
    "tpu.trace_stop"() : () -> ()
    %44 = arith.truncf %43 : vector<4x8x8xf32> to vector<4x8x8xbf16>
    "tpu.trace_start"() <{level = 10 : i32, message = "hqe,hed->hqd"}> : () -> ()
    %cst_31 = arith.constant dense<0.000000e+00> : vector<4x8x32xf32>
    %45 = tpu.matmul %44, %16, %cst_31 {dimension_numbers = #tpu.dot_dimension_numbers<[2], [1], [1], [2], [0, 0, 0, 1, 1, 2], [0], [0]>} : vector<4x8x8xbf16>, vector<4x8x32xbf16>, vector<4x8x32xf32> -> vector<4x8x32xf32>
    "tpu.trace_stop"() : () -> ()
    %46 = vector.extract_strided_slice %45 {offsets = [0, 0, 0], sizes = [1, 8, 32], strides = [1, 1, 1]} : vector<4x8x32xf32> to vector<1x8x32xf32>
    %47 = vector.shape_cast %46 : vector<1x8x32xf32> to vector<8x32xf32>
    %48 = vector.extract_strided_slice %45 {offsets = [1, 0, 0], sizes = [1, 8, 32], strides = [1, 1, 1]} : vector<4x8x32xf32> to vector<1x8x32xf32>
    %49 = vector.shape_cast %48 : vector<1x8x32xf32> to vector<8x32xf32>
    %50 = arith.addf %47, %49 : vector<8x32xf32>
    %51 = vector.extract_strided_slice %45 {offsets = [2, 0, 0], sizes = [1, 8, 32], strides = [1, 1, 1]} : vector<4x8x32xf32> to vector<1x8x32xf32>
    %52 = vector.shape_cast %51 : vector<1x8x32xf32> to vector<8x32xf32>
    %53 = arith.addf %50, %52 : vector<8x32xf32>
    %54 = vector.extract_strided_slice %45 {offsets = [3, 0, 0], sizes = [1, 8, 32], strides = [1, 1, 1]} : vector<4x8x32xf32> to vector<1x8x32xf32>
    %55 = vector.shape_cast %54 : vector<1x8x32xf32> to vector<8x32xf32>
    %56 = arith.addf %53, %55 : vector<8x32xf32>
    %c0_32 = arith.constant 0 : index
    %c0_33 = arith.constant 0 : index
    %c0_34 = arith.constant 0 : index
    %57 = vector.load %arg7[%c0_32, %c0_33, %c0_34] : memref<8x1x32xf32, #tpu.memory_space<vmem>>, vector<1x1x32xf32>
    %58 = vector.shape_cast %57 : vector<1x1x32xf32> to vector<1x32xf32>
    %c0_35 = arith.constant 0 : index
    %c0_36 = arith.constant 0 : index
    %c0_37 = arith.constant 0 : index
    %59 = vector.load %arg8[%c0_35, %c0_36, %c0_37] : memref<8x1x32xf32, #tpu.memory_space<vmem>>, vector<1x1x32xf32>
    %60 = vector.shape_cast %59 : vector<1x1x32xf32> to vector<1x32xf32>
    %cst_38 = arith.constant dense<0.000000e+00> : vector<8xf32>
    %61 = vector.multi_reduction <add>, %56, %cst_38 [1] : vector<8x32xf32> to vector<8xf32>
    %62 = vector.shape_cast %61 : vector<8xf32> to vector<8x1xf32>
    %cst_39 = arith.constant 3.200000e+01 : f32
    %63 = vector.broadcast %cst_39 : f32 to vector<8x1xf32>
    %64 = arith.divf %62, %63 : vector<8x1xf32>
    %65 = vector.broadcast %64 : vector<8x1xf32> to vector<8x32xf32>
    %66 = arith.subf %56, %65 : vector<8x32xf32>
    %67 = arith.mulf %66, %66 : vector<8x32xf32>
    %cst_40 = arith.constant dense<0.000000e+00> : vector<8xf32>
    %68 = vector.multi_reduction <add>, %67, %cst_40 [1] : vector<8x32xf32> to vector<8xf32>
    %69 = vector.shape_cast %68 : vector<8xf32> to vector<8x1xf32>
    %cst_41 = arith.constant 3.200000e+01 : f32
    %70 = vector.broadcast %cst_41 : f32 to vector<8x1xf32>
    %71 = arith.divf %69, %70 : vector<8x1xf32>
    %72 = vector.broadcast %64 : vector<8x1xf32> to vector<8x32xf32>
    %73 = arith.subf %56, %72 : vector<8x32xf32>
    %cst_42 = arith.constant 9.99999974E-6 : f32
    %74 = vector.broadcast %cst_42 : f32 to vector<8x1xf32>
    %75 = arith.addf %71, %74 : vector<8x1xf32>
    %76 = math.rsqrt %75 : vector<8x1xf32>
    %77 = vector.broadcast %76 : vector<8x1xf32> to vector<8x32xf32>
    %78 = arith.mulf %73, %77 : vector<8x32xf32>
    %79 = vector.broadcast %58 : vector<1x32xf32> to vector<8x32xf32>
    %80 = arith.mulf %78, %79 : vector<8x32xf32>
    %81 = vector.broadcast %60 : vector<1x32xf32> to vector<8x32xf32>
    %82 = arith.addf %80, %81 : vector<8x32xf32>
    %83 = vector.extract_strided_slice %82 {offsets = [1, 0], sizes = [7, 32], strides = [1, 1]} : vector<8x32xf32> to vector<7x32xf32>
    %c0_43 = arith.constant 0 : index
    %c0_44 = arith.constant 0 : index
    %c0_45 = arith.constant 0 : index
    %84 = vector.load %arg2[%c0_43, %c0_44, %c0_45] : memref<1x8x32xf32, #tpu.memory_space<vmem>>, vector<1x8x32xf32>
    %85 = vector.shape_cast %84 : vector<1x8x32xf32> to vector<8x32xf32>
    %c0_46 = arith.constant 0 : index
    %c0_47 = arith.constant 0 : index
    %c0_48 = arith.constant 0 : index
    %86 = vector.load %arg3[%c0_46, %c0_47, %c0_48] : memref<1x8x8xf32, #tpu.memory_space<vmem>>, vector<1x8x8xf32>
    %87 = vector.shape_cast %86 : vector<1x8x8xf32> to vector<8x8xf32>
    %c1 = arith.constant 1 : index
    %c0_49 = arith.constant 0 : index
    %c0_50 = arith.constant 0 : index
    %88 = vector.load %arg7[%c1, %c0_49, %c0_50] : memref<8x1x32xf32, #tpu.memory_space<vmem>>, vector<1x1x32xf32>
    %89 = vector.shape_cast %88 : vector<1x1x32xf32> to vector<1x32xf32>
    %c1_51 = arith.constant 1 : index
    %c0_52 = arith.constant 0 : index
    %c0_53 = arith.constant 0 : index
    %90 = vector.load %arg8[%c1_51, %c0_52, %c0_53] : memref<8x1x32xf32, #tpu.memory_space<vmem>>, vector<1x1x32xf32>
    %91 = vector.shape_cast %90 : vector<1x1x32xf32> to vector<1x32xf32>
    %cst_54 = arith.constant dense<0.000000e+00> : vector<8xf32>
    %92 = vector.multi_reduction <add>, %85, %cst_54 [1] : vector<8x32xf32> to vector<8xf32>
    %93 = vector.shape_cast %92 : vector<8xf32> to vector<8x1xf32>
    %cst_55 = arith.constant 3.200000e+01 : f32
    %94 = vector.broadcast %cst_55 : f32 to vector<8x1xf32>
    %95 = arith.divf %93, %94 : vector<8x1xf32>
    %96 = vector.broadcast %95 : vector<8x1xf32> to vector<8x32xf32>
    %97 = arith.subf %85, %96 : vector<8x32xf32>
    %98 = arith.mulf %97, %97 : vector<8x32xf32>
    %cst_56 = arith.constant dense<0.000000e+00> : vector<8xf32>
    %99 = vector.multi_reduction <add>, %98, %cst_56 [1] : vector<8x32xf32> to vector<8xf32>
    %100 = vector.shape_cast %99 : vector<8xf32> to vector<8x1xf32>
    %cst_57 = arith.constant 3.200000e+01 : f32
    %101 = vector.broadcast %cst_57 : f32 to vector<8x1xf32>
    %102 = arith.divf %100, %101 : vector<8x1xf32>
    %103 = vector.broadcast %95 : vector<8x1xf32> to vector<8x32xf32>
    %104 = arith.subf %85, %103 : vector<8x32xf32>
    %cst_58 = arith.constant 9.99999974E-6 : f32
    %105 = vector.broadcast %cst_58 : f32 to vector<8x1xf32>
    %106 = arith.addf %102, %105 : vector<8x1xf32>
    %107 = math.rsqrt %106 : vector<8x1xf32>
    %108 = vector.broadcast %107 : vector<8x1xf32> to vector<8x32xf32>
    %109 = arith.mulf %104, %108 : vector<8x32xf32>
    %110 = vector.broadcast %89 : vector<1x32xf32> to vector<8x32xf32>
    %111 = arith.mulf %109, %110 : vector<8x32xf32>
    %112 = vector.broadcast %91 : vector<1x32xf32> to vector<8x32xf32>
    %113 = arith.addf %111, %112 : vector<8x32xf32>
    %c1_59 = arith.constant 1 : index
    %c0_60 = arith.constant 0 : index
    %c0_61 = arith.constant 0 : index
    %c0_62 = arith.constant 0 : index
    %114 = vector.load %arg9[%c1_59, %c0_60, %c0_61, %c0_62] : memref<5x4x32x8xbf16, #tpu.memory_space<vmem>>, vector<1x4x32x8xbf16>
    %115 = vector.shape_cast %114 : vector<1x4x32x8xbf16> to vector<4x32x8xbf16>
    %c1_63 = arith.constant 1 : index
    %c0_64 = arith.constant 0 : index
    %c0_65 = arith.constant 0 : index
    %c0_66 = arith.constant 0 : index
    %116 = vector.load %arg10[%c1_63, %c0_64, %c0_65, %c0_66] : memref<5x4x32x8xbf16, #tpu.memory_space<vmem>>, vector<1x4x32x8xbf16>
    %117 = vector.shape_cast %116 : vector<1x4x32x8xbf16> to vector<4x32x8xbf16>
    %c1_67 = arith.constant 1 : index
    %c0_68 = arith.constant 0 : index
    %c0_69 = arith.constant 0 : index
    %c0_70 = arith.constant 0 : index
    %118 = vector.load %arg11[%c1_67, %c0_68, %c0_69, %c0_70] : memref<5x4x32x8xbf16, #tpu.memory_space<vmem>>, vector<1x4x32x8xbf16>
    %119 = vector.shape_cast %118 : vector<1x4x32x8xbf16> to vector<4x32x8xbf16>
    %c1_71 = arith.constant 1 : index
    %c0_72 = arith.constant 0 : index
    %c0_73 = arith.constant 0 : index
    %c0_74 = arith.constant 0 : index
    %120 = vector.load %arg12[%c1_71, %c0_72, %c0_73, %c0_74] : memref<5x4x8x32xbf16, #tpu.memory_space<vmem>>, vector<1x4x8x32xbf16>
    %121 = vector.shape_cast %120 : vector<1x4x8x32xbf16> to vector<4x8x32xbf16>
    %122 = vector.shape_cast %113 : vector<8x32xf32> to vector<1x8x32xf32>
    %123 = arith.truncf %122 : vector<1x8x32xf32> to vector<1x8x32xbf16>
    %124 = vector.shape_cast %123 : vector<1x8x32xbf16> to vector<1x8x32xbf16>
    %125 = vector.broadcast %124 : vector<1x8x32xbf16> to vector<4x8x32xbf16>
    %126 = vector.shape_cast %113 : vector<8x32xf32> to vector<1x8x32xf32>
    %127 = arith.truncf %126 : vector<1x8x32xf32> to vector<1x8x32xbf16>
    %128 = vector.shape_cast %127 : vector<1x8x32xbf16> to vector<1x8x32xbf16>
    %129 = vector.broadcast %128 : vector<1x8x32xbf16> to vector<4x8x32xbf16>
    "tpu.trace_start"() <{level = 10 : i32, message = "hsd,hde->hse"}> : () -> ()
    %cst_75 = arith.constant dense<0.000000e+00> : vector<4x8x8xf32>
    %130 = tpu.matmul %125, %115, %cst_75 {dimension_numbers = #tpu.dot_dimension_numbers<[2], [1], [1], [2], [0, 0, 0, 1, 1, 2], [0], [0]>} : vector<4x8x32xbf16>, vector<4x32x8xbf16>, vector<4x8x8xf32> -> vector<4x8x8xf32>
    %cst_76 = arith.constant dense<0.000000e+00> : vector<4x8x8xf32>
    %131 = tpu.matmul %129, %117, %cst_76 {dimension_numbers = #tpu.dot_dimension_numbers<[2], [1], [1], [2], [0, 0, 0, 1, 1, 2], [0], [0]>} : vector<4x8x32xbf16>, vector<4x32x8xbf16>, vector<4x8x8xf32> -> vector<4x8x8xf32>
    %cst_77 = arith.constant dense<0.000000e+00> : vector<4x8x8xf32>
    %132 = tpu.matmul %129, %119, %cst_77 {dimension_numbers = #tpu.dot_dimension_numbers<[2], [1], [1], [2], [0, 0, 0, 1, 1, 2], [0], [0]>} : vector<4x8x32xbf16>, vector<4x32x8xbf16>, vector<4x8x8xf32> -> vector<4x8x8xf32>
    "tpu.trace_stop"() : () -> ()
    %133 = arith.truncf %130 : vector<4x8x8xf32> to vector<4x8x8xbf16>
    %134 = arith.truncf %131 : vector<4x8x8xf32> to vector<4x8x8xbf16>
    "tpu.trace_start"() <{level = 10 : i32, message = "hqe,hke->hqk"}> : () -> ()
    %cst_78 = arith.constant dense<0.000000e+00> : vector<4x8x8xf32>
    %135 = tpu.matmul %133, %134, %cst_78 {dimension_numbers = #tpu.dot_dimension_numbers<[2], [2], [1], [1], [0, 0, 0, 1, 1, 1], [0], [0]>} : vector<4x8x8xbf16>, vector<4x8x8xbf16>, vector<4x8x8xf32> -> vector<4x8x8xf32>
    "tpu.trace_stop"() : () -> ()
    %136 = vector.shape_cast %87 : vector<8x8xf32> to vector<1x8x8xf32>
    %137 = vector.broadcast %136 : vector<1x8x8xf32> to vector<4x8x8xf32>
    %138 = arith.addf %135, %137 : vector<4x8x8xf32>
    %cst_79 = arith.constant dense<0xFF800000> : vector<4x8xf32>
    %139 = vector.multi_reduction <maximumf>, %138, %cst_79 [2] : vector<4x8x8xf32> to vector<4x8xf32>
    %140 = vector.shape_cast %139 : vector<4x8xf32> to vector<4x8x1xf32>
    %141 = vector.broadcast %140 : vector<4x8x1xf32> to vector<4x8x8xf32>
    %142 = arith.subf %138, %141 : vector<4x8x8xf32>
    %143 = math.exp %142 : vector<4x8x8xf32>
    %cst_80 = arith.constant dense<0.000000e+00> : vector<4x8xf32>
    %144 = vector.multi_reduction <add>, %143, %cst_80 [2] : vector<4x8x8xf32> to vector<4x8xf32>
    %145 = vector.shape_cast %144 : vector<4x8xf32> to vector<4x8x1xf32>
    %146 = tpu.reciprocal %145 {approx = true} : vector<4x8x1xf32> -> vector<4x8x1xf32>
    %147 = vector.broadcast %146 : vector<4x8x1xf32> to vector<4x8x8xf32>
    %148 = arith.mulf %143, %147 : vector<4x8x8xf32>
    %149 = arith.truncf %148 : vector<4x8x8xf32> to vector<4x8x8xbf16>
    %150 = arith.truncf %132 : vector<4x8x8xf32> to vector<4x8x8xbf16>
    "tpu.trace_start"() <{level = 10 : i32, message = "hqk,hke->hqe"}> : () -> ()
    %cst_81 = arith.constant dense<0.000000e+00> : vector<4x8x8xf32>
    %151 = tpu.matmul %149, %150, %cst_81 {dimension_numbers = #tpu.dot_dimension_numbers<[2], [1], [1], [2], [0, 0, 0, 1, 1, 2], [0], [0]>} : vector<4x8x8xbf16>, vector<4x8x8xbf16>, vector<4x8x8xf32> -> vector<4x8x8xf32>
    "tpu.trace_stop"() : () -> ()
    %152 = arith.truncf %151 : vector<4x8x8xf32> to vector<4x8x8xbf16>
    "tpu.trace_start"() <{level = 10 : i32, message = "hqe,hed->hqd"}> : () -> ()
    %cst_82 = arith.constant dense<0.000000e+00> : vector<4x8x32xf32>
    %153 = tpu.matmul %152, %121, %cst_82 {dimension_numbers = #tpu.dot_dimension_numbers<[2], [1], [1], [2], [0, 0, 0, 1, 1, 2], [0], [0]>} : vector<4x8x8xbf16>, vector<4x8x32xbf16>, vector<4x8x32xf32> -> vector<4x8x32xf32>
    "tpu.trace_stop"() : () -> ()
    %154 = vector.extract_strided_slice %153 {offsets = [0, 0, 0], sizes = [1, 8, 32], strides = [1, 1, 1]} : vector<4x8x32xf32> to vector<1x8x32xf32>
    %155 = vector.shape_cast %154 : vector<1x8x32xf32> to vector<8x32xf32>
    %156 = vector.extract_strided_slice %153 {offsets = [1, 0, 0], sizes = [1, 8, 32], strides = [1, 1, 1]} : vector<4x8x32xf32> to vector<1x8x32xf32>
    %157 = vector.shape_cast %156 : vector<1x8x32xf32> to vector<8x32xf32>
    %158 = arith.addf %155, %157 : vector<8x32xf32>
    %159 = vector.extract_strided_slice %153 {offsets = [2, 0, 0], sizes = [1, 8, 32], strides = [1, 1, 1]} : vector<4x8x32xf32> to vector<1x8x32xf32>
    %160 = vector.shape_cast %159 : vector<1x8x32xf32> to vector<8x32xf32>
    %161 = arith.addf %158, %160 : vector<8x32xf32>
    %162 = vector.extract_strided_slice %153 {offsets = [3, 0, 0], sizes = [1, 8, 32], strides = [1, 1, 1]} : vector<4x8x32xf32> to vector<1x8x32xf32>
    %163 = vector.shape_cast %162 : vector<1x8x32xf32> to vector<8x32xf32>
    %164 = arith.addf %161, %163 : vector<8x32xf32>
    %165 = arith.addf %85, %164 : vector<8x32xf32>
    %c2 = arith.constant 2 : index
    %c0_83 = arith.constant 0 : index
    %c0_84 = arith.constant 0 : index
    %166 = vector.load %arg7[%c2, %c0_83, %c0_84] : memref<8x1x32xf32, #tpu.memory_space<vmem>>, vector<1x1x32xf32>
    %167 = vector.shape_cast %166 : vector<1x1x32xf32> to vector<1x32xf32>
    %c2_85 = arith.constant 2 : index
    %c0_86 = arith.constant 0 : index
    %c0_87 = arith.constant 0 : index
    %168 = vector.load %arg8[%c2_85, %c0_86, %c0_87] : memref<8x1x32xf32, #tpu.memory_space<vmem>>, vector<1x1x32xf32>
    %169 = vector.shape_cast %168 : vector<1x1x32xf32> to vector<1x32xf32>
    %cst_88 = arith.constant dense<0.000000e+00> : vector<8xf32>
    %170 = vector.multi_reduction <add>, %165, %cst_88 [1] : vector<8x32xf32> to vector<8xf32>
    %171 = vector.shape_cast %170 : vector<8xf32> to vector<8x1xf32>
    %cst_89 = arith.constant 3.200000e+01 : f32
    %172 = vector.broadcast %cst_89 : f32 to vector<8x1xf32>
    %173 = arith.divf %171, %172 : vector<8x1xf32>
    %174 = vector.broadcast %173 : vector<8x1xf32> to vector<8x32xf32>
    %175 = arith.subf %165, %174 : vector<8x32xf32>
    %176 = arith.mulf %175, %175 : vector<8x32xf32>
    %cst_90 = arith.constant dense<0.000000e+00> : vector<8xf32>
    %177 = vector.multi_reduction <add>, %176, %cst_90 [1] : vector<8x32xf32> to vector<8xf32>
    %178 = vector.shape_cast %177 : vector<8xf32> to vector<8x1xf32>
    %cst_91 = arith.constant 3.200000e+01 : f32
    %179 = vector.broadcast %cst_91 : f32 to vector<8x1xf32>
    %180 = arith.divf %178, %179 : vector<8x1xf32>
    %181 = vector.broadcast %173 : vector<8x1xf32> to vector<8x32xf32>
    %182 = arith.subf %165, %181 : vector<8x32xf32>
    %cst_92 = arith.constant 9.99999974E-6 : f32
    %183 = vector.broadcast %cst_92 : f32 to vector<8x1xf32>
    %184 = arith.addf %180, %183 : vector<8x1xf32>
    %185 = math.rsqrt %184 : vector<8x1xf32>
    %186 = vector.broadcast %185 : vector<8x1xf32> to vector<8x32xf32>
    %187 = arith.mulf %182, %186 : vector<8x32xf32>
    %188 = vector.broadcast %167 : vector<1x32xf32> to vector<8x32xf32>
    %189 = arith.mulf %187, %188 : vector<8x32xf32>
    %190 = vector.broadcast %169 : vector<1x32xf32> to vector<8x32xf32>
    %191 = arith.addf %189, %190 : vector<8x32xf32>
    %c2_93 = arith.constant 2 : index
    %c0_94 = arith.constant 0 : index
    %c0_95 = arith.constant 0 : index
    %c0_96 = arith.constant 0 : index
    %192 = vector.load %arg9[%c2_93, %c0_94, %c0_95, %c0_96] : memref<5x4x32x8xbf16, #tpu.memory_space<vmem>>, vector<1x4x32x8xbf16>
    %193 = vector.shape_cast %192 : vector<1x4x32x8xbf16> to vector<4x32x8xbf16>
    %c2_97 = arith.constant 2 : index
    %c0_98 = arith.constant 0 : index
    %c0_99 = arith.constant 0 : index
    %c0_100 = arith.constant 0 : index
    %194 = vector.load %arg10[%c2_97, %c0_98, %c0_99, %c0_100] : memref<5x4x32x8xbf16, #tpu.memory_space<vmem>>, vector<1x4x32x8xbf16>
    %195 = vector.shape_cast %194 : vector<1x4x32x8xbf16> to vector<4x32x8xbf16>
    %c2_101 = arith.constant 2 : index
    %c0_102 = arith.constant 0 : index
    %c0_103 = arith.constant 0 : index
    %c0_104 = arith.constant 0 : index
    %196 = vector.load %arg11[%c2_101, %c0_102, %c0_103, %c0_104] : memref<5x4x32x8xbf16, #tpu.memory_space<vmem>>, vector<1x4x32x8xbf16>
    %197 = vector.shape_cast %196 : vector<1x4x32x8xbf16> to vector<4x32x8xbf16>
    %c2_105 = arith.constant 2 : index
    %c0_106 = arith.constant 0 : index
    %c0_107 = arith.constant 0 : index
    %c0_108 = arith.constant 0 : index
    %198 = vector.load %arg12[%c2_105, %c0_106, %c0_107, %c0_108] : memref<5x4x8x32xbf16, #tpu.memory_space<vmem>>, vector<1x4x8x32xbf16>
    %199 = vector.shape_cast %198 : vector<1x4x8x32xbf16> to vector<4x8x32xbf16>
    %200 = vector.shape_cast %191 : vector<8x32xf32> to vector<1x8x32xf32>
    %201 = arith.truncf %200 : vector<1x8x32xf32> to vector<1x8x32xbf16>
    %202 = vector.shape_cast %201 : vector<1x8x32xbf16> to vector<1x8x32xbf16>
    %203 = vector.broadcast %202 : vector<1x8x32xbf16> to vector<4x8x32xbf16>
    %204 = vector.shape_cast %83 : vector<7x32xf32> to vector<1x7x32xf32>
    %205 = arith.truncf %204 : vector<1x7x32xf32> to vector<1x7x32xbf16>
    %206 = vector.shape_cast %205 : vector<1x7x32xbf16> to vector<1x7x32xbf16>
    %207 = vector.broadcast %206 : vector<1x7x32xbf16> to vector<4x7x32xbf16>
    "tpu.trace_start"() <{level = 10 : i32, message = "hsd,hde->hse"}> : () -> ()
    %cst_109 = arith.constant dense<0.000000e+00> : vector<4x8x8xf32>
    %208 = tpu.matmul %203, %193, %cst_109 {dimension_numbers = #tpu.dot_dimension_numbers<[2], [1], [1], [2], [0, 0, 0, 1, 1, 2], [0], [0]>} : vector<4x8x32xbf16>, vector<4x32x8xbf16>, vector<4x8x8xf32> -> vector<4x8x8xf32>
    %cst_110 = arith.constant dense<0.000000e+00> : vector<4x7x8xf32>
    %209 = tpu.matmul %207, %195, %cst_110 {dimension_numbers = #tpu.dot_dimension_numbers<[2], [1], [1], [2], [0, 0, 0, 1, 1, 2], [0], [0]>} : vector<4x7x32xbf16>, vector<4x32x8xbf16>, vector<4x7x8xf32> -> vector<4x7x8xf32>
    %cst_111 = arith.constant dense<0.000000e+00> : vector<4x7x8xf32>
    %210 = tpu.matmul %207, %197, %cst_111 {dimension_numbers = #tpu.dot_dimension_numbers<[2], [1], [1], [2], [0, 0, 0, 1, 1, 2], [0], [0]>} : vector<4x7x32xbf16>, vector<4x32x8xbf16>, vector<4x7x8xf32> -> vector<4x7x8xf32>
    "tpu.trace_stop"() : () -> ()
    %211 = arith.truncf %208 : vector<4x8x8xf32> to vector<4x8x8xbf16>
    %212 = arith.truncf %209 : vector<4x7x8xf32> to vector<4x7x8xbf16>
    "tpu.trace_start"() <{level = 10 : i32, message = "hqe,hke->hqk"}> : () -> ()
    %cst_112 = arith.constant dense<0.000000e+00> : vector<4x8x7xf32>
    %213 = tpu.matmul %211, %212, %cst_112 {dimension_numbers = #tpu.dot_dimension_numbers<[2], [2], [1], [1], [0, 0, 0, 1, 1, 1], [0], [0]>} : vector<4x8x8xbf16>, vector<4x7x8xbf16>, vector<4x8x7xf32> -> vector<4x8x7xf32>
    "tpu.trace_stop"() : () -> ()
    %cst_113 = arith.constant dense<0xFF800000> : vector<4x8xf32>
    %214 = vector.multi_reduction <maximumf>, %213, %cst_113 [2] : vector<4x8x7xf32> to vector<4x8xf32>
    %215 = vector.shape_cast %214 : vector<4x8xf32> to vector<4x8x1xf32>
    %216 = vector.broadcast %215 : vector<4x8x1xf32> to vector<4x8x7xf32>
    %217 = arith.subf %213, %216 : vector<4x8x7xf32>
    %218 = math.exp %217 : vector<4x8x7xf32>
    %cst_114 = arith.constant dense<0.000000e+00> : vector<4x8xf32>
    %219 = vector.multi_reduction <add>, %218, %cst_114 [2] : vector<4x8x7xf32> to vector<4x8xf32>
    %220 = vector.shape_cast %219 : vector<4x8xf32> to vector<4x8x1xf32>
    %221 = tpu.reciprocal %220 {approx = true} : vector<4x8x1xf32> -> vector<4x8x1xf32>
    %222 = vector.broadcast %221 : vector<4x8x1xf32> to vector<4x8x7xf32>
    %223 = arith.mulf %218, %222 : vector<4x8x7xf32>
    %224 = arith.truncf %223 : vector<4x8x7xf32> to vector<4x8x7xbf16>
    %225 = arith.truncf %210 : vector<4x7x8xf32> to vector<4x7x8xbf16>
    "tpu.trace_start"() <{level = 10 : i32, message = "hqk,hke->hqe"}> : () -> ()
    %cst_115 = arith.constant dense<0.000000e+00> : vector<4x8x8xf32>
    %226 = tpu.matmul %224, %225, %cst_115 {dimension_numbers = #tpu.dot_dimension_numbers<[2], [1], [1], [2], [0, 0, 0, 1, 1, 2], [0], [0]>} : vector<4x8x7xbf16>, vector<4x7x8xbf16>, vector<4x8x8xf32> -> vector<4x8x8xf32>
    "tpu.trace_stop"() : () -> ()
    %227 = arith.truncf %226 : vector<4x8x8xf32> to vector<4x8x8xbf16>
    "tpu.trace_start"() <{level = 10 : i32, message = "hqe,hed->hqd"}> : () -> ()
    %cst_116 = arith.constant dense<0.000000e+00> : vector<4x8x32xf32>
    %228 = tpu.matmul %227, %199, %cst_116 {dimension_numbers = #tpu.dot_dimension_numbers<[2], [1], [1], [2], [0, 0, 0, 1, 1, 2], [0], [0]>} : vector<4x8x8xbf16>, vector<4x8x32xbf16>, vector<4x8x32xf32> -> vector<4x8x32xf32>
    "tpu.trace_stop"() : () -> ()
    %229 = vector.extract_strided_slice %228 {offsets = [0, 0, 0], sizes = [1, 8, 32], strides = [1, 1, 1]} : vector<4x8x32xf32> to vector<1x8x32xf32>
    %230 = vector.shape_cast %229 : vector<1x8x32xf32> to vector<8x32xf32>
    %231 = vector.extract_strided_slice %228 {offsets = [1, 0, 0], sizes = [1, 8, 32], strides = [1, 1, 1]} : vector<4x8x32xf32> to vector<1x8x32xf32>
    %232 = vector.shape_cast %231 : vector<1x8x32xf32> to vector<8x32xf32>
    %233 = arith.addf %230, %232 : vector<8x32xf32>
    %234 = vector.extract_strided_slice %228 {offsets = [2, 0, 0], sizes = [1, 8, 32], strides = [1, 1, 1]} : vector<4x8x32xf32> to vector<1x8x32xf32>
    %235 = vector.shape_cast %234 : vector<1x8x32xf32> to vector<8x32xf32>
    %236 = arith.addf %233, %235 : vector<8x32xf32>
    %237 = vector.extract_strided_slice %228 {offsets = [3, 0, 0], sizes = [1, 8, 32], strides = [1, 1, 1]} : vector<4x8x32xf32> to vector<1x8x32xf32>
    %238 = vector.shape_cast %237 : vector<1x8x32xf32> to vector<8x32xf32>
    %239 = arith.addf %236, %238 : vector<8x32xf32>
    %240 = arith.addf %165, %239 : vector<8x32xf32>
    %c3 = arith.constant 3 : index
    %c0_117 = arith.constant 0 : index
    %c0_118 = arith.constant 0 : index
    %241 = vector.load %arg7[%c3, %c0_117, %c0_118] : memref<8x1x32xf32, #tpu.memory_space<vmem>>, vector<1x1x32xf32>
    %242 = vector.shape_cast %241 : vector<1x1x32xf32> to vector<1x32xf32>
    %c3_119 = arith.constant 3 : index
    %c0_120 = arith.constant 0 : index
    %c0_121 = arith.constant 0 : index
    %243 = vector.load %arg8[%c3_119, %c0_120, %c0_121] : memref<8x1x32xf32, #tpu.memory_space<vmem>>, vector<1x1x32xf32>
    %244 = vector.shape_cast %243 : vector<1x1x32xf32> to vector<1x32xf32>
    %cst_122 = arith.constant dense<0.000000e+00> : vector<8xf32>
    %245 = vector.multi_reduction <add>, %240, %cst_122 [1] : vector<8x32xf32> to vector<8xf32>
    %246 = vector.shape_cast %245 : vector<8xf32> to vector<8x1xf32>
    %cst_123 = arith.constant 3.200000e+01 : f32
    %247 = vector.broadcast %cst_123 : f32 to vector<8x1xf32>
    %248 = arith.divf %246, %247 : vector<8x1xf32>
    %249 = vector.broadcast %248 : vector<8x1xf32> to vector<8x32xf32>
    %250 = arith.subf %240, %249 : vector<8x32xf32>
    %251 = arith.mulf %250, %250 : vector<8x32xf32>
    %cst_124 = arith.constant dense<0.000000e+00> : vector<8xf32>
    %252 = vector.multi_reduction <add>, %251, %cst_124 [1] : vector<8x32xf32> to vector<8xf32>
    %253 = vector.shape_cast %252 : vector<8xf32> to vector<8x1xf32>
    %cst_125 = arith.constant 3.200000e+01 : f32
    %254 = vector.broadcast %cst_125 : f32 to vector<8x1xf32>
    %255 = arith.divf %253, %254 : vector<8x1xf32>
    %256 = vector.broadcast %248 : vector<8x1xf32> to vector<8x32xf32>
    %257 = arith.subf %240, %256 : vector<8x32xf32>
    %cst_126 = arith.constant 9.99999974E-6 : f32
    %258 = vector.broadcast %cst_126 : f32 to vector<8x1xf32>
    %259 = arith.addf %255, %258 : vector<8x1xf32>
    %260 = math.rsqrt %259 : vector<8x1xf32>
    %261 = vector.broadcast %260 : vector<8x1xf32> to vector<8x32xf32>
    %262 = arith.mulf %257, %261 : vector<8x32xf32>
    %263 = vector.broadcast %242 : vector<1x32xf32> to vector<8x32xf32>
    %264 = arith.mulf %262, %263 : vector<8x32xf32>
    %265 = vector.broadcast %244 : vector<1x32xf32> to vector<8x32xf32>
    %266 = arith.addf %264, %265 : vector<8x32xf32>
    %c0_127 = arith.constant 0 : index
    %c0_128 = arith.constant 0 : index
    %c0_129 = arith.constant 0 : index
    %267 = vector.load %arg13[%c0_127, %c0_128, %c0_129] : memref<2x32x64xbf16, #tpu.memory_space<vmem>>, vector<1x32x64xbf16>
    %268 = vector.shape_cast %267 : vector<1x32x64xbf16> to vector<32x64xbf16>
    %c0_130 = arith.constant 0 : index
    %c0_131 = arith.constant 0 : index
    %c0_132 = arith.constant 0 : index
    %269 = vector.load %arg14[%c0_130, %c0_131, %c0_132] : memref<2x1x64xf32, #tpu.memory_space<vmem>>, vector<1x1x64xf32>
    %270 = vector.shape_cast %269 : vector<1x1x64xf32> to vector<1x64xf32>
    %c0_133 = arith.constant 0 : index
    %c0_134 = arith.constant 0 : index
    %c0_135 = arith.constant 0 : index
    %271 = vector.load %arg15[%c0_133, %c0_134, %c0_135] : memref<2x64x32xbf16, #tpu.memory_space<vmem>>, vector<1x64x32xbf16>
    %272 = vector.shape_cast %271 : vector<1x64x32xbf16> to vector<64x32xbf16>
    %c0_136 = arith.constant 0 : index
    %c0_137 = arith.constant 0 : index
    %c0_138 = arith.constant 0 : index
    %273 = vector.load %arg16[%c0_136, %c0_137, %c0_138] : memref<2x1x32xf32, #tpu.memory_space<vmem>>, vector<1x1x32xf32>
    %274 = vector.shape_cast %273 : vector<1x1x32xf32> to vector<1x32xf32>
    %275 = arith.truncf %266 : vector<8x32xf32> to vector<8x32xbf16>
    %cst_139 = arith.constant dense<0.000000e+00> : vector<8x64xf32>
    %276 = tpu.matmul %275, %268, %cst_139 {dimension_numbers = #tpu.dot_dimension_numbers<[1], [0], [0], [1], [0, 0, 1, 1], [], []>} : vector<8x32xbf16>, vector<32x64xbf16>, vector<8x64xf32> -> vector<8x64xf32>
    %277 = vector.broadcast %270 : vector<1x64xf32> to vector<8x64xf32>
    %278 = arith.addf %276, %277 : vector<8x64xf32>
    %279 = arith.mulf %278, %278 : vector<8x64xf32>
    %280 = arith.mulf %278, %279 : vector<8x64xf32>
    %cst_140 = arith.constant 4.471500e-02 : f32
    %281 = vector.broadcast %cst_140 : f32 to vector<8x64xf32>
    %282 = arith.mulf %281, %280 : vector<8x64xf32>
    %283 = arith.addf %278, %282 : vector<8x64xf32>
    %cst_141 = arith.constant 0.797884583 : f32
    %284 = vector.broadcast %cst_141 : f32 to vector<8x64xf32>
    %285 = arith.mulf %284, %283 : vector<8x64xf32>
    %286 = math.tanh %285 : vector<8x64xf32>
    %cst_142 = arith.constant 1.000000e+00 : f32
    %287 = vector.broadcast %cst_142 : f32 to vector<8x64xf32>
    %288 = arith.addf %287, %286 : vector<8x64xf32>
    %cst_143 = arith.constant 5.000000e-01 : f32
    %289 = vector.broadcast %cst_143 : f32 to vector<8x64xf32>
    %290 = arith.mulf %289, %288 : vector<8x64xf32>
    %291 = arith.mulf %278, %290 : vector<8x64xf32>
    %292 = arith.truncf %291 : vector<8x64xf32> to vector<8x64xbf16>
    %cst_144 = arith.constant dense<0.000000e+00> : vector<8x32xf32>
    %293 = tpu.matmul %292, %272, %cst_144 {dimension_numbers = #tpu.dot_dimension_numbers<[1], [0], [0], [1], [0, 0, 1, 1], [], []>} : vector<8x64xbf16>, vector<64x32xbf16>, vector<8x32xf32> -> vector<8x32xf32>
    %294 = vector.broadcast %274 : vector<1x32xf32> to vector<8x32xf32>
    %295 = arith.addf %293, %294 : vector<8x32xf32>
    %296 = arith.addf %240, %295 : vector<8x32xf32>
    %c4 = arith.constant 4 : index
    %c0_145 = arith.constant 0 : index
    %c0_146 = arith.constant 0 : index
    %297 = vector.load %arg7[%c4, %c0_145, %c0_146] : memref<8x1x32xf32, #tpu.memory_space<vmem>>, vector<1x1x32xf32>
    %298 = vector.shape_cast %297 : vector<1x1x32xf32> to vector<1x32xf32>
    %c4_147 = arith.constant 4 : index
    %c0_148 = arith.constant 0 : index
    %c0_149 = arith.constant 0 : index
    %299 = vector.load %arg8[%c4_147, %c0_148, %c0_149] : memref<8x1x32xf32, #tpu.memory_space<vmem>>, vector<1x1x32xf32>
    %300 = vector.shape_cast %299 : vector<1x1x32xf32> to vector<1x32xf32>
    %cst_150 = arith.constant dense<0.000000e+00> : vector<8xf32>
    %301 = vector.multi_reduction <add>, %296, %cst_150 [1] : vector<8x32xf32> to vector<8xf32>
    %302 = vector.shape_cast %301 : vector<8xf32> to vector<8x1xf32>
    %cst_151 = arith.constant 3.200000e+01 : f32
    %303 = vector.broadcast %cst_151 : f32 to vector<8x1xf32>
    %304 = arith.divf %302, %303 : vector<8x1xf32>
    %305 = vector.broadcast %304 : vector<8x1xf32> to vector<8x32xf32>
    %306 = arith.subf %296, %305 : vector<8x32xf32>
    %307 = arith.mulf %306, %306 : vector<8x32xf32>
    %cst_152 = arith.constant dense<0.000000e+00> : vector<8xf32>
    %308 = vector.multi_reduction <add>, %307, %cst_152 [1] : vector<8x32xf32> to vector<8xf32>
    %309 = vector.shape_cast %308 : vector<8xf32> to vector<8x1xf32>
    %cst_153 = arith.constant 3.200000e+01 : f32
    %310 = vector.broadcast %cst_153 : f32 to vector<8x1xf32>
    %311 = arith.divf %309, %310 : vector<8x1xf32>
    %312 = vector.broadcast %304 : vector<8x1xf32> to vector<8x32xf32>
    %313 = arith.subf %296, %312 : vector<8x32xf32>
    %cst_154 = arith.constant 9.99999974E-6 : f32
    %314 = vector.broadcast %cst_154 : f32 to vector<8x1xf32>
    %315 = arith.addf %311, %314 : vector<8x1xf32>
    %316 = math.rsqrt %315 : vector<8x1xf32>
    %317 = vector.broadcast %316 : vector<8x1xf32> to vector<8x32xf32>
    %318 = arith.mulf %313, %317 : vector<8x32xf32>
    %319 = vector.broadcast %298 : vector<1x32xf32> to vector<8x32xf32>
    %320 = arith.mulf %318, %319 : vector<8x32xf32>
    %321 = vector.broadcast %300 : vector<1x32xf32> to vector<8x32xf32>
    %322 = arith.addf %320, %321 : vector<8x32xf32>
    %c3_155 = arith.constant 3 : index
    %c0_156 = arith.constant 0 : index
    %c0_157 = arith.constant 0 : index
    %c0_158 = arith.constant 0 : index
    %323 = vector.load %arg9[%c3_155, %c0_156, %c0_157, %c0_158] : memref<5x4x32x8xbf16, #tpu.memory_space<vmem>>, vector<1x4x32x8xbf16>
    %324 = vector.shape_cast %323 : vector<1x4x32x8xbf16> to vector<4x32x8xbf16>
    %c3_159 = arith.constant 3 : index
    %c0_160 = arith.constant 0 : index
    %c0_161 = arith.constant 0 : index
    %c0_162 = arith.constant 0 : index
    %325 = vector.load %arg10[%c3_159, %c0_160, %c0_161, %c0_162] : memref<5x4x32x8xbf16, #tpu.memory_space<vmem>>, vector<1x4x32x8xbf16>
    %326 = vector.shape_cast %325 : vector<1x4x32x8xbf16> to vector<4x32x8xbf16>
    %c3_163 = arith.constant 3 : index
    %c0_164 = arith.constant 0 : index
    %c0_165 = arith.constant 0 : index
    %c0_166 = arith.constant 0 : index
    %327 = vector.load %arg11[%c3_163, %c0_164, %c0_165, %c0_166] : memref<5x4x32x8xbf16, #tpu.memory_space<vmem>>, vector<1x4x32x8xbf16>
    %328 = vector.shape_cast %327 : vector<1x4x32x8xbf16> to vector<4x32x8xbf16>
    %c3_167 = arith.constant 3 : index
    %c0_168 = arith.constant 0 : index
    %c0_169 = arith.constant 0 : index
    %c0_170 = arith.constant 0 : index
    %329 = vector.load %arg12[%c3_167, %c0_168, %c0_169, %c0_170] : memref<5x4x8x32xbf16, #tpu.memory_space<vmem>>, vector<1x4x8x32xbf16>
    %330 = vector.shape_cast %329 : vector<1x4x8x32xbf16> to vector<4x8x32xbf16>
    %331 = vector.shape_cast %322 : vector<8x32xf32> to vector<1x8x32xf32>
    %332 = arith.truncf %331 : vector<1x8x32xf32> to vector<1x8x32xbf16>
    %333 = vector.shape_cast %332 : vector<1x8x32xbf16> to vector<1x8x32xbf16>
    %334 = vector.broadcast %333 : vector<1x8x32xbf16> to vector<4x8x32xbf16>
    %335 = vector.shape_cast %322 : vector<8x32xf32> to vector<1x8x32xf32>
    %336 = arith.truncf %335 : vector<1x8x32xf32> to vector<1x8x32xbf16>
    %337 = vector.shape_cast %336 : vector<1x8x32xbf16> to vector<1x8x32xbf16>
    %338 = vector.broadcast %337 : vector<1x8x32xbf16> to vector<4x8x32xbf16>
    "tpu.trace_start"() <{level = 10 : i32, message = "hsd,hde->hse"}> : () -> ()
    %cst_171 = arith.constant dense<0.000000e+00> : vector<4x8x8xf32>
    %339 = tpu.matmul %334, %324, %cst_171 {dimension_numbers = #tpu.dot_dimension_numbers<[2], [1], [1], [2], [0, 0, 0, 1, 1, 2], [0], [0]>} : vector<4x8x32xbf16>, vector<4x32x8xbf16>, vector<4x8x8xf32> -> vector<4x8x8xf32>
    %cst_172 = arith.constant dense<0.000000e+00> : vector<4x8x8xf32>
    %340 = tpu.matmul %338, %326, %cst_172 {dimension_numbers = #tpu.dot_dimension_numbers<[2], [1], [1], [2], [0, 0, 0, 1, 1, 2], [0], [0]>} : vector<4x8x32xbf16>, vector<4x32x8xbf16>, vector<4x8x8xf32> -> vector<4x8x8xf32>
    %cst_173 = arith.constant dense<0.000000e+00> : vector<4x8x8xf32>
    %341 = tpu.matmul %338, %328, %cst_173 {dimension_numbers = #tpu.dot_dimension_numbers<[2], [1], [1], [2], [0, 0, 0, 1, 1, 2], [0], [0]>} : vector<4x8x32xbf16>, vector<4x32x8xbf16>, vector<4x8x8xf32> -> vector<4x8x8xf32>
    "tpu.trace_stop"() : () -> ()
    %342 = arith.truncf %339 : vector<4x8x8xf32> to vector<4x8x8xbf16>
    %343 = arith.truncf %340 : vector<4x8x8xf32> to vector<4x8x8xbf16>
    "tpu.trace_start"() <{level = 10 : i32, message = "hqe,hke->hqk"}> : () -> ()
    %cst_174 = arith.constant dense<0.000000e+00> : vector<4x8x8xf32>
    %344 = tpu.matmul %342, %343, %cst_174 {dimension_numbers = #tpu.dot_dimension_numbers<[2], [2], [1], [1], [0, 0, 0, 1, 1, 1], [0], [0]>} : vector<4x8x8xbf16>, vector<4x8x8xbf16>, vector<4x8x8xf32> -> vector<4x8x8xf32>
    "tpu.trace_stop"() : () -> ()
    %345 = vector.shape_cast %87 : vector<8x8xf32> to vector<1x8x8xf32>
    %346 = vector.broadcast %345 : vector<1x8x8xf32> to vector<4x8x8xf32>
    %347 = arith.addf %344, %346 : vector<4x8x8xf32>
    %cst_175 = arith.constant dense<0xFF800000> : vector<4x8xf32>
    %348 = vector.multi_reduction <maximumf>, %347, %cst_175 [2] : vector<4x8x8xf32> to vector<4x8xf32>
    %349 = vector.shape_cast %348 : vector<4x8xf32> to vector<4x8x1xf32>
    %350 = vector.broadcast %349 : vector<4x8x1xf32> to vector<4x8x8xf32>
    %351 = arith.subf %347, %350 : vector<4x8x8xf32>
    %352 = math.exp %351 : vector<4x8x8xf32>
    %cst_176 = arith.constant dense<0.000000e+00> : vector<4x8xf32>
    %353 = vector.multi_reduction <add>, %352, %cst_176 [2] : vector<4x8x8xf32> to vector<4x8xf32>
    %354 = vector.shape_cast %353 : vector<4x8xf32> to vector<4x8x1xf32>
    %355 = tpu.reciprocal %354 {approx = true} : vector<4x8x1xf32> -> vector<4x8x1xf32>
    %356 = vector.broadcast %355 : vector<4x8x1xf32> to vector<4x8x8xf32>
    %357 = arith.mulf %352, %356 : vector<4x8x8xf32>
    %358 = arith.truncf %357 : vector<4x8x8xf32> to vector<4x8x8xbf16>
    %359 = arith.truncf %341 : vector<4x8x8xf32> to vector<4x8x8xbf16>
    "tpu.trace_start"() <{level = 10 : i32, message = "hqk,hke->hqe"}> : () -> ()
    %cst_177 = arith.constant dense<0.000000e+00> : vector<4x8x8xf32>
    %360 = tpu.matmul %358, %359, %cst_177 {dimension_numbers = #tpu.dot_dimension_numbers<[2], [1], [1], [2], [0, 0, 0, 1, 1, 2], [0], [0]>} : vector<4x8x8xbf16>, vector<4x8x8xbf16>, vector<4x8x8xf32> -> vector<4x8x8xf32>
    "tpu.trace_stop"() : () -> ()
    %361 = arith.truncf %360 : vector<4x8x8xf32> to vector<4x8x8xbf16>
    "tpu.trace_start"() <{level = 10 : i32, message = "hqe,hed->hqd"}> : () -> ()
    %cst_178 = arith.constant dense<0.000000e+00> : vector<4x8x32xf32>
    %362 = tpu.matmul %361, %330, %cst_178 {dimension_numbers = #tpu.dot_dimension_numbers<[2], [1], [1], [2], [0, 0, 0, 1, 1, 2], [0], [0]>} : vector<4x8x8xbf16>, vector<4x8x32xbf16>, vector<4x8x32xf32> -> vector<4x8x32xf32>
    "tpu.trace_stop"() : () -> ()
    %363 = vector.extract_strided_slice %362 {offsets = [0, 0, 0], sizes = [1, 8, 32], strides = [1, 1, 1]} : vector<4x8x32xf32> to vector<1x8x32xf32>
    %364 = vector.shape_cast %363 : vector<1x8x32xf32> to vector<8x32xf32>
    %365 = vector.extract_strided_slice %362 {offsets = [1, 0, 0], sizes = [1, 8, 32], strides = [1, 1, 1]} : vector<4x8x32xf32> to vector<1x8x32xf32>
    %366 = vector.shape_cast %365 : vector<1x8x32xf32> to vector<8x32xf32>
    %367 = arith.addf %364, %366 : vector<8x32xf32>
    %368 = vector.extract_strided_slice %362 {offsets = [2, 0, 0], sizes = [1, 8, 32], strides = [1, 1, 1]} : vector<4x8x32xf32> to vector<1x8x32xf32>
    %369 = vector.shape_cast %368 : vector<1x8x32xf32> to vector<8x32xf32>
    %370 = arith.addf %367, %369 : vector<8x32xf32>
    %371 = vector.extract_strided_slice %362 {offsets = [3, 0, 0], sizes = [1, 8, 32], strides = [1, 1, 1]} : vector<4x8x32xf32> to vector<1x8x32xf32>
    %372 = vector.shape_cast %371 : vector<1x8x32xf32> to vector<8x32xf32>
    %373 = arith.addf %370, %372 : vector<8x32xf32>
    %374 = arith.addf %296, %373 : vector<8x32xf32>
    %c5 = arith.constant 5 : index
    %c0_179 = arith.constant 0 : index
    %c0_180 = arith.constant 0 : index
    %375 = vector.load %arg7[%c5, %c0_179, %c0_180] : memref<8x1x32xf32, #tpu.memory_space<vmem>>, vector<1x1x32xf32>
    %376 = vector.shape_cast %375 : vector<1x1x32xf32> to vector<1x32xf32>
    %c5_181 = arith.constant 5 : index
    %c0_182 = arith.constant 0 : index
    %c0_183 = arith.constant 0 : index
    %377 = vector.load %arg8[%c5_181, %c0_182, %c0_183] : memref<8x1x32xf32, #tpu.memory_space<vmem>>, vector<1x1x32xf32>
    %378 = vector.shape_cast %377 : vector<1x1x32xf32> to vector<1x32xf32>
    %cst_184 = arith.constant dense<0.000000e+00> : vector<8xf32>
    %379 = vector.multi_reduction <add>, %374, %cst_184 [1] : vector<8x32xf32> to vector<8xf32>
    %380 = vector.shape_cast %379 : vector<8xf32> to vector<8x1xf32>
    %cst_185 = arith.constant 3.200000e+01 : f32
    %381 = vector.broadcast %cst_185 : f32 to vector<8x1xf32>
    %382 = arith.divf %380, %381 : vector<8x1xf32>
    %383 = vector.broadcast %382 : vector<8x1xf32> to vector<8x32xf32>
    %384 = arith.subf %374, %383 : vector<8x32xf32>
    %385 = arith.mulf %384, %384 : vector<8x32xf32>
    %cst_186 = arith.constant dense<0.000000e+00> : vector<8xf32>
    %386 = vector.multi_reduction <add>, %385, %cst_186 [1] : vector<8x32xf32> to vector<8xf32>
    %387 = vector.shape_cast %386 : vector<8xf32> to vector<8x1xf32>
    %cst_187 = arith.constant 3.200000e+01 : f32
    %388 = vector.broadcast %cst_187 : f32 to vector<8x1xf32>
    %389 = arith.divf %387, %388 : vector<8x1xf32>
    %390 = vector.broadcast %382 : vector<8x1xf32> to vector<8x32xf32>
    %391 = arith.subf %374, %390 : vector<8x32xf32>
    %cst_188 = arith.constant 9.99999974E-6 : f32
    %392 = vector.broadcast %cst_188 : f32 to vector<8x1xf32>
    %393 = arith.addf %389, %392 : vector<8x1xf32>
    %394 = math.rsqrt %393 : vector<8x1xf32>
    %395 = vector.broadcast %394 : vector<8x1xf32> to vector<8x32xf32>
    %396 = arith.mulf %391, %395 : vector<8x32xf32>
    %397 = vector.broadcast %376 : vector<1x32xf32> to vector<8x32xf32>
    %398 = arith.mulf %396, %397 : vector<8x32xf32>
    %399 = vector.broadcast %378 : vector<1x32xf32> to vector<8x32xf32>
    %400 = arith.addf %398, %399 : vector<8x32xf32>
    %c4_189 = arith.constant 4 : index
    %c0_190 = arith.constant 0 : index
    %c0_191 = arith.constant 0 : index
    %c0_192 = arith.constant 0 : index
    %401 = vector.load %arg9[%c4_189, %c0_190, %c0_191, %c0_192] : memref<5x4x32x8xbf16, #tpu.memory_space<vmem>>, vector<1x4x32x8xbf16>
    %402 = vector.shape_cast %401 : vector<1x4x32x8xbf16> to vector<4x32x8xbf16>
    %c4_193 = arith.constant 4 : index
    %c0_194 = arith.constant 0 : index
    %c0_195 = arith.constant 0 : index
    %c0_196 = arith.constant 0 : index
    %403 = vector.load %arg10[%c4_193, %c0_194, %c0_195, %c0_196] : memref<5x4x32x8xbf16, #tpu.memory_space<vmem>>, vector<1x4x32x8xbf16>
    %404 = vector.shape_cast %403 : vector<1x4x32x8xbf16> to vector<4x32x8xbf16>
    %c4_197 = arith.constant 4 : index
    %c0_198 = arith.constant 0 : index
    %c0_199 = arith.constant 0 : index
    %c0_200 = arith.constant 0 : index
    %405 = vector.load %arg11[%c4_197, %c0_198, %c0_199, %c0_200] : memref<5x4x32x8xbf16, #tpu.memory_space<vmem>>, vector<1x4x32x8xbf16>
    %406 = vector.shape_cast %405 : vector<1x4x32x8xbf16> to vector<4x32x8xbf16>
    %c4_201 = arith.constant 4 : index
    %c0_202 = arith.constant 0 : index
    %c0_203 = arith.constant 0 : index
    %c0_204 = arith.constant 0 : index
    %407 = vector.load %arg12[%c4_201, %c0_202, %c0_203, %c0_204] : memref<5x4x8x32xbf16, #tpu.memory_space<vmem>>, vector<1x4x8x32xbf16>
    %408 = vector.shape_cast %407 : vector<1x4x8x32xbf16> to vector<4x8x32xbf16>
    %409 = vector.shape_cast %400 : vector<8x32xf32> to vector<1x8x32xf32>
    %410 = arith.truncf %409 : vector<1x8x32xf32> to vector<1x8x32xbf16>
    %411 = vector.shape_cast %410 : vector<1x8x32xbf16> to vector<1x8x32xbf16>
    %412 = vector.broadcast %411 : vector<1x8x32xbf16> to vector<4x8x32xbf16>
    %413 = vector.shape_cast %83 : vector<7x32xf32> to vector<1x7x32xf32>
    %414 = arith.truncf %413 : vector<1x7x32xf32> to vector<1x7x32xbf16>
    %415 = vector.shape_cast %414 : vector<1x7x32xbf16> to vector<1x7x32xbf16>
    %416 = vector.broadcast %415 : vector<1x7x32xbf16> to vector<4x7x32xbf16>
    "tpu.trace_start"() <{level = 10 : i32, message = "hsd,hde->hse"}> : () -> ()
    %cst_205 = arith.constant dense<0.000000e+00> : vector<4x8x8xf32>
    %417 = tpu.matmul %412, %402, %cst_205 {dimension_numbers = #tpu.dot_dimension_numbers<[2], [1], [1], [2], [0, 0, 0, 1, 1, 2], [0], [0]>} : vector<4x8x32xbf16>, vector<4x32x8xbf16>, vector<4x8x8xf32> -> vector<4x8x8xf32>
    %cst_206 = arith.constant dense<0.000000e+00> : vector<4x7x8xf32>
    %418 = tpu.matmul %416, %404, %cst_206 {dimension_numbers = #tpu.dot_dimension_numbers<[2], [1], [1], [2], [0, 0, 0, 1, 1, 2], [0], [0]>} : vector<4x7x32xbf16>, vector<4x32x8xbf16>, vector<4x7x8xf32> -> vector<4x7x8xf32>
    %cst_207 = arith.constant dense<0.000000e+00> : vector<4x7x8xf32>
    %419 = tpu.matmul %416, %406, %cst_207 {dimension_numbers = #tpu.dot_dimension_numbers<[2], [1], [1], [2], [0, 0, 0, 1, 1, 2], [0], [0]>} : vector<4x7x32xbf16>, vector<4x32x8xbf16>, vector<4x7x8xf32> -> vector<4x7x8xf32>
    "tpu.trace_stop"() : () -> ()
    %420 = arith.truncf %417 : vector<4x8x8xf32> to vector<4x8x8xbf16>
    %421 = arith.truncf %418 : vector<4x7x8xf32> to vector<4x7x8xbf16>
    "tpu.trace_start"() <{level = 10 : i32, message = "hqe,hke->hqk"}> : () -> ()
    %cst_208 = arith.constant dense<0.000000e+00> : vector<4x8x7xf32>
    %422 = tpu.matmul %420, %421, %cst_208 {dimension_numbers = #tpu.dot_dimension_numbers<[2], [2], [1], [1], [0, 0, 0, 1, 1, 1], [0], [0]>} : vector<4x8x8xbf16>, vector<4x7x8xbf16>, vector<4x8x7xf32> -> vector<4x8x7xf32>
    "tpu.trace_stop"() : () -> ()
    %cst_209 = arith.constant dense<0xFF800000> : vector<4x8xf32>
    %423 = vector.multi_reduction <maximumf>, %422, %cst_209 [2] : vector<4x8x7xf32> to vector<4x8xf32>
    %424 = vector.shape_cast %423 : vector<4x8xf32> to vector<4x8x1xf32>
    %425 = vector.broadcast %424 : vector<4x8x1xf32> to vector<4x8x7xf32>
    %426 = arith.subf %422, %425 : vector<4x8x7xf32>
    %427 = math.exp %426 : vector<4x8x7xf32>
    %cst_210 = arith.constant dense<0.000000e+00> : vector<4x8xf32>
    %428 = vector.multi_reduction <add>, %427, %cst_210 [2] : vector<4x8x7xf32> to vector<4x8xf32>
    %429 = vector.shape_cast %428 : vector<4x8xf32> to vector<4x8x1xf32>
    %430 = tpu.reciprocal %429 {approx = true} : vector<4x8x1xf32> -> vector<4x8x1xf32>
    %431 = vector.broadcast %430 : vector<4x8x1xf32> to vector<4x8x7xf32>
    %432 = arith.mulf %427, %431 : vector<4x8x7xf32>
    %433 = arith.truncf %432 : vector<4x8x7xf32> to vector<4x8x7xbf16>
    %434 = arith.truncf %419 : vector<4x7x8xf32> to vector<4x7x8xbf16>
    "tpu.trace_start"() <{level = 10 : i32, message = "hqk,hke->hqe"}> : () -> ()
    %cst_211 = arith.constant dense<0.000000e+00> : vector<4x8x8xf32>
    %435 = tpu.matmul %433, %434, %cst_211 {dimension_numbers = #tpu.dot_dimension_numbers<[2], [1], [1], [2], [0, 0, 0, 1, 1, 2], [0], [0]>} : vector<4x8x7xbf16>, vector<4x7x8xbf16>, vector<4x8x8xf32> -> vector<4x8x8xf32>
    "tpu.trace_stop"() : () -> ()
    %436 = arith.truncf %435 : vector<4x8x8xf32> to vector<4x8x8xbf16>
    "tpu.trace_start"() <{level = 10 : i32, message = "hqe,hed->hqd"}> : () -> ()
    %cst_212 = arith.constant dense<0.000000e+00> : vector<4x8x32xf32>
    %437 = tpu.matmul %436, %408, %cst_212 {dimension_numbers = #tpu.dot_dimension_numbers<[2], [1], [1], [2], [0, 0, 0, 1, 1, 2], [0], [0]>} : vector<4x8x8xbf16>, vector<4x8x32xbf16>, vector<4x8x32xf32> -> vector<4x8x32xf32>
    "tpu.trace_stop"() : () -> ()
    %438 = vector.extract_strided_slice %437 {offsets = [0, 0, 0], sizes = [1, 8, 32], strides = [1, 1, 1]} : vector<4x8x32xf32> to vector<1x8x32xf32>
    %439 = vector.shape_cast %438 : vector<1x8x32xf32> to vector<8x32xf32>
    %440 = vector.extract_strided_slice %437 {offsets = [1, 0, 0], sizes = [1, 8, 32], strides = [1, 1, 1]} : vector<4x8x32xf32> to vector<1x8x32xf32>
    %441 = vector.shape_cast %440 : vector<1x8x32xf32> to vector<8x32xf32>
    %442 = arith.addf %439, %441 : vector<8x32xf32>
    %443 = vector.extract_strided_slice %437 {offsets = [2, 0, 0], sizes = [1, 8, 32], strides = [1, 1, 1]} : vector<4x8x32xf32> to vector<1x8x32xf32>
    %444 = vector.shape_cast %443 : vector<1x8x32xf32> to vector<8x32xf32>
    %445 = arith.addf %442, %444 : vector<8x32xf32>
    %446 = vector.extract_strided_slice %437 {offsets = [3, 0, 0], sizes = [1, 8, 32], strides = [1, 1, 1]} : vector<4x8x32xf32> to vector<1x8x32xf32>
    %447 = vector.shape_cast %446 : vector<1x8x32xf32> to vector<8x32xf32>
    %448 = arith.addf %445, %447 : vector<8x32xf32>
    %449 = arith.addf %374, %448 : vector<8x32xf32>
    %c6 = arith.constant 6 : index
    %c0_213 = arith.constant 0 : index
    %c0_214 = arith.constant 0 : index
    %450 = vector.load %arg7[%c6, %c0_213, %c0_214] : memref<8x1x32xf32, #tpu.memory_space<vmem>>, vector<1x1x32xf32>
    %451 = vector.shape_cast %450 : vector<1x1x32xf32> to vector<1x32xf32>
    %c6_215 = arith.constant 6 : index
    %c0_216 = arith.constant 0 : index
    %c0_217 = arith.constant 0 : index
    %452 = vector.load %arg8[%c6_215, %c0_216, %c0_217] : memref<8x1x32xf32, #tpu.memory_space<vmem>>, vector<1x1x32xf32>
    %453 = vector.shape_cast %452 : vector<1x1x32xf32> to vector<1x32xf32>
    %cst_218 = arith.constant dense<0.000000e+00> : vector<8xf32>
    %454 = vector.multi_reduction <add>, %449, %cst_218 [1] : vector<8x32xf32> to vector<8xf32>
    %455 = vector.shape_cast %454 : vector<8xf32> to vector<8x1xf32>
    %cst_219 = arith.constant 3.200000e+01 : f32
    %456 = vector.broadcast %cst_219 : f32 to vector<8x1xf32>
    %457 = arith.divf %455, %456 : vector<8x1xf32>
    %458 = vector.broadcast %457 : vector<8x1xf32> to vector<8x32xf32>
    %459 = arith.subf %449, %458 : vector<8x32xf32>
    %460 = arith.mulf %459, %459 : vector<8x32xf32>
    %cst_220 = arith.constant dense<0.000000e+00> : vector<8xf32>
    %461 = vector.multi_reduction <add>, %460, %cst_220 [1] : vector<8x32xf32> to vector<8xf32>
    %462 = vector.shape_cast %461 : vector<8xf32> to vector<8x1xf32>
    %cst_221 = arith.constant 3.200000e+01 : f32
    %463 = vector.broadcast %cst_221 : f32 to vector<8x1xf32>
    %464 = arith.divf %462, %463 : vector<8x1xf32>
    %465 = vector.broadcast %457 : vector<8x1xf32> to vector<8x32xf32>
    %466 = arith.subf %449, %465 : vector<8x32xf32>
    %cst_222 = arith.constant 9.99999974E-6 : f32
    %467 = vector.broadcast %cst_222 : f32 to vector<8x1xf32>
    %468 = arith.addf %464, %467 : vector<8x1xf32>
    %469 = math.rsqrt %468 : vector<8x1xf32>
    %470 = vector.broadcast %469 : vector<8x1xf32> to vector<8x32xf32>
    %471 = arith.mulf %466, %470 : vector<8x32xf32>
    %472 = vector.broadcast %451 : vector<1x32xf32> to vector<8x32xf32>
    %473 = arith.mulf %471, %472 : vector<8x32xf32>
    %474 = vector.broadcast %453 : vector<1x32xf32> to vector<8x32xf32>
    %475 = arith.addf %473, %474 : vector<8x32xf32>
    %c1_223 = arith.constant 1 : index
    %c0_224 = arith.constant 0 : index
    %c0_225 = arith.constant 0 : index
    %476 = vector.load %arg13[%c1_223, %c0_224, %c0_225] : memref<2x32x64xbf16, #tpu.memory_space<vmem>>, vector<1x32x64xbf16>
    %477 = vector.shape_cast %476 : vector<1x32x64xbf16> to vector<32x64xbf16>
    %c1_226 = arith.constant 1 : index
    %c0_227 = arith.constant 0 : index
    %c0_228 = arith.constant 0 : index
    %478 = vector.load %arg14[%c1_226, %c0_227, %c0_228] : memref<2x1x64xf32, #tpu.memory_space<vmem>>, vector<1x1x64xf32>
    %479 = vector.shape_cast %478 : vector<1x1x64xf32> to vector<1x64xf32>
    %c1_229 = arith.constant 1 : index
    %c0_230 = arith.constant 0 : index
    %c0_231 = arith.constant 0 : index
    %480 = vector.load %arg15[%c1_229, %c0_230, %c0_231] : memref<2x64x32xbf16, #tpu.memory_space<vmem>>, vector<1x64x32xbf16>
    %481 = vector.shape_cast %480 : vector<1x64x32xbf16> to vector<64x32xbf16>
    %c1_232 = arith.constant 1 : index
    %c0_233 = arith.constant 0 : index
    %c0_234 = arith.constant 0 : index
    %482 = vector.load %arg16[%c1_232, %c0_233, %c0_234] : memref<2x1x32xf32, #tpu.memory_space<vmem>>, vector<1x1x32xf32>
    %483 = vector.shape_cast %482 : vector<1x1x32xf32> to vector<1x32xf32>
    %484 = arith.truncf %475 : vector<8x32xf32> to vector<8x32xbf16>
    %cst_235 = arith.constant dense<0.000000e+00> : vector<8x64xf32>
    %485 = tpu.matmul %484, %477, %cst_235 {dimension_numbers = #tpu.dot_dimension_numbers<[1], [0], [0], [1], [0, 0, 1, 1], [], []>} : vector<8x32xbf16>, vector<32x64xbf16>, vector<8x64xf32> -> vector<8x64xf32>
    %486 = vector.broadcast %479 : vector<1x64xf32> to vector<8x64xf32>
    %487 = arith.addf %485, %486 : vector<8x64xf32>
    %488 = arith.mulf %487, %487 : vector<8x64xf32>
    %489 = arith.mulf %487, %488 : vector<8x64xf32>
    %cst_236 = arith.constant 4.471500e-02 : f32
    %490 = vector.broadcast %cst_236 : f32 to vector<8x64xf32>
    %491 = arith.mulf %490, %489 : vector<8x64xf32>
    %492 = arith.addf %487, %491 : vector<8x64xf32>
    %cst_237 = arith.constant 0.797884583 : f32
    %493 = vector.broadcast %cst_237 : f32 to vector<8x64xf32>
    %494 = arith.mulf %493, %492 : vector<8x64xf32>
    %495 = math.tanh %494 : vector<8x64xf32>
    %cst_238 = arith.constant 1.000000e+00 : f32
    %496 = vector.broadcast %cst_238 : f32 to vector<8x64xf32>
    %497 = arith.addf %496, %495 : vector<8x64xf32>
    %cst_239 = arith.constant 5.000000e-01 : f32
    %498 = vector.broadcast %cst_239 : f32 to vector<8x64xf32>
    %499 = arith.mulf %498, %497 : vector<8x64xf32>
    %500 = arith.mulf %487, %499 : vector<8x64xf32>
    %501 = arith.truncf %500 : vector<8x64xf32> to vector<8x64xbf16>
    %cst_240 = arith.constant dense<0.000000e+00> : vector<8x32xf32>
    %502 = tpu.matmul %501, %481, %cst_240 {dimension_numbers = #tpu.dot_dimension_numbers<[1], [0], [0], [1], [0, 0, 1, 1], [], []>} : vector<8x64xbf16>, vector<64x32xbf16>, vector<8x32xf32> -> vector<8x32xf32>
    %503 = vector.broadcast %483 : vector<1x32xf32> to vector<8x32xf32>
    %504 = arith.addf %502, %503 : vector<8x32xf32>
    %505 = arith.addf %449, %504 : vector<8x32xf32>
    %c7 = arith.constant 7 : index
    %c0_241 = arith.constant 0 : index
    %c0_242 = arith.constant 0 : index
    %506 = vector.load %arg7[%c7, %c0_241, %c0_242] : memref<8x1x32xf32, #tpu.memory_space<vmem>>, vector<1x1x32xf32>
    %507 = vector.shape_cast %506 : vector<1x1x32xf32> to vector<1x32xf32>
    %c7_243 = arith.constant 7 : index
    %c0_244 = arith.constant 0 : index
    %c0_245 = arith.constant 0 : index
    %508 = vector.load %arg8[%c7_243, %c0_244, %c0_245] : memref<8x1x32xf32, #tpu.memory_space<vmem>>, vector<1x1x32xf32>
    %509 = vector.shape_cast %508 : vector<1x1x32xf32> to vector<1x32xf32>
    %cst_246 = arith.constant dense<0.000000e+00> : vector<8xf32>
    %510 = vector.multi_reduction <add>, %505, %cst_246 [1] : vector<8x32xf32> to vector<8xf32>
    %511 = vector.shape_cast %510 : vector<8xf32> to vector<8x1xf32>
    %cst_247 = arith.constant 3.200000e+01 : f32
    %512 = vector.broadcast %cst_247 : f32 to vector<8x1xf32>
    %513 = arith.divf %511, %512 : vector<8x1xf32>
    %514 = vector.broadcast %513 : vector<8x1xf32> to vector<8x32xf32>
    %515 = arith.subf %505, %514 : vector<8x32xf32>
    %516 = arith.mulf %515, %515 : vector<8x32xf32>
    %cst_248 = arith.constant dense<0.000000e+00> : vector<8xf32>
    %517 = vector.multi_reduction <add>, %516, %cst_248 [1] : vector<8x32xf32> to vector<8xf32>
    %518 = vector.shape_cast %517 : vector<8xf32> to vector<8x1xf32>
    %cst_249 = arith.constant 3.200000e+01 : f32
    %519 = vector.broadcast %cst_249 : f32 to vector<8x1xf32>
    %520 = arith.divf %518, %519 : vector<8x1xf32>
    %521 = vector.broadcast %513 : vector<8x1xf32> to vector<8x32xf32>
    %522 = arith.subf %505, %521 : vector<8x32xf32>
    %cst_250 = arith.constant 9.99999974E-6 : f32
    %523 = vector.broadcast %cst_250 : f32 to vector<8x1xf32>
    %524 = arith.addf %520, %523 : vector<8x1xf32>
    %525 = math.rsqrt %524 : vector<8x1xf32>
    %526 = vector.broadcast %525 : vector<8x1xf32> to vector<8x32xf32>
    %527 = arith.mulf %522, %526 : vector<8x32xf32>
    %528 = vector.broadcast %507 : vector<1x32xf32> to vector<8x32xf32>
    %529 = arith.mulf %527, %528 : vector<8x32xf32>
    %530 = vector.broadcast %509 : vector<1x32xf32> to vector<8x32xf32>
    %531 = arith.addf %529, %530 : vector<8x32xf32>
    %532 = arith.truncf %531 : vector<8x32xf32> to vector<8x32xbf16>
    %c0_251 = arith.constant 0 : index
    %c0_252 = arith.constant 0 : index
    %533 = vector.load %arg17[%c0_251, %c0_252] : memref<128x32xbf16, #tpu.memory_space<vmem>>, vector<128x32xbf16>
    %cst_253 = arith.constant dense<0.000000e+00> : vector<8x128xf32>
    %534 = tpu.matmul %532, %533, %cst_253 {dimension_numbers = #tpu.dot_dimension_numbers<[1], [1], [0], [0], [0, 0, 1, 0], [], []>} : vector<8x32xbf16>, vector<128x32xbf16>, vector<8x128xf32> -> vector<8x128xf32>
    %c0_254 = arith.constant 0 : index
    %c0_255 = arith.constant 0 : index
    %c0_256 = arith.constant 0 : index
    %535 = vector.load %arg18[%c0_254, %c0_255, %c0_256] : memref<1x8x128xf32, #tpu.memory_space<vmem>>, vector<1x8x128xf32>
    %536 = vector.shape_cast %535 : vector<1x8x128xf32> to vector<8x128xf32>
    %537 = vector.shape_cast %534 : vector<8x128xf32> to vector<1x8x128xf32>
    tpu.vector_store %arg18[%c0_254, %c0_255, %c0_256], %537 {strides = array<i32>} : memref<1x8x128xf32, #tpu.memory_space<vmem>>, vector<1x8x128xf32>,
    return
  }
  func.func @transform_0(%arg0: i32) -> (i32, i32, i32) {
    %c0_i32 = arith.constant 0 : i32
    %c0_i32_0 = arith.constant 0 : i32
    %c0_i32_1 = arith.constant 0 : i32
    return %arg0, %c0_i32, %c0_i32_0 : i32, i32, i32
  }
  func.func @transform_1(%arg0: i32) -> (i32, i32, i32) {
    %c0_i32 = arith.constant 0 : i32
    %c0_i32_0 = arith.constant 0 : i32
    %c0_i32_1 = arith.constant 0 : i32
    return %arg0, %c0_i32, %c0_i32_0 : i32, i32, i32
  }
  func.func @transform_2(%arg0: i32) -> (i32, i32, i32) {
    %c0_i32 = arith.constant 0 : i32
    %c0_i32_0 = arith.constant 0 : i32
    %c0_i32_1 = arith.constant 0 : i32
    return %arg0, %c0_i32, %c0_i32_0 : i32, i32, i32
  }
  func.func @transform_3(%arg0: i32) -> (i32, i32) {
    %c0_i32 = arith.constant 0 : i32
    %c0_i32_0 = arith.constant 0 : i32
    %c0_i32_1 = arith.constant 0 : i32
    return %c0_i32, %c0_i32_0 : i32, i32
  }
  func.func @transform_4(%arg0: i32) -> (i32, i32) {
    %c0_i32 = arith.constant 0 : i32
    %c0_i32_0 = arith.constant 0 : i32
    %c0_i32_1 = arith.constant 0 : i32
    return %c0_i32, %c0_i32_0 : i32, i32
  }
  func.func @transform_5(%arg0: i32) -> (i32, i32) {
    %c0_i32 = arith.constant 0 : i32
    %c0_i32_0 = arith.constant 0 : i32
    %c0_i32_1 = arith.constant 0 : i32
    return %c0_i32, %c0_i32_0 : i32, i32
  }
  func.func @transform_6(%arg0: i32) -> (i32, i32, i32) {
    %c0_i32 = arith.constant 0 : i32
    %c0_i32_0 = arith.constant 0 : i32
    %c0_i32_1 = arith.constant 0 : i32
    %c0_i32_2 = arith.constant 0 : i32
    return %c0_i32, %c0_i32_0, %c0_i32_1 : i32, i32, i32
  }
  func.func @transform_7(%arg0: i32) -> (i32, i32, i32) {
    %c0_i32 = arith.constant 0 : i32
    %c0_i32_0 = arith.constant 0 : i32
    %c0_i32_1 = arith.constant 0 : i32
    %c0_i32_2 = arith.constant 0 : i32
    return %c0_i32, %c0_i32_0, %c0_i32_1 : i32, i32, i32
  }
  func.func @transform_8(%arg0: i32) -> (i32, i32, i32, i32) {
    %c0_i32 = arith.constant 0 : i32
    %c0_i32_0 = arith.constant 0 : i32
    %c0_i32_1 = arith.constant 0 : i32
    %c0_i32_2 = arith.constant 0 : i32
    %c0_i32_3 = arith.constant 0 : i32
    return %c0_i32, %c0_i32_0, %c0_i32_1, %c0_i32_2 : i32, i32, i32, i32
  }
  func.func @transform_9(%arg0: i32) -> (i32, i32, i32, i32) {
    %c0_i32 = arith.constant 0 : i32
    %c0_i32_0 = arith.constant 0 : i32
    %c0_i32_1 = arith.constant 0 : i32
    %c0_i32_2 = arith.constant 0 : i32
    %c0_i32_3 = arith.constant 0 : i32
    return %c0_i32, %c0_i32_0, %c0_i32_1, %c0_i32_2 : i32, i32, i32, i32
  }
  func.func @transform_10(%arg0: i32) -> (i32, i32, i32, i32) {
    %c0_i32 = arith.constant 0 : i32
    %c0_i32_0 = arith.constant 0 : i32
    %c0_i32_1 = arith.constant 0 : i32
    %c0_i32_2 = arith.constant 0 : i32
    %c0_i32_3 = arith.constant 0 : i32
    return %c0_i32, %c0_i32_0, %c0_i32_1, %c0_i32_2 : i32, i32, i32, i32
  }
  func.func @transform_11(%arg0: i32) -> (i32, i32, i32, i32) {
    %c0_i32 = arith.constant 0 : i32
    %c0_i32_0 = arith.constant 0 : i32
    %c0_i32_1 = arith.constant 0 : i32
    %c0_i32_2 = arith.constant 0 : i32
    %c0_i32_3 = arith.constant 0 : i32
    return %c0_i32, %c0_i32_0, %c0_i32_1, %c0_i32_2 : i32, i32, i32, i32
  }
  func.func @transform_12(%arg0: i32) -> (i32, i32, i32) {
    %c0_i32 = arith.constant 0 : i32
    %c0_i32_0 = arith.constant 0 : i32
    %c0_i32_1 = arith.constant 0 : i32
    %c0_i32_2 = arith.constant 0 : i32
    return %c0_i32, %c0_i32_0, %c0_i32_1 : i32, i32, i32
  }
  func.func @transform_13(%arg0: i32) -> (i32, i32, i32) {
    %c0_i32 = arith.constant 0 : i32
    %c0_i32_0 = arith.constant 0 : i32
    %c0_i32_1 = arith.constant 0 : i32
    %c0_i32_2 = arith.constant 0 : i32
    return %c0_i32, %c0_i32_0, %c0_i32_1 : i32, i32, i32
  }
  func.func @transform_14(%arg0: i32) -> (i32, i32, i32) {
    %c0_i32 = arith.constant 0 : i32
    %c0_i32_0 = arith.constant 0 : i32
    %c0_i32_1 = arith.constant 0 : i32
    %c0_i32_2 = arith.constant 0 : i32
    return %c0_i32, %c0_i32_0, %c0_i32_1 : i32, i32, i32
  }
  func.func @transform_15(%arg0: i32) -> (i32, i32, i32) {
    %c0_i32 = arith.constant 0 : i32
    %c0_i32_0 = arith.constant 0 : i32
    %c0_i32_1 = arith.constant 0 : i32
    %c0_i32_2 = arith.constant 0 : i32
    return %c0_i32, %c0_i32_0, %c0_i32_1 : i32, i32, i32
  }
  func.func @transform_16(%arg0: i32) -> (i32, i32) {
    %c0_i32 = arith.constant 0 : i32
    %c0_i32_0 = arith.constant 0 : i32
    %c0_i32_1 = arith.constant 0 : i32
    return %c0_i32, %c0_i32_0 : i32, i32
  }
  func.func @transform_17(%arg0: i32) -> (i32, i32, i32) {
    %c0_i32 = arith.constant 0 : i32
    %c0_i32_0 = arith.constant 0 : i32
    %c0_i32_1 = arith.constant 0 : i32
    return %arg0, %c0_i32, %c0_i32_0 : i32, i32, i32
  }
}

</mosaic_0001>

<llo_original>
// kernel: mammut_forward.1
$region0: #{mammut_forward.1}
  #allocation0 [shape = 'u32[]', space=smem, size = 0x4, offset = 0x4, fixed_abs, tag = 'smem constant byte address 0x4 - core index']
  #allocation1 [shape = 'u32[144,128]{1,0:T(1,128)}', space=vmem, size = 0x12000, scoped, tag = 'internal scratch']
  %s0 = inlined_call_operand.vmem [shape: f32[2,4,64], index: 0, kind: input, shape index: {}]
  %s1 = inlined_call_operand.vmem [shape: f32[2,8,32], index: 1, kind: input, shape index: {}]
  %s2 = inlined_call_operand.vmem [shape: f32[2,8,8], index: 2, kind: input, shape index: {}]
  %s3 = inlined_call_operand.vmem [shape: bf16[64,32], index: 3, kind: input, shape index: {}]
  %s4 = inlined_call_operand.vmem [shape: f32[1,32], index: 4, kind: input, shape index: {}]
  %s5 = inlined_call_operand.vmem [shape: f32[8,32], index: 5, kind: input, shape index: {}]
  %s6 = inlined_call_operand.vmem [shape: f32[8,1,32], index: 6, kind: input, shape index: {}]
  %s7 = inlined_call_operand.vmem [shape: f32[8,1,32], index: 7, kind: input, shape index: {}]
  %s8 = inlined_call_operand.vmem [shape: bf16[5,4,32,8], index: 8, kind: input, shape index: {}]
  %s9 = inlined_call_operand.vmem [shape: bf16[5,4,32,8], index: 9, kind: input, shape index: {}]
  %s10 = inlined_call_operand.vmem [shape: bf16[5,4,32,8], index: 10, kind: input, shape index: {}]
  %s11 = inlined_call_operand.vmem [shape: bf16[5,4,8,32], index: 11, kind: input, shape index: {}]
  %s12 = inlined_call_operand.vmem [shape: bf16[2,32,64], index: 12, kind: input, shape index: {}]
  %s13 = inlined_call_operand.vmem [shape: f32[2,1,64], index: 13, kind: input, shape index: {}]
  %s14 = inlined_call_operand.vmem [shape: bf16[2,64,32], index: 14, kind: input, shape index: {}]
  %s15 = inlined_call_operand.vmem [shape: f32[2,1,32], index: 15, kind: input, shape index: {}]
  %s16 = inlined_call_operand.vmem [shape: bf16[128,32], index: 16, kind: input, shape index: {}]
  %s17 = inlined_call_operand.hbm [shape: f32[2,8,128], index: 17, kind: output, shape index: {}]
  %s18 = sld [smem:[#allocation0]]
  $region101: #{mammut_forward.1} parent=0
    _
  %s20 = ssub.s32 1, %s18
  %s21 = scalar_select 0, %s20, %s18
  $region1: #{mammut_forward.1} parent=0
    #allocation2 [shape = 'u8[8192]{0}', space=vmem, size = 0x2000, scoped, tag = 'output window, operand 0']
    #allocation3 [shape = 's32[2]{0}', space=sflag, size = 0x8, scoped, tag = 'scoped memory for mammut_forward.1']
    %22 = vsyncpa [#allocation3], 0
    %s23 = scalar_lea.sflag [#allocation3], 1
    %24 = vsyncpa %s23, 0
    loop: start=0, step=1, limit=4
    $region2: #{mammut_forward.1} parent=1 // loop_pre_header
      _
    $region3: #{mammut_forward.1} parent=1 // loop_header
      %s26 = sphi 0, %s30
      %p27 = scmp.ge.s32.totalorder %s26, 4
      %s36 = sphi 0, %s38
      %s39 = sphi 0, %s36
      %s40 = sphi 0, %s39
      %s56 = sphi 0, %s40
      %s62 = sphi 0, %s64
      %s65 = sphi 0, %s62
      %s66 = sphi 0, %s65
      %s82 = sphi 0, %s66
      %s88 = sphi 0, %s90
      %s91 = sphi 0, %s88
      %s92 = sphi 0, %s91
      %s108 = sphi 0, %s92
      %s112 = sphi 0, %s112
      %s114 = sphi 0, %s112
      %s115 = sphi 0, %s114
      %s129 = sphi 0, %s115
      %s133 = sphi 0, %s133
      %s135 = sphi 0, %s133
      %s136 = sphi 0, %s135
      %s150 = sphi 0, %s136
      %s154 = sphi 0, %s154
      %s156 = sphi 0, %s154
      %s157 = sphi 0, %s156
      %s171 = sphi 0, %s157
      %s175 = sphi 0, %s175
      %s177 = sphi 0, %s175
      %s178 = sphi 0, %s177
      %s192 = sphi 0, %s178
      %s196 = sphi 0, %s196
      %s198 = sphi 0, %s196
      %s199 = sphi 0, %s198
      %s213 = sphi 0, %s199
      %s217 = sphi 0, %s217
      %s219 = sphi 0, %s217
      %s220 = sphi 0, %s219
      %s234 = sphi 0, %s220
      %s238 = sphi 0, %s238
      %s240 = sphi 0, %s238
      %s241 = sphi 0, %s240
      %s255 = sphi 0, %s241
      %s259 = sphi 0, %s259
      %s261 = sphi 0, %s259
      %s262 = sphi 0, %s261
      %s276 = sphi 0, %s262
      %s280 = sphi 0, %s280
      %s282 = sphi 0, %s280
      %s283 = sphi 0, %s282
      %s297 = sphi 0, %s283
      %s301 = sphi 0, %s301
      %s303 = sphi 0, %s301
      %s304 = sphi 0, %s303
      %s318 = sphi 0, %s304
      %s322 = sphi 0, %s322
      %s324 = sphi 0, %s322
      %s325 = sphi 0, %s324
      %s339 = sphi 0, %s325
      %s343 = sphi 0, %s343
      %s345 = sphi 0, %s343
      %s346 = sphi 0, %s345
      %s360 = sphi 0, %s346
      %s364 = sphi 0, %s364
      %s366 = sphi 0, %s364
      %s367 = sphi 0, %s366
      %s381 = sphi 0, %s367
      %s385 = sphi 0, %s385
      %s387 = sphi 0, %s385
      %s388 = sphi 0, %s387
      %s402 = sphi 0, %s388
      %s408 = sphi 0, %s410
      %s411 = sphi 0, %s408
      %s412 = sphi 0, %s411
      %s428 = sphi 0, %s412
    $region4: #{mammut_forward.1} parent=1 // loop_header_branch
      %29 = sbr.rel (%p27) target = $region8
    $region5: #{mammut_forward.1} parent=1 // loop_body
      %s31 = ssub.s32 %s26, 1
      %s32 = ssub.s32 %s26, 2
      %s33 = sadd.s32 %s26, 1
      %s34 = ssub.s32 %s26, %s33
      %p35 = scmp.eq.s32.totalorder %s34, 0
      %s37 = sadd.s32 %s36, 1
      %s38 = scalar_select %p35, %s36, %s37
      %p41 = pneg %p35
      %p42 = scmp.eq.s32.totalorder %s26, 1
      %p43 = por %p41, %p42
      %p44 = scmp.ne.s32.totalorder %s36, %s39
      %p45 = scmp.eq.s32.totalorder %s26, 0
      %p46 = por %p44, %p45
      %p47 = scmp.ne.s32.totalorder %s36, %s39
      %p48 = scmp.eq.s32.totalorder %s31, 1
      %p49 = por %p47, %p48
      %p50 = scmp.ne.s32.totalorder %s39, %s40
      %p51 = scmp.eq.s32.totalorder %s31, 0
      %p52 = por %p50, %p51
      %p53 = scmp.ne.s32.totalorder %s39, %s40
      %p54 = scmp.eq.s32.totalorder %s32, 1
      %p55 = por %p53, %p54
      %p57 = scmp.ne.s32.totalorder %s40, %s56
      %p58 = scmp.eq.s32.totalorder %s32, 0
      %p59 = por %p57, %p58
      %s60 = ssub.s32 %s26, %s33
      %p61 = scmp.eq.s32.totalorder %s60, 0
      %s63 = sadd.s32 %s62, 1
      %s64 = scalar_select %p61, %s62, %s63
      %p67 = pneg %p61
      %p68 = scmp.eq.s32.totalorder %s26, 1
      %p69 = por %p67, %p68
      %p70 = scmp.ne.s32.totalorder %s62, %s65
      %p71 = scmp.eq.s32.totalorder %s26, 0
      %p72 = por %p70, %p71
      %p73 = scmp.ne.s32.totalorder %s62, %s65
      %p74 = scmp.eq.s32.totalorder %s31, 1
      %p75 = por %p73, %p74
      %p76 = scmp.ne.s32.totalorder %s65, %s66
      %p77 = scmp.eq.s32.totalorder %s31, 0
      %p78 = por %p76, %p77
      %p79 = scmp.ne.s32.totalorder %s65, %s66
      %p80 = scmp.eq.s32.totalorder %s32, 1
      %p81 = por %p79, %p80
      %p83 = scmp.ne.s32.totalorder %s66, %s82
      %p84 = scmp.eq.s32.totalorder %s32, 0
      %p85 = por %p83, %p84
      %s86 = ssub.s32 %s26, %s33
      %p87 = scmp.eq.s32.totalorder %s86, 0
      %s89 = sadd.s32 %s88, 1
      %s90 = scalar_select %p87, %s88, %s89
      %p93 = pneg %p87
      %p94 = scmp.eq.s32.totalorder %s26, 1
      %p95 = por %p93, %p94
      %p96 = scmp.ne.s32.totalorder %s88, %s91
      %p97 = scmp.eq.s32.totalorder %s26, 0
      %p98 = por %p96, %p97
      %p99 = scmp.ne.s32.totalorder %s88, %s91
      %p100 = scmp.eq.s32.totalorder %s31, 1
      %p101 = por %p99, %p100
      %p102 = scmp.ne.s32.totalorder %s91, %s92
      %p103 = scmp.eq.s32.totalorder %s31, 0
      %p104 = por %p102, %p103
      %p105 = scmp.ne.s32.totalorder %s91, %s92
      %p106 = scmp.eq.s32.totalorder %s32, 1
      %p107 = por %p105, %p106
      %p109 = scmp.ne.s32.totalorder %s92, %s108
      %p110 = scmp.eq.s32.totalorder %s32, 0
      %p111 = por %p109, %p110
      %s113 = sadd.s32 %s112, 1
      %p116 = scmp.eq.s32.totalorder %s26, 1
      %p117 = scmp.ne.s32.totalorder %s112, %s114
      %p118 = scmp.eq.s32.totalorder %s26, 0
      %p119 = por %p117, %p118
      %p120 = scmp.ne.s32.totalorder %s112, %s114
      %p121 = scmp.eq.s32.totalorder %s31, 1
      %p122 = por %p120, %p121
      %p123 = scmp.ne.s32.totalorder %s114, %s115
      %p124 = scmp.eq.s32.totalorder %s31, 0
      %p125 = por %p123, %p124
      %p126 = scmp.ne.s32.totalorder %s114, %s115
      %p127 = scmp.eq.s32.totalorder %s32, 1
      %p128 = por %p126, %p127
      %p130 = scmp.ne.s32.totalorder %s115, %s129
      %p131 = scmp.eq.s32.totalorder %s32, 0
      %p132 = por %p130, %p131
      %s134 = sadd.s32 %s133, 1
      %p137 = scmp.eq.s32.totalorder %s26, 1
      %p138 = scmp.ne.s32.totalorder %s133, %s135
      %p139 = scmp.eq.s32.totalorder %s26, 0
      %p140 = por %p138, %p139
      %p141 = scmp.ne.s32.totalorder %s133, %s135
      %p142 = scmp.eq.s32.totalorder %s31, 1
      %p143 = por %p141, %p142
      %p144 = scmp.ne.s32.totalorder %s135, %s136
      %p145 = scmp.eq.s32.totalorder %s31, 0
      %p146 = por %p144, %p145
      %p147 = scmp.ne.s32.totalorder %s135, %s136
      %p148 = scmp.eq.s32.totalorder %s32, 1
      %p149 = por %p147, %p148
      %p151 = scmp.ne.s32.totalorder %s136, %s150
      %p152 = scmp.eq.s32.totalorder %s32, 0
      %p153 = por %p151, %p152
      %s155 = sadd.s32 %s154, 1
      %p158 = scmp.eq.s32.totalorder %s26, 1
      %p159 = scmp.ne.s32.totalorder %s154, %s156
      %p160 = scmp.eq.s32.totalorder %s26, 0
      %p161 = por %p159, %p160
      %p162 = scmp.ne.s32.totalorder %s154, %s156
      %p163 = scmp.eq.s32.totalorder %s31, 1
      %p164 = por %p162, %p163
      %p165 = scmp.ne.s32.totalorder %s156, %s157
      %p166 = scmp.eq.s32.totalorder %s31, 0
      %p167 = por %p165, %p166
      %p168 = scmp.ne.s32.totalorder %s156, %s157
      %p169 = scmp.eq.s32.totalorder %s32, 1
      %p170 = por %p168, %p169
      %p172 = scmp.ne.s32.totalorder %s157, %s171
      %p173 = scmp.eq.s32.totalorder %s32, 0
      %p174 = por %p172, %p173
      %s176 = sadd.s32 %s175, 1
      %p179 = scmp.eq.s32.totalorder %s26, 1
      %p180 = scmp.ne.s32.totalorder %s175, %s177
      %p181 = scmp.eq.s32.totalorder %s26, 0
      %p182 = por %p180, %p181
      %p183 = scmp.ne.s32.totalorder %s175, %s177
      %p184 = scmp.eq.s32.totalorder %s31, 1
      %p185 = por %p183, %p184
      %p186 = scmp.ne.s32.totalorder %s177, %s178
      %p187 = scmp.eq.s32.totalorder %s31, 0
      %p188 = por %p186, %p187
      %p189 = scmp.ne.s32.totalorder %s177, %s178
      %p190 = scmp.eq.s32.totalorder %s32, 1
      %p191 = por %p189, %p190
      %p193 = scmp.ne.s32.totalorder %s178, %s192
      %p194 = scmp.eq.s32.totalorder %s32, 0
      %p195 = por %p193, %p194
      %s197 = sadd.s32 %s196, 1
      %p200 = scmp.eq.s32.totalorder %s26, 1
      %p201 = scmp.ne.s32.totalorder %s196, %s198
      %p202 = scmp.eq.s32.totalorder %s26, 0
      %p203 = por %p201, %p202
      %p204 = scmp.ne.s32.totalorder %s196, %s198
      %p205 = scmp.eq.s32.totalorder %s31, 1
      %p206 = por %p204, %p205
      %p207 = scmp.ne.s32.totalorder %s198, %s199
      %p208 = scmp.eq.s32.totalorder %s31, 0
      %p209 = por %p207, %p208
      %p210 = scmp.ne.s32.totalorder %s198, %s199
      %p211 = scmp.eq.s32.totalorder %s32, 1
      %p212 = por %p210, %p211
      %p214 = scmp.ne.s32.totalorder %s199, %s213
      %p215 = scmp.eq.s32.totalorder %s32, 0
      %p216 = por %p214, %p215
      %s218 = sadd.s32 %s217, 1
      %p221 = scmp.eq.s32.totalorder %s26, 1
      %p222 = scmp.ne.s32.totalorder %s217, %s219
      %p223 = scmp.eq.s32.totalorder %s26, 0
      %p224 = por %p222, %p223
      %p225 = scmp.ne.s32.totalorder %s217, %s219
      %p226 = scmp.eq.s32.totalorder %s31, 1
      %p227 = por %p225, %p226
      %p228 = scmp.ne.s32.totalorder %s219, %s220
      %p229 = scmp.eq.s32.totalorder %s31, 0
      %p230 = por %p228, %p229
      %p231 = scmp.ne.s32.totalorder %s219, %s220
      %p232 = scmp.eq.s32.totalorder %s32, 1
      %p233 = por %p231, %p232
      %p235 = scmp.ne.s32.totalorder %s220, %s234
      %p236 = scmp.eq.s32.totalorder %s32, 0
      %p237 = por %p235, %p236
      %s239 = sadd.s32 %s238, 1
      %p242 = scmp.eq.s32.totalorder %s26, 1
      %p243 = scmp.ne.s32.totalorder %s238, %s240
      %p244 = scmp.eq.s32.totalorder %s26, 0
      %p245 = por %p243, %p244
      %p246 = scmp.ne.s32.totalorder %s238, %s240
      %p247 = scmp.eq.s32.totalorder %s31, 1
      %p248 = por %p246, %p247
      %p249 = scmp.ne.s32.totalorder %s240, %s241
      %p250 = scmp.eq.s32.totalorder %s31, 0
      %p251 = por %p249, %p250
      %p252 = scmp.ne.s32.totalorder %s240, %s241
      %p253 = scmp.eq.s32.totalorder %s32, 1
      %p254 = por %p252, %p253
      %p256 = scmp.ne.s32.totalorder %s241, %s255
      %p257 = scmp.eq.s32.totalorder %s32, 0
      %p258 = por %p256, %p257
      %s260 = sadd.s32 %s259, 1
      %p263 = scmp.eq.s32.totalorder %s26, 1
      %p264 = scmp.ne.s32.totalorder %s259, %s261
      %p265 = scmp.eq.s32.totalorder %s26, 0
      %p266 = por %p264, %p265
      %p267 = scmp.ne.s32.totalorder %s259, %s261
      %p268 = scmp.eq.s32.totalorder %s31, 1
      %p269 = por %p267, %p268
      %p270 = scmp.ne.s32.totalorder %s261, %s262
      %p271 = scmp.eq.s32.totalorder %s31, 0
      %p272 = por %p270, %p271
      %p273 = scmp.ne.s32.totalorder %s261, %s262
      %p274 = scmp.eq.s32.totalorder %s32, 1
      %p275 = por %p273, %p274
      %p277 = scmp.ne.s32.totalorder %s262, %s276
      %p278 = scmp.eq.s32.totalorder %s32, 0
      %p279 = por %p277, %p278
      %s281 = sadd.s32 %s280, 1
      %p284 = scmp.eq.s32.totalorder %s26, 1
      %p285 = scmp.ne.s32.totalorder %s280, %s282
      %p286 = scmp.eq.s32.totalorder %s26, 0
      %p287 = por %p285, %p286
      %p288 = scmp.ne.s32.totalorder %s280, %s282
      %p289 = scmp.eq.s32.totalorder %s31, 1
      %p290 = por %p288, %p289
      %p291 = scmp.ne.s32.totalorder %s282, %s283
      %p292 = scmp.eq.s32.totalorder %s31, 0
      %p293 = por %p291, %p292
      %p294 = scmp.ne.s32.totalorder %s282, %s283
      %p295 = scmp.eq.s32.totalorder %s32, 1
      %p296 = por %p294, %p295
      %p298 = scmp.ne.s32.totalorder %s283, %s297
      %p299 = scmp.eq.s32.totalorder %s32, 0
      %p300 = por %p298, %p299
      %s302 = sadd.s32 %s301, 1
      %p305 = scmp.eq.s32.totalorder %s26, 1
      %p306 = scmp.ne.s32.totalorder %s301, %s303
      %p307 = scmp.eq.s32.totalorder %s26, 0
      %p308 = por %p306, %p307
      %p309 = scmp.ne.s32.totalorder %s301, %s303
      %p310 = scmp.eq.s32.totalorder %s31, 1
      %p311 = por %p309, %p310
      %p312 = scmp.ne.s32.totalorder %s303, %s304
      %p313 = scmp.eq.s32.totalorder %s31, 0
      %p314 = por %p312, %p313
      %p315 = scmp.ne.s32.totalorder %s303, %s304
      %p316 = scmp.eq.s32.totalorder %s32, 1
      %p317 = por %p315, %p316
      %p319 = scmp.ne.s32.totalorder %s304, %s318
      %p320 = scmp.eq.s32.totalorder %s32, 0
      %p321 = por %p319, %p320
      %s323 = sadd.s32 %s322, 1
      %p326 = scmp.eq.s32.totalorder %s26, 1
      %p327 = scmp.ne.s32.totalorder %s322, %s324
      %p328 = scmp.eq.s32.totalorder %s26, 0
      %p329 = por %p327, %p328
      %p330 = scmp.ne.s32.totalorder %s322, %s324
      %p331 = scmp.eq.s32.totalorder %s31, 1
      %p332 = por %p330, %p331
      %p333 = scmp.ne.s32.totalorder %s324, %s325
      %p334 = scmp.eq.s32.totalorder %s31, 0
      %p335 = por %p333, %p334
      %p336 = scmp.ne.s32.totalorder %s324, %s325
      %p337 = scmp.eq.s32.totalorder %s32, 1
      %p338 = por %p336, %p337
      %p340 = scmp.ne.s32.totalorder %s325, %s339
      %p341 = scmp.eq.s32.totalorder %s32, 0
      %p342 = por %p340, %p341
      %s344 = sadd.s32 %s343, 1
      %p347 = scmp.eq.s32.totalorder %s26, 1
      %p348 = scmp.ne.s32.totalorder %s343, %s345
      %p349 = scmp.eq.s32.totalorder %s26, 0
      %p350 = por %p348, %p349
      %p351 = scmp.ne.s32.totalorder %s343, %s345
      %p352 = scmp.eq.s32.totalorder %s31, 1
      %p353 = por %p351, %p352
      %p354 = scmp.ne.s32.totalorder %s345, %s346
      %p355 = scmp.eq.s32.totalorder %s31, 0
      %p356 = por %p354, %p355
      %p357 = scmp.ne.s32.totalorder %s345, %s346
      %p358 = scmp.eq.s32.totalorder %s32, 1
      %p359 = por %p357, %p358
      %p361 = scmp.ne.s32.totalorder %s346, %s360
      %p362 = scmp.eq.s32.totalorder %s32, 0
      %p363 = por %p361, %p362
      %s365 = sadd.s32 %s364, 1
      %p368 = scmp.eq.s32.totalorder %s26, 1
      %p369 = scmp.ne.s32.totalorder %s364, %s366
      %p370 = scmp.eq.s32.totalorder %s26, 0
      %p371 = por %p369, %p370
      %p372 = scmp.ne.s32.totalorder %s364, %s366
      %p373 = scmp.eq.s32.totalorder %s31, 1
      %p374 = por %p372, %p373
      %p375 = scmp.ne.s32.totalorder %s366, %s367
      %p376 = scmp.eq.s32.totalorder %s31, 0
      %p377 = por %p375, %p376
      %p378 = scmp.ne.s32.totalorder %s366, %s367
      %p379 = scmp.eq.s32.totalorder %s32, 1
      %p380 = por %p378, %p379
      %p382 = scmp.ne.s32.totalorder %s367, %s381
      %p383 = scmp.eq.s32.totalorder %s32, 0
      %p384 = por %p382, %p383
      %s386 = sadd.s32 %s385, 1
      %p389 = scmp.eq.s32.totalorder %s26, 1
      %p390 = scmp.ne.s32.totalorder %s385, %s387
      %p391 = scmp.eq.s32.totalorder %s26, 0
      %p392 = por %p390, %p391
      %p393 = scmp.ne.s32.totalorder %s385, %s387
      %p394 = scmp.eq.s32.totalorder %s31, 1
      %p395 = por %p393, %p394
      %p396 = scmp.ne.s32.totalorder %s387, %s388
      %p397 = scmp.eq.s32.totalorder %s31, 0
      %p398 = por %p396, %p397
      %p399 = scmp.ne.s32.totalorder %s387, %s388
      %p400 = scmp.eq.s32.totalorder %s32, 1
      %p401 = por %p399, %p400
      %p403 = scmp.ne.s32.totalorder %s388, %s402
      %p404 = scmp.eq.s32.totalorder %s32, 0
      %p405 = por %p403, %p404
      %s406 = ssub.s32 %s26, %s33
      %p407 = scmp.eq.s32.totalorder %s406, 0
      %s409 = sadd.s32 %s408, 1
      %s410 = scalar_select %p407, %s408, %s409
      %p413 = pneg %p407
      %p414 = scmp.eq.s32.totalorder %s26, 1
      %p415 = por %p413, %p414
      %p416 = scmp.ne.s32.totalorder %s408, %s411
      %p417 = scmp.eq.s32.totalorder %s26, 0
      %p418 = por %p416, %p417
      %p419 = scmp.ne.s32.totalorder %s408, %s411
      %p420 = scmp.eq.s32.totalorder %s31, 1
      %p421 = por %p419, %p420
      %p422 = scmp.ne.s32.totalorder %s411, %s412
      %p423 = scmp.eq.s32.totalorder %s31, 0
      %p424 = por %p422, %p423
      %p425 = scmp.ne.s32.totalorder %s411, %s412
      %p426 = scmp.eq.s32.totalorder %s32, 1
      %p427 = por %p425, %p426
      %p429 = scmp.ne.s32.totalorder %s412, %s428
      %p430 = scmp.eq.s32.totalorder %s32, 0
      %p431 = por %p429, %p430
      %p432 = scmp.le.s32.totalorder 1, %s26
      %p433 = scmp.lt.s32.totalorder %s26, 3
      %p434 = pnand %p432, %p433
      %p435 = pneg %p434
      // Predicated region
      $region9: #{mammut_forward.1} parent=5 // pred_check
        _
      $region10: #{mammut_forward.1} parent=5 // pred_check_branch
        %437 = sbr.rel (%p434) target = $region12
      $region11: #{mammut_forward.1} parent=5 // pred_region
        %s438 = ssub.s32 %s26, 1
        // Predicated region
        $region13: #{mammut_forward.1} parent=11 // pred_check
          %p439 = pneg %p125
        $region14: #{mammut_forward.1} parent=11 // pred_check_branch
          %441 = sbr.rel (%p439) target = $region16
        $region15: #{mammut_forward.1} parent=11 // pred_region
          _
        $region16: #{mammut_forward.1} parent=11 // pred_fallthru
          _
        // Predicated region
        $region17: #{mammut_forward.1} parent=11 // pred_check
          %p442 = pneg %p146
        $region18: #{mammut_forward.1} parent=11 // pred_check_branch
          %444 = sbr.rel (%p442) target = $region20
        $region19: #{mammut_forward.1} parent=11 // pred_region
          _
        $region20: #{mammut_forward.1} parent=11 // pred_fallthru
          _
        // Predicated region
        $region21: #{mammut_forward.1} parent=11 // pred_check
          %p445 = pneg %p167
        $region22: #{mammut_forward.1} parent=11 // pred_check_branch
          %447 = sbr.rel (%p445) target = $region24
        $region23: #{mammut_forward.1} parent=11 // pred_region
          _
        $region24: #{mammut_forward.1} parent=11 // pred_fallthru
          _
        // Predicated region
        $region25: #{mammut_forward.1} parent=11 // pred_check
          %p448 = pneg %p188
        $region26: #{mammut_forward.1} parent=11 // pred_check_branch
          %450 = sbr.rel (%p448) target = $region28
        $region27: #{mammut_forward.1} parent=11 // pred_region
          _
        $region28: #{mammut_forward.1} parent=11 // pred_fallthru
          _
        // Predicated region
        $region29: #{mammut_forward.1} parent=11 // pred_check
          %p451 = pneg %p209
        $region30: #{mammut_forward.1} parent=11 // pred_check_branch
          %453 = sbr.rel (%p451) target = $region32
        $region31: #{mammut_forward.1} parent=11 // pred_region
          _
        $region32: #{mammut_forward.1} parent=11 // pred_fallthru
          _
        // Predicated region
        $region33: #{mammut_forward.1} parent=11 // pred_check
          %p454 = pneg %p230
        $region34: #{mammut_forward.1} parent=11 // pred_check_branch
          %456 = sbr.rel (%p454) target = $region36
        $region35: #{mammut_forward.1} parent=11 // pred_region
          _
        $region36: #{mammut_forward.1} parent=11 // pred_fallthru
          _
        // Predicated region
        $region37: #{mammut_forward.1} parent=11 // pred_check
          %p457 = pneg %p251
        $region38: #{mammut_forward.1} parent=11 // pred_check_branch
          %459 = sbr.rel (%p457) target = $region40
        $region39: #{mammut_forward.1} parent=11 // pred_region
          _
        $region40: #{mammut_forward.1} parent=11 // pred_fallthru
          _
        // Predicated region
        $region41: #{mammut_forward.1} parent=11 // pred_check
          %p460 = pneg %p272
        $region42: #{mammut_forward.1} parent=11 // pred_check_branch
          %462 = sbr.rel (%p460) target = $region44
        $region43: #{mammut_forward.1} parent=11 // pred_region
          _
        $region44: #{mammut_forward.1} parent=11 // pred_fallthru
          _
        // Predicated region
        $region45: #{mammut_forward.1} parent=11 // pred_check
          %p463 = pneg %p293
        $region46: #{mammut_forward.1} parent=11 // pred_check_branch
          %465 = sbr.rel (%p463) target = $region48
        $region47: #{mammut_forward.1} parent=11 // pred_region
          _
        $region48: #{mammut_forward.1} parent=11 // pred_fallthru
          _
        // Predicated region
        $region49: #{mammut_forward.1} parent=11 // pred_check
          %p466 = pneg %p314
        $region50: #{mammut_forward.1} parent=11 // pred_check_branch
          %468 = sbr.rel (%p466) target = $region52
        $region51: #{mammut_forward.1} parent=11 // pred_region
          _
        $region52: #{mammut_forward.1} parent=11 // pred_fallthru
          _
        // Predicated region
        $region53: #{mammut_forward.1} parent=11 // pred_check
          %p469 = pneg %p335
        $region54: #{mammut_forward.1} parent=11 // pred_check_branch
          %471 = sbr.rel (%p469) target = $region56
        $region55: #{mammut_forward.1} parent=11 // pred_region
          _
        $region56: #{mammut_forward.1} parent=11 // pred_fallthru
          _
        // Predicated region
        $region57: #{mammut_forward.1} parent=11 // pred_check
          %p472 = pneg %p356
        $region58: #{mammut_forward.1} parent=11 // pred_check_branch
          %474 = sbr.rel (%p472) target = $region60
        $region59: #{mammut_forward.1} parent=11 // pred_region
          _
        $region60: #{mammut_forward.1} parent=11 // pred_fallthru
          _
        // Predicated region
        $region61: #{mammut_forward.1} parent=11 // pred_check
          %p475 = pneg %p377
        $region62: #{mammut_forward.1} parent=11 // pred_check_branch
          %477 = sbr.rel (%p475) target = $region64
        $region63: #{mammut_forward.1} parent=11 // pred_region
          _
        $region64: #{mammut_forward.1} parent=11 // pred_fallthru
          _
        // Predicated region
        $region65: #{mammut_forward.1} parent=11 // pred_check
          %p478 = pneg %p398
        $region66: #{mammut_forward.1} parent=11 // pred_check_branch
          %480 = sbr.rel (%p478) target = $region68
        $region67: #{mammut_forward.1} parent=11 // pred_region
          _
        $region68: #{mammut_forward.1} parent=11 // pred_fallthru
          _
      $region12: #{mammut_forward.1} parent=5 // pred_fallthru
        _
      %p481 = scmp.lt.s32.totalorder %s26, 2
      // Predicated region
      $region69: #{mammut_forward.1} parent=5 // pred_check
        %p482 = pneg %p481
      $region70: #{mammut_forward.1} parent=5 // pred_check_branch
        %484 = sbr.rel (%p482) target = $region72
      $region71: #{mammut_forward.1} parent=5 // pred_region
        // Predicated region
        $region73: #{mammut_forward.1} parent=71 // pred_check
          %p485 = pneg %p46
        $region74: #{mammut_forward.1} parent=71 // pred_check_branch
          %487 = sbr.rel (%p485) target = $region76
        $region75: #{mammut_forward.1} parent=71 // pred_region
          %p488 = scmp.lt.s32.totalorder %s26, 1
          %s489 = scalar_select %p488, %s26, 1
          %s490 = smul.addr %s489, 4
          %s491 = scalar_lea.vmem %s0, %s490
        $region76: #{mammut_forward.1} parent=71 // pred_fallthru
          _
        // Predicated region
        $region77: #{mammut_forward.1} parent=71 // pred_check
          %p492 = pneg %p72
        $region78: #{mammut_forward.1} parent=71 // pred_check_branch
          %494 = sbr.rel (%p492) target = $region80
        $region79: #{mammut_forward.1} parent=71 // pred_region
          %p495 = scmp.lt.s32.totalorder %s26, 1
          %s496 = scalar_select %p495, %s26, 1
          %s497 = smul.addr %s496, 8
          %s498 = scalar_lea.vmem %s1, %s497
        $region80: #{mammut_forward.1} parent=71 // pred_fallthru
          _
        // Predicated region
        $region81: #{mammut_forward.1} parent=71 // pred_check
          %p499 = pneg %p98
        $region82: #{mammut_forward.1} parent=71 // pred_check_branch
          %501 = sbr.rel (%p499) target = $region84
        $region83: #{mammut_forward.1} parent=71 // pred_region
          %p502 = scmp.lt.s32.totalorder %s26, 1
          %s503 = scalar_select %p502, %s26, 1
          %s504 = smul.addr %s503, 8
          %s505 = scalar_lea.vmem %s2, %s504
        $region84: #{mammut_forward.1} parent=71 // pred_fallthru
          _
      $region72: #{mammut_forward.1} parent=5 // pred_fallthru
        _
      %p506 = scmp.le.s32.totalorder 1, %s26
      %p507 = scmp.lt.s32.totalorder %s26, 3
      %p508 = pnand %p506, %p507
      %p509 = pneg %p508
      // Predicated region
      $region85: #{mammut_forward.1} parent=5 // pred_check
        _
      $region86: #{mammut_forward.1} parent=5 // pred_check_branch
        %511 = sbr.rel (%p508) target = $region88
      $region87: #{mammut_forward.1} parent=5 // pred_region
        %s512 = ssub.s32 %s26, 1
        %p513 = scmp.lt.s32.totalorder %s31, 1
        %s514 = scalar_select %p513, %s31, 1
        %s515 = smul.addr %s514, 4
        %s516 = scalar_lea.vmem %s0, %s515
        %p517 = pneg %p52
        %p518 = pneg %p49
        %p519 = scmp.lt.s32.totalorder %s31, 1
        %s520 = scalar_select %p519, %s31, 1
        %s521 = smul.addr %s520, 8
        %s522 = scalar_lea.vmem %s1, %s521
        %p523 = pneg %p78
        %p524 = pneg %p75
        %p525 = scmp.lt.s32.totalorder %s31, 1
        %s526 = scalar_select %p525, %s31, 1
        %s527 = smul.addr %s526, 8
        %s528 = scalar_lea.vmem %s2, %s527
        %p529 = pneg %p104
        %p530 = pneg %p101
        %p531 = pneg %p125
        %p532 = pneg %p122
        %p533 = pneg %p146
        %p534 = pneg %p143
        %p535 = pneg %p167
        %p536 = pneg %p164
        %p537 = pneg %p188
        %p538 = pneg %p185
        %p539 = pneg %p209
        %p540 = pneg %p206
        %p541 = pneg %p230
        %p542 = pneg %p227
        %p543 = pneg %p251
        %p544 = pneg %p248
        %p545 = pneg %p272
        %p546 = pneg %p269
        %p547 = pneg %p293
        %p548 = pneg %p290
        %p549 = pneg %p314
        %p550 = pneg %p311
        %p551 = pneg %p335
        %p552 = pneg %p332
        %p553 = pneg %p356
        %p554 = pneg %p353
        %p555 = pneg %p377
        %p556 = pneg %p374
        %p557 = pneg %p398
        %p558 = pneg %p395
        %p559 = pneg %p424
        %p560 = pneg %p421
        %s561 = sand.u32 %s411, 1
        %s562 = scalar_lea.sflag [#allocation3], %s561
        %s563 = sand.u32 %s411, 1
        %s564 = smul.addr %s563, 8
        %s565 = scalar_lea.vmem [#allocation2], %s564
        %p566 = scmp.lt.s32.totalorder %s31, 1
        %s567 = scalar_select %p566, %s31, 1
        %s568 = smul.addr %s567, 4
        %s569 = scalar_lea.vmem %s0, %s568
        %p570 = scmp.lt.s32.totalorder %s31, 1
        %s571 = scalar_select %p570, %s31, 1
        %s572 = smul.addr %s571, 8
        %s573 = scalar_lea.vmem %s1, %s572
        %p574 = scmp.lt.s32.totalorder %s31, 1
        %s575 = scalar_select %p574, %s31, 1
        %s576 = smul.addr %s575, 8
        %s577 = scalar_lea.vmem %s2, %s576
        %v579 = vld [vmem:[%s569] sm:$0xf]
        %v580 = vpack.c.bf16 %v579, %v579
        %v581 = vld [vmem:[%s3] sm:$0xf]
        %v582 = vld [vmem:[%s3 + $0x4] sm:$0xf]
        %v583 = vld [vmem:[%s3 + $0x8] sm:$0xf]
        %v584 = vld [vmem:[%s3 + $0xc] sm:$0xf]
        %v585 = vld [vmem:[%s3 + $0x10] sm:$0xf]
        %v586 = vld [vmem:[%s3 + $0x14] sm:$0xf]
        %v587 = vld [vmem:[%s3 + $0x18] sm:$0xf]
        %v588 = vld [vmem:[%s3 + $0x1c] sm:$0xf]
        %v589 = vld [vmem:[%s4] sm:$0x1]
        %v591 = vlaneseq
        %v592 = vshrl.u32 %v591, 7
        %v593 = vsub.s32 0, %v592
        %v594 = vrot.slane %v589, %v593
        %v604 = vunpack.c.l.b16 %v581
        %v605 = vunpack.c.l.b16 %v582
        %v606 = vunpack.c.l.b16 %v583
        %v607 = vunpack.c.l.b16 %v584
        %v608 = vunpack.c.l.b16 %v585
        %v609 = vunpack.c.l.b16 %v586
        %v610 = vunpack.c.l.b16 %v587
        %v611 = vunpack.c.l.b16 %v588
        %v612 = vpack.c.b16 %v605, %v604
        %v613 = vpack.c.b16 %v607, %v606
        %v614 = vpack.c.b16 %v609, %v608
        %v615 = vpack.c.b16 %v611, %v610
        %vm620 = vcmask 523264
        %v622 = vsel %vm620, %v580, 0
        %624 = vmatprep.subr.bf16.mxu0 0
        %625 = vmatpush1.bf16.msra.mxu0 %v612
        %626 = vmatprep.subr.bf16.mxu0 0
        %627 = vmatpush1.bf16.msra.mxu0 %v613
        %628 = vmatprep.subr.bf16.mxu0 0
        %629 = vmatpush1.bf16.msra.mxu0 %v614
        %630 = vmatprep.subr.bf16.mxu0 0
        %631 = vmatpush1.bf16.msra.mxu0 %v615
        %632 = vmatprep.subr.bf16.mxu0 0
        %633 = vmatpush1.bf16.msra.mxu0 0
        %634 = vmatprep.subr.bf16.mxu0 0
        %635 = vmatpush1.bf16.msra.mxu0 0
        %636 = vmatprep.subr.bf16.mxu0 0
        %637 = vmatpush1.bf16.msra.mxu0 0
        %638 = vmatprep.subr.bf16.mxu0 0
        %639 = vmatpush1.bf16.msra.mxu0 0
        %640 = vmatprep.subr.bf16.mxu0 0
        %641 = vmatpush1.bf16.msra.mxu0 0
        %642 = vmatprep.subr.bf16.mxu0 0
        %643 = vmatpush1.bf16.msra.mxu0 0
        %644 = vmatprep.subr.bf16.mxu0 0
        %645 = vmatpush1.bf16.msra.mxu0 0
        %646 = vmatprep.subr.bf16.mxu0 0
        %647 = vmatpush1.bf16.msra.mxu0 0
        %648 = vmatprep.subr.bf16.mxu0 0
        %649 = vmatpush1.bf16.msra.mxu0 0
        %650 = vmatprep.subr.bf16.mxu0 0
        %651 = vmatpush1.bf16.msra.mxu0 0
        %652 = vmatprep.subr.bf16.mxu0 0
        %653 = vmatpush1.bf16.msra.mxu0 0
        %654 = vmatprep.subr.bf16.mxu0 0
        %655 = vmatpush1.bf16.msra.mxu0 0
        %656 = vmatprep.mubr.bf16.mxu0 0
        %657 = vmatmul.mubr.bf16.gmra.mrb[0].mxu0 %v622
        %v658 = vpop.f32.mrb[0].mxu0
        %v659 = vadd.f32 %v594, %v658
        %v660 = vpop.f32.mrb[0].mxu0
        %v661 = vpop.f32.mrb[0].mxu0
        %v662 = vpop.f32.mrb[0].mxu0
        %663 = vdwg.mxu0
        %v664 = vld [vmem:[%s5] sm:$0xff]
        %v665 = vld [vmem:[%s8] sm:$0xf]
        %v666 = vld [vmem:[%s8 + $0x4] sm:$0xf]
        %v667 = vld [vmem:[%s8 + $0x8] sm:$0xf]
        %v668 = vld [vmem:[%s8 + $0xc] sm:$0xf]
        %v669 = vld [vmem:[%s8 + $0x10] sm:$0xf]
        %v670 = vld [vmem:[%s8 + $0x14] sm:$0xf]
        %v671 = vld [vmem:[%s8 + $0x18] sm:$0xf]
        %v672 = vld [vmem:[%s8 + $0x1c] sm:$0xf]
        %v673 = vld [vmem:[%s8 + $0x20] sm:$0xf]
        %v674 = vld [vmem:[%s8 + $0x24] sm:$0xf]
        %v675 = vld [vmem:[%s8 + $0x28] sm:$0xf]
        %v676 = vld [vmem:[%s8 + $0x2c] sm:$0xf]
        %v677 = vld [vmem:[%s8 + $0x30] sm:$0xf]
        %v678 = vld [vmem:[%s8 + $0x34] sm:$0xf]
        %v679 = vld [vmem:[%s8 + $0x38] sm:$0xf]
        %v680 = vld [vmem:[%s8 + $0x3c] sm:$0xf]
        %v681 = vld [vmem:[%s9] sm:$0xf]
        %v682 = vld [vmem:[%s9 + $0x4] sm:$0xf]
        %v683 = vld [vmem:[%s9 + $0x8] sm:$0xf]
        %v684 = vld [vmem:[%s9 + $0xc] sm:$0xf]
        %v685 = vld [vmem:[%s9 + $0x10] sm:$0xf]
        %v686 = vld [vmem:[%s9 + $0x14] sm:$0xf]
        %v687 = vld [vmem:[%s9 + $0x18] sm:$0xf]
        %v688 = vld [vmem:[%s9 + $0x1c] sm:$0xf]
        %v689 = vld [vmem:[%s9 + $0x20] sm:$0xf]
        %v690 = vld [vmem:[%s9 + $0x24] sm:$0xf]
        %v691 = vld [vmem:[%s9 + $0x28] sm:$0xf]
        %v692 = vld [vmem:[%s9 + $0x2c] sm:$0xf]
        %v693 = vld [vmem:[%s9 + $0x30] sm:$0xf]
        %v694 = vld [vmem:[%s9 + $0x34] sm:$0xf]
        %v695 = vld [vmem:[%s9 + $0x38] sm:$0xf]
        %v696 = vld [vmem:[%s9 + $0x3c] sm:$0xf]
        %v697 = vld [vmem:[%s10] sm:$0xf]
        %v698 = vld [vmem:[%s10 + $0x4] sm:$0xf]
        %v699 = vld [vmem:[%s10 + $0x8] sm:$0xf]
        %v700 = vld [vmem:[%s10 + $0xc] sm:$0xf]
        %v701 = vld [vmem:[%s10 + $0x10] sm:$0xf]
        %v702 = vld [vmem:[%s10 + $0x14] sm:$0xf]
        %v703 = vld [vmem:[%s10 + $0x18] sm:$0xf]
        %v704 = vld [vmem:[%s10 + $0x1c] sm:$0xf]
        %v705 = vld [vmem:[%s10 + $0x20] sm:$0xf]
        %v706 = vld [vmem:[%s10 + $0x24] sm:$0xf]
        %v707 = vld [vmem:[%s10 + $0x28] sm:$0xf]
        %v708 = vld [vmem:[%s10 + $0x2c] sm:$0xf]
        %v709 = vld [vmem:[%s10 + $0x30] sm:$0xf]
        %v710 = vld [vmem:[%s10 + $0x34] sm:$0xf]
        %v711 = vld [vmem:[%s10 + $0x38] sm:$0xf]
        %v712 = vld [vmem:[%s10 + $0x3c] sm:$0xf]
        %v713 = vld [vmem:[%s11] sm:$0xf]
        %v714 = vld [vmem:[%s11 + $0x4] sm:$0xf]
        %v715 = vld [vmem:[%s11 + $0x8] sm:$0xf]
        %v716 = vld [vmem:[%s11 + $0xc] sm:$0xf]
        %v717 = vpack.c.bf16 %v664, %v664
        %v718 = vpack.c.bf16 %v659, %v659
        %v723 = vunpack.c.l.b16 %v665
        %v724 = vunpack.c.l.b16 %v666
        %v725 = vunpack.c.l.b16 %v667
        %v726 = vunpack.c.l.b16 %v668
        %v727 = vpack.c.b16 %v724, %v723
        %v728 = vpack.c.b16 %v726, %v725
        %vm731 = vcmask 261120
        %v733 = vsel %vm731, %v717, 0
        %735 = vmatprep.subr.bf16.mxu0 0
        %736 = vmatpush1.bf16.msra.mxu0 %v727
        %737 = vmatprep.subr.bf16.mxu0 0
        %738 = vmatpush1.bf16.msra.mxu0 %v728
        %739 = vmatprep.subr.bf16.mxu0 0
        %740 = vmatpush1.bf16.msra.mxu0 0
        %741 = vmatprep.subr.bf16.mxu0 0
        %742 = vmatpush1.bf16.msra.mxu0 0
        %743 = vmatprep.subr.bf16.mxu0 0
        %744 = vmatpush1.bf16.msra.mxu0 0
        %745 = vmatprep.subr.bf16.mxu0 0
        %746 = vmatpush1.bf16.msra.mxu0 0
        %747 = vmatprep.subr.bf16.mxu0 0
        %748 = vmatpush1.bf16.msra.mxu0 0
        %749 = vmatprep.subr.bf16.mxu0 0
        %750 = vmatpush1.bf16.msra.mxu0 0
        %751 = vmatprep.subr.bf16.mxu0 0
        %752 = vmatpush1.bf16.msra.mxu0 0
        %753 = vmatprep.subr.bf16.mxu0 0
        %754 = vmatpush1.bf16.msra.mxu0 0
        %755 = vmatprep.subr.bf16.mxu0 0
        %756 = vmatpush1.bf16.msra.mxu0 0
        %757 = vmatprep.subr.bf16.mxu0 0
        %758 = vmatpush1.bf16.msra.mxu0 0
        %759 = vmatprep.subr.bf16.mxu0 0
        %760 = vmatpush1.bf16.msra.mxu0 0
        %761 = vmatprep.subr.bf16.mxu0 0
        %762 = vmatpush1.bf16.msra.mxu0 0
        %763 = vmatprep.subr.bf16.mxu0 0
        %764 = vmatpush1.bf16.msra.mxu0 0
        %765 = vmatprep.subr.bf16.mxu0 0
        %766 = vmatpush1.bf16.msra.mxu0 0
        %767 = vmatprep.mubr.bf16.mxu0 0
        %768 = vmatmul.mubr.bf16.gmra.mrb[0].mxu0 %v733
        %v769 = vpop.f32.mrb[0].mxu0
        %v770 = vadd.f32 0.0, %v769
        %v771 = vpop.f32.mrb[0].mxu0
        %v772 = vpop.f32.mrb[0].mxu0
        %v773 = vpop.f32.mrb[0].mxu0
        %774 = vdwg.mxu0
        %v779 = vunpack.c.l.b16 %v669
        %v780 = vunpack.c.l.b16 %v670
        %v781 = vunpack.c.l.b16 %v671
        %v782 = vunpack.c.l.b16 %v672
        %v783 = vpack.c.b16 %v780, %v779
        %v784 = vpack.c.b16 %v782, %v781
        %787 = vmatprep.subr.bf16.mxu0 0
        %788 = vmatpush1.bf16.msra.mxu0 %v783
        %789 = vmatprep.subr.bf16.mxu0 0
        %790 = vmatpush1.bf16.msra.mxu0 %v784
        %791 = vmatprep.subr.bf16.mxu0 0
        %792 = vmatpush1.bf16.msra.mxu0 0
        %793 = vmatprep.subr.bf16.mxu0 0
        %794 = vmatpush1.bf16.msra.mxu0 0
        %795 = vmatprep.subr.bf16.mxu0 0
        %796 = vmatpush1.bf16.msra.mxu0 0
        %797 = vmatprep.subr.bf16.mxu0 0
        %798 = vmatpush1.bf16.msra.mxu0 0
        %799 = vmatprep.subr.bf16.mxu0 0
        %800 = vmatpush1.bf16.msra.mxu0 0
        %801 = vmatprep.subr.bf16.mxu0 0
        %802 = vmatpush1.bf16.msra.mxu0 0
        %803 = vmatprep.subr.bf16.mxu0 0
        %804 = vmatpush1.bf16.msra.mxu0 0
        %805 = vmatprep.subr.bf16.mxu0 0
        %806 = vmatpush1.bf16.msra.mxu0 0
        %807 = vmatprep.subr.bf16.mxu0 0
        %808 = vmatpush1.bf16.msra.mxu0 0
        %809 = vmatprep.subr.bf16.mxu0 0
        %810 = vmatpush1.bf16.msra.mxu0 0
        %811 = vmatprep.subr.bf16.mxu0 0
        %812 = vmatpush1.bf16.msra.mxu0 0
        %813 = vmatprep.subr.bf16.mxu0 0
        %814 = vmatpush1.bf16.msra.mxu0 0
        %815 = vmatprep.subr.bf16.mxu0 0
        %816 = vmatpush1.bf16.msra.mxu0 0
        %817 = vmatprep.subr.bf16.mxu0 0
        %818 = vmatpush1.bf16.msra.mxu0 0
        %819 = vmatprep.mubr.bf16.mxu0 0
        %820 = vmatmul.mubr.bf16.gmra.mrb[0].mxu0 %v733
        %v821 = vpop.f32.mrb[0].mxu0
        %v822 = vadd.f32 0.0, %v821
        %v823 = vpop.f32.mrb[0].mxu0
        %v824 = vpop.f32.mrb[0].mxu0
        %v825 = vpop.f32.mrb[0].mxu0
        %826 = vdwg.mxu0
        %v831 = vunpack.c.l.b16 %v673
        %v832 = vunpack.c.l.b16 %v674
        %v833 = vunpack.c.l.b16 %v675
        %v834 = vunpack.c.l.b16 %v676
        %v835 = vpack.c.b16 %v832, %v831
        %v836 = vpack.c.b16 %v834, %v833
        %839 = vmatprep.subr.bf16.mxu0 0
        %840 = vmatpush1.bf16.msra.mxu0 %v835
        %841 = vmatprep.subr.bf16.mxu0 0
        %842 = vmatpush1.bf16.msra.mxu0 %v836
        %843 = vmatprep.subr.bf16.mxu0 0
        %844 = vmatpush1.bf16.msra.mxu0 0
        %845 = vmatprep.subr.bf16.mxu0 0
        %846 = vmatpush1.bf16.msra.mxu0 0
        %847 = vmatprep.subr.bf16.mxu0 0
        %848 = vmatpush1.bf16.msra.mxu0 0
        %849 = vmatprep.subr.bf16.mxu0 0
        %850 = vmatpush1.bf16.msra.mxu0 0
        %851 = vmatprep.subr.bf16.mxu0 0
        %852 = vmatpush1.bf16.msra.mxu0 0
        %853 = vmatprep.subr.bf16.mxu0 0
        %854 = vmatpush1.bf16.msra.mxu0 0
        %855 = vmatprep.subr.bf16.mxu0 0
        %856 = vmatpush1.bf16.msra.mxu0 0
        %857 = vmatprep.subr.bf16.mxu0 0
        %858 = vmatpush1.bf16.msra.mxu0 0
        %859 = vmatprep.subr.bf16.mxu0 0
        %860 = vmatpush1.bf16.msra.mxu0 0
        %861 = vmatprep.subr.bf16.mxu0 0
        %862 = vmatpush1.bf16.msra.mxu0 0
        %863 = vmatprep.subr.bf16.mxu0 0
        %864 = vmatpush1.bf16.msra.mxu0 0
        %865 = vmatprep.subr.bf16.mxu0 0
        %866 = vmatpush1.bf16.msra.mxu0 0
        %867 = vmatprep.subr.bf16.mxu0 0
        %868 = vmatpush1.bf16.msra.mxu0 0
        %869 = vmatprep.subr.bf16.mxu0 0
        %870 = vmatpush1.bf16.msra.mxu0 0
        %871 = vmatprep.mubr.bf16.mxu0 0
        %872 = vmatmul.mubr.bf16.gmra.mrb[0].mxu0 %v733
        %v873 = vpop.f32.mrb[0].mxu0
        %v874 = vadd.f32 0.0, %v873
        %v875 = vpop.f32.mrb[0].mxu0
        %v876 = vpop.f32.mrb[0].mxu0
        %v877 = vpop.f32.mrb[0].mxu0
        %878 = vdwg.mxu0
        %v883 = vunpack.c.l.b16 %v677
        %v884 = vunpack.c.l.b16 %v678
        %v885 = vunpack.c.l.b16 %v679
        %v886 = vunpack.c.l.b16 %v680
        %v887 = vpack.c.b16 %v884, %v883
        %v888 = vpack.c.b16 %v886, %v885
        %891 = vmatprep.subr.bf16.mxu0 0
        %892 = vmatpush1.bf16.msra.mxu0 %v887
        %893 = vmatprep.subr.bf16.mxu0 0
        %894 = vmatpush1.bf16.msra.mxu0 %v888
        %895 = vmatprep.subr.bf16.mxu0 0
        %896 = vmatpush1.bf16.msra.mxu0 0
        %897 = vmatprep.subr.bf16.mxu0 0
        %898 = vmatpush1.bf16.msra.mxu0 0
        %899 = vmatprep.subr.bf16.mxu0 0
        %900 = vmatpush1.bf16.msra.mxu0 0
        %901 = vmatprep.subr.bf16.mxu0 0
        %902 = vmatpush1.bf16.msra.mxu0 0
        %903 = vmatprep.subr.bf16.mxu0 0
        %904 = vmatpush1.bf16.msra.mxu0 0
        %905 = vmatprep.subr.bf16.mxu0 0
        %906 = vmatpush1.bf16.msra.mxu0 0
        %907 = vmatprep.subr.bf16.mxu0 0
        %908 = vmatpush1.bf16.msra.mxu0 0
        %909 = vmatprep.subr.bf16.mxu0 0
        %910 = vmatpush1.bf16.msra.mxu0 0
        %911 = vmatprep.subr.bf16.mxu0 0
        %912 = vmatpush1.bf16.msra.mxu0 0
        %913 = vmatprep.subr.bf16.mxu0 0
        %914 = vmatpush1.bf16.msra.mxu0 0
        %915 = vmatprep.subr.bf16.mxu0 0
        %916 = vmatpush1.bf16.msra.mxu0 0
        %917 = vmatprep.subr.bf16.mxu0 0
        %918 = vmatpush1.bf16.msra.mxu0 0
        %919 = vmatprep.subr.bf16.mxu0 0
        %920 = vmatpush1.bf16.msra.mxu0 0
        %921 = vmatprep.subr.bf16.mxu0 0
        %922 = vmatpush1.bf16.msra.mxu0 0
        %923 = vmatprep.mubr.bf16.mxu0 0
        %924 = vmatmul.mubr.bf16.gmra.mrb[0].mxu0 %v733
        %v925 = vpop.f32.mrb[0].mxu0
        %v926 = vadd.f32 0.0, %v925
        %v927 = vpop.f32.mrb[0].mxu0
        %v928 = vpop.f32.mrb[0].mxu0
        %v929 = vpop.f32.mrb[0].mxu0
        %930 = vdwg.mxu0
        %v935 = vunpack.c.l.b16 %v681
        %v936 = vunpack.c.l.b16 %v682
        %v937 = vunpack.c.l.b16 %v683
        %v938 = vunpack.c.l.b16 %v684
        %v939 = vpack.c.b16 %v936, %v935
        %v940 = vpack.c.b16 %v938, %v937
        %v944 = vsel %vm731, %v718, 0
        %946 = vmatprep.subr.bf16.mxu0 0
        %947 = vmatpush1.bf16.msra.mxu0 %v939
        %948 = vmatprep.subr.bf16.mxu0 0
        %949 = vmatpush1.bf16.msra.mxu0 %v940
        %950 = vmatprep.subr.bf16.mxu0 0
        %951 = vmatpush1.bf16.msra.mxu0 0
        %952 = vmatprep.subr.bf16.mxu0 0
        %953 = vmatpush1.bf16.msra.mxu0 0
        %954 = vmatprep.subr.bf16.mxu0 0
        %955 = vmatpush1.bf16.msra.mxu0 0
        %956 = vmatprep.subr.bf16.mxu0 0
        %957 = vmatpush1.bf16.msra.mxu0 0
        %958 = vmatprep.subr.bf16.mxu0 0
        %959 = vmatpush1.bf16.msra.mxu0 0
        %960 = vmatprep.subr.bf16.mxu0 0
        %961 = vmatpush1.bf16.msra.mxu0 0
        %962 = vmatprep.subr.bf16.mxu0 0
        %963 = vmatpush1.bf16.msra.mxu0 0
        %964 = vmatprep.subr.bf16.mxu0 0
        %965 = vmatpush1.bf16.msra.mxu0 0
        %966 = vmatprep.subr.bf16.mxu0 0
        %967 = vmatpush1.bf16.msra.mxu0 0
        %968 = vmatprep.subr.bf16.mxu0 0
        %969 = vmatpush1.bf16.msra.mxu0 0
        %970 = vmatprep.subr.bf16.mxu0 0
        %971 = vmatpush1.bf16.msra.mxu0 0
        %972 = vmatprep.subr.bf16.mxu0 0
        %973 = vmatpush1.bf16.msra.mxu0 0
        %974 = vmatprep.subr.bf16.mxu0 0
        %975 = vmatpush1.bf16.msra.mxu0 0
        %976 = vmatprep.subr.bf16.mxu0 0
        %977 = vmatpush1.bf16.msra.mxu0 0
        %978 = vmatprep.mubr.bf16.mxu0 0
        %979 = vmatmul.mubr.bf16.gmra.mrb[0].mxu0 %v944
        %v980 = vpop.f32.mrb[0].mxu0
        %v981 = vadd.f32 0.0, %v980
        %v982 = vpop.f32.mrb[0].mxu0
        %v983 = vpop.f32.mrb[0].mxu0
        %v984 = vpop.f32.mrb[0].mxu0
        %985 = vdwg.mxu0
        %v990 = vunpack.c.l.b16 %v685
        %v991 = vunpack.c.l.b16 %v686
        %v992 = vunpack.c.l.b16 %v687
        %v993 = vunpack.c.l.b16 %v688
        %v994 = vpack.c.b16 %v991, %v990
        %v995 = vpack.c.b16 %v993, %v992
        %998 = vmatprep.subr.bf16.mxu0 0
        %999 = vmatpush1.bf16.msra.mxu0 %v994
        %1000 = vmatprep.subr.bf16.mxu0 0
        %1001 = vmatpush1.bf16.msra.mxu0 %v995
        %1002 = vmatprep.subr.bf16.mxu0 0
        %1003 = vmatpush1.bf16.msra.mxu0 0
        %1004 = vmatprep.subr.bf16.mxu0 0
        %1005 = vmatpush1.bf16.msra.mxu0 0
        %1006 = vmatprep.subr.bf16.mxu0 0
        %1007 = vmatpush1.bf16.msra.mxu0 0
        %1008 = vmatprep.subr.bf16.mxu0 0
        %1009 = vmatpush1.bf16.msra.mxu0 0
        %1010 = vmatprep.subr.bf16.mxu0 0
        %1011 = vmatpush1.bf16.msra.mxu0 0
        %1012 = vmatprep.subr.bf16.mxu0 0
        %1013 = vmatpush1.bf16.msra.mxu0 0
        %1014 = vmatprep.subr.bf16.mxu0 0
        %1015 = vmatpush1.bf16.msra.mxu0 0
        %1016 = vmatprep.subr.bf16.mxu0 0
        %1017 = vmatpush1.bf16.msra.mxu0 0
        %1018 = vmatprep.subr.bf16.mxu0 0
        %1019 = vmatpush1.bf16.msra.mxu0 0
        %1020 = vmatprep.subr.bf16.mxu0 0
        %1021 = vmatpush1.bf16.msra.mxu0 0
        %1022 = vmatprep.subr.bf16.mxu0 0
        %1023 = vmatpush1.bf16.msra.mxu0 0
        %1024 = vmatprep.subr.bf16.mxu0 0
        %1025 = vmatpush1.bf16.msra.mxu0 0
        %1026 = vmatprep.subr.bf16.mxu0 0
        %1027 = vmatpush1.bf16.msra.mxu0 0
        %1028 = vmatprep.subr.bf16.mxu0 0
        %1029 = vmatpush1.bf16.msra.mxu0 0
        %1030 = vmatprep.mubr.bf16.mxu0 0
        %1031 = vmatmul.mubr.bf16.gmra.mrb[0].mxu0 %v944
        %v1032 = vpop.f32.mrb[0].mxu0
        %v1033 = vadd.f32 0.0, %v1032
        %v1034 = vpop.f32.mrb[0].mxu0
        %v1035 = vpop.f32.mrb[0].mxu0
        %v1036 = vpop.f32.mrb[0].mxu0
        %1037 = vdwg.mxu0
        %v1042 = vunpack.c.l.b16 %v689
        %v1043 = vunpack.c.l.b16 %v690
        %v1044 = vunpack.c.l.b16 %v691
        %v1045 = vunpack.c.l.b16 %v692
        %v1046 = vpack.c.b16 %v1043, %v1042
        %v1047 = vpack.c.b16 %v1045, %v1044
        %1050 = vmatprep.subr.bf16.mxu0 0
        %1051 = vmatpush1.bf16.msra.mxu0 %v1046
        %1052 = vmatprep.subr.bf16.mxu0 0
        %1053 = vmatpush1.bf16.msra.mxu0 %v1047
        %1054 = vmatprep.subr.bf16.mxu0 0
        %1055 = vmatpush1.bf16.msra.mxu0 0
        %1056 = vmatprep.subr.bf16.mxu0 0
        %1057 = vmatpush1.bf16.msra.mxu0 0
        %1058 = vmatprep.subr.bf16.mxu0 0
        %1059 = vmatpush1.bf16.msra.mxu0 0
        %1060 = vmatprep.subr.bf16.mxu0 0
        %1061 = vmatpush1.bf16.msra.mxu0 0
        %1062 = vmatprep.subr.bf16.mxu0 0
        %1063 = vmatpush1.bf16.msra.mxu0 0
        %1064 = vmatprep.subr.bf16.mxu0 0
        %1065 = vmatpush1.bf16.msra.mxu0 0
        %1066 = vmatprep.subr.bf16.mxu0 0
        %1067 = vmatpush1.bf16.msra.mxu0 0
        %1068 = vmatprep.subr.bf16.mxu0 0
        %1069 = vmatpush1.bf16.msra.mxu0 0
        %1070 = vmatprep.subr.bf16.mxu0 0
        %1071 = vmatpush1.bf16.msra.mxu0 0
        %1072 = vmatprep.subr.bf16.mxu0 0
        %1073 = vmatpush1.bf16.msra.mxu0 0
        %1074 = vmatprep.subr.bf16.mxu0 0
        %1075 = vmatpush1.bf16.msra.mxu0 0
        %1076 = vmatprep.subr.bf16.mxu0 0
        %1077 = vmatpush1.bf16.msra.mxu0 0
        %1078 = vmatprep.subr.bf16.mxu0 0
        %1079 = vmatpush1.bf16.msra.mxu0 0
        %1080 = vmatprep.subr.bf16.mxu0 0
        %1081 = vmatpush1.bf16.msra.mxu0 0
        %1082 = vmatprep.mubr.bf16.mxu0 0
        %1083 = vmatmul.mubr.bf16.gmra.mrb[0].mxu0 %v944
        %v1084 = vpop.f32.mrb[0].mxu0
        %v1085 = vadd.f32 0.0, %v1084
        %v1086 = vpop.f32.mrb[0].mxu0
        %v1087 = vpop.f32.mrb[0].mxu0
        %v1088 = vpop.f32.mrb[0].mxu0
        %1089 = vdwg.mxu0
        %v1094 = vunpack.c.l.b16 %v693
        %v1095 = vunpack.c.l.b16 %v694
        %v1096 = vunpack.c.l.b16 %v695
        %v1097 = vunpack.c.l.b16 %v696
        %v1098 = vpack.c.b16 %v1095, %v1094
        %v1099 = vpack.c.b16 %v1097, %v1096
        %1102 = vmatprep.subr.bf16.mxu0 0
        %1103 = vmatpush1.bf16.msra.mxu0 %v1098
        %1104 = vmatprep.subr.bf16.mxu0 0
        %1105 = vmatpush1.bf16.msra.mxu0 %v1099
        %1106 = vmatprep.subr.bf16.mxu0 0
        %1107 = vmatpush1.bf16.msra.mxu0 0
        %1108 = vmatprep.subr.bf16.mxu0 0
        %1109 = vmatpush1.bf16.msra.mxu0 0
        %1110 = vmatprep.subr.bf16.mxu0 0
        %1111 = vmatpush1.bf16.msra.mxu0 0
        %1112 = vmatprep.subr.bf16.mxu0 0
        %1113 = vmatpush1.bf16.msra.mxu0 0
        %1114 = vmatprep.subr.bf16.mxu0 0
        %1115 = vmatpush1.bf16.msra.mxu0 0
        %1116 = vmatprep.subr.bf16.mxu0 0
        %1117 = vmatpush1.bf16.msra.mxu0 0
        %1118 = vmatprep.subr.bf16.mxu0 0
        %1119 = vmatpush1.bf16.msra.mxu0 0
        %1120 = vmatprep.subr.bf16.mxu0 0
        %1121 = vmatpush1.bf16.msra.mxu0 0
        %1122 = vmatprep.subr.bf16.mxu0 0
        %1123 = vmatpush1.bf16.msra.mxu0 0
        %1124 = vmatprep.subr.bf16.mxu0 0
        %1125 = vmatpush1.bf16.msra.mxu0 0
        %1126 = vmatprep.subr.bf16.mxu0 0
        %1127 = vmatpush1.bf16.msra.mxu0 0
        %1128 = vmatprep.subr.bf16.mxu0 0
        %1129 = vmatpush1.bf16.msra.mxu0 0
        %1130 = vmatprep.subr.bf16.mxu0 0
        %1131 = vmatpush1.bf16.msra.mxu0 0
        %1132 = vmatprep.subr.bf16.mxu0 0
        %1133 = vmatpush1.bf16.msra.mxu0 0
        %1134 = vmatprep.mubr.bf16.mxu0 0
        %1135 = vmatmul.mubr.bf16.gmra.mrb[0].mxu0 %v944
        %v1136 = vpop.f32.mrb[0].mxu0
        %v1137 = vadd.f32 0.0, %v1136
        %v1138 = vpop.f32.mrb[0].mxu0
        %v1139 = vpop.f32.mrb[0].mxu0
        %v1140 = vpop.f32.mrb[0].mxu0
        %1141 = vdwg.mxu0
        %v1146 = vunpack.c.l.b16 %v697
        %v1147 = vunpack.c.l.b16 %v698
        %v1148 = vunpack.c.l.b16 %v699
        %v1149 = vunpack.c.l.b16 %v700
        %v1150 = vpack.c.b16 %v1147, %v1146
        %v1151 = vpack.c.b16 %v1149, %v1148
        %1154 = vmatprep.subr.bf16.mxu0 0
        %1155 = vmatpush1.bf16.msra.mxu0 %v1150
        %1156 = vmatprep.subr.bf16.mxu0 0
        %1157 = vmatpush1.bf16.msra.mxu0 %v1151
        %1158 = vmatprep.subr.bf16.mxu0 0
        %1159 = vmatpush1.bf16.msra.mxu0 0
        %1160 = vmatprep.subr.bf16.mxu0 0
        %1161 = vmatpush1.bf16.msra.mxu0 0
        %1162 = vmatprep.subr.bf16.mxu0 0
        %1163 = vmatpush1.bf16.msra.mxu0 0
        %1164 = vmatprep.subr.bf16.mxu0 0
        %1165 = vmatpush1.bf16.msra.mxu0 0
        %1166 = vmatprep.subr.bf16.mxu0 0
        %1167 = vmatpush1.bf16.msra.mxu0 0
        %1168 = vmatprep.subr.bf16.mxu0 0
        %1169 = vmatpush1.bf16.msra.mxu0 0
        %1170 = vmatprep.subr.bf16.mxu0 0
        %1171 = vmatpush1.bf16.msra.mxu0 0
        %1172 = vmatprep.subr.bf16.mxu0 0
        %1173 = vmatpush1.bf16.msra.mxu0 0
        %1174 = vmatprep.subr.bf16.mxu0 0
        %1175 = vmatpush1.bf16.msra.mxu0 0
        %1176 = vmatprep.subr.bf16.mxu0 0
        %1177 = vmatpush1.bf16.msra.mxu0 0
        %1178 = vmatprep.subr.bf16.mxu0 0
        %1179 = vmatpush1.bf16.msra.mxu0 0
        %1180 = vmatprep.subr.bf16.mxu0 0
        %1181 = vmatpush1.bf16.msra.mxu0 0
        %1182 = vmatprep.subr.bf16.mxu0 0
        %1183 = vmatpush1.bf16.msra.mxu0 0
        %1184 = vmatprep.subr.bf16.mxu0 0
        %1185 = vmatpush1.bf16.msra.mxu0 0
        %1186 = vmatprep.mubr.bf16.mxu0 0
        %1187 = vmatmul.mubr.bf16.gmra.mrb[0].mxu0 %v944
        %v1188 = vpop.f32.mrb[0].mxu0
        %v1189 = vadd.f32 0.0, %v1188
        %v1190 = vpop.f32.mrb[0].mxu0
        %v1191 = vpop.f32.mrb[0].mxu0
        %v1192 = vpop.f32.mrb[0].mxu0
        %1193 = vdwg.mxu0
        %v1198 = vunpack.c.l.b16 %v701
        %v1199 = vunpack.c.l.b16 %v702
        %v1200 = vunpack.c.l.b16 %v703
        %v1201 = vunpack.c.l.b16 %v704
        %v1202 = vpack.c.b16 %v1199, %v1198
        %v1203 = vpack.c.b16 %v1201, %v1200
        %1206 = vmatprep.subr.bf16.mxu0 0
        %1207 = vmatpush1.bf16.msra.mxu0 %v1202
        %1208 = vmatprep.subr.bf16.mxu0 0
        %1209 = vmatpush1.bf16.msra.mxu0 %v1203
        %1210 = vmatprep.subr.bf16.mxu0 0
        %1211 = vmatpush1.bf16.msra.mxu0 0
        %1212 = vmatprep.subr.bf16.mxu0 0
        %1213 = vmatpush1.bf16.msra.mxu0 0
        %1214 = vmatprep.subr.bf16.mxu0 0
        %1215 = vmatpush1.bf16.msra.mxu0 0
        %1216 = vmatprep.subr.bf16.mxu0 0
        %1217 = vmatpush1.bf16.msra.mxu0 0
        %1218 = vmatprep.subr.bf16.mxu0 0
        %1219 = vmatpush1.bf16.msra.mxu0 0
        %1220 = vmatprep.subr.bf16.mxu0 0
        %1221 = vmatpush1.bf16.msra.mxu0 0
        %1222 = vmatprep.subr.bf16.mxu0 0
        %1223 = vmatpush1.bf16.msra.mxu0 0
        %1224 = vmatprep.subr.bf16.mxu0 0
        %1225 = vmatpush1.bf16.msra.mxu0 0
        %1226 = vmatprep.subr.bf16.mxu0 0
        %1227 = vmatpush1.bf16.msra.mxu0 0
        %1228 = vmatprep.subr.bf16.mxu0 0
        %1229 = vmatpush1.bf16.msra.mxu0 0
        %1230 = vmatprep.subr.bf16.mxu0 0
        %1231 = vmatpush1.bf16.msra.mxu0 0
        %1232 = vmatprep.subr.bf16.mxu0 0
        %1233 = vmatpush1.bf16.msra.mxu0 0
        %1234 = vmatprep.subr.bf16.mxu0 0
        %1235 = vmatpush1.bf16.msra.mxu0 0
        %1236 = vmatprep.subr.bf16.mxu0 0
        %1237 = vmatpush1.bf16.msra.mxu0 0
        %1238 = vmatprep.mubr.bf16.mxu0 0
        %1239 = vmatmul.mubr.bf16.gmra.mrb[0].mxu0 %v944
        %v1240 = vpop.f32.mrb[0].mxu0
        %v1241 = vadd.f32 0.0, %v1240
        %v1242 = vpop.f32.mrb[0].mxu0
        %v1243 = vpop.f32.mrb[0].mxu0
        %v1244 = vpop.f32.mrb[0].mxu0
        %1245 = vdwg.mxu0
        %v1250 = vunpack.c.l.b16 %v705
        %v1251 = vunpack.c.l.b16 %v706
        %v1252 = vunpack.c.l.b16 %v707
        %v1253 = vunpack.c.l.b16 %v708
        %v1254 = vpack.c.b16 %v1251, %v1250
        %v1255 = vpack.c.b16 %v1253, %v1252
        %1258 = vmatprep.subr.bf16.mxu0 0
        %1259 = vmatpush1.bf16.msra.mxu0 %v1254
        %1260 = vmatprep.subr.bf16.mxu0 0
        %1261 = vmatpush1.bf16.msra.mxu0 %v1255
        %1262 = vmatprep.subr.bf16.mxu0 0
        %1263 = vmatpush1.bf16.msra.mxu0 0
        %1264 = vmatprep.subr.bf16.mxu0 0
        %1265 = vmatpush1.bf16.msra.mxu0 0
        %1266 = vmatprep.subr.bf16.mxu0 0
        %1267 = vmatpush1.bf16.msra.mxu0 0
        %1268 = vmatprep.subr.bf16.mxu0 0
        %1269 = vmatpush1.bf16.msra.mxu0 0
        %1270 = vmatprep.subr.bf16.mxu0 0
        %1271 = vmatpush1.bf16.msra.mxu0 0
        %1272 = vmatprep.subr.bf16.mxu0 0
        %1273 = vmatpush1.bf16.msra.mxu0 0
        %1274 = vmatprep.subr.bf16.mxu0 0
        %1275 = vmatpush1.bf16.msra.mxu0 0
        %1276 = vmatprep.subr.bf16.mxu0 0
        %1277 = vmatpush1.bf16.msra.mxu0 0
        %1278 = vmatprep.subr.bf16.mxu0 0
        %1279 = vmatpush1.bf16.msra.mxu0 0
        %1280 = vmatprep.subr.bf16.mxu0 0
        %1281 = vmatpush1.bf16.msra.mxu0 0
        %1282 = vmatprep.subr.bf16.mxu0 0
        %1283 = vmatpush1.bf16.msra.mxu0 0
        %1284 = vmatprep.subr.bf16.mxu0 0
        %1285 = vmatpush1.bf16.msra.mxu0 0
        %1286 = vmatprep.subr.bf16.mxu0 0
        %1287 = vmatpush1.bf16.msra.mxu0 0
        %1288 = vmatprep.subr.bf16.mxu0 0
        %1289 = vmatpush1.bf16.msra.mxu0 0
        %1290 = vmatprep.mubr.bf16.mxu0 0
        %1291 = vmatmul.mubr.bf16.gmra.mrb[0].mxu0 %v944
        %v1292 = vpop.f32.mrb[0].mxu0
        %v1293 = vadd.f32 0.0, %v1292
        %v1294 = vpop.f32.mrb[0].mxu0
        %v1295 = vpop.f32.mrb[0].mxu0
        %v1296 = vpop.f32.mrb[0].mxu0
        %1297 = vdwg.mxu0
        %v1302 = vunpack.c.l.b16 %v709
        %v1303 = vunpack.c.l.b16 %v710
        %v1304 = vunpack.c.l.b16 %v711
        %v1305 = vunpack.c.l.b16 %v712
        %v1306 = vpack.c.b16 %v1303, %v1302
        %v1307 = vpack.c.b16 %v1305, %v1304
        %1310 = vmatprep.subr.bf16.mxu0 0
        %1311 = vmatpush1.bf16.msra.mxu0 %v1306
        %1312 = vmatprep.subr.bf16.mxu0 0
        %1313 = vmatpush1.bf16.msra.mxu0 %v1307
        %1314 = vmatprep.subr.bf16.mxu0 0
        %1315 = vmatpush1.bf16.msra.mxu0 0
        %1316 = vmatprep.subr.bf16.mxu0 0
        %1317 = vmatpush1.bf16.msra.mxu0 0
        %1318 = vmatprep.subr.bf16.mxu0 0
        %1319 = vmatpush1.bf16.msra.mxu0 0
        %1320 = vmatprep.subr.bf16.mxu0 0
        %1321 = vmatpush1.bf16.msra.mxu0 0
        %1322 = vmatprep.subr.bf16.mxu0 0
        %1323 = vmatpush1.bf16.msra.mxu0 0
        %1324 = vmatprep.subr.bf16.mxu0 0
        %1325 = vmatpush1.bf16.msra.mxu0 0
        %1326 = vmatprep.subr.bf16.mxu0 0
        %1327 = vmatpush1.bf16.msra.mxu0 0
        %1328 = vmatprep.subr.bf16.mxu0 0
        %1329 = vmatpush1.bf16.msra.mxu0 0
        %1330 = vmatprep.subr.bf16.mxu0 0
        %1331 = vmatpush1.bf16.msra.mxu0 0
        %1332 = vmatprep.subr.bf16.mxu0 0
        %1333 = vmatpush1.bf16.msra.mxu0 0
        %1334 = vmatprep.subr.bf16.mxu0 0
        %1335 = vmatpush1.bf16.msra.mxu0 0
        %1336 = vmatprep.subr.bf16.mxu0 0
        %1337 = vmatpush1.bf16.msra.mxu0 0
        %1338 = vmatprep.subr.bf16.mxu0 0
        %1339 = vmatpush1.bf16.msra.mxu0 0
        %1340 = vmatprep.subr.bf16.mxu0 0
        %1341 = vmatpush1.bf16.msra.mxu0 0
        %1342 = vmatprep.mubr.bf16.mxu0 0
        %1343 = vmatmul.mubr.bf16.gmra.mrb[0].mxu0 %v944
        %v1344 = vpop.f32.mrb[0].mxu0
        %v1345 = vadd.f32 0.0, %v1344
        %v1346 = vpop.f32.mrb[0].mxu0
        %v1347 = vpop.f32.mrb[0].mxu0
        %v1348 = vpop.f32.mrb[0].mxu0
        %1349 = vdwg.mxu0
        %v1350 = vpack.c.bf16 %v770, %v770
        %v1351 = vpack.c.bf16 %v822, %v822
        %v1352 = vpack.c.bf16 %v874, %v874
        %v1353 = vpack.c.bf16 %v926, %v926
        %v1354 = vpack.c.bf16 %v981, %v981
        %v1355 = vpack.c.bf16 %v1033, %v1033
        %v1356 = vpack.c.bf16 %v1085, %v1085
        %v1357 = vpack.c.bf16 %v1137, %v1137
        %vm1358 = vcmask 64512
        %v1360 = vsel %vm1358, %v1350, 0
        %v1363 = vsel %vm1358, %v1354, 0
        %1365 = vmatprep.subr.bf16.mxu0 0
        %1366 = vmatpush1.bf16.xpose.msra.mxu0 %v1363
        %1367 = vmatprep.subr.bf16.mxu0 0
        %1368 = vmatpush1.bf16.xpose.msra.mxu0 0
        %1369 = vmatprep.subr.bf16.mxu0 0
        %1370 = vmatpush1.bf16.xpose.msra.mxu0 0
        %1371 = vmatprep.subr.bf16.mxu0 0
        %1372 = vmatpush1.bf16.xpose.msra.mxu0 0
        %1373 = vmatprep.subr.bf16.mxu0 0
        %1374 = vmatpush1.bf16.xpose.msra.mxu0 0
        %1375 = vmatprep.subr.bf16.mxu0 0
        %1376 = vmatpush1.bf16.xpose.msra.mxu0 0
        %1377 = vmatprep.subr.bf16.mxu0 0
        %1378 = vmatpush1.bf16.xpose.msra.mxu0 0
        %1379 = vmatprep.subr.bf16.mxu0 0
        %1380 = vmatpush1.bf16.xpose.msra.mxu0 0
        %1381 = vmatprep.subr.bf16.mxu0 0
        %1382 = vmatpush1.bf16.xpose.msra.mxu0 0
        %1383 = vmatprep.subr.bf16.mxu0 0
        %1384 = vmatpush1.bf16.xpose.msra.mxu0 0
        %1385 = vmatprep.subr.bf16.mxu0 0
        %1386 = vmatpush1.bf16.xpose.msra.mxu0 0
        %1387 = vmatprep.subr.bf16.mxu0 0
        %1388 = vmatpush1.bf16.xpose.msra.mxu0 0
        %1389 = vmatprep.subr.bf16.mxu0 0
        %1390 = vmatpush1.bf16.xpose.msra.mxu0 0
        %1391 = vmatprep.subr.bf16.mxu0 0
        %1392 = vmatpush1.bf16.xpose.msra.mxu0 0
        %1393 = vmatprep.subr.bf16.mxu0 0
        %1394 = vmatpush1.bf16.xpose.msra.mxu0 0
        %1395 = vmatprep.subr.bf16.mxu0 0
        %1396 = vmatpush1.bf16.xpose.msra.mxu0 0
        %1397 = vmatprep.mubr.bf16.mxu0 0
        %1398 = vmatmul.mubr.bf16.gmra.mrb[0].mxu0 %v1360
        %v1399 = vpop.f32.mrb[0].mxu0
        %v1400 = vadd.f32 0.0, %v1399
        %v1401 = vpop.f32.mrb[0].mxu0
        %v1402 = vpop.f32.mrb[0].mxu0
        %v1403 = vpop.f32.mrb[0].mxu0
        %1404 = vdwg.mxu0
        %v1406 = vsel %vm1358, %v1351, 0
        %v1409 = vsel %vm1358, %v1355, 0
        %1411 = vmatprep.subr.bf16.mxu0 0
        %1412 = vmatpush1.bf16.xpose.msra.mxu0 %v1409
        %1413 = vmatprep.subr.bf16.mxu0 0
        %1414 = vmatpush1.bf16.xpose.msra.mxu0 0
        %1415 = vmatprep.subr.bf16.mxu0 0
        %1416 = vmatpush1.bf16.xpose.msra.mxu0 0
        %1417 = vmatprep.subr.bf16.mxu0 0
        %1418 = vmatpush1.bf16.xpose.msra.mxu0 0
        %1419 = vmatprep.subr.bf16.mxu0 0
        %1420 = vmatpush1.bf16.xpose.msra.mxu0 0
        %1421 = vmatprep.subr.bf16.mxu0 0
        %1422 = vmatpush1.bf16.xpose.msra.mxu0 0
        %1423 = vmatprep.subr.bf16.mxu0 0
        %1424 = vmatpush1.bf16.xpose.msra.mxu0 0
        %1425 = vmatprep.subr.bf16.mxu0 0
        %1426 = vmatpush1.bf16.xpose.msra.mxu0 0
        %1427 = vmatprep.subr.bf16.mxu0 0
        %1428 = vmatpush1.bf16.xpose.msra.mxu0 0
        %1429 = vmatprep.subr.bf16.mxu0 0
        %1430 = vmatpush1.bf16.xpose.msra.mxu0 0
        %1431 = vmatprep.subr.bf16.mxu0 0
        %1432 = vmatpush1.bf16.xpose.msra.mxu0 0
        %1433 = vmatprep.subr.bf16.mxu0 0
        %1434 = vmatpush1.bf16.xpose.msra.mxu0 0
        %1435 = vmatprep.subr.bf16.mxu0 0
        %1436 = vmatpush1.bf16.xpose.msra.mxu0 0
        %1437 = vmatprep.subr.bf16.mxu0 0
        %1438 = vmatpush1.bf16.xpose.msra.mxu0 0
        %1439 = vmatprep.subr.bf16.mxu0 0
        %1440 = vmatpush1.bf16.xpose.msra.mxu0 0
        %1441 = vmatprep.subr.bf16.mxu0 0
        %1442 = vmatpush1.bf16.xpose.msra.mxu0 0
        %1443 = vmatprep.mubr.bf16.mxu0 0
        %1444 = vmatmul.mubr.bf16.gmra.mrb[0].mxu0 %v1406
        %v1445 = vpop.f32.mrb[0].mxu0
        %v1446 = vadd.f32 0.0, %v1445
        %v1447 = vpop.f32.mrb[0].mxu0
        %v1448 = vpop.f32.mrb[0].mxu0
        %v1449 = vpop.f32.mrb[0].mxu0
        %1450 = vdwg.mxu0
        %v1452 = vsel %vm1358, %v1352, 0
        %v1455 = vsel %vm1358, %v1356, 0
        %1457 = vmatprep.subr.bf16.mxu0 0
        %1458 = vmatpush1.bf16.xpose.msra.mxu0 %v1455
        %1459 = vmatprep.subr.bf16.mxu0 0
        %1460 = vmatpush1.bf16.xpose.msra.mxu0 0
        %1461 = vmatprep.subr.bf16.mxu0 0
        %1462 = vmatpush1.bf16.xpose.msra.mxu0 0
        %1463 = vmatprep.subr.bf16.mxu0 0
        %1464 = vmatpush1.bf16.xpose.msra.mxu0 0
        %1465 = vmatprep.subr.bf16.mxu0 0
        %1466 = vmatpush1.bf16.xpose.msra.mxu0 0
        %1467 = vmatprep.subr.bf16.mxu0 0
        %1468 = vmatpush1.bf16.xpose.msra.mxu0 0
        %1469 = vmatprep.subr.bf16.mxu0 0
        %1470 = vmatpush1.bf16.xpose.msra.mxu0 0
        %1471 = vmatprep.subr.bf16.mxu0 0
        %1472 = vmatpush1.bf16.xpose.msra.mxu0 0
        %1473 = vmatprep.subr.bf16.mxu0 0
        %1474 = vmatpush1.bf16.xpose.msra.mxu0 0
        %1475 = vmatprep.subr.bf16.mxu0 0
        %1476 = vmatpush1.bf16.xpose.msra.mxu0 0
        %1477 = vmatprep.subr.bf16.mxu0 0
        %1478 = vmatpush1.bf16.xpose.msra.mxu0 0
        %1479 = vmatprep.subr.bf16.mxu0 0
        %1480 = vmatpush1.bf16.xpose.msra.mxu0 0
        %1481 = vmatprep.subr.bf16.mxu0 0
        %1482 = vmatpush1.bf16.xpose.msra.mxu0 0
        %1483 = vmatprep.subr.bf16.mxu0 0
        %1484 = vmatpush1.bf16.xpose.msra.mxu0 0
        %1485 = vmatprep.subr.bf16.mxu0 0
        %1486 = vmatpush1.bf16.xpose.msra.mxu0 0
        %1487 = vmatprep.subr.bf16.mxu0 0
        %1488 = vmatpush1.bf16.xpose.msra.mxu0 0
        %1489 = vmatprep.mubr.bf16.mxu0 0
        %1490 = vmatmul.mubr.bf16.gmra.mrb[0].mxu0 %v1452
        %v1491 = vpop.f32.mrb[0].mxu0
        %v1492 = vadd.f32 0.0, %v1491
        %v1493 = vpop.f32.mrb[0].mxu0
        %v1494 = vpop.f32.mrb[0].mxu0
        %v1495 = vpop.f32.mrb[0].mxu0
        %1496 = vdwg.mxu0
        %v1498 = vsel %vm1358, %v1353, 0
        %v1501 = vsel %vm1358, %v1357, 0
        %1503 = vmatprep.subr.bf16.mxu0 0
        %1504 = vmatpush1.bf16.xpose.msra.mxu0 %v1501
        %1505 = vmatprep.subr.bf16.mxu0 0
        %1506 = vmatpush1.bf16.xpose.msra.mxu0 0
        %1507 = vmatprep.subr.bf16.mxu0 0
        %1508 = vmatpush1.bf16.xpose.msra.mxu0 0
        %1509 = vmatprep.subr.bf16.mxu0 0
        %1510 = vmatpush1.bf16.xpose.msra.mxu0 0
        %1511 = vmatprep.subr.bf16.mxu0 0
        %1512 = vmatpush1.bf16.xpose.msra.mxu0 0
        %1513 = vmatprep.subr.bf16.mxu0 0
        %1514 = vmatpush1.bf16.xpose.msra.mxu0 0
        %1515 = vmatprep.subr.bf16.mxu0 0
        %1516 = vmatpush1.bf16.xpose.msra.mxu0 0
        %1517 = vmatprep.subr.bf16.mxu0 0
        %1518 = vmatpush1.bf16.xpose.msra.mxu0 0
        %1519 = vmatprep.subr.bf16.mxu0 0
        %1520 = vmatpush1.bf16.xpose.msra.mxu0 0
        %1521 = vmatprep.subr.bf16.mxu0 0
        %1522 = vmatpush1.bf16.xpose.msra.mxu0 0
        %1523 = vmatprep.subr.bf16.mxu0 0
        %1524 = vmatpush1.bf16.xpose.msra.mxu0 0
        %1525 = vmatprep.subr.bf16.mxu0 0
        %1526 = vmatpush1.bf16.xpose.msra.mxu0 0
        %1527 = vmatprep.subr.bf16.mxu0 0
        %1528 = vmatpush1.bf16.xpose.msra.mxu0 0
        %1529 = vmatprep.subr.bf16.mxu0 0
        %1530 = vmatpush1.bf16.xpose.msra.mxu0 0
        %1531 = vmatprep.subr.bf16.mxu0 0
        %1532 = vmatpush1.bf16.xpose.msra.mxu0 0
        %1533 = vmatprep.subr.bf16.mxu0 0
        %1534 = vmatpush1.bf16.xpose.msra.mxu0 0
        %1535 = vmatprep.mubr.bf16.mxu0 0
        %1536 = vmatmul.mubr.bf16.gmra.mrb[0].mxu0 %v1498
        %v1537 = vpop.f32.mrb[0].mxu0
        %v1538 = vadd.f32 0.0, %v1537
        %v1539 = vpop.f32.mrb[0].mxu0
        %v1540 = vpop.f32.mrb[0].mxu0
        %v1541 = vpop.f32.mrb[0].mxu0
        %1542 = vdwg.mxu0
        %vm1543 = vcmask 31744
        %v1544 = vsel %vm1543, %v1400, -inf
        %1545 = vmax.xlane.f32.xlu0 %v1544
        %v1546 = vpop.xlane.xlu0 %1545
        %v1547 = vsel %vm1543, %v1446, -inf
        %1548 = vmax.xlane.f32.xlu0 %v1547
        %v1549 = vpop.xlane.xlu0 %1548
        %v1550 = vsel %vm1543, %v1492, -inf
        %1551 = vmax.xlane.f32.xlu0 %v1550
        %v1552 = vpop.xlane.xlu0 %1551
        %v1553 = vsel %vm1543, %v1538, -inf
        %1554 = vmax.xlane.f32.xlu0 %v1553
        %v1555 = vpop.xlane.xlu0 %1554
        %v1556 = vsub.f32 %v1400, %v1546
        %v1557 = vsub.f32 %v1446, %v1549
        %v1558 = vsub.f32 %v1492, %v1552
        %v1559 = vsub.f32 %v1538, %v1555
        %v1560 = vmul.f32 %v1556, 1.442695
        %v1561 = vpow.pop %v1560
        %v1562 = vmul.f32 %v1557, 1.442695
        %v1563 = vpow.pop %v1562
        %v1564 = vmul.f32 %v1558, 1.442695
        %v1565 = vpow.pop %v1564
        %v1566 = vmul.f32 %v1559, 1.442695
        %v1567 = vpow.pop %v1566
        %v1568 = vsel %vm1543, %v1561, 0.0
        %1569 = vadd.xlane.f32.xlu0 %v1568
        %v1570 = vpop.xlane.xlu0 %1569
        %v1571 = vsel %vm1543, %v1563, 0.0
        %1572 = vadd.xlane.f32.xlu0 %v1571
        %v1573 = vpop.xlane.xlu0 %1572
        %v1574 = vsel %vm1543, %v1565, 0.0
        %1575 = vadd.xlane.f32.xlu0 %v1574
        %v1576 = vpop.xlane.xlu0 %1575
        %v1577 = vsel %vm1543, %v1567, 0.0
        %1578 = vadd.xlane.f32.xlu0 %v1577
        %v1579 = vpop.xlane.xlu0 %1578
        %v1580 = vrcp.pop %v1570
        %v1581 = vrcp.pop %v1573
        %v1582 = vrcp.pop %v1576
        %v1583 = vrcp.pop %v1579
        %v1584 = vmul.f32 %v1561, %v1580
        %v1585 = vmul.f32 %v1563, %v1581
        %v1586 = vmul.f32 %v1565, %v1582
        %v1587 = vmul.f32 %v1567, %v1583
        %v1588 = vpack.c.bf16 %v1584, %v1584
        %v1589 = vpack.c.bf16 %v1585, %v1585
        %v1590 = vpack.c.bf16 %v1586, %v1586
        %v1591 = vpack.c.bf16 %v1587, %v1587
        %v1592 = vpack.c.bf16 %v1189, %v1189
        %v1593 = vpack.c.bf16 %v1241, %v1241
        %v1594 = vpack.c.bf16 %v1293, %v1293
        %v1595 = vpack.c.bf16 %v1345, %v1345
        %v1597 = vsel %vm1543, %v1588, 0
        %vm1599 = vcmask 1041408
        %v1601 = vsel %vm1599, %v1592, 0
        %1603 = vmatprep.subr.bf16.mxu0 0
        %1604 = vmatpush1.bf16.msra.mxu0 %v1601
        %1605 = vmatprep.subr.bf16.mxu0 0
        %1606 = vmatpush1.bf16.msra.mxu0 0
        %1607 = vmatprep.subr.bf16.mxu0 0
        %1608 = vmatpush1.bf16.msra.mxu0 0
        %1609 = vmatprep.subr.bf16.mxu0 0
        %1610 = vmatpush1.bf16.msra.mxu0 0
        %1611 = vmatprep.subr.bf16.mxu0 0
        %1612 = vmatpush1.bf16.msra.mxu0 0
        %1613 = vmatprep.subr.bf16.mxu0 0
        %1614 = vmatpush1.bf16.msra.mxu0 0
        %1615 = vmatprep.subr.bf16.mxu0 0
        %1616 = vmatpush1.bf16.msra.mxu0 0
        %1617 = vmatprep.subr.bf16.mxu0 0
        %1618 = vmatpush1.bf16.msra.mxu0 0
        %1619 = vmatprep.subr.bf16.mxu0 0
        %1620 = vmatpush1.bf16.msra.mxu0 0
        %1621 = vmatprep.subr.bf16.mxu0 0
        %1622 = vmatpush1.bf16.msra.mxu0 0
        %1623 = vmatprep.subr.bf16.mxu0 0
        %1624 = vmatpush1.bf16.msra.mxu0 0
        %1625 = vmatprep.subr.bf16.mxu0 0
        %1626 = vmatpush1.bf16.msra.mxu0 0
        %1627 = vmatprep.subr.bf16.mxu0 0
        %1628 = vmatpush1.bf16.msra.mxu0 0
        %1629 = vmatprep.subr.bf16.mxu0 0
        %1630 = vmatpush1.bf16.msra.mxu0 0
        %1631 = vmatprep.subr.bf16.mxu0 0
        %1632 = vmatpush1.bf16.msra.mxu0 0
        %1633 = vmatprep.subr.bf16.mxu0 0
        %1634 = vmatpush1.bf16.msra.mxu0 0
        %1635 = vmatprep.mubr.bf16.mxu0 0
        %1636 = vmatmul.mubr.bf16.gmra.mrb[0].mxu0 %v1597
        %v1637 = vpop.f32.mrb[0].mxu0
        %v1638 = vadd.f32 0.0, %v1637
        %v1639 = vpop.f32.mrb[0].mxu0
        %v1640 = vpop.f32.mrb[0].mxu0
        %v1641 = vpop.f32.mrb[0].mxu0
        %1642 = vdwg.mxu0
        %v1644 = vsel %vm1543, %v1589, 0
        %v1647 = vsel %vm1599, %v1593, 0
        %1649 = vmatprep.subr.bf16.mxu0 0
        %1650 = vmatpush1.bf16.msra.mxu0 %v1647
        %1651 = vmatprep.subr.bf16.mxu0 0
        %1652 = vmatpush1.bf16.msra.mxu0 0
        %1653 = vmatprep.subr.bf16.mxu0 0
        %1654 = vmatpush1.bf16.msra.mxu0 0
        %1655 = vmatprep.subr.bf16.mxu0 0
        %1656 = vmatpush1.bf16.msra.mxu0 0
        %1657 = vmatprep.subr.bf16.mxu0 0
        %1658 = vmatpush1.bf16.msra.mxu0 0
        %1659 = vmatprep.subr.bf16.mxu0 0
        %1660 = vmatpush1.bf16.msra.mxu0 0
        %1661 = vmatprep.subr.bf16.mxu0 0
        %1662 = vmatpush1.bf16.msra.mxu0 0
        %1663 = vmatprep.subr.bf16.mxu0 0
        %1664 = vmatpush1.bf16.msra.mxu0 0
        %1665 = vmatprep.subr.bf16.mxu0 0
        %1666 = vmatpush1.bf16.msra.mxu0 0
        %1667 = vmatprep.subr.bf16.mxu0 0
        %1668 = vmatpush1.bf16.msra.mxu0 0
        %1669 = vmatprep.subr.bf16.mxu0 0
        %1670 = vmatpush1.bf16.msra.mxu0 0
        %1671 = vmatprep.subr.bf16.mxu0 0
        %1672 = vmatpush1.bf16.msra.mxu0 0
        %1673 = vmatprep.subr.bf16.mxu0 0
        %1674 = vmatpush1.bf16.msra.mxu0 0
        %1675 = vmatprep.subr.bf16.mxu0 0
        %1676 = vmatpush1.bf16.msra.mxu0 0
        %1677 = vmatprep.subr.bf16.mxu0 0
        %1678 = vmatpush1.bf16.msra.mxu0 0
        %1679 = vmatprep.subr.bf16.mxu0 0
        %1680 = vmatpush1.bf16.msra.mxu0 0
        %1681 = vmatprep.mubr.bf16.mxu0 0
        %1682 = vmatmul.mubr.bf16.gmra.mrb[0].mxu0 %v1644
        %v1683 = vpop.f32.mrb[0].mxu0
        %v1684 = vadd.f32 0.0, %v1683
        %v1685 = vpop.f32.mrb[0].mxu0
        %v1686 = vpop.f32.mrb[0].mxu0
        %v1687 = vpop.f32.mrb[0].mxu0
        %1688 = vdwg.mxu0
        %v1690 = vsel %vm1543, %v1590, 0
        %v1693 = vsel %vm1599, %v1594, 0
        %1695 = vmatprep.subr.bf16.mxu0 0
        %1696 = vmatpush1.bf16.msra.mxu0 %v1693
        %1697 = vmatprep.subr.bf16.mxu0 0
        %1698 = vmatpush1.bf16.msra.mxu0 0
        %1699 = vmatprep.subr.bf16.mxu0 0
        %1700 = vmatpush1.bf16.msra.mxu0 0
        %1701 = vmatprep.subr.bf16.mxu0 0
        %1702 = vmatpush1.bf16.msra.mxu0 0
        %1703 = vmatprep.subr.bf16.mxu0 0
        %1704 = vmatpush1.bf16.msra.mxu0 0
        %1705 = vmatprep.subr.bf16.mxu0 0
        %1706 = vmatpush1.bf16.msra.mxu0 0
        %1707 = vmatprep.subr.bf16.mxu0 0
        %1708 = vmatpush1.bf16.msra.mxu0 0
        %1709 = vmatprep.subr.bf16.mxu0 0
        %1710 = vmatpush1.bf16.msra.mxu0 0
        %1711 = vmatprep.subr.bf16.mxu0 0
        %1712 = vmatpush1.bf16.msra.mxu0 0
        %1713 = vmatprep.subr.bf16.mxu0 0
        %1714 = vmatpush1.bf16.msra.mxu0 0
        %1715 = vmatprep.subr.bf16.mxu0 0
        %1716 = vmatpush1.bf16.msra.mxu0 0
        %1717 = vmatprep.subr.bf16.mxu0 0
        %1718 = vmatpush1.bf16.msra.mxu0 0
        %1719 = vmatprep.subr.bf16.mxu0 0
        %1720 = vmatpush1.bf16.msra.mxu0 0
        %1721 = vmatprep.subr.bf16.mxu0 0
        %1722 = vmatpush1.bf16.msra.mxu0 0
        %1723 = vmatprep.subr.bf16.mxu0 0
        %1724 = vmatpush1.bf16.msra.mxu0 0
        %1725 = vmatprep.subr.bf16.mxu0 0
        %1726 = vmatpush1.bf16.msra.mxu0 0
        %1727 = vmatprep.mubr.bf16.mxu0 0
        %1728 = vmatmul.mubr.bf16.gmra.mrb[0].mxu0 %v1690
        %v1729 = vpop.f32.mrb[0].mxu0
        %v1730 = vadd.f32 0.0, %v1729
        %v1731 = vpop.f32.mrb[0].mxu0
        %v1732 = vpop.f32.mrb[0].mxu0
        %v1733 = vpop.f32.mrb[0].mxu0
        %1734 = vdwg.mxu0
        %v1736 = vsel %vm1543, %v1591, 0
        %v1739 = vsel %vm1599, %v1595, 0
        %1741 = vmatprep.subr.bf16.mxu0 0
        %1742 = vmatpush1.bf16.msra.mxu0 %v1739
        %1743 = vmatprep.subr.bf16.mxu0 0
        %1744 = vmatpush1.bf16.msra.mxu0 0
        %1745 = vmatprep.subr.bf16.mxu0 0
        %1746 = vmatpush1.bf16.msra.mxu0 0
        %1747 = vmatprep.subr.bf16.mxu0 0
        %1748 = vmatpush1.bf16.msra.mxu0 0
        %1749 = vmatprep.subr.bf16.mxu0 0
        %1750 = vmatpush1.bf16.msra.mxu0 0
        %1751 = vmatprep.subr.bf16.mxu0 0
        %1752 = vmatpush1.bf16.msra.mxu0 0
        %1753 = vmatprep.subr.bf16.mxu0 0
        %1754 = vmatpush1.bf16.msra.mxu0 0
        %1755 = vmatprep.subr.bf16.mxu0 0
        %1756 = vmatpush1.bf16.msra.mxu0 0
        %1757 = vmatprep.subr.bf16.mxu0 0
        %1758 = vmatpush1.bf16.msra.mxu0 0
        %1759 = vmatprep.subr.bf16.mxu0 0
        %1760 = vmatpush1.bf16.msra.mxu0 0
        %1761 = vmatprep.subr.bf16.mxu0 0
        %1762 = vmatpush1.bf16.msra.mxu0 0
        %1763 = vmatprep.subr.bf16.mxu0 0
        %1764 = vmatpush1.bf16.msra.mxu0 0
        %1765 = vmatprep.subr.bf16.mxu0 0
        %1766 = vmatpush1.bf16.msra.mxu0 0
        %1767 = vmatprep.subr.bf16.mxu0 0
        %1768 = vmatpush1.bf16.msra.mxu0 0
        %1769 = vmatprep.subr.bf16.mxu0 0
        %1770 = vmatpush1.bf16.msra.mxu0 0
        %1771 = vmatprep.subr.bf16.mxu0 0
        %1772 = vmatpush1.bf16.msra.mxu0 0
        %1773 = vmatprep.mubr.bf16.mxu0 0
        %1774 = vmatmul.mubr.bf16.gmra.mrb[0].mxu0 %v1736
        %v1775 = vpop.f32.mrb[0].mxu0
        %v1776 = vadd.f32 0.0, %v1775
        %v1777 = vpop.f32.mrb[0].mxu0
        %v1778 = vpop.f32.mrb[0].mxu0
        %v1779 = vpop.f32.mrb[0].mxu0
        %1780 = vdwg.mxu0
        %v1781 = vpack.c.bf16 %v1638, %v1638
        %v1782 = vpack.c.bf16 %v1684, %v1684
        %v1783 = vpack.c.bf16 %v1730, %v1730
        %v1784 = vpack.c.bf16 %v1776, %v1776
        %v1786 = vsel %vm1358, %v1781, 0
        %vm1788 = vcmask 1043456
        %v1790 = vsel %vm1788, %v713, 0
        %1792 = vmatprep.subr.bf16.mxu0 0
        %1793 = vmatpush1.bf16.msra.mxu0 %v1790
        %1794 = vmatprep.subr.bf16.mxu0 0
        %1795 = vmatpush1.bf16.msra.mxu0 0
        %1796 = vmatprep.subr.bf16.mxu0 0
        %1797 = vmatpush1.bf16.msra.mxu0 0
        %1798 = vmatprep.subr.bf16.mxu0 0
        %1799 = vmatpush1.bf16.msra.mxu0 0
        %1800 = vmatprep.subr.bf16.mxu0 0
        %1801 = vmatpush1.bf16.msra.mxu0 0
        %1802 = vmatprep.subr.bf16.mxu0 0
        %1803 = vmatpush1.bf16.msra.mxu0 0
        %1804 = vmatprep.subr.bf16.mxu0 0
        %1805 = vmatpush1.bf16.msra.mxu0 0
        %1806 = vmatprep.subr.bf16.mxu0 0
        %1807 = vmatpush1.bf16.msra.mxu0 0
        %1808 = vmatprep.subr.bf16.mxu0 0
        %1809 = vmatpush1.bf16.msra.mxu0 0
        %1810 = vmatprep.subr.bf16.mxu0 0
        %1811 = vmatpush1.bf16.msra.mxu0 0
        %1812 = vmatprep.subr.bf16.mxu0 0
        %1813 = vmatpush1.bf16.msra.mxu0 0
        %1814 = vmatprep.subr.bf16.mxu0 0
        %1815 = vmatpush1.bf16.msra.mxu0 0
        %1816 = vmatprep.subr.bf16.mxu0 0
        %1817 = vmatpush1.bf16.msra.mxu0 0
        %1818 = vmatprep.subr.bf16.mxu0 0
        %1819 = vmatpush1.bf16.msra.mxu0 0
        %1820 = vmatprep.subr.bf16.mxu0 0
        %1821 = vmatpush1.bf16.msra.mxu0 0
        %1822 = vmatprep.subr.bf16.mxu0 0
        %1823 = vmatpush1.bf16.msra.mxu0 0
        %1824 = vmatprep.mubr.bf16.mxu0 0
        %1825 = vmatmul.mubr.bf16.gmra.mrb[0].mxu0 %v1786
        %v1826 = vpop.f32.mrb[0].mxu0
        %v1827 = vadd.f32 0.0, %v1826
        %v1828 = vpop.f32.mrb[0].mxu0
        %v1829 = vpop.f32.mrb[0].mxu0
        %v1830 = vpop.f32.mrb[0].mxu0
        %1831 = vdwg.mxu0
        %v1833 = vsel %vm1358, %v1782, 0
        %v1836 = vsel %vm1788, %v714, 0
        %1838 = vmatprep.subr.bf16.mxu0 0
        %1839 = vmatpush1.bf16.msra.mxu0 %v1836
        %1840 = vmatprep.subr.bf16.mxu0 0
        %1841 = vmatpush1.bf16.msra.mxu0 0
        %1842 = vmatprep.subr.bf16.mxu0 0
        %1843 = vmatpush1.bf16.msra.mxu0 0
        %1844 = vmatprep.subr.bf16.mxu0 0
        %1845 = vmatpush1.bf16.msra.mxu0 0
        %1846 = vmatprep.subr.bf16.mxu0 0
        %1847 = vmatpush1.bf16.msra.mxu0 0
        %1848 = vmatprep.subr.bf16.mxu0 0
        %1849 = vmatpush1.bf16.msra.mxu0 0
        %1850 = vmatprep.subr.bf16.mxu0 0
        %1851 = vmatpush1.bf16.msra.mxu0 0
        %1852 = vmatprep.subr.bf16.mxu0 0
        %1853 = vmatpush1.bf16.msra.mxu0 0
        %1854 = vmatprep.subr.bf16.mxu0 0
        %1855 = vmatpush1.bf16.msra.mxu0 0
        %1856 = vmatprep.subr.bf16.mxu0 0
        %1857 = vmatpush1.bf16.msra.mxu0 0
        %1858 = vmatprep.subr.bf16.mxu0 0
        %1859 = vmatpush1.bf16.msra.mxu0 0
        %1860 = vmatprep.subr.bf16.mxu0 0
        %1861 = vmatpush1.bf16.msra.mxu0 0
        %1862 = vmatprep.subr.bf16.mxu0 0
        %1863 = vmatpush1.bf16.msra.mxu0 0
        %1864 = vmatprep.subr.bf16.mxu0 0
        %1865 = vmatpush1.bf16.msra.mxu0 0
        %1866 = vmatprep.subr.bf16.mxu0 0
        %1867 = vmatpush1.bf16.msra.mxu0 0
        %1868 = vmatprep.subr.bf16.mxu0 0
        %1869 = vmatpush1.bf16.msra.mxu0 0
        %1870 = vmatprep.mubr.bf16.mxu0 0
        %1871 = vmatmul.mubr.bf16.gmra.mrb[0].mxu0 %v1833
        %v1872 = vpop.f32.mrb[0].mxu0
        %v1873 = vadd.f32 0.0, %v1872
        %v1874 = vpop.f32.mrb[0].mxu0
        %v1875 = vpop.f32.mrb[0].mxu0
        %v1876 = vpop.f32.mrb[0].mxu0
        %1877 = vdwg.mxu0
        %v1879 = vsel %vm1358, %v1783, 0
        %v1882 = vsel %vm1788, %v715, 0
        %1884 = vmatprep.subr.bf16.mxu0 0
        %1885 = vmatpush1.bf16.msra.mxu0 %v1882
        %1886 = vmatprep.subr.bf16.mxu0 0
        %1887 = vmatpush1.bf16.msra.mxu0 0
        %1888 = vmatprep.subr.bf16.mxu0 0
        %1889 = vmatpush1.bf16.msra.mxu0 0
        %1890 = vmatprep.subr.bf16.mxu0 0
        %1891 = vmatpush1.bf16.msra.mxu0 0
        %1892 = vmatprep.subr.bf16.mxu0 0
        %1893 = vmatpush1.bf16.msra.mxu0 0
        %1894 = vmatprep.subr.bf16.mxu0 0
        %1895 = vmatpush1.bf16.msra.mxu0 0
        %1896 = vmatprep.subr.bf16.mxu0 0
        %1897 = vmatpush1.bf16.msra.mxu0 0
        %1898 = vmatprep.subr.bf16.mxu0 0
        %1899 = vmatpush1.bf16.msra.mxu0 0
        %1900 = vmatprep.subr.bf16.mxu0 0
        %1901 = vmatpush1.bf16.msra.mxu0 0
        %1902 = vmatprep.subr.bf16.mxu0 0
        %1903 = vmatpush1.bf16.msra.mxu0 0
        %1904 = vmatprep.subr.bf16.mxu0 0
        %1905 = vmatpush1.bf16.msra.mxu0 0
        %1906 = vmatprep.subr.bf16.mxu0 0
        %1907 = vmatpush1.bf16.msra.mxu0 0
        %1908 = vmatprep.subr.bf16.mxu0 0
        %1909 = vmatpush1.bf16.msra.mxu0 0
        %1910 = vmatprep.subr.bf16.mxu0 0
        %1911 = vmatpush1.bf16.msra.mxu0 0
        %1912 = vmatprep.subr.bf16.mxu0 0
        %1913 = vmatpush1.bf16.msra.mxu0 0
        %1914 = vmatprep.subr.bf16.mxu0 0
        %1915 = vmatpush1.bf16.msra.mxu0 0
        %1916 = vmatprep.mubr.bf16.mxu0 0
        %1917 = vmatmul.mubr.bf16.gmra.mrb[0].mxu0 %v1879
        %v1918 = vpop.f32.mrb[0].mxu0
        %v1919 = vadd.f32 0.0, %v1918
        %v1920 = vpop.f32.mrb[0].mxu0
        %v1921 = vpop.f32.mrb[0].mxu0
        %v1922 = vpop.f32.mrb[0].mxu0
        %1923 = vdwg.mxu0
        %v1925 = vsel %vm1358, %v1784, 0
        %v1928 = vsel %vm1788, %v716, 0
        %1930 = vmatprep.subr.bf16.mxu0 0
        %1931 = vmatpush1.bf16.msra.mxu0 %v1928
        %1932 = vmatprep.subr.bf16.mxu0 0
        %1933 = vmatpush1.bf16.msra.mxu0 0
        %1934 = vmatprep.subr.bf16.mxu0 0
        %1935 = vmatpush1.bf16.msra.mxu0 0
        %1936 = vmatprep.subr.bf16.mxu0 0
        %1937 = vmatpush1.bf16.msra.mxu0 0
        %1938 = vmatprep.subr.bf16.mxu0 0
        %1939 = vmatpush1.bf16.msra.mxu0 0
        %1940 = vmatprep.subr.bf16.mxu0 0
        %1941 = vmatpush1.bf16.msra.mxu0 0
        %1942 = vmatprep.subr.bf16.mxu0 0
        %1943 = vmatpush1.bf16.msra.mxu0 0
        %1944 = vmatprep.subr.bf16.mxu0 0
        %1945 = vmatpush1.bf16.msra.mxu0 0
        %1946 = vmatprep.subr.bf16.mxu0 0
        %1947 = vmatpush1.bf16.msra.mxu0 0
        %1948 = vmatprep.subr.bf16.mxu0 0
        %1949 = vmatpush1.bf16.msra.mxu0 0
        %1950 = vmatprep.subr.bf16.mxu0 0
        %1951 = vmatpush1.bf16.msra.mxu0 0
        %1952 = vmatprep.subr.bf16.mxu0 0
        %1953 = vmatpush1.bf16.msra.mxu0 0
        %1954 = vmatprep.subr.bf16.mxu0 0
        %1955 = vmatpush1.bf16.msra.mxu0 0
        %1956 = vmatprep.subr.bf16.mxu0 0
        %1957 = vmatpush1.bf16.msra.mxu0 0
        %1958 = vmatprep.subr.bf16.mxu0 0
        %1959 = vmatpush1.bf16.msra.mxu0 0
        %1960 = vmatprep.subr.bf16.mxu0 0
        %1961 = vmatpush1.bf16.msra.mxu0 0
        %1962 = vmatprep.mubr.bf16.mxu0 0
        %1963 = vmatmul.mubr.bf16.gmra.mrb[0].mxu0 %v1925
        %v1964 = vpop.f32.mrb[0].mxu0
        %v1965 = vadd.f32 0.0, %v1964
        %v1966 = vpop.f32.mrb[0].mxu0
        %v1967 = vpop.f32.mrb[0].mxu0
        %v1968 = vpop.f32.mrb[0].mxu0
        %1969 = vdwg.mxu0
        %v1970 = vadd.f32 %v1827, %v1873
        %v1971 = vadd.f32 %v1970, %v1919
        %v1972 = vadd.f32 %v1971, %v1965
        %v1973 = vld [vmem:[%s6] sm:$0x1]
        %v1974 = vld [vmem:[%s7] sm:$0x1]
        %v1975 = vsel %vm731, %v1972, 0.0
        %1976 = vadd.xlane.f32.xlu0 %v1975
        %v1977 = vpop.xlane.xlu0 %1976
        %v1978 = vrcp.pop 32.0
        %v1979 = vmul.f32 %v1977, %v1978
        %v1980 = vsub.f32 %v1972, %v1979
        %v1981 = vmul.f32 %v1980, %v1980
        %v1982 = vsel %vm731, %v1981, 0.0
        %1983 = vadd.xlane.f32.xlu0 %v1982
        %v1984 = vpop.xlane.xlu0 %1983
        %v1985 = vmul.f32 %v1984, %v1978
        %v1986 = vadd.f32 %v1985, 1e-05
        %v1987 = vrsqrt.pop %v1986
        %v1988 = vmul.f32 %v1980, %v1987
        %v1990 = vlaneseq
        %v1991 = vshrl.u32 %v1990, 7
        %v1992 = vsub.s32 0, %v1991
        %v1993 = vrot.slane %v1973, %v1992
        %v1995 = vmul.f32 %v1988, %v1993
        %v1997 = vlaneseq
        %v1998 = vshrl.u32 %v1997, 7
        %v1999 = vsub.s32 0, %v1998
        %v2000 = vrot.slane %v1974, %v1999
        %v2002 = vadd.f32 %v1995, %v2000
        %v2003 = vld [vmem:[%s573] sm:$0xff]
        %v2004 = vld [vmem:[%s577] sm:$0xff]
        %s2005 = scalar_lea.vmem %s6, 1
        %v2006 = vld [vmem:[%s2005] sm:$0x1]
        %s2007 = scalar_lea.vmem %s7, 1
        %v2008 = vld [vmem:[%s2007] sm:$0x1]
        %v2009 = vsel %vm731, %v2003, 0.0
        %2010 = vadd.xlane.f32.xlu0 %v2009
        %v2011 = vpop.xlane.xlu0 %2010
        %v2012 = vmul.f32 %v2011, %v1978
        %v2013 = vsub.f32 %v2003, %v2012
        %v2014 = vmul.f32 %v2013, %v2013
        %v2015 = vsel %vm731, %v2014, 0.0
        %2016 = vadd.xlane.f32.xlu0 %v2015
        %v2017 = vpop.xlane.xlu0 %2016
        %v2018 = vmul.f32 %v2017, %v1978
        %v2019 = vadd.f32 %v2018, 1e-05
        %v2020 = vrsqrt.pop %v2019
        %v2021 = vmul.f32 %v2013, %v2020
        %v2023 = vlaneseq
        %v2024 = vshrl.u32 %v2023, 7
        %v2025 = vsub.s32 0, %v2024
        %v2026 = vrot.slane %v2006, %v2025
        %v2028 = vmul.f32 %v2021, %v2026
        %v2030 = vlaneseq
        %v2031 = vshrl.u32 %v2030, 7
        %v2032 = vsub.s32 0, %v2031
        %v2033 = vrot.slane %v2008, %v2032
        %v2035 = vadd.f32 %v2028, %v2033
        %s2036 = scalar_lea.vmem %s8, 64
        %v2037 = vld [vmem:[%s2036] sm:$0xf]
        %v2038 = vld [vmem:[%s2036 + $0x4] sm:$0xf]
        %v2039 = vld [vmem:[%s2036 + $0x8] sm:$0xf]
        %v2040 = vld [vmem:[%s2036 + $0xc] sm:$0xf]
        %v2041 = vld [vmem:[%s2036 + $0x10] sm:$0xf]
        %v2042 = vld [vmem:[%s2036 + $0x14] sm:$0xf]
        %v2043 = vld [vmem:[%s2036 + $0x18] sm:$0xf]
        %v2044 = vld [vmem:[%s2036 + $0x1c] sm:$0xf]
        %v2045 = vld [vmem:[%s2036 + $0x20] sm:$0xf]
        %v2046 = vld [vmem:[%s2036 + $0x24] sm:$0xf]
        %v2047 = vld [vmem:[%s2036 + $0x28] sm:$0xf]
        %v2048 = vld [vmem:[%s2036 + $0x2c] sm:$0xf]
        %v2049 = vld [vmem:[%s2036 + $0x30] sm:$0xf]
        %v2050 = vld [vmem:[%s2036 + $0x34] sm:$0xf]
        %v2051 = vld [vmem:[%s2036 + $0x38] sm:$0xf]
        %v2052 = vld [vmem:[%s2036 + $0x3c] sm:$0xf]
        %s2053 = scalar_lea.vmem %s9, 64
        %v2054 = vld [vmem:[%s2053] sm:$0xf]
        %v2055 = vld [vmem:[%s2053 + $0x4] sm:$0xf]
        %v2056 = vld [vmem:[%s2053 + $0x8] sm:$0xf]
        %v2057 = vld [vmem:[%s2053 + $0xc] sm:$0xf]
        %v2058 = vld [vmem:[%s2053 + $0x10] sm:$0xf]
        %v2059 = vld [vmem:[%s2053 + $0x14] sm:$0xf]
        %v2060 = vld [vmem:[%s2053 + $0x18] sm:$0xf]
        %v2061 = vld [vmem:[%s2053 + $0x1c] sm:$0xf]
        %v2062 = vld [vmem:[%s2053 + $0x20] sm:$0xf]
        %v2063 = vld [vmem:[%s2053 + $0x24] sm:$0xf]
        %v2064 = vld [vmem:[%s2053 + $0x28] sm:$0xf]
        %v2065 = vld [vmem:[%s2053 + $0x2c] sm:$0xf]
        %v2066 = vld [vmem:[%s2053 + $0x30] sm:$0xf]
        %v2067 = vld [vmem:[%s2053 + $0x34] sm:$0xf]
        %v2068 = vld [vmem:[%s2053 + $0x38] sm:$0xf]
        %v2069 = vld [vmem:[%s2053 + $0x3c] sm:$0xf]
        %s2070 = scalar_lea.vmem %s10, 64
        %v2071 = vld [vmem:[%s2070] sm:$0xf]
        %v2072 = vld [vmem:[%s2070 + $0x4] sm:$0xf]
        %v2073 = vld [vmem:[%s2070 + $0x8] sm:$0xf]
        %v2074 = vld [vmem:[%s2070 + $0xc] sm:$0xf]
        %v2075 = vld [vmem:[%s2070 + $0x10] sm:$0xf]
        %v2076 = vld [vmem:[%s2070 + $0x14] sm:$0xf]
        %v2077 = vld [vmem:[%s2070 + $0x18] sm:$0xf]
        %v2078 = vld [vmem:[%s2070 + $0x1c] sm:$0xf]
        %v2079 = vld [vmem:[%s2070 + $0x20] sm:$0xf]
        %v2080 = vld [vmem:[%s2070 + $0x24] sm:$0xf]
        %v2081 = vld [vmem:[%s2070 + $0x28] sm:$0xf]
        %v2082 = vld [vmem:[%s2070 + $0x2c] sm:$0xf]
        %v2083 = vld [vmem:[%s2070 + $0x30] sm:$0xf]
        %v2084 = vld [vmem:[%s2070 + $0x34] sm:$0xf]
        %v2085 = vld [vmem:[%s2070 + $0x38] sm:$0xf]
        %v2086 = vld [vmem:[%s2070 + $0x3c] sm:$0xf]
        %s2087 = scalar_lea.vmem %s11, 16
        %v2088 = vld [vmem:[%s2087] sm:$0xf]
        %v2089 = vld [vmem:[%s2087 + $0x4] sm:$0xf]
        %v2090 = vld [vmem:[%s2087 + $0x8] sm:$0xf]
        %v2091 = vld [vmem:[%s2087 + $0xc] sm:$0xf]
        %v2092 = vpack.c.bf16 %v2035, %v2035
        %v2097 = vunpack.c.l.b16 %v2037
        %v2098 = vunpack.c.l.b16 %v2038
        %v2099 = vunpack.c.l.b16 %v2039
        %v2100 = vunpack.c.l.b16 %v2040
        %v2101 = vpack.c.b16 %v2098, %v2097
        %v2102 = vpack.c.b16 %v2100, %v2099
        %v2106 = vsel %vm731, %v2092, 0
        %2108 = vmatprep.subr.bf16.mxu0 0
        %2109 = vmatpush1.bf16.msra.mxu0 %v2101
        %2110 = vmatprep.subr.bf16.mxu0 0
        %2111 = vmatpush1.bf16.msra.mxu0 %v2102
        %2112 = vmatprep.subr.bf16.mxu0 0
        %2113 = vmatpush1.bf16.msra.mxu0 0
        %2114 = vmatprep.subr.bf16.mxu0 0
        %2115 = vmatpush1.bf16.msra.mxu0 0
        %2116 = vmatprep.subr.bf16.mxu0 0
        %2117 = vmatpush1.bf16.msra.mxu0 0
        %2118 = vmatprep.subr.bf16.mxu0 0
        %2119 = vmatpush1.bf16.msra.mxu0 0
        %2120 = vmatprep.subr.bf16.mxu0 0
        %2121 = vmatpush1.bf16.msra.mxu0 0
        %2122 = vmatprep.subr.bf16.mxu0 0
        %2123 = vmatpush1.bf16.msra.mxu0 0
        %2124 = vmatprep.subr.bf16.mxu0 0
        %2125 = vmatpush1.bf16.msra.mxu0 0
        %2126 = vmatprep.subr.bf16.mxu0 0
        %2127 = vmatpush1.bf16.msra.mxu0 0
        %2128 = vmatprep.subr.bf16.mxu0 0
        %2129 = vmatpush1.bf16.msra.mxu0 0
        %2130 = vmatprep.subr.bf16.mxu0 0
        %2131 = vmatpush1.bf16.msra.mxu0 0
        %2132 = vmatprep.subr.bf16.mxu0 0
        %2133 = vmatpush1.bf16.msra.mxu0 0
        %2134 = vmatprep.subr.bf16.mxu0 0
        %2135 = vmatpush1.bf16.msra.mxu0 0
        %2136 = vmatprep.subr.bf16.mxu0 0
        %2137 = vmatpush1.bf16.msra.mxu0 0
        %2138 = vmatprep.subr.bf16.mxu0 0
        %2139 = vmatpush1.bf16.msra.mxu0 0
        %2140 = vmatprep.mubr.bf16.mxu0 0
        %2141 = vmatmul.mubr.bf16.gmra.mrb[0].mxu0 %v2106
        %v2142 = vpop.f32.mrb[0].mxu0
        %v2143 = vadd.f32 0.0, %v2142
        %v2144 = vpop.f32.mrb[0].mxu0
        %v2145 = vpop.f32.mrb[0].mxu0
        %v2146 = vpop.f32.mrb[0].mxu0
        %2147 = vdwg.mxu0
        %v2152 = vunpack.c.l.b16 %v2041
        %v2153 = vunpack.c.l.b16 %v2042
        %v2154 = vunpack.c.l.b16 %v2043
        %v2155 = vunpack.c.l.b16 %v2044
        %v2156 = vpack.c.b16 %v2153, %v2152
        %v2157 = vpack.c.b16 %v2155, %v2154
        %2160 = vmatprep.subr.bf16.mxu0 0
        %2161 = vmatpush1.bf16.msra.mxu0 %v2156
        %2162 = vmatprep.subr.bf16.mxu0 0
        %2163 = vmatpush1.bf16.msra.mxu0 %v2157
        %2164 = vmatprep.subr.bf16.mxu0 0
        %2165 = vmatpush1.bf16.msra.mxu0 0
        %2166 = vmatprep.subr.bf16.mxu0 0
        %2167 = vmatpush1.bf16.msra.mxu0 0
        %2168 = vmatprep.subr.bf16.mxu0 0
        %2169 = vmatpush1.bf16.msra.mxu0 0
        %2170 = vmatprep.subr.bf16.mxu0 0
        %2171 = vmatpush1.bf16.msra.mxu0 0
        %2172 = vmatprep.subr.bf16.mxu0 0
        %2173 = vmatpush1.bf16.msra.mxu0 0
        %2174 = vmatprep.subr.bf16.mxu0 0
        %2175 = vmatpush1.bf16.msra.mxu0 0
        %2176 = vmatprep.subr.bf16.mxu0 0
        %2177 = vmatpush1.bf16.msra.mxu0 0
        %2178 = vmatprep.subr.bf16.mxu0 0
        %2179 = vmatpush1.bf16.msra.mxu0 0
        %2180 = vmatprep.subr.bf16.mxu0 0
        %2181 = vmatpush1.bf16.msra.mxu0 0
        %2182 = vmatprep.subr.bf16.mxu0 0
        %2183 = vmatpush1.bf16.msra.mxu0 0
        %2184 = vmatprep.subr.bf16.mxu0 0
        %2185 = vmatpush1.bf16.msra.mxu0 0
        %2186 = vmatprep.subr.bf16.mxu0 0
        %2187 = vmatpush1.bf16.msra.mxu0 0
        %2188 = vmatprep.subr.bf16.mxu0 0
        %2189 = vmatpush1.bf16.msra.mxu0 0
        %2190 = vmatprep.subr.bf16.mxu0 0
        %2191 = vmatpush1.bf16.msra.mxu0 0
        %2192 = vmatprep.mubr.bf16.mxu0 0
        %2193 = vmatmul.mubr.bf16.gmra.mrb[0].mxu0 %v2106
        %v2194 = vpop.f32.mrb[0].mxu0
        %v2195 = vadd.f32 0.0, %v2194
        %v2196 = vpop.f32.mrb[0].mxu0
        %v2197 = vpop.f32.mrb[0].mxu0
        %v2198 = vpop.f32.mrb[0].mxu0
        %2199 = vdwg.mxu0
        %v2204 = vunpack.c.l.b16 %v2045
        %v2205 = vunpack.c.l.b16 %v2046
        %v2206 = vunpack.c.l.b16 %v2047
        %v2207 = vunpack.c.l.b16 %v2048
        %v2208 = vpack.c.b16 %v2205, %v2204
        %v2209 = vpack.c.b16 %v2207, %v2206
        %2212 = vmatprep.subr.bf16.mxu0 0
        %2213 = vmatpush1.bf16.msra.mxu0 %v2208
        %2214 = vmatprep.subr.bf16.mxu0 0
        %2215 = vmatpush1.bf16.msra.mxu0 %v2209
        %2216 = vmatprep.subr.bf16.mxu0 0
        %2217 = vmatpush1.bf16.msra.mxu0 0
        %2218 = vmatprep.subr.bf16.mxu0 0
        %2219 = vmatpush1.bf16.msra.mxu0 0
        %2220 = vmatprep.subr.bf16.mxu0 0
        %2221 = vmatpush1.bf16.msra.mxu0 0
        %2222 = vmatprep.subr.bf16.mxu0 0
        %2223 = vmatpush1.bf16.msra.mxu0 0
        %2224 = vmatprep.subr.bf16.mxu0 0
        %2225 = vmatpush1.bf16.msra.mxu0 0
        %2226 = vmatprep.subr.bf16.mxu0 0
        %2227 = vmatpush1.bf16.msra.mxu0 0
        %2228 = vmatprep.subr.bf16.mxu0 0
        %2229 = vmatpush1.bf16.msra.mxu0 0
        %2230 = vmatprep.subr.bf16.mxu0 0
        %2231 = vmatpush1.bf16.msra.mxu0 0
        %2232 = vmatprep.subr.bf16.mxu0 0
        %2233 = vmatpush1.bf16.msra.mxu0 0
        %2234 = vmatprep.subr.bf16.mxu0 0
        %2235 = vmatpush1.bf16.msra.mxu0 0
        %2236 = vmatprep.subr.bf16.mxu0 0
        %2237 = vmatpush1.bf16.msra.mxu0 0
        %2238 = vmatprep.subr.bf16.mxu0 0
        %2239 = vmatpush1.bf16.msra.mxu0 0
        %2240 = vmatprep.subr.bf16.mxu0 0
        %2241 = vmatpush1.bf16.msra.mxu0 0
        %2242 = vmatprep.subr.bf16.mxu0 0
        %2243 = vmatpush1.bf16.msra.mxu0 0
        %2244 = vmatprep.mubr.bf16.mxu0 0
        %2245 = vmatmul.mubr.bf16.gmra.mrb[0].mxu0 %v2106
        %v2246 = vpop.f32.mrb[0].mxu0
        %v2247 = vadd.f32 0.0, %v2246
        %v2248 = vpop.f32.mrb[0].mxu0
        %v2249 = vpop.f32.mrb[0].mxu0
        %v2250 = vpop.f32.mrb[0].mxu0
        %2251 = vdwg.mxu0
        %v2256 = vunpack.c.l.b16 %v2049
        %v2257 = vunpack.c.l.b16 %v2050
        %v2258 = vunpack.c.l.b16 %v2051
        %v2259 = vunpack.c.l.b16 %v2052
        %v2260 = vpack.c.b16 %v2257, %v2256
        %v2261 = vpack.c.b16 %v2259, %v2258
        %2264 = vmatprep.subr.bf16.mxu0 0
        %2265 = vmatpush1.bf16.msra.mxu0 %v2260
        %2266 = vmatprep.subr.bf16.mxu0 0
        %2267 = vmatpush1.bf16.msra.mxu0 %v2261
        %2268 = vmatprep.subr.bf16.mxu0 0
        %2269 = vmatpush1.bf16.msra.mxu0 0
        %2270 = vmatprep.subr.bf16.mxu0 0
        %2271 = vmatpush1.bf16.msra.mxu0 0
        %2272 = vmatprep.subr.bf16.mxu0 0
        %2273 = vmatpush1.bf16.msra.mxu0 0
        %2274 = vmatprep.subr.bf16.mxu0 0
        %2275 = vmatpush1.bf16.msra.mxu0 0
        %2276 = vmatprep.subr.bf16.mxu0 0
        %2277 = vmatpush1.bf16.msra.mxu0 0
        %2278 = vmatprep.subr.bf16.mxu0 0
        %2279 = vmatpush1.bf16.msra.mxu0 0
        %2280 = vmatprep.subr.bf16.mxu0 0
        %2281 = vmatpush1.bf16.msra.mxu0 0
        %2282 = vmatprep.subr.bf16.mxu0 0
        %2283 = vmatpush1.bf16.msra.mxu0 0
        %2284 = vmatprep.subr.bf16.mxu0 0
        %2285 = vmatpush1.bf16.msra.mxu0 0
        %2286 = vmatprep.subr.bf16.mxu0 0
        %2287 = vmatpush1.bf16.msra.mxu0 0
        %2288 = vmatprep.subr.bf16.mxu0 0
        %2289 = vmatpush1.bf16.msra.mxu0 0
        %2290 = vmatprep.subr.bf16.mxu0 0
        %2291 = vmatpush1.bf16.msra.mxu0 0
        %2292 = vmatprep.subr.bf16.mxu0 0
        %2293 = vmatpush1.bf16.msra.mxu0 0
        %2294 = vmatprep.subr.bf16.mxu0 0
        %2295 = vmatpush1.bf16.msra.mxu0 0
        %2296 = vmatprep.mubr.bf16.mxu0 0
        %2297 = vmatmul.mubr.bf16.gmra.mrb[0].mxu0 %v2106
        %v2298 = vpop.f32.mrb[0].mxu0
        %v2299 = vadd.f32 0.0, %v2298
        %v2300 = vpop.f32.mrb[0].mxu0
        %v2301 = vpop.f32.mrb[0].mxu0
        %v2302 = vpop.f32.mrb[0].mxu0
        %2303 = vdwg.mxu0
        %v2308 = vunpack.c.l.b16 %v2054
        %v2309 = vunpack.c.l.b16 %v2055
        %v2310 = vunpack.c.l.b16 %v2056
        %v2311 = vunpack.c.l.b16 %v2057
        %v2312 = vpack.c.b16 %v2309, %v2308
        %v2313 = vpack.c.b16 %v2311, %v2310
        %2316 = vmatprep.subr.bf16.mxu0 0
        %2317 = vmatpush1.bf16.msra.mxu0 %v2312
        %2318 = vmatprep.subr.bf16.mxu0 0
        %2319 = vmatpush1.bf16.msra.mxu0 %v2313
        %2320 = vmatprep.subr.bf16.mxu0 0
        %2321 = vmatpush1.bf16.msra.mxu0 0
        %2322 = vmatprep.subr.bf16.mxu0 0
        %2323 = vmatpush1.bf16.msra.mxu0 0
        %2324 = vmatprep.subr.bf16.mxu0 0
        %2325 = vmatpush1.bf16.msra.mxu0 0
        %2326 = vmatprep.subr.bf16.mxu0 0
        %2327 = vmatpush1.bf16.msra.mxu0 0
        %2328 = vmatprep.subr.bf16.mxu0 0
        %2329 = vmatpush1.bf16.msra.mxu0 0
        %2330 = vmatprep.subr.bf16.mxu0 0
        %2331 = vmatpush1.bf16.msra.mxu0 0
        %2332 = vmatprep.subr.bf16.mxu0 0
        %2333 = vmatpush1.bf16.msra.mxu0 0
        %2334 = vmatprep.subr.bf16.mxu0 0
        %2335 = vmatpush1.bf16.msra.mxu0 0
        %2336 = vmatprep.subr.bf16.mxu0 0
        %2337 = vmatpush1.bf16.msra.mxu0 0
        %2338 = vmatprep.subr.bf16.mxu0 0
        %2339 = vmatpush1.bf16.msra.mxu0 0
        %2340 = vmatprep.subr.bf16.mxu0 0
        %2341 = vmatpush1.bf16.msra.mxu0 0
        %2342 = vmatprep.subr.bf16.mxu0 0
        %2343 = vmatpush1.bf16.msra.mxu0 0
        %2344 = vmatprep.subr.bf16.mxu0 0
        %2345 = vmatpush1.bf16.msra.mxu0 0
        %2346 = vmatprep.subr.bf16.mxu0 0
        %2347 = vmatpush1.bf16.msra.mxu0 0
        %2348 = vmatprep.mubr.bf16.mxu0 0
        %2349 = vmatmul.mubr.bf16.gmra.mrb[0].mxu0 %v2106
        %v2350 = vpop.f32.mrb[0].mxu0
        %v2351 = vadd.f32 0.0, %v2350
        %v2352 = vpop.f32.mrb[0].mxu0
        %v2353 = vpop.f32.mrb[0].mxu0
        %v2354 = vpop.f32.mrb[0].mxu0
        %2355 = vdwg.mxu0
        %v2360 = vunpack.c.l.b16 %v2058
        %v2361 = vunpack.c.l.b16 %v2059
        %v2362 = vunpack.c.l.b16 %v2060
        %v2363 = vunpack.c.l.b16 %v2061
        %v2364 = vpack.c.b16 %v2361, %v2360
        %v2365 = vpack.c.b16 %v2363, %v2362
        %2368 = vmatprep.subr.bf16.mxu0 0
        %2369 = vmatpush1.bf16.msra.mxu0 %v2364
        %2370 = vmatprep.subr.bf16.mxu0 0
        %2371 = vmatpush1.bf16.msra.mxu0 %v2365
        %2372 = vmatprep.subr.bf16.mxu0 0
        %2373 = vmatpush1.bf16.msra.mxu0 0
        %2374 = vmatprep.subr.bf16.mxu0 0
        %2375 = vmatpush1.bf16.msra.mxu0 0
        %2376 = vmatprep.subr.bf16.mxu0 0
        %2377 = vmatpush1.bf16.msra.mxu0 0
        %2378 = vmatprep.subr.bf16.mxu0 0
        %2379 = vmatpush1.bf16.msra.mxu0 0
        %2380 = vmatprep.subr.bf16.mxu0 0
        %2381 = vmatpush1.bf16.msra.mxu0 0
        %2382 = vmatprep.subr.bf16.mxu0 0
        %2383 = vmatpush1.bf16.msra.mxu0 0
        %2384 = vmatprep.subr.bf16.mxu0 0
        %2385 = vmatpush1.bf16.msra.mxu0 0
        %2386 = vmatprep.subr.bf16.mxu0 0
        %2387 = vmatpush1.bf16.msra.mxu0 0
        %2388 = vmatprep.subr.bf16.mxu0 0
        %2389 = vmatpush1.bf16.msra.mxu0 0
        %2390 = vmatprep.subr.bf16.mxu0 0
        %2391 = vmatpush1.bf16.msra.mxu0 0
        %2392 = vmatprep.subr.bf16.mxu0 0
        %2393 = vmatpush1.bf16.msra.mxu0 0
        %2394 = vmatprep.subr.bf16.mxu0 0
        %2395 = vmatpush1.bf16.msra.mxu0 0
        %2396 = vmatprep.subr.bf16.mxu0 0
        %2397 = vmatpush1.bf16.msra.mxu0 0
        %2398 = vmatprep.subr.bf16.mxu0 0
        %2399 = vmatpush1.bf16.msra.mxu0 0
        %2400 = vmatprep.mubr.bf16.mxu0 0
        %2401 = vmatmul.mubr.bf16.gmra.mrb[0].mxu0 %v2106
        %v2402 = vpop.f32.mrb[0].mxu0
        %v2403 = vadd.f32 0.0, %v2402
        %v2404 = vpop.f32.mrb[0].mxu0
        %v2405 = vpop.f32.mrb[0].mxu0
        %v2406 = vpop.f32.mrb[0].mxu0
        %2407 = vdwg.mxu0
        %v2412 = vunpack.c.l.b16 %v2062
        %v2413 = vunpack.c.l.b16 %v2063
        %v2414 = vunpack.c.l.b16 %v2064
        %v2415 = vunpack.c.l.b16 %v2065
        %v2416 = vpack.c.b16 %v2413, %v2412
        %v2417 = vpack.c.b16 %v2415, %v2414
        %2420 = vmatprep.subr.bf16.mxu0 0
        %2421 = vmatpush1.bf16.msra.mxu0 %v2416
        %2422 = vmatprep.subr.bf16.mxu0 0
        %2423 = vmatpush1.bf16.msra.mxu0 %v2417
        %2424 = vmatprep.subr.bf16.mxu0 0
        %2425 = vmatpush1.bf16.msra.mxu0 0
        %2426 = vmatprep.subr.bf16.mxu0 0
        %2427 = vmatpush1.bf16.msra.mxu0 0
        %2428 = vmatprep.subr.bf16.mxu0 0
        %2429 = vmatpush1.bf16.msra.mxu0 0
        %2430 = vmatprep.subr.bf16.mxu0 0
        %2431 = vmatpush1.bf16.msra.mxu0 0
        %2432 = vmatprep.subr.bf16.mxu0 0
        %2433 = vmatpush1.bf16.msra.mxu0 0
        %2434 = vmatprep.subr.bf16.mxu0 0
        %2435 = vmatpush1.bf16.msra.mxu0 0
        %2436 = vmatprep.subr.bf16.mxu0 0
        %2437 = vmatpush1.bf16.msra.mxu0 0
        %2438 = vmatprep.subr.bf16.mxu0 0
        %2439 = vmatpush1.bf16.msra.mxu0 0
        %2440 = vmatprep.subr.bf16.mxu0 0
        %2441 = vmatpush1.bf16.msra.mxu0 0
        %2442 = vmatprep.subr.bf16.mxu0 0
        %2443 = vmatpush1.bf16.msra.mxu0 0
        %2444 = vmatprep.subr.bf16.mxu0 0
        %2445 = vmatpush1.bf16.msra.mxu0 0
        %2446 = vmatprep.subr.bf16.mxu0 0
        %2447 = vmatpush1.bf16.msra.mxu0 0
        %2448 = vmatprep.subr.bf16.mxu0 0
        %2449 = vmatpush1.bf16.msra.mxu0 0
        %2450 = vmatprep.subr.bf16.mxu0 0
        %2451 = vmatpush1.bf16.msra.mxu0 0
        %2452 = vmatprep.mubr.bf16.mxu0 0
        %2453 = vmatmul.mubr.bf16.gmra.mrb[0].mxu0 %v2106
        %v2454 = vpop.f32.mrb[0].mxu0
        %v2455 = vadd.f32 0.0, %v2454
        %v2456 = vpop.f32.mrb[0].mxu0
        %v2457 = vpop.f32.mrb[0].mxu0
        %v2458 = vpop.f32.mrb[0].mxu0
        %2459 = vdwg.mxu0
        %v2464 = vunpack.c.l.b16 %v2066
        %v2465 = vunpack.c.l.b16 %v2067
        %v2466 = vunpack.c.l.b16 %v2068
        %v2467 = vunpack.c.l.b16 %v2069
        %v2468 = vpack.c.b16 %v2465, %v2464
        %v2469 = vpack.c.b16 %v2467, %v2466
        %2472 = vmatprep.subr.bf16.mxu0 0
        %2473 = vmatpush1.bf16.msra.mxu0 %v2468
        %2474 = vmatprep.subr.bf16.mxu0 0
        %2475 = vmatpush1.bf16.msra.mxu0 %v2469
        %2476 = vmatprep.subr.bf16.mxu0 0
        %2477 = vmatpush1.bf16.msra.mxu0 0
        %2478 = vmatprep.subr.bf16.mxu0 0
        %2479 = vmatpush1.bf16.msra.mxu0 0
        %2480 = vmatprep.subr.bf16.mxu0 0
        %2481 = vmatpush1.bf16.msra.mxu0 0
        %2482 = vmatprep.subr.bf16.mxu0 0
        %2483 = vmatpush1.bf16.msra.mxu0 0
        %2484 = vmatprep.subr.bf16.mxu0 0
        %2485 = vmatpush1.bf16.msra.mxu0 0
        %2486 = vmatprep.subr.bf16.mxu0 0
        %2487 = vmatpush1.bf16.msra.mxu0 0
        %2488 = vmatprep.subr.bf16.mxu0 0
        %2489 = vmatpush1.bf16.msra.mxu0 0
        %2490 = vmatprep.subr.bf16.mxu0 0
        %2491 = vmatpush1.bf16.msra.mxu0 0
        %2492 = vmatprep.subr.bf16.mxu0 0
        %2493 = vmatpush1.bf16.msra.mxu0 0
        %2494 = vmatprep.subr.bf16.mxu0 0
        %2495 = vmatpush1.bf16.msra.mxu0 0
        %2496 = vmatprep.subr.bf16.mxu0 0
        %2497 = vmatpush1.bf16.msra.mxu0 0
        %2498 = vmatprep.subr.bf16.mxu0 0
        %2499 = vmatpush1.bf16.msra.mxu0 0
        %2500 = vmatprep.subr.bf16.mxu0 0
        %2501 = vmatpush1.bf16.msra.mxu0 0
        %2502 = vmatprep.subr.bf16.mxu0 0
        %2503 = vmatpush1.bf16.msra.mxu0 0
        %2504 = vmatprep.mubr.bf16.mxu0 0
        %2505 = vmatmul.mubr.bf16.gmra.mrb[0].mxu0 %v2106
        %v2506 = vpop.f32.mrb[0].mxu0
        %v2507 = vadd.f32 0.0, %v2506
        %v2508 = vpop.f32.mrb[0].mxu0
        %v2509 = vpop.f32.mrb[0].mxu0
        %v2510 = vpop.f32.mrb[0].mxu0
        %2511 = vdwg.mxu0
        %v2516 = vunpack.c.l.b16 %v2071
        %v2517 = vunpack.c.l.b16 %v2072
        %v2518 = vunpack.c.l.b16 %v2073
        %v2519 = vunpack.c.l.b16 %v2074
        %v2520 = vpack.c.b16 %v2517, %v2516
        %v2521 = vpack.c.b16 %v2519, %v2518
        %2524 = vmatprep.subr.bf16.mxu0 0
        %2525 = vmatpush1.bf16.msra.mxu0 %v2520
        %2526 = vmatprep.subr.bf16.mxu0 0
        %2527 = vmatpush1.bf16.msra.mxu0 %v2521
        %2528 = vmatprep.subr.bf16.mxu0 0
        %2529 = vmatpush1.bf16.msra.mxu0 0
        %2530 = vmatprep.subr.bf16.mxu0 0
        %2531 = vmatpush1.bf16.msra.mxu0 0
        %2532 = vmatprep.subr.bf16.mxu0 0
        %2533 = vmatpush1.bf16.msra.mxu0 0
        %2534 = vmatprep.subr.bf16.mxu0 0
        %2535 = vmatpush1.bf16.msra.mxu0 0
        %2536 = vmatprep.subr.bf16.mxu0 0
        %2537 = vmatpush1.bf16.msra.mxu0 0
        %2538 = vmatprep.subr.bf16.mxu0 0
        %2539 = vmatpush1.bf16.msra.mxu0 0
        %2540 = vmatprep.subr.bf16.mxu0 0
        %2541 = vmatpush1.bf16.msra.mxu0 0
        %2542 = vmatprep.subr.bf16.mxu0 0
        %2543 = vmatpush1.bf16.msra.mxu0 0
        %2544 = vmatprep.subr.bf16.mxu0 0
        %2545 = vmatpush1.bf16.msra.mxu0 0
        %2546 = vmatprep.subr.bf16.mxu0 0
        %2547 = vmatpush1.bf16.msra.mxu0 0
        %2548 = vmatprep.subr.bf16.mxu0 0
        %2549 = vmatpush1.bf16.msra.mxu0 0
        %2550 = vmatprep.subr.bf16.mxu0 0
        %2551 = vmatpush1.bf16.msra.mxu0 0
        %2552 = vmatprep.subr.bf16.mxu0 0
        %2553 = vmatpush1.bf16.msra.mxu0 0
        %2554 = vmatprep.subr.bf16.mxu0 0
        %2555 = vmatpush1.bf16.msra.mxu0 0
        %2556 = vmatprep.mubr.bf16.mxu0 0
        %2557 = vmatmul.mubr.bf16.gmra.mrb[0].mxu0 %v2106
        %v2558 = vpop.f32.mrb[0].mxu0
        %v2559 = vadd.f32 0.0, %v2558
        %v2560 = vpop.f32.mrb[0].mxu0
        %v2561 = vpop.f32.mrb[0].mxu0
        %v2562 = vpop.f32.mrb[0].mxu0
        %2563 = vdwg.mxu0
        %v2568 = vunpack.c.l.b16 %v2075
        %v2569 = vunpack.c.l.b16 %v2076
        %v2570 = vunpack.c.l.b16 %v2077
        %v2571 = vunpack.c.l.b16 %v2078
        %v2572 = vpack.c.b16 %v2569, %v2568
        %v2573 = vpack.c.b16 %v2571, %v2570
        %2576 = vmatprep.subr.bf16.mxu0 0
        %2577 = vmatpush1.bf16.msra.mxu0 %v2572
        %2578 = vmatprep.subr.bf16.mxu0 0
        %2579 = vmatpush1.bf16.msra.mxu0 %v2573
        %2580 = vmatprep.subr.bf16.mxu0 0
        %2581 = vmatpush1.bf16.msra.mxu0 0
        %2582 = vmatprep.subr.bf16.mxu0 0
        %2583 = vmatpush1.bf16.msra.mxu0 0
        %2584 = vmatprep.subr.bf16.mxu0 0
        %2585 = vmatpush1.bf16.msra.mxu0 0
        %2586 = vmatprep.subr.bf16.mxu0 0
        %2587 = vmatpush1.bf16.msra.mxu0 0
        %2588 = vmatprep.subr.bf16.mxu0 0
        %2589 = vmatpush1.bf16.msra.mxu0 0
        %2590 = vmatprep.subr.bf16.mxu0 0
        %2591 = vmatpush1.bf16.msra.mxu0 0
        %2592 = vmatprep.subr.bf16.mxu0 0
        %2593 = vmatpush1.bf16.msra.mxu0 0
        %2594 = vmatprep.subr.bf16.mxu0 0
        %2595 = vmatpush1.bf16.msra.mxu0 0
        %2596 = vmatprep.subr.bf16.mxu0 0
        %2597 = vmatpush1.bf16.msra.mxu0 0
        %2598 = vmatprep.subr.bf16.mxu0 0
        %2599 = vmatpush1.bf16.msra.mxu0 0
        %2600 = vmatprep.subr.bf16.mxu0 0
        %2601 = vmatpush1.bf16.msra.mxu0 0
        %2602 = vmatprep.subr.bf16.mxu0 0
        %2603 = vmatpush1.bf16.msra.mxu0 0
        %2604 = vmatprep.subr.bf16.mxu0 0
        %2605 = vmatpush1.bf16.msra.mxu0 0
        %2606 = vmatprep.subr.bf16.mxu0 0
        %2607 = vmatpush1.bf16.msra.mxu0 0
        %2608 = vmatprep.mubr.bf16.mxu0 0
        %2609 = vmatmul.mubr.bf16.gmra.mrb[0].mxu0 %v2106
        %v2610 = vpop.f32.mrb[0].mxu0
        %v2611 = vadd.f32 0.0, %v2610
        %v2612 = vpop.f32.mrb[0].mxu0
        %v2613 = vpop.f32.mrb[0].mxu0
        %v2614 = vpop.f32.mrb[0].mxu0
        %2615 = vdwg.mxu0
        %v2620 = vunpack.c.l.b16 %v2079
        %v2621 = vunpack.c.l.b16 %v2080
        %v2622 = vunpack.c.l.b16 %v2081
        %v2623 = vunpack.c.l.b16 %v2082
        %v2624 = vpack.c.b16 %v2621, %v2620
        %v2625 = vpack.c.b16 %v2623, %v2622
        %2628 = vmatprep.subr.bf16.mxu0 0
        %2629 = vmatpush1.bf16.msra.mxu0 %v2624
        %2630 = vmatprep.subr.bf16.mxu0 0
        %2631 = vmatpush1.bf16.msra.mxu0 %v2625
        %2632 = vmatprep.subr.bf16.mxu0 0
        %2633 = vmatpush1.bf16.msra.mxu0 0
        %2634 = vmatprep.subr.bf16.mxu0 0
        %2635 = vmatpush1.bf16.msra.mxu0 0
        %2636 = vmatprep.subr.bf16.mxu0 0
        %2637 = vmatpush1.bf16.msra.mxu0 0
        %2638 = vmatprep.subr.bf16.mxu0 0
        %2639 = vmatpush1.bf16.msra.mxu0 0
        %2640 = vmatprep.subr.bf16.mxu0 0
        %2641 = vmatpush1.bf16.msra.mxu0 0
        %2642 = vmatprep.subr.bf16.mxu0 0
        %2643 = vmatpush1.bf16.msra.mxu0 0
        %2644 = vmatprep.subr.bf16.mxu0 0
        %2645 = vmatpush1.bf16.msra.mxu0 0
        %2646 = vmatprep.subr.bf16.mxu0 0
        %2647 = vmatpush1.bf16.msra.mxu0 0
        %2648 = vmatprep.subr.bf16.mxu0 0
        %2649 = vmatpush1.bf16.msra.mxu0 0
        %2650 = vmatprep.subr.bf16.mxu0 0
        %2651 = vmatpush1.bf16.msra.mxu0 0
        %2652 = vmatprep.subr.bf16.mxu0 0
        %2653 = vmatpush1.bf16.msra.mxu0 0
        %2654 = vmatprep.subr.bf16.mxu0 0
        %2655 = vmatpush1.bf16.msra.mxu0 0
        %2656 = vmatprep.subr.bf16.mxu0 0
        %2657 = vmatpush1.bf16.msra.mxu0 0
        %2658 = vmatprep.subr.bf16.mxu0 0
        %2659 = vmatpush1.bf16.msra.mxu0 0
        %2660 = vmatprep.mubr.bf16.mxu0 0
        %2661 = vmatmul.mubr.bf16.gmra.mrb[0].mxu0 %v2106
        %v2662 = vpop.f32.mrb[0].mxu0
        %v2663 = vadd.f32 0.0, %v2662
        %v2664 = vpop.f32.mrb[0].mxu0
        %v2665 = vpop.f32.mrb[0].mxu0
        %v2666 = vpop.f32.mrb[0].mxu0
        %2667 = vdwg.mxu0
        %v2672 = vunpack.c.l.b16 %v2083
        %v2673 = vunpack.c.l.b16 %v2084
        %v2674 = vunpack.c.l.b16 %v2085
        %v2675 = vunpack.c.l.b16 %v2086
        %v2676 = vpack.c.b16 %v2673, %v2672
        %v2677 = vpack.c.b16 %v2675, %v2674
        %2680 = vmatprep.subr.bf16.mxu0 0
        %2681 = vmatpush1.bf16.msra.mxu0 %v2676
        %2682 = vmatprep.subr.bf16.mxu0 0
        %2683 = vmatpush1.bf16.msra.mxu0 %v2677
        %2684 = vmatprep.subr.bf16.mxu0 0
        %2685 = vmatpush1.bf16.msra.mxu0 0
        %2686 = vmatprep.subr.bf16.mxu0 0
        %2687 = vmatpush1.bf16.msra.mxu0 0
        %2688 = vmatprep.subr.bf16.mxu0 0
        %2689 = vmatpush1.bf16.msra.mxu0 0
        %2690 = vmatprep.subr.bf16.mxu0 0
        %2691 = vmatpush1.bf16.msra.mxu0 0
        %2692 = vmatprep.subr.bf16.mxu0 0
        %2693 = vmatpush1.bf16.msra.mxu0 0
        %2694 = vmatprep.subr.bf16.mxu0 0
        %2695 = vmatpush1.bf16.msra.mxu0 0
        %2696 = vmatprep.subr.bf16.mxu0 0
        %2697 = vmatpush1.bf16.msra.mxu0 0
        %2698 = vmatprep.subr.bf16.mxu0 0
        %2699 = vmatpush1.bf16.msra.mxu0 0
        %2700 = vmatprep.subr.bf16.mxu0 0
        %2701 = vmatpush1.bf16.msra.mxu0 0
        %2702 = vmatprep.subr.bf16.mxu0 0
        %2703 = vmatpush1.bf16.msra.mxu0 0
        %2704 = vmatprep.subr.bf16.mxu0 0
        %2705 = vmatpush1.bf16.msra.mxu0 0
        %2706 = vmatprep.subr.bf16.mxu0 0
        %2707 = vmatpush1.bf16.msra.mxu0 0
        %2708 = vmatprep.subr.bf16.mxu0 0
        %2709 = vmatpush1.bf16.msra.mxu0 0
        %2710 = vmatprep.subr.bf16.mxu0 0
        %2711 = vmatpush1.bf16.msra.mxu0 0
        %2712 = vmatprep.mubr.bf16.mxu0 0
        %2713 = vmatmul.mubr.bf16.gmra.mrb[0].mxu0 %v2106
        %v2714 = vpop.f32.mrb[0].mxu0
        %v2715 = vadd.f32 0.0, %v2714
        %v2716 = vpop.f32.mrb[0].mxu0
        %v2717 = vpop.f32.mrb[0].mxu0
        %v2718 = vpop.f32.mrb[0].mxu0
        %2719 = vdwg.mxu0
        %v2720 = vpack.c.bf16 %v2143, %v2143
        %v2721 = vpack.c.bf16 %v2195, %v2195
        %v2722 = vpack.c.bf16 %v2247, %v2247
        %v2723 = vpack.c.bf16 %v2299, %v2299
        %v2724 = vpack.c.bf16 %v2351, %v2351
        %v2725 = vpack.c.bf16 %v2403, %v2403
        %v2726 = vpack.c.bf16 %v2455, %v2455
        %v2727 = vpack.c.bf16 %v2507, %v2507
        %v2729 = vsel %vm1358, %v2720, 0
        %v2732 = vsel %vm1358, %v2724, 0
        %2734 = vmatprep.subr.bf16.mxu0 0
        %2735 = vmatpush1.bf16.xpose.msra.mxu0 %v2732
        %2736 = vmatprep.subr.bf16.mxu0 0
        %2737 = vmatpush1.bf16.xpose.msra.mxu0 0
        %2738 = vmatprep.subr.bf16.mxu0 0
        %2739 = vmatpush1.bf16.xpose.msra.mxu0 0
        %2740 = vmatprep.subr.bf16.mxu0 0
        %2741 = vmatpush1.bf16.xpose.msra.mxu0 0
        %2742 = vmatprep.subr.bf16.mxu0 0
        %2743 = vmatpush1.bf16.xpose.msra.mxu0 0
        %2744 = vmatprep.subr.bf16.mxu0 0
        %2745 = vmatpush1.bf16.xpose.msra.mxu0 0
        %2746 = vmatprep.subr.bf16.mxu0 0
        %2747 = vmatpush1.bf16.xpose.msra.mxu0 0
        %2748 = vmatprep.subr.bf16.mxu0 0
        %2749 = vmatpush1.bf16.xpose.msra.mxu0 0
        %2750 = vmatprep.subr.bf16.mxu0 0
        %2751 = vmatpush1.bf16.xpose.msra.mxu0 0
        %2752 = vmatprep.subr.bf16.mxu0 0
        %2753 = vmatpush1.bf16.xpose.msra.mxu0 0
        %2754 = vmatprep.subr.bf16.mxu0 0
        %2755 = vmatpush1.bf16.xpose.msra.mxu0 0
        %2756 = vmatprep.subr.bf16.mxu0 0
        %2757 = vmatpush1.bf16.xpose.msra.mxu0 0
        %2758 = vmatprep.subr.bf16.mxu0 0
        %2759 = vmatpush1.bf16.xpose.msra.mxu0 0
        %2760 = vmatprep.subr.bf16.mxu0 0
        %2761 = vmatpush1.bf16.xpose.msra.mxu0 0
        %2762 = vmatprep.subr.bf16.mxu0 0
        %2763 = vmatpush1.bf16.xpose.msra.mxu0 0
        %2764 = vmatprep.subr.bf16.mxu0 0
        %2765 = vmatpush1.bf16.xpose.msra.mxu0 0
        %2766 = vmatprep.mubr.bf16.mxu0 0
        %2767 = vmatmul.mubr.bf16.gmra.mrb[0].mxu0 %v2729
        %v2768 = vpop.f32.mrb[0].mxu0
        %v2769 = vadd.f32 %v2004, %v2768
        %v2770 = vpop.f32.mrb[0].mxu0
        %v2771 = vpop.f32.mrb[0].mxu0
        %v2772 = vpop.f32.mrb[0].mxu0
        %2773 = vdwg.mxu0
        %v2775 = vsel %vm1358, %v2721, 0
        %v2778 = vsel %vm1358, %v2725, 0
        %2780 = vmatprep.subr.bf16.mxu0 0
        %2781 = vmatpush1.bf16.xpose.msra.mxu0 %v2778
        %2782 = vmatprep.subr.bf16.mxu0 0
        %2783 = vmatpush1.bf16.xpose.msra.mxu0 0
        %2784 = vmatprep.subr.bf16.mxu0 0
        %2785 = vmatpush1.bf16.xpose.msra.mxu0 0
        %2786 = vmatprep.subr.bf16.mxu0 0
        %2787 = vmatpush1.bf16.xpose.msra.mxu0 0
        %2788 = vmatprep.subr.bf16.mxu0 0
        %2789 = vmatpush1.bf16.xpose.msra.mxu0 0
        %2790 = vmatprep.subr.bf16.mxu0 0
        %2791 = vmatpush1.bf16.xpose.msra.mxu0 0
        %2792 = vmatprep.subr.bf16.mxu0 0
        %2793 = vmatpush1.bf16.xpose.msra.mxu0 0
        %2794 = vmatprep.subr.bf16.mxu0 0
        %2795 = vmatpush1.bf16.xpose.msra.mxu0 0
        %2796 = vmatprep.subr.bf16.mxu0 0
        %2797 = vmatpush1.bf16.xpose.msra.mxu0 0
        %2798 = vmatprep.subr.bf16.mxu0 0
        %2799 = vmatpush1.bf16.xpose.msra.mxu0 0
        %2800 = vmatprep.subr.bf16.mxu0 0
        %2801 = vmatpush1.bf16.xpose.msra.mxu0 0
        %2802 = vmatprep.subr.bf16.mxu0 0
        %2803 = vmatpush1.bf16.xpose.msra.mxu0 0
        %2804 = vmatprep.subr.bf16.mxu0 0
        %2805 = vmatpush1.bf16.xpose.msra.mxu0 0
        %2806 = vmatprep.subr.bf16.mxu0 0
        %2807 = vmatpush1.bf16.xpose.msra.mxu0 0
        %2808 = vmatprep.subr.bf16.mxu0 0
        %2809 = vmatpush1.bf16.xpose.msra.mxu0 0
        %2810 = vmatprep.subr.bf16.mxu0 0
        %2811 = vmatpush1.bf16.xpose.msra.mxu0 0
        %2812 = vmatprep.mubr.bf16.mxu0 0
        %2813 = vmatmul.mubr.bf16.gmra.mrb[0].mxu0 %v2775
        %v2814 = vpop.f32.mrb[0].mxu0
        %v2815 = vadd.f32 %v2004, %v2814
        %v2816 = vpop.f32.mrb[0].mxu0
        %v2817 = vpop.f32.mrb[0].mxu0
        %v2818 = vpop.f32.mrb[0].mxu0
        %2819 = vdwg.mxu0
        %v2821 = vsel %vm1358, %v2722, 0
        %v2824 = vsel %vm1358, %v2726, 0
        %2826 = vmatprep.subr.bf16.mxu0 0
        %2827 = vmatpush1.bf16.xpose.msra.mxu0 %v2824
        %2828 = vmatprep.subr.bf16.mxu0 0
        %2829 = vmatpush1.bf16.xpose.msra.mxu0 0
        %2830 = vmatprep.subr.bf16.mxu0 0
        %2831 = vmatpush1.bf16.xpose.msra.mxu0 0
        %2832 = vmatprep.subr.bf16.mxu0 0
        %2833 = vmatpush1.bf16.xpose.msra.mxu0 0
        %2834 = vmatprep.subr.bf16.mxu0 0
        %2835 = vmatpush1.bf16.xpose.msra.mxu0 0
        %2836 = vmatprep.subr.bf16.mxu0 0
        %2837 = vmatpush1.bf16.xpose.msra.mxu0 0
        %2838 = vmatprep.subr.bf16.mxu0 0
        %2839 = vmatpush1.bf16.xpose.msra.mxu0 0
        %2840 = vmatprep.subr.bf16.mxu0 0
        %2841 = vmatpush1.bf16.xpose.msra.mxu0 0
        %2842 = vmatprep.subr.bf16.mxu0 0
        %2843 = vmatpush1.bf16.xpose.msra.mxu0 0
        %2844 = vmatprep.subr.bf16.mxu0 0
        %2845 = vmatpush1.bf16.xpose.msra.mxu0 0
        %2846 = vmatprep.subr.bf16.mxu0 0
        %2847 = vmatpush1.bf16.xpose.msra.mxu0 0
        %2848 = vmatprep.subr.bf16.mxu0 0
        %2849 = vmatpush1.bf16.xpose.msra.mxu0 0
        %2850 = vmatprep.subr.bf16.mxu0 0
        %2851 = vmatpush1.bf16.xpose.msra.mxu0 0
        %2852 = vmatprep.subr.bf16.mxu0 0
        %2853 = vmatpush1.bf16.xpose.msra.mxu0 0
        %2854 = vmatprep.subr.bf16.mxu0 0
        %2855 = vmatpush1.bf16.xpose.msra.mxu0 0
        %2856 = vmatprep.subr.bf16.mxu0 0
        %2857 = vmatpush1.bf16.xpose.msra.mxu0 0
        %2858 = vmatprep.mubr.bf16.mxu0 0
        %2859 = vmatmul.mubr.bf16.gmra.mrb[0].mxu0 %v2821
        %v2860 = vpop.f32.mrb[0].mxu0
        %v2861 = vadd.f32 %v2004, %v2860
        %v2862 = vpop.f32.mrb[0].mxu0
        %v2863 = vpop.f32.mrb[0].mxu0
        %v2864 = vpop.f32.mrb[0].mxu0
        %2865 = vdwg.mxu0
        %v2867 = vsel %vm1358, %v2723, 0
        %v2870 = vsel %vm1358, %v2727, 0
        %2872 = vmatprep.subr.bf16.mxu0 0
        %2873 = vmatpush1.bf16.xpose.msra.mxu0 %v2870
        %2874 = vmatprep.subr.bf16.mxu0 0
        %2875 = vmatpush1.bf16.xpose.msra.mxu0 0
        %2876 = vmatprep.subr.bf16.mxu0 0
        %2877 = vmatpush1.bf16.xpose.msra.mxu0 0
        %2878 = vmatprep.subr.bf16.mxu0 0
        %2879 = vmatpush1.bf16.xpose.msra.mxu0 0
        %2880 = vmatprep.subr.bf16.mxu0 0
        %2881 = vmatpush1.bf16.xpose.msra.mxu0 0
        %2882 = vmatprep.subr.bf16.mxu0 0
        %2883 = vmatpush1.bf16.xpose.msra.mxu0 0
        %2884 = vmatprep.subr.bf16.mxu0 0
        %2885 = vmatpush1.bf16.xpose.msra.mxu0 0
        %2886 = vmatprep.subr.bf16.mxu0 0
        %2887 = vmatpush1.bf16.xpose.msra.mxu0 0
        %2888 = vmatprep.subr.bf16.mxu0 0
        %2889 = vmatpush1.bf16.xpose.msra.mxu0 0
        %2890 = vmatprep.subr.bf16.mxu0 0
        %2891 = vmatpush1.bf16.xpose.msra.mxu0 0
        %2892 = vmatprep.subr.bf16.mxu0 0
        %2893 = vmatpush1.bf16.xpose.msra.mxu0 0
        %2894 = vmatprep.subr.bf16.mxu0 0
        %2895 = vmatpush1.bf16.xpose.msra.mxu0 0
        %2896 = vmatprep.subr.bf16.mxu0 0
        %2897 = vmatpush1.bf16.xpose.msra.mxu0 0
        %2898 = vmatprep.subr.bf16.mxu0 0
        %2899 = vmatpush1.bf16.xpose.msra.mxu0 0
        %2900 = vmatprep.subr.bf16.mxu0 0
        %2901 = vmatpush1.bf16.xpose.msra.mxu0 0
        %2902 = vmatprep.subr.bf16.mxu0 0
        %2903 = vmatpush1.bf16.xpose.msra.mxu0 0
        %2904 = vmatprep.mubr.bf16.mxu0 0
        %2905 = vmatmul.mubr.bf16.gmra.mrb[0].mxu0 %v2867
        %v2906 = vpop.f32.mrb[0].mxu0
        %v2907 = vadd.f32 %v2004, %v2906
        %v2908 = vpop.f32.mrb[0].mxu0
        %v2909 = vpop.f32.mrb[0].mxu0
        %v2910 = vpop.f32.mrb[0].mxu0
        %2911 = vdwg.mxu0
        %v2912 = vsel %vm1358, %v2769, -inf
        %2913 = vmax.xlane.f32.xlu0 %v2912
        %v2914 = vpop.xlane.xlu0 %2913
        %v2915 = vsel %vm1358, %v2815, -inf
        %2916 = vmax.xlane.f32.xlu0 %v2915
        %v2917 = vpop.xlane.xlu0 %2916
        %v2918 = vsel %vm1358, %v2861, -inf
        %2919 = vmax.xlane.f32.xlu0 %v2918
        %v2920 = vpop.xlane.xlu0 %2919
        %v2921 = vsel %vm1358, %v2907, -inf
        %2922 = vmax.xlane.f32.xlu0 %v2921
        %v2923 = vpop.xlane.xlu0 %2922
        %v2924 = vsub.f32 %v2769, %v2914
        %v2925 = vsub.f32 %v2815, %v2917
        %v2926 = vsub.f32 %v2861, %v2920
        %v2927 = vsub.f32 %v2907, %v2923
        %v2928 = vmul.f32 %v2924, 1.442695
        %v2929 = vpow.pop %v2928
        %v2930 = vmul.f32 %v2925, 1.442695
        %v2931 = vpow.pop %v2930
        %v2932 = vmul.f32 %v2926, 1.442695
        %v2933 = vpow.pop %v2932
        %v2934 = vmul.f32 %v2927, 1.442695
        %v2935 = vpow.pop %v2934
        %v2936 = vsel %vm1358, %v2929, 0.0
        %2937 = vadd.xlane.f32.xlu0 %v2936
        %v2938 = vpop.xlane.xlu0 %2937
        %v2939 = vsel %vm1358, %v2931, 0.0
        %2940 = vadd.xlane.f32.xlu0 %v2939
        %v2941 = vpop.xlane.xlu0 %2940
        %v2942 = vsel %vm1358, %v2933, 0.0
        %2943 = vadd.xlane.f32.xlu0 %v2942
        %v2944 = vpop.xlane.xlu0 %2943
        %v2945 = vsel %vm1358, %v2935, 0.0
        %2946 = vadd.xlane.f32.xlu0 %v2945
        %v2947 = vpop.xlane.xlu0 %2946
        %v2948 = vrcp.pop %v2938
        %v2949 = vrcp.pop %v2941
        %v2950 = vrcp.pop %v2944
        %v2951 = vrcp.pop %v2947
        %v2952 = vmul.f32 %v2929, %v2948
        %v2953 = vmul.f32 %v2931, %v2949
        %v2954 = vmul.f32 %v2933, %v2950
        %v2955 = vmul.f32 %v2935, %v2951
        %v2956 = vpack.c.bf16 %v2952, %v2952
        %v2957 = vpack.c.bf16 %v2953, %v2953
        %v2958 = vpack.c.bf16 %v2954, %v2954
        %v2959 = vpack.c.bf16 %v2955, %v2955
        %v2960 = vpack.c.bf16 %v2559, %v2559
        %v2961 = vpack.c.bf16 %v2611, %v2611
        %v2962 = vpack.c.bf16 %v2663, %v2663
        %v2963 = vpack.c.bf16 %v2715, %v2715
        %v2965 = vsel %vm1358, %v2956, 0
        %v2968 = vsel %vm1788, %v2960, 0
        %2970 = vmatprep.subr.bf16.mxu0 0
        %2971 = vmatpush1.bf16.msra.mxu0 %v2968
        %2972 = vmatprep.subr.bf16.mxu0 0
        %2973 = vmatpush1.bf16.msra.mxu0 0
        %2974 = vmatprep.subr.bf16.mxu0 0
        %2975 = vmatpush1.bf16.msra.mxu0 0
        %2976 = vmatprep.subr.bf16.mxu0 0
        %2977 = vmatpush1.bf16.msra.mxu0 0
        %2978 = vmatprep.subr.bf16.mxu0 0
        %2979 = vmatpush1.bf16.msra.mxu0 0
        %2980 = vmatprep.subr.bf16.mxu0 0
        %2981 = vmatpush1.bf16.msra.mxu0 0
        %2982 = vmatprep.subr.bf16.mxu0 0
        %2983 = vmatpush1.bf16.msra.mxu0 0
        %2984 = vmatprep.subr.bf16.mxu0 0
        %2985 = vmatpush1.bf16.msra.mxu0 0
        %2986 = vmatprep.subr.bf16.mxu0 0
        %2987 = vmatpush1.bf16.msra.mxu0 0
        %2988 = vmatprep.subr.bf16.mxu0 0
        %2989 = vmatpush1.bf16.msra.mxu0 0
        %2990 = vmatprep.subr.bf16.mxu0 0
        %2991 = vmatpush1.bf16.msra.mxu0 0
        %2992 = vmatprep.subr.bf16.mxu0 0
        %2993 = vmatpush1.bf16.msra.mxu0 0
        %2994 = vmatprep.subr.bf16.mxu0 0
        %2995 = vmatpush1.bf16.msra.mxu0 0
        %2996 = vmatprep.subr.bf16.mxu0 0
        %2997 = vmatpush1.bf16.msra.mxu0 0
        %2998 = vmatprep.subr.bf16.mxu0 0
        %2999 = vmatpush1.bf16.msra.mxu0 0
        %3000 = vmatprep.subr.bf16.mxu0 0
        %3001 = vmatpush1.bf16.msra.mxu0 0
        %3002 = vmatprep.mubr.bf16.mxu0 0
        %3003 = vmatmul.mubr.bf16.gmra.mrb[0].mxu0 %v2965
        %v3004 = vpop.f32.mrb[0].mxu0
        %v3005 = vadd.f32 0.0, %v3004
        %v3006 = vpop.f32.mrb[0].mxu0
        %v3007 = vpop.f32.mrb[0].mxu0
        %v3008 = vpop.f32.mrb[0].mxu0
        %3009 = vdwg.mxu0
        %v3011 = vsel %vm1358, %v2957, 0
        %v3014 = vsel %vm1788, %v2961, 0
        %3016 = vmatprep.subr.bf16.mxu0 0
        %3017 = vmatpush1.bf16.msra.mxu0 %v3014
        %3018 = vmatprep.subr.bf16.mxu0 0
        %3019 = vmatpush1.bf16.msra.mxu0 0
        %3020 = vmatprep.subr.bf16.mxu0 0
        %3021 = vmatpush1.bf16.msra.mxu0 0
        %3022 = vmatprep.subr.bf16.mxu0 0
        %3023 = vmatpush1.bf16.msra.mxu0 0
        %3024 = vmatprep.subr.bf16.mxu0 0
        %3025 = vmatpush1.bf16.msra.mxu0 0
        %3026 = vmatprep.subr.bf16.mxu0 0
        %3027 = vmatpush1.bf16.msra.mxu0 0
        %3028 = vmatprep.subr.bf16.mxu0 0
        %3029 = vmatpush1.bf16.msra.mxu0 0
        %3030 = vmatprep.subr.bf16.mxu0 0
        %3031 = vmatpush1.bf16.msra.mxu0 0
        %3032 = vmatprep.subr.bf16.mxu0 0
        %3033 = vmatpush1.bf16.msra.mxu0 0
        %3034 = vmatprep.subr.bf16.mxu0 0
        %3035 = vmatpush1.bf16.msra.mxu0 0
        %3036 = vmatprep.subr.bf16.mxu0 0
        %3037 = vmatpush1.bf16.msra.mxu0 0
        %3038 = vmatprep.subr.bf16.mxu0 0
        %3039 = vmatpush1.bf16.msra.mxu0 0
        %3040 = vmatprep.subr.bf16.mxu0 0
        %3041 = vmatpush1.bf16.msra.mxu0 0
        %3042 = vmatprep.subr.bf16.mxu0 0
        %3043 = vmatpush1.bf16.msra.mxu0 0
        %3044 = vmatprep.subr.bf16.mxu0 0
        %3045 = vmatpush1.bf16.msra.mxu0 0
        %3046 = vmatprep.subr.bf16.mxu0 0
        %3047 = vmatpush1.bf16.msra.mxu0 0
        %3048 = vmatprep.mubr.bf16.mxu0 0
        %3049 = vmatmul.mubr.bf16.gmra.mrb[0].mxu0 %v3011
        %v3050 = vpop.f32.mrb[0].mxu0
        %v3051 = vadd.f32 0.0, %v3050
        %v3052 = vpop.f32.mrb[0].mxu0
        %v3053 = vpop.f32.mrb[0].mxu0
        %v3054 = vpop.f32.mrb[0].mxu0
        %3055 = vdwg.mxu0
        %v3057 = vsel %vm1358, %v2958, 0
        %v3060 = vsel %vm1788, %v2962, 0
        %3062 = vmatprep.subr.bf16.mxu0 0
        %3063 = vmatpush1.bf16.msra.mxu0 %v3060
        %3064 = vmatprep.subr.bf16.mxu0 0
        %3065 = vmatpush1.bf16.msra.mxu0 0
        %3066 = vmatprep.subr.bf16.mxu0 0
        %3067 = vmatpush1.bf16.msra.mxu0 0
        %3068 = vmatprep.subr.bf16.mxu0 0
        %3069 = vmatpush1.bf16.msra.mxu0 0
        %3070 = vmatprep.subr.bf16.mxu0 0
        %3071 = vmatpush1.bf16.msra.mxu0 0
        %3072 = vmatprep.subr.bf16.mxu0 0
        %3073 = vmatpush1.bf16.msra.mxu0 0
        %3074 = vmatprep.subr.bf16.mxu0 0
        %3075 = vmatpush1.bf16.msra.mxu0 0
        %3076 = vmatprep.subr.bf16.mxu0 0
        %3077 = vmatpush1.bf16.msra.mxu0 0
        %3078 = vmatprep.subr.bf16.mxu0 0
        %3079 = vmatpush1.bf16.msra.mxu0 0
        %3080 = vmatprep.subr.bf16.mxu0 0
        %3081 = vmatpush1.bf16.msra.mxu0 0
        %3082 = vmatprep.subr.bf16.mxu0 0
        %3083 = vmatpush1.bf16.msra.mxu0 0
        %3084 = vmatprep.subr.bf16.mxu0 0
        %3085 = vmatpush1.bf16.msra.mxu0 0
        %3086 = vmatprep.subr.bf16.mxu0 0
        %3087 = vmatpush1.bf16.msra.mxu0 0
        %3088 = vmatprep.subr.bf16.mxu0 0
        %3089 = vmatpush1.bf16.msra.mxu0 0
        %3090 = vmatprep.subr.bf16.mxu0 0
        %3091 = vmatpush1.bf16.msra.mxu0 0
        %3092 = vmatprep.subr.bf16.mxu0 0
        %3093 = vmatpush1.bf16.msra.mxu0 0
        %3094 = vmatprep.mubr.bf16.mxu0 0
        %3095 = vmatmul.mubr.bf16.gmra.mrb[0].mxu0 %v3057
        %v3096 = vpop.f32.mrb[0].mxu0
        %v3097 = vadd.f32 0.0, %v3096
        %v3098 = vpop.f32.mrb[0].mxu0
        %v3099 = vpop.f32.mrb[0].mxu0
        %v3100 = vpop.f32.mrb[0].mxu0
        %3101 = vdwg.mxu0
        %v3103 = vsel %vm1358, %v2959, 0
        %v3106 = vsel %vm1788, %v2963, 0
        %3108 = vmatprep.subr.bf16.mxu0 0
        %3109 = vmatpush1.bf16.msra.mxu0 %v3106
        %3110 = vmatprep.subr.bf16.mxu0 0
        %3111 = vmatpush1.bf16.msra.mxu0 0
        %3112 = vmatprep.subr.bf16.mxu0 0
        %3113 = vmatpush1.bf16.msra.mxu0 0
        %3114 = vmatprep.subr.bf16.mxu0 0
        %3115 = vmatpush1.bf16.msra.mxu0 0
        %3116 = vmatprep.subr.bf16.mxu0 0
        %3117 = vmatpush1.bf16.msra.mxu0 0
        %3118 = vmatprep.subr.bf16.mxu0 0
        %3119 = vmatpush1.bf16.msra.mxu0 0
        %3120 = vmatprep.subr.bf16.mxu0 0
        %3121 = vmatpush1.bf16.msra.mxu0 0
        %3122 = vmatprep.subr.bf16.mxu0 0
        %3123 = vmatpush1.bf16.msra.mxu0 0
        %3124 = vmatprep.subr.bf16.mxu0 0
        %3125 = vmatpush1.bf16.msra.mxu0 0
        %3126 = vmatprep.subr.bf16.mxu0 0
        %3127 = vmatpush1.bf16.msra.mxu0 0
        %3128 = vmatprep.subr.bf16.mxu0 0
        %3129 = vmatpush1.bf16.msra.mxu0 0
        %3130 = vmatprep.subr.bf16.mxu0 0
        %3131 = vmatpush1.bf16.msra.mxu0 0
        %3132 = vmatprep.subr.bf16.mxu0 0
        %3133 = vmatpush1.bf16.msra.mxu0 0
        %3134 = vmatprep.subr.bf16.mxu0 0
        %3135 = vmatpush1.bf16.msra.mxu0 0
        %3136 = vmatprep.subr.bf16.mxu0 0
        %3137 = vmatpush1.bf16.msra.mxu0 0
        %3138 = vmatprep.subr.bf16.mxu0 0
        %3139 = vmatpush1.bf16.msra.mxu0 0
        %3140 = vmatprep.mubr.bf16.mxu0 0
        %3141 = vmatmul.mubr.bf16.gmra.mrb[0].mxu0 %v3103
        %v3142 = vpop.f32.mrb[0].mxu0
        %v3143 = vadd.f32 0.0, %v3142
        %v3144 = vpop.f32.mrb[0].mxu0
        %v3145 = vpop.f32.mrb[0].mxu0
        %v3146 = vpop.f32.mrb[0].mxu0
        %3147 = vdwg.mxu0
        %v3148 = vpack.c.bf16 %v3005, %v3005
        %v3149 = vpack.c.bf16 %v3051, %v3051
        %v3150 = vpack.c.bf16 %v3097, %v3097
        %v3151 = vpack.c.bf16 %v3143, %v3143
        %v3153 = vsel %vm1358, %v3148, 0
        %v3156 = vsel %vm1788, %v2088, 0
        %3158 = vmatprep.subr.bf16.mxu0 0
        %3159 = vmatpush1.bf16.msra.mxu0 %v3156
        %3160 = vmatprep.subr.bf16.mxu0 0
        %3161 = vmatpush1.bf16.msra.mxu0 0
        %3162 = vmatprep.subr.bf16.mxu0 0
        %3163 = vmatpush1.bf16.msra.mxu0 0
        %3164 = vmatprep.subr.bf16.mxu0 0
        %3165 = vmatpush1.bf16.msra.mxu0 0
        %3166 = vmatprep.subr.bf16.mxu0 0
        %3167 = vmatpush1.bf16.msra.mxu0 0
        %3168 = vmatprep.subr.bf16.mxu0 0
        %3169 = vmatpush1.bf16.msra.mxu0 0
        %3170 = vmatprep.subr.bf16.mxu0 0
        %3171 = vmatpush1.bf16.msra.mxu0 0
        %3172 = vmatprep.subr.bf16.mxu0 0
        %3173 = vmatpush1.bf16.msra.mxu0 0
        %3174 = vmatprep.subr.bf16.mxu0 0
        %3175 = vmatpush1.bf16.msra.mxu0 0
        %3176 = vmatprep.subr.bf16.mxu0 0
        %3177 = vmatpush1.bf16.msra.mxu0 0
        %3178 = vmatprep.subr.bf16.mxu0 0
        %3179 = vmatpush1.bf16.msra.mxu0 0
        %3180 = vmatprep.subr.bf16.mxu0 0
        %3181 = vmatpush1.bf16.msra.mxu0 0
        %3182 = vmatprep.subr.bf16.mxu0 0
        %3183 = vmatpush1.bf16.msra.mxu0 0
        %3184 = vmatprep.subr.bf16.mxu0 0
        %3185 = vmatpush1.bf16.msra.mxu0 0
        %3186 = vmatprep.subr.bf16.mxu0 0
        %3187 = vmatpush1.bf16.msra.mxu0 0
        %3188 = vmatprep.subr.bf16.mxu0 0
        %3189 = vmatpush1.bf16.msra.mxu0 0
        %3190 = vmatprep.mubr.bf16.mxu0 0
        %3191 = vmatmul.mubr.bf16.gmra.mrb[0].mxu0 %v3153
        %v3192 = vpop.f32.mrb[0].mxu0
        %v3193 = vadd.f32 0.0, %v3192
        %v3194 = vpop.f32.mrb[0].mxu0
        %v3195 = vpop.f32.mrb[0].mxu0
        %v3196 = vpop.f32.mrb[0].mxu0
        %3197 = vdwg.mxu0
        %v3199 = vsel %vm1358, %v3149, 0
        %v3202 = vsel %vm1788, %v2089, 0
        %3204 = vmatprep.subr.bf16.mxu0 0
        %3205 = vmatpush1.bf16.msra.mxu0 %v3202
        %3206 = vmatprep.subr.bf16.mxu0 0
        %3207 = vmatpush1.bf16.msra.mxu0 0
        %3208 = vmatprep.subr.bf16.mxu0 0
        %3209 = vmatpush1.bf16.msra.mxu0 0
        %3210 = vmatprep.subr.bf16.mxu0 0
        %3211 = vmatpush1.bf16.msra.mxu0 0
        %3212 = vmatprep.subr.bf16.mxu0 0
        %3213 = vmatpush1.bf16.msra.mxu0 0
        %3214 = vmatprep.subr.bf16.mxu0 0
        %3215 = vmatpush1.bf16.msra.mxu0 0
        %3216 = vmatprep.subr.bf16.mxu0 0
        %3217 = vmatpush1.bf16.msra.mxu0 0
        %3218 = vmatprep.subr.bf16.mxu0 0
        %3219 = vmatpush1.bf16.msra.mxu0 0
        %3220 = vmatprep.subr.bf16.mxu0 0
        %3221 = vmatpush1.bf16.msra.mxu0 0
        %3222 = vmatprep.subr.bf16.mxu0 0
        %3223 = vmatpush1.bf16.msra.mxu0 0
        %3224 = vmatprep.subr.bf16.mxu0 0
        %3225 = vmatpush1.bf16.msra.mxu0 0
        %3226 = vmatprep.subr.bf16.mxu0 0
        %3227 = vmatpush1.bf16.msra.mxu0 0
        %3228 = vmatprep.subr.bf16.mxu0 0
        %3229 = vmatpush1.bf16.msra.mxu0 0
        %3230 = vmatprep.subr.bf16.mxu0 0
        %3231 = vmatpush1.bf16.msra.mxu0 0
        %3232 = vmatprep.subr.bf16.mxu0 0
        %3233 = vmatpush1.bf16.msra.mxu0 0
        %3234 = vmatprep.subr.bf16.mxu0 0
        %3235 = vmatpush1.bf16.msra.mxu0 0
        %3236 = vmatprep.mubr.bf16.mxu0 0
        %3237 = vmatmul.mubr.bf16.gmra.mrb[0].mxu0 %v3199
        %v3238 = vpop.f32.mrb[0].mxu0
        %v3239 = vadd.f32 0.0, %v3238
        %v3240 = vpop.f32.mrb[0].mxu0
        %v3241 = vpop.f32.mrb[0].mxu0
        %v3242 = vpop.f32.mrb[0].mxu0
        %3243 = vdwg.mxu0
        %v3245 = vsel %vm1358, %v3150, 0
        %v3248 = vsel %vm1788, %v2090, 0
        %3250 = vmatprep.subr.bf16.mxu0 0
        %3251 = vmatpush1.bf16.msra.mxu0 %v3248
        %3252 = vmatprep.subr.bf16.mxu0 0
        %3253 = vmatpush1.bf16.msra.mxu0 0
        %3254 = vmatprep.subr.bf16.mxu0 0
        %3255 = vmatpush1.bf16.msra.mxu0 0
        %3256 = vmatprep.subr.bf16.mxu0 0
        %3257 = vmatpush1.bf16.msra.mxu0 0
        %3258 = vmatprep.subr.bf16.mxu0 0
        %3259 = vmatpush1.bf16.msra.mxu0 0
        %3260 = vmatprep.subr.bf16.mxu0 0
        %3261 = vmatpush1.bf16.msra.mxu0 0
        %3262 = vmatprep.subr.bf16.mxu0 0
        %3263 = vmatpush1.bf16.msra.mxu0 0
        %3264 = vmatprep.subr.bf16.mxu0 0
        %3265 = vmatpush1.bf16.msra.mxu0 0
        %3266 = vmatprep.subr.bf16.mxu0 0
        %3267 = vmatpush1.bf16.msra.mxu0 0
        %3268 = vmatprep.subr.bf16.mxu0 0
        %3269 = vmatpush1.bf16.msra.mxu0 0
        %3270 = vmatprep.subr.bf16.mxu0 0
        %3271 = vmatpush1.bf16.msra.mxu0 0
        %3272 = vmatprep.subr.bf16.mxu0 0
        %3273 = vmatpush1.bf16.msra.mxu0 0
        %3274 = vmatprep.subr.bf16.mxu0 0
        %3275 = vmatpush1.bf16.msra.mxu0 0
        %3276 = vmatprep.subr.bf16.mxu0 0
        %3277 = vmatpush1.bf16.msra.mxu0 0
        %3278 = vmatprep.subr.bf16.mxu0 0
        %3279 = vmatpush1.bf16.msra.mxu0 0
        %3280 = vmatprep.subr.bf16.mxu0 0
        %3281 = vmatpush1.bf16.msra.mxu0 0
        %3282 = vmatprep.mubr.bf16.mxu0 0
        %3283 = vmatmul.mubr.bf16.gmra.mrb[0].mxu0 %v3245
        %v3284 = vpop.f32.mrb[0].mxu0
        %v3285 = vadd.f32 0.0, %v3284
        %v3286 = vpop.f32.mrb[0].mxu0
        %v3287 = vpop.f32.mrb[0].mxu0
        %v3288 = vpop.f32.mrb[0].mxu0
        %3289 = vdwg.mxu0
        %v3291 = vsel %vm1358, %v3151, 0
        %v3294 = vsel %vm1788, %v2091, 0
        %3296 = vmatprep.subr.bf16.mxu0 0
        %3297 = vmatpush1.bf16.msra.mxu0 %v3294
        %3298 = vmatprep.subr.bf16.mxu0 0
        %3299 = vmatpush1.bf16.msra.mxu0 0
        %3300 = vmatprep.subr.bf16.mxu0 0
        %3301 = vmatpush1.bf16.msra.mxu0 0
        %3302 = vmatprep.subr.bf16.mxu0 0
        %3303 = vmatpush1.bf16.msra.mxu0 0
        %3304 = vmatprep.subr.bf16.mxu0 0
        %3305 = vmatpush1.bf16.msra.mxu0 0
        %3306 = vmatprep.subr.bf16.mxu0 0
        %3307 = vmatpush1.bf16.msra.mxu0 0
        %3308 = vmatprep.subr.bf16.mxu0 0
        %3309 = vmatpush1.bf16.msra.mxu0 0
        %3310 = vmatprep.subr.bf16.mxu0 0
        %3311 = vmatpush1.bf16.msra.mxu0 0
        %3312 = vmatprep.subr.bf16.mxu0 0
        %3313 = vmatpush1.bf16.msra.mxu0 0
        %3314 = vmatprep.subr.bf16.mxu0 0
        %3315 = vmatpush1.bf16.msra.mxu0 0
        %3316 = vmatprep.subr.bf16.mxu0 0
        %3317 = vmatpush1.bf16.msra.mxu0 0
        %3318 = vmatprep.subr.bf16.mxu0 0
        %3319 = vmatpush1.bf16.msra.mxu0 0
        %3320 = vmatprep.subr.bf16.mxu0 0
        %3321 = vmatpush1.bf16.msra.mxu0 0
        %3322 = vmatprep.subr.bf16.mxu0 0
        %3323 = vmatpush1.bf16.msra.mxu0 0
        %3324 = vmatprep.subr.bf16.mxu0 0
        %3325 = vmatpush1.bf16.msra.mxu0 0
        %3326 = vmatprep.subr.bf16.mxu0 0
        %3327 = vmatpush1.bf16.msra.mxu0 0
        %3328 = vmatprep.mubr.bf16.mxu0 0
        %3329 = vmatmul.mubr.bf16.gmra.mrb[0].mxu0 %v3291
        %v3330 = vpop.f32.mrb[0].mxu0
        %v3331 = vadd.f32 0.0, %v3330
        %v3332 = vpop.f32.mrb[0].mxu0
        %v3333 = vpop.f32.mrb[0].mxu0
        %v3334 = vpop.f32.mrb[0].mxu0
        %3335 = vdwg.mxu0
        %v3336 = vadd.f32 %v3193, %v3239
        %v3337 = vadd.f32 %v3336, %v3285
        %v3338 = vadd.f32 %v3337, %v3331
        %v3339 = vadd.f32 %v2003, %v3338
        %s3340 = scalar_lea.vmem %s6, 2
        %v3341 = vld [vmem:[%s3340] sm:$0x1]
        %s3342 = scalar_lea.vmem %s7, 2
        %v3343 = vld [vmem:[%s3342] sm:$0x1]
        %v3344 = vsel %vm731, %v3339, 0.0
        %3345 = vadd.xlane.f32.xlu0 %v3344
        %v3346 = vpop.xlane.xlu0 %3345
        %v3347 = vmul.f32 %v3346, %v1978
        %v3348 = vsub.f32 %v3339, %v3347
        %v3349 = vmul.f32 %v3348, %v3348
        %v3350 = vsel %vm731, %v3349, 0.0
        %3351 = vadd.xlane.f32.xlu0 %v3350
        %v3352 = vpop.xlane.xlu0 %3351
        %v3353 = vmul.f32 %v3352, %v1978
        %v3354 = vadd.f32 %v3353, 1e-05
        %v3355 = vrsqrt.pop %v3354
        %v3356 = vmul.f32 %v3348, %v3355
        %v3358 = vlaneseq
        %v3359 = vshrl.u32 %v3358, 7
        %v3360 = vsub.s32 0, %v3359
        %v3361 = vrot.slane %v3341, %v3360
        %v3363 = vmul.f32 %v3356, %v3361
        %v3365 = vlaneseq
        %v3366 = vshrl.u32 %v3365, 7
        %v3367 = vsub.s32 0, %v3366
        %v3368 = vrot.slane %v3343, %v3367
        %v3370 = vadd.f32 %v3363, %v3368
        %s3371 = scalar_lea.vmem %s8, 128
        %v3372 = vld [vmem:[%s3371] sm:$0xf]
        %v3373 = vld [vmem:[%s3371 + $0x4] sm:$0xf]
        %v3374 = vld [vmem:[%s3371 + $0x8] sm:$0xf]
        %v3375 = vld [vmem:[%s3371 + $0xc] sm:$0xf]
        %v3376 = vld [vmem:[%s3371 + $0x10] sm:$0xf]
        %v3377 = vld [vmem:[%s3371 + $0x14] sm:$0xf]
        %v3378 = vld [vmem:[%s3371 + $0x18] sm:$0xf]
        %v3379 = vld [vmem:[%s3371 + $0x1c] sm:$0xf]
        %v3380 = vld [vmem:[%s3371 + $0x20] sm:$0xf]
        %v3381 = vld [vmem:[%s3371 + $0x24] sm:$0xf]
        %v3382 = vld [vmem:[%s3371 + $0x28] sm:$0xf]
        %v3383 = vld [vmem:[%s3371 + $0x2c] sm:$0xf]
        %v3384 = vld [vmem:[%s3371 + $0x30] sm:$0xf]
        %v3385 = vld [vmem:[%s3371 + $0x34] sm:$0xf]
        %v3386 = vld [vmem:[%s3371 + $0x38] sm:$0xf]
        %v3387 = vld [vmem:[%s3371 + $0x3c] sm:$0xf]
        %s3388 = scalar_lea.vmem %s9, 128
        %v3389 = vld [vmem:[%s3388] sm:$0xf]
        %v3390 = vld [vmem:[%s3388 + $0x4] sm:$0xf]
        %v3391 = vld [vmem:[%s3388 + $0x8] sm:$0xf]
        %v3392 = vld [vmem:[%s3388 + $0xc] sm:$0xf]
        %v3393 = vld [vmem:[%s3388 + $0x10] sm:$0xf]
        %v3394 = vld [vmem:[%s3388 + $0x14] sm:$0xf]
        %v3395 = vld [vmem:[%s3388 + $0x18] sm:$0xf]
        %v3396 = vld [vmem:[%s3388 + $0x1c] sm:$0xf]
        %v3397 = vld [vmem:[%s3388 + $0x20] sm:$0xf]
        %v3398 = vld [vmem:[%s3388 + $0x24] sm:$0xf]
        %v3399 = vld [vmem:[%s3388 + $0x28] sm:$0xf]
        %v3400 = vld [vmem:[%s3388 + $0x2c] sm:$0xf]
        %v3401 = vld [vmem:[%s3388 + $0x30] sm:$0xf]
        %v3402 = vld [vmem:[%s3388 + $0x34] sm:$0xf]
        %v3403 = vld [vmem:[%s3388 + $0x38] sm:$0xf]
        %v3404 = vld [vmem:[%s3388 + $0x3c] sm:$0xf]
        %s3405 = scalar_lea.vmem %s10, 128
        %v3406 = vld [vmem:[%s3405] sm:$0xf]
        %v3407 = vld [vmem:[%s3405 + $0x4] sm:$0xf]
        %v3408 = vld [vmem:[%s3405 + $0x8] sm:$0xf]
        %v3409 = vld [vmem:[%s3405 + $0xc] sm:$0xf]
        %v3410 = vld [vmem:[%s3405 + $0x10] sm:$0xf]
        %v3411 = vld [vmem:[%s3405 + $0x14] sm:$0xf]
        %v3412 = vld [vmem:[%s3405 + $0x18] sm:$0xf]
        %v3413 = vld [vmem:[%s3405 + $0x1c] sm:$0xf]
        %v3414 = vld [vmem:[%s3405 + $0x20] sm:$0xf]
        %v3415 = vld [vmem:[%s3405 + $0x24] sm:$0xf]
        %v3416 = vld [vmem:[%s3405 + $0x28] sm:$0xf]
        %v3417 = vld [vmem:[%s3405 + $0x2c] sm:$0xf]
        %v3418 = vld [vmem:[%s3405 + $0x30] sm:$0xf]
        %v3419 = vld [vmem:[%s3405 + $0x34] sm:$0xf]
        %v3420 = vld [vmem:[%s3405 + $0x38] sm:$0xf]
        %v3421 = vld [vmem:[%s3405 + $0x3c] sm:$0xf]
        %s3422 = scalar_lea.vmem %s11, 32
        %v3423 = vld [vmem:[%s3422] sm:$0xf]
        %v3424 = vld [vmem:[%s3422 + $0x4] sm:$0xf]
        %v3425 = vld [vmem:[%s3422 + $0x8] sm:$0xf]
        %v3426 = vld [vmem:[%s3422 + $0xc] sm:$0xf]
        %v3427 = vpack.c.bf16 %v3370, %v3370
        %v3428 = vpack.c.bf16 %v2002, %v2002
        %v3433 = vunpack.c.l.b16 %v3372
        %v3434 = vunpack.c.l.b16 %v3373
        %v3435 = vunpack.c.l.b16 %v3374
        %v3436 = vunpack.c.l.b16 %v3375
        %v3437 = vpack.c.b16 %v3434, %v3433
        %v3438 = vpack.c.b16 %v3436, %v3435
        %v3442 = vsel %vm731, %v3427, 0
        %3444 = vmatprep.subr.bf16.mxu0 0
        %3445 = vmatpush1.bf16.msra.mxu0 %v3437
        %3446 = vmatprep.subr.bf16.mxu0 0
        %3447 = vmatpush1.bf16.msra.mxu0 %v3438
        %3448 = vmatprep.subr.bf16.mxu0 0
        %3449 = vmatpush1.bf16.msra.mxu0 0
        %3450 = vmatprep.subr.bf16.mxu0 0
        %3451 = vmatpush1.bf16.msra.mxu0 0
        %3452 = vmatprep.subr.bf16.mxu0 0
        %3453 = vmatpush1.bf16.msra.mxu0 0
        %3454 = vmatprep.subr.bf16.mxu0 0
        %3455 = vmatpush1.bf16.msra.mxu0 0
        %3456 = vmatprep.subr.bf16.mxu0 0
        %3457 = vmatpush1.bf16.msra.mxu0 0
        %3458 = vmatprep.subr.bf16.mxu0 0
        %3459 = vmatpush1.bf16.msra.mxu0 0
        %3460 = vmatprep.subr.bf16.mxu0 0
        %3461 = vmatpush1.bf16.msra.mxu0 0
        %3462 = vmatprep.subr.bf16.mxu0 0
        %3463 = vmatpush1.bf16.msra.mxu0 0
        %3464 = vmatprep.subr.bf16.mxu0 0
        %3465 = vmatpush1.bf16.msra.mxu0 0
        %3466 = vmatprep.subr.bf16.mxu0 0
        %3467 = vmatpush1.bf16.msra.mxu0 0
        %3468 = vmatprep.subr.bf16.mxu0 0
        %3469 = vmatpush1.bf16.msra.mxu0 0
        %3470 = vmatprep.subr.bf16.mxu0 0
        %3471 = vmatpush1.bf16.msra.mxu0 0
        %3472 = vmatprep.subr.bf16.mxu0 0
        %3473 = vmatpush1.bf16.msra.mxu0 0
        %3474 = vmatprep.subr.bf16.mxu0 0
        %3475 = vmatpush1.bf16.msra.mxu0 0
        %3476 = vmatprep.mubr.bf16.mxu0 0
        %3477 = vmatmul.mubr.bf16.gmra.mrb[0].mxu0 %v3442
        %v3478 = vpop.f32.mrb[0].mxu0
        %v3479 = vadd.f32 0.0, %v3478
        %v3480 = vpop.f32.mrb[0].mxu0
        %v3481 = vpop.f32.mrb[0].mxu0
        %v3482 = vpop.f32.mrb[0].mxu0
        %3483 = vdwg.mxu0
        %v3488 = vunpack.c.l.b16 %v3376
        %v3489 = vunpack.c.l.b16 %v3377
        %v3490 = vunpack.c.l.b16 %v3378
        %v3491 = vunpack.c.l.b16 %v3379
        %v3492 = vpack.c.b16 %v3489, %v3488
        %v3493 = vpack.c.b16 %v3491, %v3490
        %3496 = vmatprep.subr.bf16.mxu0 0
        %3497 = vmatpush1.bf16.msra.mxu0 %v3492
        %3498 = vmatprep.subr.bf16.mxu0 0
        %3499 = vmatpush1.bf16.msra.mxu0 %v3493
        %3500 = vmatprep.subr.bf16.mxu0 0
        %3501 = vmatpush1.bf16.msra.mxu0 0
        %3502 = vmatprep.subr.bf16.mxu0 0
        %3503 = vmatpush1.bf16.msra.mxu0 0
        %3504 = vmatprep.subr.bf16.mxu0 0
        %3505 = vmatpush1.bf16.msra.mxu0 0
        %3506 = vmatprep.subr.bf16.mxu0 0
        %3507 = vmatpush1.bf16.msra.mxu0 0
        %3508 = vmatprep.subr.bf16.mxu0 0
        %3509 = vmatpush1.bf16.msra.mxu0 0
        %3510 = vmatprep.subr.bf16.mxu0 0
        %3511 = vmatpush1.bf16.msra.mxu0 0
        %3512 = vmatprep.subr.bf16.mxu0 0
        %3513 = vmatpush1.bf16.msra.mxu0 0
        %3514 = vmatprep.subr.bf16.mxu0 0
        %3515 = vmatpush1.bf16.msra.mxu0 0
        %3516 = vmatprep.subr.bf16.mxu0 0
        %3517 = vmatpush1.bf16.msra.mxu0 0
        %3518 = vmatprep.subr.bf16.mxu0 0
        %3519 = vmatpush1.bf16.msra.mxu0 0
        %3520 = vmatprep.subr.bf16.mxu0 0
        %3521 = vmatpush1.bf16.msra.mxu0 0
        %3522 = vmatprep.subr.bf16.mxu0 0
        %3523 = vmatpush1.bf16.msra.mxu0 0
        %3524 = vmatprep.subr.bf16.mxu0 0
        %3525 = vmatpush1.bf16.msra.mxu0 0
        %3526 = vmatprep.subr.bf16.mxu0 0
        %3527 = vmatpush1.bf16.msra.mxu0 0
        %3528 = vmatprep.mubr.bf16.mxu0 0
        %3529 = vmatmul.mubr.bf16.gmra.mrb[0].mxu0 %v3442
        %v3530 = vpop.f32.mrb[0].mxu0
        %v3531 = vadd.f32 0.0, %v3530
        %v3532 = vpop.f32.mrb[0].mxu0
        %v3533 = vpop.f32.mrb[0].mxu0
        %v3534 = vpop.f32.mrb[0].mxu0
        %3535 = vdwg.mxu0
        %v3540 = vunpack.c.l.b16 %v3380
        %v3541 = vunpack.c.l.b16 %v3381
        %v3542 = vunpack.c.l.b16 %v3382
        %v3543 = vunpack.c.l.b16 %v3383
        %v3544 = vpack.c.b16 %v3541, %v3540
        %v3545 = vpack.c.b16 %v3543, %v3542
        %3548 = vmatprep.subr.bf16.mxu0 0
        %3549 = vmatpush1.bf16.msra.mxu0 %v3544
        %3550 = vmatprep.subr.bf16.mxu0 0
        %3551 = vmatpush1.bf16.msra.mxu0 %v3545
        %3552 = vmatprep.subr.bf16.mxu0 0
        %3553 = vmatpush1.bf16.msra.mxu0 0
        %3554 = vmatprep.subr.bf16.mxu0 0
        %3555 = vmatpush1.bf16.msra.mxu0 0
        %3556 = vmatprep.subr.bf16.mxu0 0
        %3557 = vmatpush1.bf16.msra.mxu0 0
        %3558 = vmatprep.subr.bf16.mxu0 0
        %3559 = vmatpush1.bf16.msra.mxu0 0
        %3560 = vmatprep.subr.bf16.mxu0 0
        %3561 = vmatpush1.bf16.msra.mxu0 0
        %3562 = vmatprep.subr.bf16.mxu0 0
        %3563 = vmatpush1.bf16.msra.mxu0 0
        %3564 = vmatprep.subr.bf16.mxu0 0
        %3565 = vmatpush1.bf16.msra.mxu0 0
        %3566 = vmatprep.subr.bf16.mxu0 0
        %3567 = vmatpush1.bf16.msra.mxu0 0
        %3568 = vmatprep.subr.bf16.mxu0 0
        %3569 = vmatpush1.bf16.msra.mxu0 0
        %3570 = vmatprep.subr.bf16.mxu0 0
        %3571 = vmatpush1.bf16.msra.mxu0 0
        %3572 = vmatprep.subr.bf16.mxu0 0
        %3573 = vmatpush1.bf16.msra.mxu0 0
        %3574 = vmatprep.subr.bf16.mxu0 0
        %3575 = vmatpush1.bf16.msra.mxu0 0
        %3576 = vmatprep.subr.bf16.mxu0 0
        %3577 = vmatpush1.bf16.msra.mxu0 0
        %3578 = vmatprep.subr.bf16.mxu0 0
        %3579 = vmatpush1.bf16.msra.mxu0 0
        %3580 = vmatprep.mubr.bf16.mxu0 0
        %3581 = vmatmul.mubr.bf16.gmra.mrb[0].mxu0 %v3442
        %v3582 = vpop.f32.mrb[0].mxu0
        %v3583 = vadd.f32 0.0, %v3582
        %v3584 = vpop.f32.mrb[0].mxu0
        %v3585 = vpop.f32.mrb[0].mxu0
        %v3586 = vpop.f32.mrb[0].mxu0
        %3587 = vdwg.mxu0
        %v3592 = vunpack.c.l.b16 %v3384
        %v3593 = vunpack.c.l.b16 %v3385
        %v3594 = vunpack.c.l.b16 %v3386
        %v3595 = vunpack.c.l.b16 %v3387
        %v3596 = vpack.c.b16 %v3593, %v3592
        %v3597 = vpack.c.b16 %v3595, %v3594
        %3600 = vmatprep.subr.bf16.mxu0 0
        %3601 = vmatpush1.bf16.msra.mxu0 %v3596
        %3602 = vmatprep.subr.bf16.mxu0 0
        %3603 = vmatpush1.bf16.msra.mxu0 %v3597
        %3604 = vmatprep.subr.bf16.mxu0 0
        %3605 = vmatpush1.bf16.msra.mxu0 0
        %3606 = vmatprep.subr.bf16.mxu0 0
        %3607 = vmatpush1.bf16.msra.mxu0 0
        %3608 = vmatprep.subr.bf16.mxu0 0
        %3609 = vmatpush1.bf16.msra.mxu0 0
        %3610 = vmatprep.subr.bf16.mxu0 0
        %3611 = vmatpush1.bf16.msra.mxu0 0
        %3612 = vmatprep.subr.bf16.mxu0 0
        %3613 = vmatpush1.bf16.msra.mxu0 0
        %3614 = vmatprep.subr.bf16.mxu0 0
        %3615 = vmatpush1.bf16.msra.mxu0 0
        %3616 = vmatprep.subr.bf16.mxu0 0
        %3617 = vmatpush1.bf16.msra.mxu0 0
        %3618 = vmatprep.subr.bf16.mxu0 0
        %3619 = vmatpush1.bf16.msra.mxu0 0
        %3620 = vmatprep.subr.bf16.mxu0 0
        %3621 = vmatpush1.bf16.msra.mxu0 0
        %3622 = vmatprep.subr.bf16.mxu0 0
        %3623 = vmatpush1.bf16.msra.mxu0 0
        %3624 = vmatprep.subr.bf16.mxu0 0
        %3625 = vmatpush1.bf16.msra.mxu0 0
        %3626 = vmatprep.subr.bf16.mxu0 0
        %3627 = vmatpush1.bf16.msra.mxu0 0
        %3628 = vmatprep.subr.bf16.mxu0 0
        %3629 = vmatpush1.bf16.msra.mxu0 0
        %3630 = vmatprep.subr.bf16.mxu0 0
        %3631 = vmatpush1.bf16.msra.mxu0 0
        %3632 = vmatprep.mubr.bf16.mxu0 0
        %3633 = vmatmul.mubr.bf16.gmra.mrb[0].mxu0 %v3442
        %v3634 = vpop.f32.mrb[0].mxu0
        %v3635 = vadd.f32 0.0, %v3634
        %v3636 = vpop.f32.mrb[0].mxu0
        %v3637 = vpop.f32.mrb[0].mxu0
        %v3638 = vpop.f32.mrb[0].mxu0
        %3639 = vdwg.mxu0
        %v3641 = vshrl.u32 %v3428, 16
        %v3643 = vshll.u32 %v3428, 16
        %v3645 = vrot.slane %v3643, 1
        %v3646 = vor.u32 %v3641, %v3645
        %v3651 = vunpack.c.l.b16 %v3389
        %v3652 = vunpack.c.l.b16 %v3390
        %v3653 = vunpack.c.l.b16 %v3391
        %v3654 = vunpack.c.l.b16 %v3392
        %v3655 = vpack.c.b16 %v3652, %v3651
        %v3656 = vpack.c.b16 %v3654, %v3653
        %v3660 = vsel %vm731, %v3646, 0
        %3662 = vmatprep.subr.bf16.mxu0 0
        %3663 = vmatpush1.bf16.msra.mxu0 %v3655
        %3664 = vmatprep.subr.bf16.mxu0 0
        %3665 = vmatpush1.bf16.msra.mxu0 %v3656
        %3666 = vmatprep.subr.bf16.mxu0 0
        %3667 = vmatpush1.bf16.msra.mxu0 0
        %3668 = vmatprep.subr.bf16.mxu0 0
        %3669 = vmatpush1.bf16.msra.mxu0 0
        %3670 = vmatprep.subr.bf16.mxu0 0
        %3671 = vmatpush1.bf16.msra.mxu0 0
        %3672 = vmatprep.subr.bf16.mxu0 0
        %3673 = vmatpush1.bf16.msra.mxu0 0
        %3674 = vmatprep.subr.bf16.mxu0 0
        %3675 = vmatpush1.bf16.msra.mxu0 0
        %3676 = vmatprep.subr.bf16.mxu0 0
        %3677 = vmatpush1.bf16.msra.mxu0 0
        %3678 = vmatprep.subr.bf16.mxu0 0
        %3679 = vmatpush1.bf16.msra.mxu0 0
        %3680 = vmatprep.subr.bf16.mxu0 0
        %3681 = vmatpush1.bf16.msra.mxu0 0
        %3682 = vmatprep.subr.bf16.mxu0 0
        %3683 = vmatpush1.bf16.msra.mxu0 0
        %3684 = vmatprep.subr.bf16.mxu0 0
        %3685 = vmatpush1.bf16.msra.mxu0 0
        %3686 = vmatprep.subr.bf16.mxu0 0
        %3687 = vmatpush1.bf16.msra.mxu0 0
        %3688 = vmatprep.subr.bf16.mxu0 0
        %3689 = vmatpush1.bf16.msra.mxu0 0
        %3690 = vmatprep.subr.bf16.mxu0 0
        %3691 = vmatpush1.bf16.msra.mxu0 0
        %3692 = vmatprep.subr.bf16.mxu0 0
        %3693 = vmatpush1.bf16.msra.mxu0 0
        %3694 = vmatprep.mubr.bf16.mxu0 0
        %3695 = vmatmul.mubr.bf16.gmra.mrb[0].mxu0 %v3660
        %v3696 = vpop.f32.mrb[0].mxu0
        %v3697 = vadd.f32 0.0, %v3696
        %v3698 = vpop.f32.mrb[0].mxu0
        %v3699 = vpop.f32.mrb[0].mxu0
        %v3700 = vpop.f32.mrb[0].mxu0
        %3701 = vdwg.mxu0
        %v3706 = vunpack.c.l.b16 %v3393
        %v3707 = vunpack.c.l.b16 %v3394
        %v3708 = vunpack.c.l.b16 %v3395
        %v3709 = vunpack.c.l.b16 %v3396
        %v3710 = vpack.c.b16 %v3707, %v3706
        %v3711 = vpack.c.b16 %v3709, %v3708
        %3714 = vmatprep.subr.bf16.mxu0 0
        %3715 = vmatpush1.bf16.msra.mxu0 %v3710
        %3716 = vmatprep.subr.bf16.mxu0 0
        %3717 = vmatpush1.bf16.msra.mxu0 %v3711
        %3718 = vmatprep.subr.bf16.mxu0 0
        %3719 = vmatpush1.bf16.msra.mxu0 0
        %3720 = vmatprep.subr.bf16.mxu0 0
        %3721 = vmatpush1.bf16.msra.mxu0 0
        %3722 = vmatprep.subr.bf16.mxu0 0
        %3723 = vmatpush1.bf16.msra.mxu0 0
        %3724 = vmatprep.subr.bf16.mxu0 0
        %3725 = vmatpush1.bf16.msra.mxu0 0
        %3726 = vmatprep.subr.bf16.mxu0 0
        %3727 = vmatpush1.bf16.msra.mxu0 0
        %3728 = vmatprep.subr.bf16.mxu0 0
        %3729 = vmatpush1.bf16.msra.mxu0 0
        %3730 = vmatprep.subr.bf16.mxu0 0
        %3731 = vmatpush1.bf16.msra.mxu0 0
        %3732 = vmatprep.subr.bf16.mxu0 0
        %3733 = vmatpush1.bf16.msra.mxu0 0
        %3734 = vmatprep.subr.bf16.mxu0 0
        %3735 = vmatpush1.bf16.msra.mxu0 0
        %3736 = vmatprep.subr.bf16.mxu0 0
        %3737 = vmatpush1.bf16.msra.mxu0 0
        %3738 = vmatprep.subr.bf16.mxu0 0
        %3739 = vmatpush1.bf16.msra.mxu0 0
        %3740 = vmatprep.subr.bf16.mxu0 0
        %3741 = vmatpush1.bf16.msra.mxu0 0
        %3742 = vmatprep.subr.bf16.mxu0 0
        %3743 = vmatpush1.bf16.msra.mxu0 0
        %3744 = vmatprep.subr.bf16.mxu0 0
        %3745 = vmatpush1.bf16.msra.mxu0 0
        %3746 = vmatprep.mubr.bf16.mxu0 0
        %3747 = vmatmul.mubr.bf16.gmra.mrb[0].mxu0 %v3660
        %v3748 = vpop.f32.mrb[0].mxu0
        %v3749 = vadd.f32 0.0, %v3748
        %v3750 = vpop.f32.mrb[0].mxu0
        %v3751 = vpop.f32.mrb[0].mxu0
        %v3752 = vpop.f32.mrb[0].mxu0
        %3753 = vdwg.mxu0
        %v3758 = vunpack.c.l.b16 %v3397
        %v3759 = vunpack.c.l.b16 %v3398
        %v3760 = vunpack.c.l.b16 %v3399
        %v3761 = vunpack.c.l.b16 %v3400
        %v3762 = vpack.c.b16 %v3759, %v3758
        %v3763 = vpack.c.b16 %v3761, %v3760
        %3766 = vmatprep.subr.bf16.mxu0 0
        %3767 = vmatpush1.bf16.msra.mxu0 %v3762
        %3768 = vmatprep.subr.bf16.mxu0 0
        %3769 = vmatpush1.bf16.msra.mxu0 %v3763
        %3770 = vmatprep.subr.bf16.mxu0 0
        %3771 = vmatpush1.bf16.msra.mxu0 0
        %3772 = vmatprep.subr.bf16.mxu0 0
        %3773 = vmatpush1.bf16.msra.mxu0 0
        %3774 = vmatprep.subr.bf16.mxu0 0
        %3775 = vmatpush1.bf16.msra.mxu0 0
        %3776 = vmatprep.subr.bf16.mxu0 0
        %3777 = vmatpush1.bf16.msra.mxu0 0
        %3778 = vmatprep.subr.bf16.mxu0 0
        %3779 = vmatpush1.bf16.msra.mxu0 0
        %3780 = vmatprep.subr.bf16.mxu0 0
        %3781 = vmatpush1.bf16.msra.mxu0 0
        %3782 = vmatprep.subr.bf16.mxu0 0
        %3783 = vmatpush1.bf16.msra.mxu0 0
        %3784 = vmatprep.subr.bf16.mxu0 0
        %3785 = vmatpush1.bf16.msra.mxu0 0
        %3786 = vmatprep.subr.bf16.mxu0 0
        %3787 = vmatpush1.bf16.msra.mxu0 0
        %3788 = vmatprep.subr.bf16.mxu0 0
        %3789 = vmatpush1.bf16.msra.mxu0 0
        %3790 = vmatprep.subr.bf16.mxu0 0
        %3791 = vmatpush1.bf16.msra.mxu0 0
        %3792 = vmatprep.subr.bf16.mxu0 0
        %3793 = vmatpush1.bf16.msra.mxu0 0
        %3794 = vmatprep.subr.bf16.mxu0 0
        %3795 = vmatpush1.bf16.msra.mxu0 0
        %3796 = vmatprep.subr.bf16.mxu0 0
        %3797 = vmatpush1.bf16.msra.mxu0 0
        %3798 = vmatprep.mubr.bf16.mxu0 0
        %3799 = vmatmul.mubr.bf16.gmra.mrb[0].mxu0 %v3660
        %v3800 = vpop.f32.mrb[0].mxu0
        %v3801 = vadd.f32 0.0, %v3800
        %v3802 = vpop.f32.mrb[0].mxu0
        %v3803 = vpop.f32.mrb[0].mxu0
        %v3804 = vpop.f32.mrb[0].mxu0
        %3805 = vdwg.mxu0
        %v3810 = vunpack.c.l.b16 %v3401
        %v3811 = vunpack.c.l.b16 %v3402
        %v3812 = vunpack.c.l.b16 %v3403
        %v3813 = vunpack.c.l.b16 %v3404
        %v3814 = vpack.c.b16 %v3811, %v3810
        %v3815 = vpack.c.b16 %v3813, %v3812
        %3818 = vmatprep.subr.bf16.mxu0 0
        %3819 = vmatpush1.bf16.msra.mxu0 %v3814
        %3820 = vmatprep.subr.bf16.mxu0 0
        %3821 = vmatpush1.bf16.msra.mxu0 %v3815
        %3822 = vmatprep.subr.bf16.mxu0 0
        %3823 = vmatpush1.bf16.msra.mxu0 0
        %3824 = vmatprep.subr.bf16.mxu0 0
        %3825 = vmatpush1.bf16.msra.mxu0 0
        %3826 = vmatprep.subr.bf16.mxu0 0
        %3827 = vmatpush1.bf16.msra.mxu0 0
        %3828 = vmatprep.subr.bf16.mxu0 0
        %3829 = vmatpush1.bf16.msra.mxu0 0
        %3830 = vmatprep.subr.bf16.mxu0 0
        %3831 = vmatpush1.bf16.msra.mxu0 0
        %3832 = vmatprep.subr.bf16.mxu0 0
        %3833 = vmatpush1.bf16.msra.mxu0 0
        %3834 = vmatprep.subr.bf16.mxu0 0
        %3835 = vmatpush1.bf16.msra.mxu0 0
        %3836 = vmatprep.subr.bf16.mxu0 0
        %3837 = vmatpush1.bf16.msra.mxu0 0
        %3838 = vmatprep.subr.bf16.mxu0 0
        %3839 = vmatpush1.bf16.msra.mxu0 0
        %3840 = vmatprep.subr.bf16.mxu0 0
        %3841 = vmatpush1.bf16.msra.mxu0 0
        %3842 = vmatprep.subr.bf16.mxu0 0
        %3843 = vmatpush1.bf16.msra.mxu0 0
        %3844 = vmatprep.subr.bf16.mxu0 0
        %3845 = vmatpush1.bf16.msra.mxu0 0
        %3846 = vmatprep.subr.bf16.mxu0 0
        %3847 = vmatpush1.bf16.msra.mxu0 0
        %3848 = vmatprep.subr.bf16.mxu0 0
        %3849 = vmatpush1.bf16.msra.mxu0 0
        %3850 = vmatprep.mubr.bf16.mxu0 0
        %3851 = vmatmul.mubr.bf16.gmra.mrb[0].mxu0 %v3660
        %v3852 = vpop.f32.mrb[0].mxu0
        %v3853 = vadd.f32 0.0, %v3852
        %v3854 = vpop.f32.mrb[0].mxu0
        %v3855 = vpop.f32.mrb[0].mxu0
        %v3856 = vpop.f32.mrb[0].mxu0
        %3857 = vdwg.mxu0
        %v3862 = vunpack.c.l.b16 %v3406
        %v3863 = vunpack.c.l.b16 %v3407
        %v3864 = vunpack.c.l.b16 %v3408
        %v3865 = vunpack.c.l.b16 %v3409
        %v3866 = vpack.c.b16 %v3863, %v3862
        %v3867 = vpack.c.b16 %v3865, %v3864
        %3870 = vmatprep.subr.bf16.mxu0 0
        %3871 = vmatpush1.bf16.msra.mxu0 %v3866
        %3872 = vmatprep.subr.bf16.mxu0 0
        %3873 = vmatpush1.bf16.msra.mxu0 %v3867
        %3874 = vmatprep.subr.bf16.mxu0 0
        %3875 = vmatpush1.bf16.msra.mxu0 0
        %3876 = vmatprep.subr.bf16.mxu0 0
        %3877 = vmatpush1.bf16.msra.mxu0 0
        %3878 = vmatprep.subr.bf16.mxu0 0
        %3879 = vmatpush1.bf16.msra.mxu0 0
        %3880 = vmatprep.subr.bf16.mxu0 0
        %3881 = vmatpush1.bf16.msra.mxu0 0
        %3882 = vmatprep.subr.bf16.mxu0 0
        %3883 = vmatpush1.bf16.msra.mxu0 0
        %3884 = vmatprep.subr.bf16.mxu0 0
        %3885 = vmatpush1.bf16.msra.mxu0 0
        %3886 = vmatprep.subr.bf16.mxu0 0
        %3887 = vmatpush1.bf16.msra.mxu0 0
        %3888 = vmatprep.subr.bf16.mxu0 0
        %3889 = vmatpush1.bf16.msra.mxu0 0
        %3890 = vmatprep.subr.bf16.mxu0 0
        %3891 = vmatpush1.bf16.msra.mxu0 0
        %3892 = vmatprep.subr.bf16.mxu0 0
        %3893 = vmatpush1.bf16.msra.mxu0 0
        %3894 = vmatprep.subr.bf16.mxu0 0
        %3895 = vmatpush1.bf16.msra.mxu0 0
        %3896 = vmatprep.subr.bf16.mxu0 0
        %3897 = vmatpush1.bf16.msra.mxu0 0
        %3898 = vmatprep.subr.bf16.mxu0 0
        %3899 = vmatpush1.bf16.msra.mxu0 0
        %3900 = vmatprep.subr.bf16.mxu0 0
        %3901 = vmatpush1.bf16.msra.mxu0 0
        %3902 = vmatprep.mubr.bf16.mxu0 0
        %3903 = vmatmul.mubr.bf16.gmra.mrb[0].mxu0 %v3660
        %v3904 = vpop.f32.mrb[0].mxu0
        %v3905 = vadd.f32 0.0, %v3904
        %v3906 = vpop.f32.mrb[0].mxu0
        %v3907 = vpop.f32.mrb[0].mxu0
        %v3908 = vpop.f32.mrb[0].mxu0
        %3909 = vdwg.mxu0
        %v3914 = vunpack.c.l.b16 %v3410
        %v3915 = vunpack.c.l.b16 %v3411
        %v3916 = vunpack.c.l.b16 %v3412
        %v3917 = vunpack.c.l.b16 %v3413
        %v3918 = vpack.c.b16 %v3915, %v3914
        %v3919 = vpack.c.b16 %v3917, %v3916
        %3922 = vmatprep.subr.bf16.mxu0 0
        %3923 = vmatpush1.bf16.msra.mxu0 %v3918
        %3924 = vmatprep.subr.bf16.mxu0 0
        %3925 = vmatpush1.bf16.msra.mxu0 %v3919
        %3926 = vmatprep.subr.bf16.mxu0 0
        %3927 = vmatpush1.bf16.msra.mxu0 0
        %3928 = vmatprep.subr.bf16.mxu0 0
        %3929 = vmatpush1.bf16.msra.mxu0 0
        %3930 = vmatprep.subr.bf16.mxu0 0
        %3931 = vmatpush1.bf16.msra.mxu0 0
        %3932 = vmatprep.subr.bf16.mxu0 0
        %3933 = vmatpush1.bf16.msra.mxu0 0
        %3934 = vmatprep.subr.bf16.mxu0 0
        %3935 = vmatpush1.bf16.msra.mxu0 0
        %3936 = vmatprep.subr.bf16.mxu0 0
        %3937 = vmatpush1.bf16.msra.mxu0 0
        %3938 = vmatprep.subr.bf16.mxu0 0
        %3939 = vmatpush1.bf16.msra.mxu0 0
        %3940 = vmatprep.subr.bf16.mxu0 0
        %3941 = vmatpush1.bf16.msra.mxu0 0
        %3942 = vmatprep.subr.bf16.mxu0 0
        %3943 = vmatpush1.bf16.msra.mxu0 0
        %3944 = vmatprep.subr.bf16.mxu0 0
        %3945 = vmatpush1.bf16.msra.mxu0 0
        %3946 = vmatprep.subr.bf16.mxu0 0
        %3947 = vmatpush1.bf16.msra.mxu0 0
        %3948 = vmatprep.subr.bf16.mxu0 0
        %3949 = vmatpush1.bf16.msra.mxu0 0
        %3950 = vmatprep.subr.bf16.mxu0 0
        %3951 = vmatpush1.bf16.msra.mxu0 0
        %3952 = vmatprep.subr.bf16.mxu0 0
        %3953 = vmatpush1.bf16.msra.mxu0 0
        %3954 = vmatprep.mubr.bf16.mxu0 0
        %3955 = vmatmul.mubr.bf16.gmra.mrb[0].mxu0 %v3660
        %v3956 = vpop.f32.mrb[0].mxu0
        %v3957 = vadd.f32 0.0, %v3956
        %v3958 = vpop.f32.mrb[0].mxu0
        %v3959 = vpop.f32.mrb[0].mxu0
        %v3960 = vpop.f32.mrb[0].mxu0
        %3961 = vdwg.mxu0
        %v3966 = vunpack.c.l.b16 %v3414
        %v3967 = vunpack.c.l.b16 %v3415
        %v3968 = vunpack.c.l.b16 %v3416
        %v3969 = vunpack.c.l.b16 %v3417
        %v3970 = vpack.c.b16 %v3967, %v3966
        %v3971 = vpack.c.b16 %v3969, %v3968
        %3974 = vmatprep.subr.bf16.mxu0 0
        %3975 = vmatpush1.bf16.msra.mxu0 %v3970
        %3976 = vmatprep.subr.bf16.mxu0 0
        %3977 = vmatpush1.bf16.msra.mxu0 %v3971
        %3978 = vmatprep.subr.bf16.mxu0 0
        %3979 = vmatpush1.bf16.msra.mxu0 0
        %3980 = vmatprep.subr.bf16.mxu0 0
        %3981 = vmatpush1.bf16.msra.mxu0 0
        %3982 = vmatprep.subr.bf16.mxu0 0
        %3983 = vmatpush1.bf16.msra.mxu0 0
        %3984 = vmatprep.subr.bf16.mxu0 0
        %3985 = vmatpush1.bf16.msra.mxu0 0
        %3986 = vmatprep.subr.bf16.mxu0 0
        %3987 = vmatpush1.bf16.msra.mxu0 0
        %3988 = vmatprep.subr.bf16.mxu0 0
        %3989 = vmatpush1.bf16.msra.mxu0 0
        %3990 = vmatprep.subr.bf16.mxu0 0
        %3991 = vmatpush1.bf16.msra.mxu0 0
        %3992 = vmatprep.subr.bf16.mxu0 0
        %3993 = vmatpush1.bf16.msra.mxu0 0
        %3994 = vmatprep.subr.bf16.mxu0 0
        %3995 = vmatpush1.bf16.msra.mxu0 0
        %3996 = vmatprep.subr.bf16.mxu0 0
        %3997 = vmatpush1.bf16.msra.mxu0 0
        %3998 = vmatprep.subr.bf16.mxu0 0
        %3999 = vmatpush1.bf16.msra.mxu0 0
        %4000 = vmatprep.subr.bf16.mxu0 0
        %4001 = vmatpush1.bf16.msra.mxu0 0
        %4002 = vmatprep.subr.bf16.mxu0 0
        %4003 = vmatpush1.bf16.msra.mxu0 0
        %4004 = vmatprep.subr.bf16.mxu0 0
        %4005 = vmatpush1.bf16.msra.mxu0 0
        %4006 = vmatprep.mubr.bf16.mxu0 0
        %4007 = vmatmul.mubr.bf16.gmra.mrb[0].mxu0 %v3660
        %v4008 = vpop.f32.mrb[0].mxu0
        %v4009 = vadd.f32 0.0, %v4008
        %v4010 = vpop.f32.mrb[0].mxu0
        %v4011 = vpop.f32.mrb[0].mxu0
        %v4012 = vpop.f32.mrb[0].mxu0
        %4013 = vdwg.mxu0
        %v4018 = vunpack.c.l.b16 %v3418
        %v4019 = vunpack.c.l.b16 %v3419
        %v4020 = vunpack.c.l.b16 %v3420
        %v4021 = vunpack.c.l.b16 %v3421
        %v4022 = vpack.c.b16 %v4019, %v4018
        %v4023 = vpack.c.b16 %v4021, %v4020
        %4026 = vmatprep.subr.bf16.mxu0 0
        %4027 = vmatpush1.bf16.msra.mxu0 %v4022
        %4028 = vmatprep.subr.bf16.mxu0 0
        %4029 = vmatpush1.bf16.msra.mxu0 %v4023
        %4030 = vmatprep.subr.bf16.mxu0 0
        %4031 = vmatpush1.bf16.msra.mxu0 0
        %4032 = vmatprep.subr.bf16.mxu0 0
        %4033 = vmatpush1.bf16.msra.mxu0 0
        %4034 = vmatprep.subr.bf16.mxu0 0
        %4035 = vmatpush1.bf16.msra.mxu0 0
        %4036 = vmatprep.subr.bf16.mxu0 0
        %4037 = vmatpush1.bf16.msra.mxu0 0
        %4038 = vmatprep.subr.bf16.mxu0 0
        %4039 = vmatpush1.bf16.msra.mxu0 0
        %4040 = vmatprep.subr.bf16.mxu0 0
        %4041 = vmatpush1.bf16.msra.mxu0 0
        %4042 = vmatprep.subr.bf16.mxu0 0
        %4043 = vmatpush1.bf16.msra.mxu0 0
        %4044 = vmatprep.subr.bf16.mxu0 0
        %4045 = vmatpush1.bf16.msra.mxu0 0
        %4046 = vmatprep.subr.bf16.mxu0 0
        %4047 = vmatpush1.bf16.msra.mxu0 0
        %4048 = vmatprep.subr.bf16.mxu0 0
        %4049 = vmatpush1.bf16.msra.mxu0 0
        %4050 = vmatprep.subr.bf16.mxu0 0
        %4051 = vmatpush1.bf16.msra.mxu0 0
        %4052 = vmatprep.subr.bf16.mxu0 0
        %4053 = vmatpush1.bf16.msra.mxu0 0
        %4054 = vmatprep.subr.bf16.mxu0 0
        %4055 = vmatpush1.bf16.msra.mxu0 0
        %4056 = vmatprep.subr.bf16.mxu0 0
        %4057 = vmatpush1.bf16.msra.mxu0 0
        %4058 = vmatprep.mubr.bf16.mxu0 0
        %4059 = vmatmul.mubr.bf16.gmra.mrb[0].mxu0 %v3660
        %v4060 = vpop.f32.mrb[0].mxu0
        %v4061 = vadd.f32 0.0, %v4060
        %v4062 = vpop.f32.mrb[0].mxu0
        %v4063 = vpop.f32.mrb[0].mxu0
        %v4064 = vpop.f32.mrb[0].mxu0
        %4065 = vdwg.mxu0
        %v4066 = vpack.c.bf16 %v3479, %v3479
        %v4067 = vpack.c.bf16 %v3531, %v3531
        %v4068 = vpack.c.bf16 %v3583, %v3583
        %v4069 = vpack.c.bf16 %v3635, %v3635
        %v4070 = vpack.c.bf16 %v3697, %v3697
        %v4071 = vpack.c.bf16 %v3749, %v3749
        %v4072 = vpack.c.bf16 %v3801, %v3801
        %v4073 = vpack.c.bf16 %v3853, %v3853
        %v4075 = vsel %vm1358, %v4066, 0
        %v4078 = vsel %vm1358, %v4070, 0
        %4080 = vmatprep.subr.bf16.mxu0 0
        %4081 = vmatpush1.bf16.xpose.msra.mxu0 %v4078
        %4082 = vmatprep.subr.bf16.mxu0 0
        %4083 = vmatpush1.bf16.xpose.msra.mxu0 0
        %4084 = vmatprep.subr.bf16.mxu0 0
        %4085 = vmatpush1.bf16.xpose.msra.mxu0 0
        %4086 = vmatprep.subr.bf16.mxu0 0
        %4087 = vmatpush1.bf16.xpose.msra.mxu0 0
        %4088 = vmatprep.subr.bf16.mxu0 0
        %4089 = vmatpush1.bf16.xpose.msra.mxu0 0
        %4090 = vmatprep.subr.bf16.mxu0 0
        %4091 = vmatpush1.bf16.xpose.msra.mxu0 0
        %4092 = vmatprep.subr.bf16.mxu0 0
        %4093 = vmatpush1.bf16.xpose.msra.mxu0 0
        %4094 = vmatprep.subr.bf16.mxu0 0
        %4095 = vmatpush1.bf16.xpose.msra.mxu0 0
        %4096 = vmatprep.subr.bf16.mxu0 0
        %4097 = vmatpush1.bf16.xpose.msra.mxu0 0
        %4098 = vmatprep.subr.bf16.mxu0 0
        %4099 = vmatpush1.bf16.xpose.msra.mxu0 0
        %4100 = vmatprep.subr.bf16.mxu0 0
        %4101 = vmatpush1.bf16.xpose.msra.mxu0 0
        %4102 = vmatprep.subr.bf16.mxu0 0
        %4103 = vmatpush1.bf16.xpose.msra.mxu0 0
        %4104 = vmatprep.subr.bf16.mxu0 0
        %4105 = vmatpush1.bf16.xpose.msra.mxu0 0
        %4106 = vmatprep.subr.bf16.mxu0 0
        %4107 = vmatpush1.bf16.xpose.msra.mxu0 0
        %4108 = vmatprep.subr.bf16.mxu0 0
        %4109 = vmatpush1.bf16.xpose.msra.mxu0 0
        %4110 = vmatprep.subr.bf16.mxu0 0
        %4111 = vmatpush1.bf16.xpose.msra.mxu0 0
        %4112 = vmatprep.mubr.bf16.mxu0 0
        %4113 = vmatmul.mubr.bf16.gmra.mrb[0].mxu0 %v4075
        %v4114 = vpop.f32.mrb[0].mxu0
        %v4115 = vadd.f32 0.0, %v4114
        %v4116 = vpop.f32.mrb[0].mxu0
        %v4117 = vpop.f32.mrb[0].mxu0
        %v4118 = vpop.f32.mrb[0].mxu0
        %4119 = vdwg.mxu0
        %v4121 = vsel %vm1358, %v4067, 0
        %v4124 = vsel %vm1358, %v4071, 0
        %4126 = vmatprep.subr.bf16.mxu0 0
        %4127 = vmatpush1.bf16.xpose.msra.mxu0 %v4124
        %4128 = vmatprep.subr.bf16.mxu0 0
        %4129 = vmatpush1.bf16.xpose.msra.mxu0 0
        %4130 = vmatprep.subr.bf16.mxu0 0
        %4131 = vmatpush1.bf16.xpose.msra.mxu0 0
        %4132 = vmatprep.subr.bf16.mxu0 0
        %4133 = vmatpush1.bf16.xpose.msra.mxu0 0
        %4134 = vmatprep.subr.bf16.mxu0 0
        %4135 = vmatpush1.bf16.xpose.msra.mxu0 0
        %4136 = vmatprep.subr.bf16.mxu0 0
        %4137 = vmatpush1.bf16.xpose.msra.mxu0 0
        %4138 = vmatprep.subr.bf16.mxu0 0
        %4139 = vmatpush1.bf16.xpose.msra.mxu0 0
        %4140 = vmatprep.subr.bf16.mxu0 0
        %4141 = vmatpush1.bf16.xpose.msra.mxu0 0
        %4142 = vmatprep.subr.bf16.mxu0 0
        %4143 = vmatpush1.bf16.xpose.msra.mxu0 0
        %4144 = vmatprep.subr.bf16.mxu0 0
        %4145 = vmatpush1.bf16.xpose.msra.mxu0 0
        %4146 = vmatprep.subr.bf16.mxu0 0
        %4147 = vmatpush1.bf16.xpose.msra.mxu0 0
        %4148 = vmatprep.subr.bf16.mxu0 0
        %4149 = vmatpush1.bf16.xpose.msra.mxu0 0
        %4150 = vmatprep.subr.bf16.mxu0 0
        %4151 = vmatpush1.bf16.xpose.msra.mxu0 0
        %4152 = vmatprep.subr.bf16.mxu0 0
        %4153 = vmatpush1.bf16.xpose.msra.mxu0 0
        %4154 = vmatprep.subr.bf16.mxu0 0
        %4155 = vmatpush1.bf16.xpose.msra.mxu0 0
        %4156 = vmatprep.subr.bf16.mxu0 0
        %4157 = vmatpush1.bf16.xpose.msra.mxu0 0
        %4158 = vmatprep.mubr.bf16.mxu0 0
        %4159 = vmatmul.mubr.bf16.gmra.mrb[0].mxu0 %v4121
        %v4160 = vpop.f32.mrb[0].mxu0
        %v4161 = vadd.f32 0.0, %v4160
        %v4162 = vpop.f32.mrb[0].mxu0
        %v4163 = vpop.f32.mrb[0].mxu0
        %v4164 = vpop.f32.mrb[0].mxu0
        %4165 = vdwg.mxu0
        %v4167 = vsel %vm1358, %v4068, 0
        %v4170 = vsel %vm1358, %v4072, 0
        %4172 = vmatprep.subr.bf16.mxu0 0
        %4173 = vmatpush1.bf16.xpose.msra.mxu0 %v4170
        %4174 = vmatprep.subr.bf16.mxu0 0
        %4175 = vmatpush1.bf16.xpose.msra.mxu0 0
        %4176 = vmatprep.subr.bf16.mxu0 0
        %4177 = vmatpush1.bf16.xpose.msra.mxu0 0
        %4178 = vmatprep.subr.bf16.mxu0 0
        %4179 = vmatpush1.bf16.xpose.msra.mxu0 0
        %4180 = vmatprep.subr.bf16.mxu0 0
        %4181 = vmatpush1.bf16.xpose.msra.mxu0 0
        %4182 = vmatprep.subr.bf16.mxu0 0
        %4183 = vmatpush1.bf16.xpose.msra.mxu0 0
        %4184 = vmatprep.subr.bf16.mxu0 0
        %4185 = vmatpush1.bf16.xpose.msra.mxu0 0
        %4186 = vmatprep.subr.bf16.mxu0 0
        %4187 = vmatpush1.bf16.xpose.msra.mxu0 0
        %4188 = vmatprep.subr.bf16.mxu0 0
        %4189 = vmatpush1.bf16.xpose.msra.mxu0 0
        %4190 = vmatprep.subr.bf16.mxu0 0
        %4191 = vmatpush1.bf16.xpose.msra.mxu0 0
        %4192 = vmatprep.subr.bf16.mxu0 0
        %4193 = vmatpush1.bf16.xpose.msra.mxu0 0
        %4194 = vmatprep.subr.bf16.mxu0 0
        %4195 = vmatpush1.bf16.xpose.msra.mxu0 0
        %4196 = vmatprep.subr.bf16.mxu0 0
        %4197 = vmatpush1.bf16.xpose.msra.mxu0 0
        %4198 = vmatprep.subr.bf16.mxu0 0
        %4199 = vmatpush1.bf16.xpose.msra.mxu0 0
        %4200 = vmatprep.subr.bf16.mxu0 0
        %4201 = vmatpush1.bf16.xpose.msra.mxu0 0
        %4202 = vmatprep.subr.bf16.mxu0 0
        %4203 = vmatpush1.bf16.xpose.msra.mxu0 0
        %4204 = vmatprep.mubr.bf16.mxu0 0
        %4205 = vmatmul.mubr.bf16.gmra.mrb[0].mxu0 %v4167
        %v4206 = vpop.f32.mrb[0].mxu0
        %v4207 = vadd.f32 0.0, %v4206
        %v4208 = vpop.f32.mrb[0].mxu0
        %v4209 = vpop.f32.mrb[0].mxu0
        %v4210 = vpop.f32.mrb[0].mxu0
        %4211 = vdwg.mxu0
        %v4213 = vsel %vm1358, %v4069, 0
        %v4216 = vsel %vm1358, %v4073, 0
        %4218 = vmatprep.subr.bf16.mxu0 0
        %4219 = vmatpush1.bf16.xpose.msra.mxu0 %v4216
        %4220 = vmatprep.subr.bf16.mxu0 0
        %4221 = vmatpush1.bf16.xpose.msra.mxu0 0
        %4222 = vmatprep.subr.bf16.mxu0 0
        %4223 = vmatpush1.bf16.xpose.msra.mxu0 0
        %4224 = vmatprep.subr.bf16.mxu0 0
        %4225 = vmatpush1.bf16.xpose.msra.mxu0 0
        %4226 = vmatprep.subr.bf16.mxu0 0
        %4227 = vmatpush1.bf16.xpose.msra.mxu0 0
        %4228 = vmatprep.subr.bf16.mxu0 0
        %4229 = vmatpush1.bf16.xpose.msra.mxu0 0
        %4230 = vmatprep.subr.bf16.mxu0 0
        %4231 = vmatpush1.bf16.xpose.msra.mxu0 0
        %4232 = vmatprep.subr.bf16.mxu0 0
        %4233 = vmatpush1.bf16.xpose.msra.mxu0 0
        %4234 = vmatprep.subr.bf16.mxu0 0
        %4235 = vmatpush1.bf16.xpose.msra.mxu0 0
        %4236 = vmatprep.subr.bf16.mxu0 0
        %4237 = vmatpush1.bf16.xpose.msra.mxu0 0
        %4238 = vmatprep.subr.bf16.mxu0 0
        %4239 = vmatpush1.bf16.xpose.msra.mxu0 0
        %4240 = vmatprep.subr.bf16.mxu0 0
        %4241 = vmatpush1.bf16.xpose.msra.mxu0 0
        %4242 = vmatprep.subr.bf16.mxu0 0
        %4243 = vmatpush1.bf16.xpose.msra.mxu0 0
        %4244 = vmatprep.subr.bf16.mxu0 0
        %4245 = vmatpush1.bf16.xpose.msra.mxu0 0
        %4246 = vmatprep.subr.bf16.mxu0 0
        %4247 = vmatpush1.bf16.xpose.msra.mxu0 0
        %4248 = vmatprep.subr.bf16.mxu0 0
        %4249 = vmatpush1.bf16.xpose.msra.mxu0 0
        %4250 = vmatprep.mubr.bf16.mxu0 0
        %4251 = vmatmul.mubr.bf16.gmra.mrb[0].mxu0 %v4213
        %v4252 = vpop.f32.mrb[0].mxu0
        %v4253 = vadd.f32 0.0, %v4252
        %v4254 = vpop.f32.mrb[0].mxu0
        %v4255 = vpop.f32.mrb[0].mxu0
        %v4256 = vpop.f32.mrb[0].mxu0
        %4257 = vdwg.mxu0
        %vm4258 = vcmask 56320
        %v4259 = vsel %vm4258, %v4115, -inf
        %4260 = vmax.xlane.f32.xlu0 %v4259
        %v4261 = vpop.xlane.xlu0 %4260
        %v4262 = vsel %vm4258, %v4161, -inf
        %4263 = vmax.xlane.f32.xlu0 %v4262
        %v4264 = vpop.xlane.xlu0 %4263
        %v4265 = vsel %vm4258, %v4207, -inf
        %4266 = vmax.xlane.f32.xlu0 %v4265
        %v4267 = vpop.xlane.xlu0 %4266
        %v4268 = vsel %vm4258, %v4253, -inf
        %4269 = vmax.xlane.f32.xlu0 %v4268
        %v4270 = vpop.xlane.xlu0 %4269
        %v4271 = vsub.f32 %v4115, %v4261
        %v4272 = vsub.f32 %v4161, %v4264
        %v4273 = vsub.f32 %v4207, %v4267
        %v4274 = vsub.f32 %v4253, %v4270
        %v4275 = vmul.f32 %v4271, 1.442695
        %v4276 = vpow.pop %v4275
        %v4277 = vmul.f32 %v4272, 1.442695
        %v4278 = vpow.pop %v4277
        %v4279 = vmul.f32 %v4273, 1.442695
        %v4280 = vpow.pop %v4279
        %v4281 = vmul.f32 %v4274, 1.442695
        %v4282 = vpow.pop %v4281
        %v4283 = vsel %vm4258, %v4276, 0.0
        %4284 = vadd.xlane.f32.xlu0 %v4283
        %v4285 = vpop.xlane.xlu0 %4284
        %v4286 = vsel %vm4258, %v4278, 0.0
        %4287 = vadd.xlane.f32.xlu0 %v4286
        %v4288 = vpop.xlane.xlu0 %4287
        %v4289 = vsel %vm4258, %v4280, 0.0
        %4290 = vadd.xlane.f32.xlu0 %v4289
        %v4291 = vpop.xlane.xlu0 %4290
        %v4292 = vsel %vm4258, %v4282, 0.0
        %4293 = vadd.xlane.f32.xlu0 %v4292
        %v4294 = vpop.xlane.xlu0 %4293
        %v4295 = vrcp.pop %v4285
        %v4296 = vrcp.pop %v4288
        %v4297 = vrcp.pop %v4291
        %v4298 = vrcp.pop %v4294
        %v4299 = vmul.f32 %v4276, %v4295
        %v4300 = vmul.f32 %v4278, %v4296
        %v4301 = vmul.f32 %v4280, %v4297
        %v4302 = vmul.f32 %v4282, %v4298
        %v4303 = vpack.c.bf16 %v4299, %v4299
        %v4304 = vpack.c.bf16 %v4300, %v4300
        %v4305 = vpack.c.bf16 %v4301, %v4301
        %v4306 = vpack.c.bf16 %v4302, %v4302
        %v4307 = vpack.c.bf16 %v3905, %v3905
        %v4308 = vpack.c.bf16 %v3957, %v3957
        %v4309 = vpack.c.bf16 %v4009, %v4009
        %v4310 = vpack.c.bf16 %v4061, %v4061
        %v4312 = vsel %vm4258, %v4303, 0
        %vm4314 = vcmask 1042432
        %v4315 = vsel %vm4314, 4294967295, 65535
        %v4316 = vsel %vm1788, %v4315, 0
        %v4318 = vand.u32 %v4307, %v4316
        %4320 = vmatprep.subr.bf16.mxu0 0
        %4321 = vmatpush1.bf16.msra.mxu0 %v4318
        %4322 = vmatprep.subr.bf16.mxu0 0
        %4323 = vmatpush1.bf16.msra.mxu0 0
        %4324 = vmatprep.subr.bf16.mxu0 0
        %4325 = vmatpush1.bf16.msra.mxu0 0
        %4326 = vmatprep.subr.bf16.mxu0 0
        %4327 = vmatpush1.bf16.msra.mxu0 0
        %4328 = vmatprep.subr.bf16.mxu0 0
        %4329 = vmatpush1.bf16.msra.mxu0 0
        %4330 = vmatprep.subr.bf16.mxu0 0
        %4331 = vmatpush1.bf16.msra.mxu0 0
        %4332 = vmatprep.subr.bf16.mxu0 0
        %4333 = vmatpush1.bf16.msra.mxu0 0
        %4334 = vmatprep.subr.bf16.mxu0 0
        %4335 = vmatpush1.bf16.msra.mxu0 0
        %4336 = vmatprep.subr.bf16.mxu0 0
        %4337 = vmatpush1.bf16.msra.mxu0 0
        %4338 = vmatprep.subr.bf16.mxu0 0
        %4339 = vmatpush1.bf16.msra.mxu0 0
        %4340 = vmatprep.subr.bf16.mxu0 0
        %4341 = vmatpush1.bf16.msra.mxu0 0
        %4342 = vmatprep.subr.bf16.mxu0 0
        %4343 = vmatpush1.bf16.msra.mxu0 0
        %4344 = vmatprep.subr.bf16.mxu0 0
        %4345 = vmatpush1.bf16.msra.mxu0 0
        %4346 = vmatprep.subr.bf16.mxu0 0
        %4347 = vmatpush1.bf16.msra.mxu0 0
        %4348 = vmatprep.subr.bf16.mxu0 0
        %4349 = vmatpush1.bf16.msra.mxu0 0
        %4350 = vmatprep.subr.bf16.mxu0 0
        %4351 = vmatpush1.bf16.msra.mxu0 0
        %4352 = vmatprep.mubr.bf16.mxu0 0
        %4353 = vmatmul.mubr.bf16.gmra.mrb[0].mxu0 %v4312
        %v4354 = vpop.f32.mrb[0].mxu0
        %v4355 = vadd.f32 0.0, %v4354
        %v4356 = vpop.f32.mrb[0].mxu0
        %v4357 = vpop.f32.mrb[0].mxu0
        %v4358 = vpop.f32.mrb[0].mxu0
        %4359 = vdwg.mxu0
        %v4361 = vsel %vm4258, %v4304, 0
        %v4364 = vand.u32 %v4308, %v4316
        %4366 = vmatprep.subr.bf16.mxu0 0
        %4367 = vmatpush1.bf16.msra.mxu0 %v4364
        %4368 = vmatprep.subr.bf16.mxu0 0
        %4369 = vmatpush1.bf16.msra.mxu0 0
        %4370 = vmatprep.subr.bf16.mxu0 0
        %4371 = vmatpush1.bf16.msra.mxu0 0
        %4372 = vmatprep.subr.bf16.mxu0 0
        %4373 = vmatpush1.bf16.msra.mxu0 0
        %4374 = vmatprep.subr.bf16.mxu0 0
        %4375 = vmatpush1.bf16.msra.mxu0 0
        %4376 = vmatprep.subr.bf16.mxu0 0
        %4377 = vmatpush1.bf16.msra.mxu0 0
        %4378 = vmatprep.subr.bf16.mxu0 0
        %4379 = vmatpush1.bf16.msra.mxu0 0
        %4380 = vmatprep.subr.bf16.mxu0 0
        %4381 = vmatpush1.bf16.msra.mxu0 0
        %4382 = vmatprep.subr.bf16.mxu0 0
        %4383 = vmatpush1.bf16.msra.mxu0 0
        %4384 = vmatprep.subr.bf16.mxu0 0
        %4385 = vmatpush1.bf16.msra.mxu0 0
        %4386 = vmatprep.subr.bf16.mxu0 0
        %4387 = vmatpush1.bf16.msra.mxu0 0
        %4388 = vmatprep.subr.bf16.mxu0 0
        %4389 = vmatpush1.bf16.msra.mxu0 0
        %4390 = vmatprep.subr.bf16.mxu0 0
        %4391 = vmatpush1.bf16.msra.mxu0 0
        %4392 = vmatprep.subr.bf16.mxu0 0
        %4393 = vmatpush1.bf16.msra.mxu0 0
        %4394 = vmatprep.subr.bf16.mxu0 0
        %4395 = vmatpush1.bf16.msra.mxu0 0
        %4396 = vmatprep.subr.bf16.mxu0 0
        %4397 = vmatpush1.bf16.msra.mxu0 0
        %4398 = vmatprep.mubr.bf16.mxu0 0
        %4399 = vmatmul.mubr.bf16.gmra.mrb[0].mxu0 %v4361
        %v4400 = vpop.f32.mrb[0].mxu0
        %v4401 = vadd.f32 0.0, %v4400
        %v4402 = vpop.f32.mrb[0].mxu0
        %v4403 = vpop.f32.mrb[0].mxu0
        %v4404 = vpop.f32.mrb[0].mxu0
        %4405 = vdwg.mxu0
        %v4407 = vsel %vm4258, %v4305, 0
        %v4410 = vand.u32 %v4309, %v4316
        %4412 = vmatprep.subr.bf16.mxu0 0
        %4413 = vmatpush1.bf16.msra.mxu0 %v4410
        %4414 = vmatprep.subr.bf16.mxu0 0
        %4415 = vmatpush1.bf16.msra.mxu0 0
        %4416 = vmatprep.subr.bf16.mxu0 0
        %4417 = vmatpush1.bf16.msra.mxu0 0
        %4418 = vmatprep.subr.bf16.mxu0 0
        %4419 = vmatpush1.bf16.msra.mxu0 0
        %4420 = vmatprep.subr.bf16.mxu0 0
        %4421 = vmatpush1.bf16.msra.mxu0 0
        %4422 = vmatprep.subr.bf16.mxu0 0
        %4423 = vmatpush1.bf16.msra.mxu0 0
        %4424 = vmatprep.subr.bf16.mxu0 0
        %4425 = vmatpush1.bf16.msra.mxu0 0
        %4426 = vmatprep.subr.bf16.mxu0 0
        %4427 = vmatpush1.bf16.msra.mxu0 0
        %4428 = vmatprep.subr.bf16.mxu0 0
        %4429 = vmatpush1.bf16.msra.mxu0 0
        %4430 = vmatprep.subr.bf16.mxu0 0
        %4431 = vmatpush1.bf16.msra.mxu0 0
        %4432 = vmatprep.subr.bf16.mxu0 0
        %4433 = vmatpush1.bf16.msra.mxu0 0
        %4434 = vmatprep.subr.bf16.mxu0 0
        %4435 = vmatpush1.bf16.msra.mxu0 0
        %4436 = vmatprep.subr.bf16.mxu0 0
        %4437 = vmatpush1.bf16.msra.mxu0 0
        %4438 = vmatprep.subr.bf16.mxu0 0
        %4439 = vmatpush1.bf16.msra.mxu0 0
        %4440 = vmatprep.subr.bf16.mxu0 0
        %4441 = vmatpush1.bf16.msra.mxu0 0
        %4442 = vmatprep.subr.bf16.mxu0 0
        %4443 = vmatpush1.bf16.msra.mxu0 0
        %4444 = vmatprep.mubr.bf16.mxu0 0
        %4445 = vmatmul.mubr.bf16.gmra.mrb[0].mxu0 %v4407
        %v4446 = vpop.f32.mrb[0].mxu0
        %v4447 = vadd.f32 0.0, %v4446
        %v4448 = vpop.f32.mrb[0].mxu0
        %v4449 = vpop.f32.mrb[0].mxu0
        %v4450 = vpop.f32.mrb[0].mxu0
        %4451 = vdwg.mxu0
        %v4453 = vsel %vm4258, %v4306, 0
        %v4456 = vand.u32 %v4310, %v4316
        %4458 = vmatprep.subr.bf16.mxu0 0
        %4459 = vmatpush1.bf16.msra.mxu0 %v4456
        %4460 = vmatprep.subr.bf16.mxu0 0
        %4461 = vmatpush1.bf16.msra.mxu0 0
        %4462 = vmatprep.subr.bf16.mxu0 0
        %4463 = vmatpush1.bf16.msra.mxu0 0
        %4464 = vmatprep.subr.bf16.mxu0 0
        %4465 = vmatpush1.bf16.msra.mxu0 0
        %4466 = vmatprep.subr.bf16.mxu0 0
        %4467 = vmatpush1.bf16.msra.mxu0 0
        %4468 = vmatprep.subr.bf16.mxu0 0
        %4469 = vmatpush1.bf16.msra.mxu0 0
        %4470 = vmatprep.subr.bf16.mxu0 0
        %4471 = vmatpush1.bf16.msra.mxu0 0
        %4472 = vmatprep.subr.bf16.mxu0 0
        %4473 = vmatpush1.bf16.msra.mxu0 0
        %4474 = vmatprep.subr.bf16.mxu0 0
        %4475 = vmatpush1.bf16.msra.mxu0 0
        %4476 = vmatprep.subr.bf16.mxu0 0
        %4477 = vmatpush1.bf16.msra.mxu0 0
        %4478 = vmatprep.subr.bf16.mxu0 0
        %4479 = vmatpush1.bf16.msra.mxu0 0
        %4480 = vmatprep.subr.bf16.mxu0 0
        %4481 = vmatpush1.bf16.msra.mxu0 0
        %4482 = vmatprep.subr.bf16.mxu0 0
        %4483 = vmatpush1.bf16.msra.mxu0 0
        %4484 = vmatprep.subr.bf16.mxu0 0
        %4485 = vmatpush1.bf16.msra.mxu0 0
        %4486 = vmatprep.subr.bf16.mxu0 0
        %4487 = vmatpush1.bf16.msra.mxu0 0
        %4488 = vmatprep.subr.bf16.mxu0 0
        %4489 = vmatpush1.bf16.msra.mxu0 0
        %4490 = vmatprep.mubr.bf16.mxu0 0
        %4491 = vmatmul.mubr.bf16.gmra.mrb[0].mxu0 %v4453
        %v4492 = vpop.f32.mrb[0].mxu0
        %v4493 = vadd.f32 0.0, %v4492
        %v4494 = vpop.f32.mrb[0].mxu0
        %v4495 = vpop.f32.mrb[0].mxu0
        %v4496 = vpop.f32.mrb[0].mxu0
        %4497 = vdwg.mxu0
        %v4498 = vpack.c.bf16 %v4355, %v4355
        %v4499 = vpack.c.bf16 %v4401, %v4401
        %v4500 = vpack.c.bf16 %v4447, %v4447
        %v4501 = vpack.c.bf16 %v4493, %v4493
        %v4503 = vsel %vm1358, %v4498, 0
        %v4506 = vsel %vm1788, %v3423, 0
        %4508 = vmatprep.subr.bf16.mxu0 0
        %4509 = vmatpush1.bf16.msra.mxu0 %v4506
        %4510 = vmatprep.subr.bf16.mxu0 0
        %4511 = vmatpush1.bf16.msra.mxu0 0
        %4512 = vmatprep.subr.bf16.mxu0 0
        %4513 = vmatpush1.bf16.msra.mxu0 0
        %4514 = vmatprep.subr.bf16.mxu0 0
        %4515 = vmatpush1.bf16.msra.mxu0 0
        %4516 = vmatprep.subr.bf16.mxu0 0
        %4517 = vmatpush1.bf16.msra.mxu0 0
        %4518 = vmatprep.subr.bf16.mxu0 0
        %4519 = vmatpush1.bf16.msra.mxu0 0
        %4520 = vmatprep.subr.bf16.mxu0 0
        %4521 = vmatpush1.bf16.msra.mxu0 0
        %4522 = vmatprep.subr.bf16.mxu0 0
        %4523 = vmatpush1.bf16.msra.mxu0 0
        %4524 = vmatprep.subr.bf16.mxu0 0
        %4525 = vmatpush1.bf16.msra.mxu0 0
        %4526 = vmatprep.subr.bf16.mxu0 0
        %4527 = vmatpush1.bf16.msra.mxu0 0
        %4528 = vmatprep.subr.bf16.mxu0 0
        %4529 = vmatpush1.bf16.msra.mxu0 0
        %4530 = vmatprep.subr.bf16.mxu0 0
        %4531 = vmatpush1.bf16.msra.mxu0 0
        %4532 = vmatprep.subr.bf16.mxu0 0
        %4533 = vmatpush1.bf16.msra.mxu0 0
        %4534 = vmatprep.subr.bf16.mxu0 0
        %4535 = vmatpush1.bf16.msra.mxu0 0
        %4536 = vmatprep.subr.bf16.mxu0 0
        %4537 = vmatpush1.bf16.msra.mxu0 0
        %4538 = vmatprep.subr.bf16.mxu0 0
        %4539 = vmatpush1.bf16.msra.mxu0 0
        %4540 = vmatprep.mubr.bf16.mxu0 0
        %4541 = vmatmul.mubr.bf16.gmra.mrb[0].mxu0 %v4503
        %v4542 = vpop.f32.mrb[0].mxu0
        %v4543 = vadd.f32 0.0, %v4542
        %v4544 = vpop.f32.mrb[0].mxu0
        %v4545 = vpop.f32.mrb[0].mxu0
        %v4546 = vpop.f32.mrb[0].mxu0
        %4547 = vdwg.mxu0
        %v4549 = vsel %vm1358, %v4499, 0
        %v4552 = vsel %vm1788, %v3424, 0
        %4554 = vmatprep.subr.bf16.mxu0 0
        %4555 = vmatpush1.bf16.msra.mxu0 %v4552
        %4556 = vmatprep.subr.bf16.mxu0 0
        %4557 = vmatpush1.bf16.msra.mxu0 0
        %4558 = vmatprep.subr.bf16.mxu0 0
        %4559 = vmatpush1.bf16.msra.mxu0 0
        %4560 = vmatprep.subr.bf16.mxu0 0
        %4561 = vmatpush1.bf16.msra.mxu0 0
        %4562 = vmatprep.subr.bf16.mxu0 0
        %4563 = vmatpush1.bf16.msra.mxu0 0
        %4564 = vmatprep.subr.bf16.mxu0 0
        %4565 = vmatpush1.bf16.msra.mxu0 0
        %4566 = vmatprep.subr.bf16.mxu0 0
        %4567 = vmatpush1.bf16.msra.mxu0 0
        %4568 = vmatprep.subr.bf16.mxu0 0
        %4569 = vmatpush1.bf16.msra.mxu0 0
        %4570 = vmatprep.subr.bf16.mxu0 0
        %4571 = vmatpush1.bf16.msra.mxu0 0
        %4572 = vmatprep.subr.bf16.mxu0 0
        %4573 = vmatpush1.bf16.msra.mxu0 0
        %4574 = vmatprep.subr.bf16.mxu0 0
        %4575 = vmatpush1.bf16.msra.mxu0 0
        %4576 = vmatprep.subr.bf16.mxu0 0
        %4577 = vmatpush1.bf16.msra.mxu0 0
        %4578 = vmatprep.subr.bf16.mxu0 0
        %4579 = vmatpush1.bf16.msra.mxu0 0
        %4580 = vmatprep.subr.bf16.mxu0 0
        %4581 = vmatpush1.bf16.msra.mxu0 0
        %4582 = vmatprep.subr.bf16.mxu0 0
        %4583 = vmatpush1.bf16.msra.mxu0 0
        %4584 = vmatprep.subr.bf16.mxu0 0
        %4585 = vmatpush1.bf16.msra.mxu0 0
        %4586 = vmatprep.mubr.bf16.mxu0 0
        %4587 = vmatmul.mubr.bf16.gmra.mrb[0].mxu0 %v4549
        %v4588 = vpop.f32.mrb[0].mxu0
        %v4589 = vadd.f32 0.0, %v4588
        %v4590 = vpop.f32.mrb[0].mxu0
        %v4591 = vpop.f32.mrb[0].mxu0
        %v4592 = vpop.f32.mrb[0].mxu0
        %4593 = vdwg.mxu0
        %v4595 = vsel %vm1358, %v4500, 0
        %v4598 = vsel %vm1788, %v3425, 0
        %4600 = vmatprep.subr.bf16.mxu0 0
        %4601 = vmatpush1.bf16.msra.mxu0 %v4598
        %4602 = vmatprep.subr.bf16.mxu0 0
        %4603 = vmatpush1.bf16.msra.mxu0 0
        %4604 = vmatprep.subr.bf16.mxu0 0
        %4605 = vmatpush1.bf16.msra.mxu0 0
        %4606 = vmatprep.subr.bf16.mxu0 0
        %4607 = vmatpush1.bf16.msra.mxu0 0
        %4608 = vmatprep.subr.bf16.mxu0 0
        %4609 = vmatpush1.bf16.msra.mxu0 0
        %4610 = vmatprep.subr.bf16.mxu0 0
        %4611 = vmatpush1.bf16.msra.mxu0 0
        %4612 = vmatprep.subr.bf16.mxu0 0
        %4613 = vmatpush1.bf16.msra.mxu0 0
        %4614 = vmatprep.subr.bf16.mxu0 0
        %4615 = vmatpush1.bf16.msra.mxu0 0
        %4616 = vmatprep.subr.bf16.mxu0 0
        %4617 = vmatpush1.bf16.msra.mxu0 0
        %4618 = vmatprep.subr.bf16.mxu0 0
        %4619 = vmatpush1.bf16.msra.mxu0 0
        %4620 = vmatprep.subr.bf16.mxu0 0
        %4621 = vmatpush1.bf16.msra.mxu0 0
        %4622 = vmatprep.subr.bf16.mxu0 0
        %4623 = vmatpush1.bf16.msra.mxu0 0
        %4624 = vmatprep.subr.bf16.mxu0 0
        %4625 = vmatpush1.bf16.msra.mxu0 0
        %4626 = vmatprep.subr.bf16.mxu0 0
        %4627 = vmatpush1.bf16.msra.mxu0 0
        %4628 = vmatprep.subr.bf16.mxu0 0
        %4629 = vmatpush1.bf16.msra.mxu0 0
        %4630 = vmatprep.subr.bf16.mxu0 0
        %4631 = vmatpush1.bf16.msra.mxu0 0
        %4632 = vmatprep.mubr.bf16.mxu0 0
        %4633 = vmatmul.mubr.bf16.gmra.mrb[0].mxu0 %v4595
        %v4634 = vpop.f32.mrb[0].mxu0
        %v4635 = vadd.f32 0.0, %v4634
        %v4636 = vpop.f32.mrb[0].mxu0
        %v4637 = vpop.f32.mrb[0].mxu0
        %v4638 = vpop.f32.mrb[0].mxu0
        %4639 = vdwg.mxu0
        %v4641 = vsel %vm1358, %v4501, 0
        %v4644 = vsel %vm1788, %v3426, 0
        %4646 = vmatprep.subr.bf16.mxu0 0
        %4647 = vmatpush1.bf16.msra.mxu0 %v4644
        %4648 = vmatprep.subr.bf16.mxu0 0
        %4649 = vmatpush1.bf16.msra.mxu0 0
        %4650 = vmatprep.subr.bf16.mxu0 0
        %4651 = vmatpush1.bf16.msra.mxu0 0
        %4652 = vmatprep.subr.bf16.mxu0 0
        %4653 = vmatpush1.bf16.msra.mxu0 0
        %4654 = vmatprep.subr.bf16.mxu0 0
        %4655 = vmatpush1.bf16.msra.mxu0 0
        %4656 = vmatprep.subr.bf16.mxu0 0
        %4657 = vmatpush1.bf16.msra.mxu0 0
        %4658 = vmatprep.subr.bf16.mxu0 0
        %4659 = vmatpush1.bf16.msra.mxu0 0
        %4660 = vmatprep.subr.bf16.mxu0 0
        %4661 = vmatpush1.bf16.msra.mxu0 0
        %4662 = vmatprep.subr.bf16.mxu0 0
        %4663 = vmatpush1.bf16.msra.mxu0 0
        %4664 = vmatprep.subr.bf16.mxu0 0
        %4665 = vmatpush1.bf16.msra.mxu0 0
        %4666 = vmatprep.subr.bf16.mxu0 0
        %4667 = vmatpush1.bf16.msra.mxu0 0
        %4668 = vmatprep.subr.bf16.mxu0 0
        %4669 = vmatpush1.bf16.msra.mxu0 0
        %4670 = vmatprep.subr.bf16.mxu0 0
        %4671 = vmatpush1.bf16.msra.mxu0 0
        %4672 = vmatprep.subr.bf16.mxu0 0
        %4673 = vmatpush1.bf16.msra.mxu0 0
        %4674 = vmatprep.subr.bf16.mxu0 0
        %4675 = vmatpush1.bf16.msra.mxu0 0
        %4676 = vmatprep.subr.bf16.mxu0 0
        %4677 = vmatpush1.bf16.msra.mxu0 0
        %4678 = vmatprep.mubr.bf16.mxu0 0
        %4679 = vmatmul.mubr.bf16.gmra.mrb[0].mxu0 %v4641
        %v4680 = vpop.f32.mrb[0].mxu0
        %v4681 = vadd.f32 0.0, %v4680
        %v4682 = vpop.f32.mrb[0].mxu0
        %v4683 = vpop.f32.mrb[0].mxu0
        %v4684 = vpop.f32.mrb[0].mxu0
        %4685 = vdwg.mxu0
        %v4686 = vadd.f32 %v4543, %v4589
        %v4687 = vadd.f32 %v4686, %v4635
        %v4688 = vadd.f32 %v4687, %v4681
        %v4689 = vadd.f32 %v3339, %v4688
        %s4690 = scalar_lea.vmem %s6, 3
        %v4691 = vld [vmem:[%s4690] sm:$0x1]
        %s4692 = scalar_lea.vmem %s7, 3
        %v4693 = vld [vmem:[%s4692] sm:$0x1]
        %v4694 = vsel %vm731, %v4689, 0.0
        %4695 = vadd.xlane.f32.xlu0 %v4694
        %v4696 = vpop.xlane.xlu0 %4695
        %v4697 = vmul.f32 %v4696, %v1978
        %v4698 = vsub.f32 %v4689, %v4697
        %v4699 = vmul.f32 %v4698, %v4698
        %v4700 = vsel %vm731, %v4699, 0.0
        %4701 = vadd.xlane.f32.xlu0 %v4700
        %v4702 = vpop.xlane.xlu0 %4701
        %v4703 = vmul.f32 %v4702, %v1978
        %v4704 = vadd.f32 %v4703, 1e-05
        %v4705 = vrsqrt.pop %v4704
        %v4706 = vmul.f32 %v4698, %v4705
        %v4708 = vlaneseq
        %v4709 = vshrl.u32 %v4708, 7
        %v4710 = vsub.s32 0, %v4709
        %v4711 = vrot.slane %v4691, %v4710
        %v4713 = vmul.f32 %v4706, %v4711
        %v4715 = vlaneseq
        %v4716 = vshrl.u32 %v4715, 7
        %v4717 = vsub.s32 0, %v4716
        %v4718 = vrot.slane %v4693, %v4717
        %v4720 = vadd.f32 %v4713, %v4718
        %v4721 = vld [vmem:[%s12] sm:$0xf]
        %v4722 = vld [vmem:[%s12 + $0x4] sm:$0xf]
        %v4723 = vld [vmem:[%s12 + $0x8] sm:$0xf]
        %v4724 = vld [vmem:[%s12 + $0xc] sm:$0xf]
        %v4725 = vld [vmem:[%s13] sm:$0x1]
        %v4726 = vld [vmem:[%s14] sm:$0xf]
        %v4727 = vld [vmem:[%s14 + $0x4] sm:$0xf]
        %v4728 = vld [vmem:[%s14 + $0x8] sm:$0xf]
        %v4729 = vld [vmem:[%s14 + $0xc] sm:$0xf]
        %v4730 = vld [vmem:[%s14 + $0x10] sm:$0xf]
        %v4731 = vld [vmem:[%s14 + $0x14] sm:$0xf]
        %v4732 = vld [vmem:[%s14 + $0x18] sm:$0xf]
        %v4733 = vld [vmem:[%s14 + $0x1c] sm:$0xf]
        %v4734 = vld [vmem:[%s15] sm:$0x1]
        %v4735 = vpack.c.bf16 %v4720, %v4720
        %v4737 = vlaneseq
        %v4738 = vshrl.u32 %v4737, 7
        %v4739 = vsub.s32 0, %v4738
        %v4740 = vrot.slane %v4725, %v4739
        %v4746 = vunpack.c.l.b16 %v4721
        %v4747 = vunpack.c.l.b16 %v4722
        %v4748 = vunpack.c.l.b16 %v4723
        %v4749 = vunpack.c.l.b16 %v4724
        %v4750 = vpack.c.b16 %v4747, %v4746
        %v4751 = vpack.c.b16 %v4749, %v4748
        %v4755 = vsel %vm731, %v4735, 0
        %4757 = vmatprep.subr.bf16.mxu0 0
        %4758 = vmatpush1.bf16.msra.mxu0 %v4750
        %4759 = vmatprep.subr.bf16.mxu0 0
        %4760 = vmatpush1.bf16.msra.mxu0 %v4751
        %4761 = vmatprep.subr.bf16.mxu0 0
        %4762 = vmatpush1.bf16.msra.mxu0 0
        %4763 = vmatprep.subr.bf16.mxu0 0
        %4764 = vmatpush1.bf16.msra.mxu0 0
        %4765 = vmatprep.subr.bf16.mxu0 0
        %4766 = vmatpush1.bf16.msra.mxu0 0
        %4767 = vmatprep.subr.bf16.mxu0 0
        %4768 = vmatpush1.bf16.msra.mxu0 0
        %4769 = vmatprep.subr.bf16.mxu0 0
        %4770 = vmatpush1.bf16.msra.mxu0 0
        %4771 = vmatprep.subr.bf16.mxu0 0
        %4772 = vmatpush1.bf16.msra.mxu0 0
        %4773 = vmatprep.subr.bf16.mxu0 0
        %4774 = vmatpush1.bf16.msra.mxu0 0
        %4775 = vmatprep.subr.bf16.mxu0 0
        %4776 = vmatpush1.bf16.msra.mxu0 0
        %4777 = vmatprep.subr.bf16.mxu0 0
        %4778 = vmatpush1.bf16.msra.mxu0 0
        %4779 = vmatprep.subr.bf16.mxu0 0
        %4780 = vmatpush1.bf16.msra.mxu0 0
        %4781 = vmatprep.subr.bf16.mxu0 0
        %4782 = vmatpush1.bf16.msra.mxu0 0
        %4783 = vmatprep.subr.bf16.mxu0 0
        %4784 = vmatpush1.bf16.msra.mxu0 0
        %4785 = vmatprep.subr.bf16.mxu0 0
        %4786 = vmatpush1.bf16.msra.mxu0 0
        %4787 = vmatprep.subr.bf16.mxu0 0
        %4788 = vmatpush1.bf16.msra.mxu0 0
        %4789 = vmatprep.mubr.bf16.mxu0 0
        %4790 = vmatmul.mubr.bf16.gmra.mrb[0].mxu0 %v4755
        %v4791 = vpop.f32.mrb[0].mxu0
        %v4792 = vadd.f32 %v4740, %v4791
        %v4793 = vpop.f32.mrb[0].mxu0
        %v4794 = vpop.f32.mrb[0].mxu0
        %v4795 = vpop.f32.mrb[0].mxu0
        %4796 = vdwg.mxu0
        %v4797 = vmul.f32 %v4792, %v4792
        %v4798 = vmul.f32 %v4792, %v4797
        %v4799 = vmul.f32 %v4798, 0.044715
        %v4800 = vadd.f32 %v4792, %v4799
        %v4801 = vmul.f32 %v4800, 0.7978846
        %v4802 = vtanh.pop %v4801
        %v4803 = vadd.f32 %v4802, 1.0
        %v4804 = vmul.f32 %v4803, 0.5
        %v4805 = vmul.f32 %v4792, %v4804
        %v4806 = vpack.c.bf16 %v4805, %v4805
        %v4808 = vlaneseq
        %v4809 = vshrl.u32 %v4808, 7
        %v4810 = vsub.s32 0, %v4809
        %v4811 = vrot.slane %v4734, %v4810
        %v4821 = vunpack.c.l.b16 %v4726
        %v4822 = vunpack.c.l.b16 %v4727
        %v4823 = vunpack.c.l.b16 %v4728
        %v4824 = vunpack.c.l.b16 %v4729
        %v4825 = vunpack.c.l.b16 %v4730
        %v4826 = vunpack.c.l.b16 %v4731
        %v4827 = vunpack.c.l.b16 %v4732
        %v4828 = vunpack.c.l.b16 %v4733
        %v4829 = vpack.c.b16 %v4822, %v4821
        %v4830 = vpack.c.b16 %v4824, %v4823
        %v4831 = vpack.c.b16 %v4826, %v4825
        %v4832 = vpack.c.b16 %v4828, %v4827
        %v4838 = vsel %vm620, %v4806, 0
        %4840 = vmatprep.subr.bf16.mxu0 0
        %4841 = vmatpush1.bf16.msra.mxu0 %v4829
        %4842 = vmatprep.subr.bf16.mxu0 0
        %4843 = vmatpush1.bf16.msra.mxu0 %v4830
        %4844 = vmatprep.subr.bf16.mxu0 0
        %4845 = vmatpush1.bf16.msra.mxu0 %v4831
        %4846 = vmatprep.subr.bf16.mxu0 0
        %4847 = vmatpush1.bf16.msra.mxu0 %v4832
        %4848 = vmatprep.subr.bf16.mxu0 0
        %4849 = vmatpush1.bf16.msra.mxu0 0
        %4850 = vmatprep.subr.bf16.mxu0 0
        %4851 = vmatpush1.bf16.msra.mxu0 0
        %4852 = vmatprep.subr.bf16.mxu0 0
        %4853 = vmatpush1.bf16.msra.mxu0 0
        %4854 = vmatprep.subr.bf16.mxu0 0
        %4855 = vmatpush1.bf16.msra.mxu0 0
        %4856 = vmatprep.subr.bf16.mxu0 0
        %4857 = vmatpush1.bf16.msra.mxu0 0
        %4858 = vmatprep.subr.bf16.mxu0 0
        %4859 = vmatpush1.bf16.msra.mxu0 0
        %4860 = vmatprep.subr.bf16.mxu0 0
        %4861 = vmatpush1.bf16.msra.mxu0 0
        %4862 = vmatprep.subr.bf16.mxu0 0
        %4863 = vmatpush1.bf16.msra.mxu0 0
        %4864 = vmatprep.subr.bf16.mxu0 0
        %4865 = vmatpush1.bf16.msra.mxu0 0
        %4866 = vmatprep.subr.bf16.mxu0 0
        %4867 = vmatpush1.bf16.msra.mxu0 0
        %4868 = vmatprep.subr.bf16.mxu0 0
        %4869 = vmatpush1.bf16.msra.mxu0 0
        %4870 = vmatprep.subr.bf16.mxu0 0
        %4871 = vmatpush1.bf16.msra.mxu0 0
        %4872 = vmatprep.mubr.bf16.mxu0 0
        %4873 = vmatmul.mubr.bf16.gmra.mrb[0].mxu0 %v4838
        %v4874 = vpop.f32.mrb[0].mxu0
        %v4875 = vadd.f32 %v4811, %v4874
        %v4876 = vpop.f32.mrb[0].mxu0
        %v4877 = vpop.f32.mrb[0].mxu0
        %v4878 = vpop.f32.mrb[0].mxu0
        %4879 = vdwg.mxu0
        %v4880 = vadd.f32 %v4689, %v4875
        %s4881 = scalar_lea.vmem %s6, 4
        %v4882 = vld [vmem:[%s4881] sm:$0x1]
        %s4883 = scalar_lea.vmem %s7, 4
        %v4884 = vld [vmem:[%s4883] sm:$0x1]
        %v4885 = vsel %vm731, %v4880, 0.0
        %4886 = vadd.xlane.f32.xlu0 %v4885
        %v4887 = vpop.xlane.xlu0 %4886
        %v4888 = vmul.f32 %v4887, %v1978
        %v4889 = vsub.f32 %v4880, %v4888
        %v4890 = vmul.f32 %v4889, %v4889
        %v4891 = vsel %vm731, %v4890, 0.0
        %4892 = vadd.xlane.f32.xlu0 %v4891
        %v4893 = vpop.xlane.xlu0 %4892
        %v4894 = vmul.f32 %v4893, %v1978
        %v4895 = vadd.f32 %v4894, 1e-05
        %v4896 = vrsqrt.pop %v4895
        %v4897 = vmul.f32 %v4889, %v4896
        %v4899 = vlaneseq
        %v4900 = vshrl.u32 %v4899, 7
        %v4901 = vsub.s32 0, %v4900
        %v4902 = vrot.slane %v4882, %v4901
        %v4904 = vmul.f32 %v4897, %v4902
        %v4906 = vlaneseq
        %v4907 = vshrl.u32 %v4906, 7
        %v4908 = vsub.s32 0, %v4907
        %v4909 = vrot.slane %v4884, %v4908
        %v4911 = vadd.f32 %v4904, %v4909
        %s4912 = scalar_lea.vmem %s8, 192
        %v4913 = vld [vmem:[%s4912] sm:$0xf]
        %v4914 = vld [vmem:[%s4912 + $0x4] sm:$0xf]
        %v4915 = vld [vmem:[%s4912 + $0x8] sm:$0xf]
        %v4916 = vld [vmem:[%s4912 + $0xc] sm:$0xf]
        %v4917 = vld [vmem:[%s4912 + $0x10] sm:$0xf]
        %v4918 = vld [vmem:[%s4912 + $0x14] sm:$0xf]
        %v4919 = vld [vmem:[%s4912 + $0x18] sm:$0xf]
        %v4920 = vld [vmem:[%s4912 + $0x1c] sm:$0xf]
        %v4921 = vld [vmem:[%s4912 + $0x20] sm:$0xf]
        %v4922 = vld [vmem:[%s4912 + $0x24] sm:$0xf]
        %v4923 = vld [vmem:[%s4912 + $0x28] sm:$0xf]
        %v4924 = vld [vmem:[%s4912 + $0x2c] sm:$0xf]
        %v4925 = vld [vmem:[%s4912 + $0x30] sm:$0xf]
        %v4926 = vld [vmem:[%s4912 + $0x34] sm:$0xf]
        %v4927 = vld [vmem:[%s4912 + $0x38] sm:$0xf]
        %v4928 = vld [vmem:[%s4912 + $0x3c] sm:$0xf]
        %s4929 = scalar_lea.vmem %s9, 192
        %v4930 = vld [vmem:[%s4929] sm:$0xf]
        %v4931 = vld [vmem:[%s4929 + $0x4] sm:$0xf]
        %v4932 = vld [vmem:[%s4929 + $0x8] sm:$0xf]
        %v4933 = vld [vmem:[%s4929 + $0xc] sm:$0xf]
        %v4934 = vld [vmem:[%s4929 + $0x10] sm:$0xf]
        %v4935 = vld [vmem:[%s4929 + $0x14] sm:$0xf]
        %v4936 = vld [vmem:[%s4929 + $0x18] sm:$0xf]
        %v4937 = vld [vmem:[%s4929 + $0x1c] sm:$0xf]
        %v4938 = vld [vmem:[%s4929 + $0x20] sm:$0xf]
        %v4939 = vld [vmem:[%s4929 + $0x24] sm:$0xf]
        %v4940 = vld [vmem:[%s4929 + $0x28] sm:$0xf]
        %v4941 = vld [vmem:[%s4929 + $0x2c] sm:$0xf]
        %v4942 = vld [vmem:[%s4929 + $0x30] sm:$0xf]
        %v4943 = vld [vmem:[%s4929 + $0x34] sm:$0xf]
        %v4944 = vld [vmem:[%s4929 + $0x38] sm:$0xf]
        %v4945 = vld [vmem:[%s4929 + $0x3c] sm:$0xf]
        %s4946 = scalar_lea.vmem %s10, 192
        %v4947 = vld [vmem:[%s4946] sm:$0xf]
        %v4948 = vld [vmem:[%s4946 + $0x4] sm:$0xf]
        %v4949 = vld [vmem:[%s4946 + $0x8] sm:$0xf]
        %v4950 = vld [vmem:[%s4946 + $0xc] sm:$0xf]
        %v4951 = vld [vmem:[%s4946 + $0x10] sm:$0xf]
        %v4952 = vld [vmem:[%s4946 + $0x14] sm:$0xf]
        %v4953 = vld [vmem:[%s4946 + $0x18] sm:$0xf]
        %v4954 = vld [vmem:[%s4946 + $0x1c] sm:$0xf]
        %v4955 = vld [vmem:[%s4946 + $0x20] sm:$0xf]
        %v4956 = vld [vmem:[%s4946 + $0x24] sm:$0xf]
        %v4957 = vld [vmem:[%s4946 + $0x28] sm:$0xf]
        %v4958 = vld [vmem:[%s4946 + $0x2c] sm:$0xf]
        %v4959 = vld [vmem:[%s4946 + $0x30] sm:$0xf]
        %v4960 = vld [vmem:[%s4946 + $0x34] sm:$0xf]
        %v4961 = vld [vmem:[%s4946 + $0x38] sm:$0xf]
        %v4962 = vld [vmem:[%s4946 + $0x3c] sm:$0xf]
        %s4963 = scalar_lea.vmem %s11, 48
        %v4964 = vld [vmem:[%s4963] sm:$0xf]
        %v4965 = vld [vmem:[%s4963 + $0x4] sm:$0xf]
        %v4966 = vld [vmem:[%s4963 + $0x8] sm:$0xf]
        %v4967 = vld [vmem:[%s4963 + $0xc] sm:$0xf]
        %v4968 = vpack.c.bf16 %v4911, %v4911
        %v4973 = vunpack.c.l.b16 %v4913
        %v4974 = vunpack.c.l.b16 %v4914
        %v4975 = vunpack.c.l.b16 %v4915
        %v4976 = vunpack.c.l.b16 %v4916
        %v4977 = vpack.c.b16 %v4974, %v4973
        %v4978 = vpack.c.b16 %v4976, %v4975
        %v4982 = vsel %vm731, %v4968, 0
        %4984 = vmatprep.subr.bf16.mxu0 0
        %4985 = vmatpush1.bf16.msra.mxu0 %v4977
        %4986 = vmatprep.subr.bf16.mxu0 0
        %4987 = vmatpush1.bf16.msra.mxu0 %v4978
        %4988 = vmatprep.subr.bf16.mxu0 0
        %4989 = vmatpush1.bf16.msra.mxu0 0
        %4990 = vmatprep.subr.bf16.mxu0 0
        %4991 = vmatpush1.bf16.msra.mxu0 0
        %4992 = vmatprep.subr.bf16.mxu0 0
        %4993 = vmatpush1.bf16.msra.mxu0 0
        %4994 = vmatprep.subr.bf16.mxu0 0
        %4995 = vmatpush1.bf16.msra.mxu0 0
        %4996 = vmatprep.subr.bf16.mxu0 0
        %4997 = vmatpush1.bf16.msra.mxu0 0
        %4998 = vmatprep.subr.bf16.mxu0 0
        %4999 = vmatpush1.bf16.msra.mxu0 0
        %5000 = vmatprep.subr.bf16.mxu0 0
        %5001 = vmatpush1.bf16.msra.mxu0 0
        %5002 = vmatprep.subr.bf16.mxu0 0
        %5003 = vmatpush1.bf16.msra.mxu0 0
        %5004 = vmatprep.subr.bf16.mxu0 0
        %5005 = vmatpush1.bf16.msra.mxu0 0
        %5006 = vmatprep.subr.bf16.mxu0 0
        %5007 = vmatpush1.bf16.msra.mxu0 0
        %5008 = vmatprep.subr.bf16.mxu0 0
        %5009 = vmatpush1.bf16.msra.mxu0 0
        %5010 = vmatprep.subr.bf16.mxu0 0
        %5011 = vmatpush1.bf16.msra.mxu0 0
        %5012 = vmatprep.subr.bf16.mxu0 0
        %5013 = vmatpush1.bf16.msra.mxu0 0
        %5014 = vmatprep.subr.bf16.mxu0 0
        %5015 = vmatpush1.bf16.msra.mxu0 0
        %5016 = vmatprep.mubr.bf16.mxu0 0
        %5017 = vmatmul.mubr.bf16.gmra.mrb[0].mxu0 %v4982
        %v5018 = vpop.f32.mrb[0].mxu0
        %v5019 = vadd.f32 0.0, %v5018
        %v5020 = vpop.f32.mrb[0].mxu0
        %v5021 = vpop.f32.mrb[0].mxu0
        %v5022 = vpop.f32.mrb[0].mxu0
        %5023 = vdwg.mxu0
        %v5028 = vunpack.c.l.b16 %v4917
        %v5029 = vunpack.c.l.b16 %v4918
        %v5030 = vunpack.c.l.b16 %v4919
        %v5031 = vunpack.c.l.b16 %v4920
        %v5032 = vpack.c.b16 %v5029, %v5028
        %v5033 = vpack.c.b16 %v5031, %v5030
        %5036 = vmatprep.subr.bf16.mxu0 0
        %5037 = vmatpush1.bf16.msra.mxu0 %v5032
        %5038 = vmatprep.subr.bf16.mxu0 0
        %5039 = vmatpush1.bf16.msra.mxu0 %v5033
        %5040 = vmatprep.subr.bf16.mxu0 0
        %5041 = vmatpush1.bf16.msra.mxu0 0
        %5042 = vmatprep.subr.bf16.mxu0 0
        %5043 = vmatpush1.bf16.msra.mxu0 0
        %5044 = vmatprep.subr.bf16.mxu0 0
        %5045 = vmatpush1.bf16.msra.mxu0 0
        %5046 = vmatprep.subr.bf16.mxu0 0
        %5047 = vmatpush1.bf16.msra.mxu0 0
        %5048 = vmatprep.subr.bf16.mxu0 0
        %5049 = vmatpush1.bf16.msra.mxu0 0
        %5050 = vmatprep.subr.bf16.mxu0 0
        %5051 = vmatpush1.bf16.msra.mxu0 0
        %5052 = vmatprep.subr.bf16.mxu0 0
        %5053 = vmatpush1.bf16.msra.mxu0 0
        %5054 = vmatprep.subr.bf16.mxu0 0
        %5055 = vmatpush1.bf16.msra.mxu0 0
        %5056 = vmatprep.subr.bf16.mxu0 0
        %5057 = vmatpush1.bf16.msra.mxu0 0
        %5058 = vmatprep.subr.bf16.mxu0 0
        %5059 = vmatpush1.bf16.msra.mxu0 0
        %5060 = vmatprep.subr.bf16.mxu0 0
        %5061 = vmatpush1.bf16.msra.mxu0 0
        %5062 = vmatprep.subr.bf16.mxu0 0
        %5063 = vmatpush1.bf16.msra.mxu0 0
        %5064 = vmatprep.subr.bf16.mxu0 0
        %5065 = vmatpush1.bf16.msra.mxu0 0
        %5066 = vmatprep.subr.bf16.mxu0 0
        %5067 = vmatpush1.bf16.msra.mxu0 0
        %5068 = vmatprep.mubr.bf16.mxu0 0
        %5069 = vmatmul.mubr.bf16.gmra.mrb[0].mxu0 %v4982
        %v5070 = vpop.f32.mrb[0].mxu0
        %v5071 = vadd.f32 0.0, %v5070
        %v5072 = vpop.f32.mrb[0].mxu0
        %v5073 = vpop.f32.mrb[0].mxu0
        %v5074 = vpop.f32.mrb[0].mxu0
        %5075 = vdwg.mxu0
        %v5080 = vunpack.c.l.b16 %v4921
        %v5081 = vunpack.c.l.b16 %v4922
        %v5082 = vunpack.c.l.b16 %v4923
        %v5083 = vunpack.c.l.b16 %v4924
        %v5084 = vpack.c.b16 %v5081, %v5080
        %v5085 = vpack.c.b16 %v5083, %v5082
        %5088 = vmatprep.subr.bf16.mxu0 0
        %5089 = vmatpush1.bf16.msra.mxu0 %v5084
        %5090 = vmatprep.subr.bf16.mxu0 0
        %5091 = vmatpush1.bf16.msra.mxu0 %v5085
        %5092 = vmatprep.subr.bf16.mxu0 0
        %5093 = vmatpush1.bf16.msra.mxu0 0
        %5094 = vmatprep.subr.bf16.mxu0 0
        %5095 = vmatpush1.bf16.msra.mxu0 0
        %5096 = vmatprep.subr.bf16.mxu0 0
        %5097 = vmatpush1.bf16.msra.mxu0 0
        %5098 = vmatprep.subr.bf16.mxu0 0
        %5099 = vmatpush1.bf16.msra.mxu0 0
        %5100 = vmatprep.subr.bf16.mxu0 0
        %5101 = vmatpush1.bf16.msra.mxu0 0
        %5102 = vmatprep.subr.bf16.mxu0 0
        %5103 = vmatpush1.bf16.msra.mxu0 0
        %5104 = vmatprep.subr.bf16.mxu0 0
        %5105 = vmatpush1.bf16.msra.mxu0 0
        %5106 = vmatprep.subr.bf16.mxu0 0
        %5107 = vmatpush1.bf16.msra.mxu0 0
        %5108 = vmatprep.subr.bf16.mxu0 0
        %5109 = vmatpush1.bf16.msra.mxu0 0
        %5110 = vmatprep.subr.bf16.mxu0 0
        %5111 = vmatpush1.bf16.msra.mxu0 0
        %5112 = vmatprep.subr.bf16.mxu0 0
        %5113 = vmatpush1.bf16.msra.mxu0 0
        %5114 = vmatprep.subr.bf16.mxu0 0
        %5115 = vmatpush1.bf16.msra.mxu0 0
        %5116 = vmatprep.subr.bf16.mxu0 0
        %5117 = vmatpush1.bf16.msra.mxu0 0
        %5118 = vmatprep.subr.bf16.mxu0 0
        %5119 = vmatpush1.bf16.msra.mxu0 0
        %5120 = vmatprep.mubr.bf16.mxu0 0
        %5121 = vmatmul.mubr.bf16.gmra.mrb[0].mxu0 %v4982
        %v5122 = vpop.f32.mrb[0].mxu0
        %v5123 = vadd.f32 0.0, %v5122
        %v5124 = vpop.f32.mrb[0].mxu0
        %v5125 = vpop.f32.mrb[0].mxu0
        %v5126 = vpop.f32.mrb[0].mxu0
        %5127 = vdwg.mxu0
        %v5132 = vunpack.c.l.b16 %v4925
        %v5133 = vunpack.c.l.b16 %v4926
        %v5134 = vunpack.c.l.b16 %v4927
        %v5135 = vunpack.c.l.b16 %v4928
        %v5136 = vpack.c.b16 %v5133, %v5132
        %v5137 = vpack.c.b16 %v5135, %v5134
        %5140 = vmatprep.subr.bf16.mxu0 0
        %5141 = vmatpush1.bf16.msra.mxu0 %v5136
        %5142 = vmatprep.subr.bf16.mxu0 0
        %5143 = vmatpush1.bf16.msra.mxu0 %v5137
        %5144 = vmatprep.subr.bf16.mxu0 0
        %5145 = vmatpush1.bf16.msra.mxu0 0
        %5146 = vmatprep.subr.bf16.mxu0 0
        %5147 = vmatpush1.bf16.msra.mxu0 0
        %5148 = vmatprep.subr.bf16.mxu0 0
        %5149 = vmatpush1.bf16.msra.mxu0 0
        %5150 = vmatprep.subr.bf16.mxu0 0
        %5151 = vmatpush1.bf16.msra.mxu0 0
        %5152 = vmatprep.subr.bf16.mxu0 0
        %5153 = vmatpush1.bf16.msra.mxu0 0
        %5154 = vmatprep.subr.bf16.mxu0 0
        %5155 = vmatpush1.bf16.msra.mxu0 0
        %5156 = vmatprep.subr.bf16.mxu0 0
        %5157 = vmatpush1.bf16.msra.mxu0 0
        %5158 = vmatprep.subr.bf16.mxu0 0
        %5159 = vmatpush1.bf16.msra.mxu0 0
        %5160 = vmatprep.subr.bf16.mxu0 0
        %5161 = vmatpush1.bf16.msra.mxu0 0
        %5162 = vmatprep.subr.bf16.mxu0 0
        %5163 = vmatpush1.bf16.msra.mxu0 0
        %5164 = vmatprep.subr.bf16.mxu0 0
        %5165 = vmatpush1.bf16.msra.mxu0 0
        %5166 = vmatprep.subr.bf16.mxu0 0
        %5167 = vmatpush1.bf16.msra.mxu0 0
        %5168 = vmatprep.subr.bf16.mxu0 0
        %5169 = vmatpush1.bf16.msra.mxu0 0
        %5170 = vmatprep.subr.bf16.mxu0 0
        %5171 = vmatpush1.bf16.msra.mxu0 0
        %5172 = vmatprep.mubr.bf16.mxu0 0
        %5173 = vmatmul.mubr.bf16.gmra.mrb[0].mxu0 %v4982
        %v5174 = vpop.f32.mrb[0].mxu0
        %v5175 = vadd.f32 0.0, %v5174
        %v5176 = vpop.f32.mrb[0].mxu0
        %v5177 = vpop.f32.mrb[0].mxu0
        %v5178 = vpop.f32.mrb[0].mxu0
        %5179 = vdwg.mxu0
        %v5184 = vunpack.c.l.b16 %v4930
        %v5185 = vunpack.c.l.b16 %v4931
        %v5186 = vunpack.c.l.b16 %v4932
        %v5187 = vunpack.c.l.b16 %v4933
        %v5188 = vpack.c.b16 %v5185, %v5184
        %v5189 = vpack.c.b16 %v5187, %v5186
        %5192 = vmatprep.subr.bf16.mxu0 0
        %5193 = vmatpush1.bf16.msra.mxu0 %v5188
        %5194 = vmatprep.subr.bf16.mxu0 0
        %5195 = vmatpush1.bf16.msra.mxu0 %v5189
        %5196 = vmatprep.subr.bf16.mxu0 0
        %5197 = vmatpush1.bf16.msra.mxu0 0
        %5198 = vmatprep.subr.bf16.mxu0 0
        %5199 = vmatpush1.bf16.msra.mxu0 0
        %5200 = vmatprep.subr.bf16.mxu0 0
        %5201 = vmatpush1.bf16.msra.mxu0 0
        %5202 = vmatprep.subr.bf16.mxu0 0
        %5203 = vmatpush1.bf16.msra.mxu0 0
        %5204 = vmatprep.subr.bf16.mxu0 0
        %5205 = vmatpush1.bf16.msra.mxu0 0
        %5206 = vmatprep.subr.bf16.mxu0 0
        %5207 = vmatpush1.bf16.msra.mxu0 0
        %5208 = vmatprep.subr.bf16.mxu0 0
        %5209 = vmatpush1.bf16.msra.mxu0 0
        %5210 = vmatprep.subr.bf16.mxu0 0
        %5211 = vmatpush1.bf16.msra.mxu0 0
        %5212 = vmatprep.subr.bf16.mxu0 0
        %5213 = vmatpush1.bf16.msra.mxu0 0
        %5214 = vmatprep.subr.bf16.mxu0 0
        %5215 = vmatpush1.bf16.msra.mxu0 0
        %5216 = vmatprep.subr.bf16.mxu0 0
        %5217 = vmatpush1.bf16.msra.mxu0 0
        %5218 = vmatprep.subr.bf16.mxu0 0
        %5219 = vmatpush1.bf16.msra.mxu0 0
        %5220 = vmatprep.subr.bf16.mxu0 0
        %5221 = vmatpush1.bf16.msra.mxu0 0
        %5222 = vmatprep.subr.bf16.mxu0 0
        %5223 = vmatpush1.bf16.msra.mxu0 0
        %5224 = vmatprep.mubr.bf16.mxu0 0
        %5225 = vmatmul.mubr.bf16.gmra.mrb[0].mxu0 %v4982
        %v5226 = vpop.f32.mrb[0].mxu0
        %v5227 = vadd.f32 0.0, %v5226
        %v5228 = vpop.f32.mrb[0].mxu0
        %v5229 = vpop.f32.mrb[0].mxu0
        %v5230 = vpop.f32.mrb[0].mxu0
        %5231 = vdwg.mxu0
        %v5236 = vunpack.c.l.b16 %v4934
        %v5237 = vunpack.c.l.b16 %v4935
        %v5238 = vunpack.c.l.b16 %v4936
        %v5239 = vunpack.c.l.b16 %v4937
        %v5240 = vpack.c.b16 %v5237, %v5236
        %v5241 = vpack.c.b16 %v5239, %v5238
        %5244 = vmatprep.subr.bf16.mxu0 0
        %5245 = vmatpush1.bf16.msra.mxu0 %v5240
        %5246 = vmatprep.subr.bf16.mxu0 0
        %5247 = vmatpush1.bf16.msra.mxu0 %v5241
        %5248 = vmatprep.subr.bf16.mxu0 0
        %5249 = vmatpush1.bf16.msra.mxu0 0
        %5250 = vmatprep.subr.bf16.mxu0 0
        %5251 = vmatpush1.bf16.msra.mxu0 0
        %5252 = vmatprep.subr.bf16.mxu0 0
        %5253 = vmatpush1.bf16.msra.mxu0 0
        %5254 = vmatprep.subr.bf16.mxu0 0
        %5255 = vmatpush1.bf16.msra.mxu0 0
        %5256 = vmatprep.subr.bf16.mxu0 0
        %5257 = vmatpush1.bf16.msra.mxu0 0
        %5258 = vmatprep.subr.bf16.mxu0 0
        %5259 = vmatpush1.bf16.msra.mxu0 0
        %5260 = vmatprep.subr.bf16.mxu0 0
        %5261 = vmatpush1.bf16.msra.mxu0 0
        %5262 = vmatprep.subr.bf16.mxu0 0
        %5263 = vmatpush1.bf16.msra.mxu0 0
        %5264 = vmatprep.subr.bf16.mxu0 0
        %5265 = vmatpush1.bf16.msra.mxu0 0
        %5266 = vmatprep.subr.bf16.mxu0 0
        %5267 = vmatpush1.bf16.msra.mxu0 0
        %5268 = vmatprep.subr.bf16.mxu0 0
        %5269 = vmatpush1.bf16.msra.mxu0 0
        %5270 = vmatprep.subr.bf16.mxu0 0
        %5271 = vmatpush1.bf16.msra.mxu0 0
        %5272 = vmatprep.subr.bf16.mxu0 0
        %5273 = vmatpush1.bf16.msra.mxu0 0
        %5274 = vmatprep.subr.bf16.mxu0 0
        %5275 = vmatpush1.bf16.msra.mxu0 0
        %5276 = vmatprep.mubr.bf16.mxu0 0
        %5277 = vmatmul.mubr.bf16.gmra.mrb[0].mxu0 %v4982
        %v5278 = vpop.f32.mrb[0].mxu0
        %v5279 = vadd.f32 0.0, %v5278
        %v5280 = vpop.f32.mrb[0].mxu0
        %v5281 = vpop.f32.mrb[0].mxu0
        %v5282 = vpop.f32.mrb[0].mxu0
        %5283 = vdwg.mxu0
        %v5288 = vunpack.c.l.b16 %v4938
        %v5289 = vunpack.c.l.b16 %v4939
        %v5290 = vunpack.c.l.b16 %v4940
        %v5291 = vunpack.c.l.b16 %v4941
        %v5292 = vpack.c.b16 %v5289, %v5288
        %v5293 = vpack.c.b16 %v5291, %v5290
        %5296 = vmatprep.subr.bf16.mxu0 0
        %5297 = vmatpush1.bf16.msra.mxu0 %v5292
        %5298 = vmatprep.subr.bf16.mxu0 0
        %5299 = vmatpush1.bf16.msra.mxu0 %v5293
        %5300 = vmatprep.subr.bf16.mxu0 0
        %5301 = vmatpush1.bf16.msra.mxu0 0
        %5302 = vmatprep.subr.bf16.mxu0 0
        %5303 = vmatpush1.bf16.msra.mxu0 0
        %5304 = vmatprep.subr.bf16.mxu0 0
        %5305 = vmatpush1.bf16.msra.mxu0 0
        %5306 = vmatprep.subr.bf16.mxu0 0
        %5307 = vmatpush1.bf16.msra.mxu0 0
        %5308 = vmatprep.subr.bf16.mxu0 0
        %5309 = vmatpush1.bf16.msra.mxu0 0
        %5310 = vmatprep.subr.bf16.mxu0 0
        %5311 = vmatpush1.bf16.msra.mxu0 0
        %5312 = vmatprep.subr.bf16.mxu0 0
        %5313 = vmatpush1.bf16.msra.mxu0 0
        %5314 = vmatprep.subr.bf16.mxu0 0
        %5315 = vmatpush1.bf16.msra.mxu0 0
        %5316 = vmatprep.subr.bf16.mxu0 0
        %5317 = vmatpush1.bf16.msra.mxu0 0
        %5318 = vmatprep.subr.bf16.mxu0 0
        %5319 = vmatpush1.bf16.msra.mxu0 0
        %5320 = vmatprep.subr.bf16.mxu0 0
        %5321 = vmatpush1.bf16.msra.mxu0 0
        %5322 = vmatprep.subr.bf16.mxu0 0
        %5323 = vmatpush1.bf16.msra.mxu0 0
        %5324 = vmatprep.subr.bf16.mxu0 0
        %5325 = vmatpush1.bf16.msra.mxu0 0
        %5326 = vmatprep.subr.bf16.mxu0 0
        %5327 = vmatpush1.bf16.msra.mxu0 0
        %5328 = vmatprep.mubr.bf16.mxu0 0
        %5329 = vmatmul.mubr.bf16.gmra.mrb[0].mxu0 %v4982
        %v5330 = vpop.f32.mrb[0].mxu0
        %v5331 = vadd.f32 0.0, %v5330
        %v5332 = vpop.f32.mrb[0].mxu0
        %v5333 = vpop.f32.mrb[0].mxu0
        %v5334 = vpop.f32.mrb[0].mxu0
        %5335 = vdwg.mxu0
        %v5340 = vunpack.c.l.b16 %v4942
        %v5341 = vunpack.c.l.b16 %v4943
        %v5342 = vunpack.c.l.b16 %v4944
        %v5343 = vunpack.c.l.b16 %v4945
        %v5344 = vpack.c.b16 %v5341, %v5340
        %v5345 = vpack.c.b16 %v5343, %v5342
        %5348 = vmatprep.subr.bf16.mxu0 0
        %5349 = vmatpush1.bf16.msra.mxu0 %v5344
        %5350 = vmatprep.subr.bf16.mxu0 0
        %5351 = vmatpush1.bf16.msra.mxu0 %v5345
        %5352 = vmatprep.subr.bf16.mxu0 0
        %5353 = vmatpush1.bf16.msra.mxu0 0
        %5354 = vmatprep.subr.bf16.mxu0 0
        %5355 = vmatpush1.bf16.msra.mxu0 0
        %5356 = vmatprep.subr.bf16.mxu0 0
        %5357 = vmatpush1.bf16.msra.mxu0 0
        %5358 = vmatprep.subr.bf16.mxu0 0
        %5359 = vmatpush1.bf16.msra.mxu0 0
        %5360 = vmatprep.subr.bf16.mxu0 0
        %5361 = vmatpush1.bf16.msra.mxu0 0
        %5362 = vmatprep.subr.bf16.mxu0 0
        %5363 = vmatpush1.bf16.msra.mxu0 0
        %5364 = vmatprep.subr.bf16.mxu0 0
        %5365 = vmatpush1.bf16.msra.mxu0 0
        %5366 = vmatprep.subr.bf16.mxu0 0
        %5367 = vmatpush1.bf16.msra.mxu0 0
        %5368 = vmatprep.subr.bf16.mxu0 0
        %5369 = vmatpush1.bf16.msra.mxu0 0
        %5370 = vmatprep.subr.bf16.mxu0 0
        %5371 = vmatpush1.bf16.msra.mxu0 0
        %5372 = vmatprep.subr.bf16.mxu0 0
        %5373 = vmatpush1.bf16.msra.mxu0 0
        %5374 = vmatprep.subr.bf16.mxu0 0
        %5375 = vmatpush1.bf16.msra.mxu0 0
        %5376 = vmatprep.subr.bf16.mxu0 0
        %5377 = vmatpush1.bf16.msra.mxu0 0
        %5378 = vmatprep.subr.bf16.mxu0 0
        %5379 = vmatpush1.bf16.msra.mxu0 0
        %5380 = vmatprep.mubr.bf16.mxu0 0
        %5381 = vmatmul.mubr.bf16.gmra.mrb[0].mxu0 %v4982
        %v5382 = vpop.f32.mrb[0].mxu0
        %v5383 = vadd.f32 0.0, %v5382
        %v5384 = vpop.f32.mrb[0].mxu0
        %v5385 = vpop.f32.mrb[0].mxu0
        %v5386 = vpop.f32.mrb[0].mxu0
        %5387 = vdwg.mxu0
        %v5392 = vunpack.c.l.b16 %v4947
        %v5393 = vunpack.c.l.b16 %v4948
        %v5394 = vunpack.c.l.b16 %v4949
        %v5395 = vunpack.c.l.b16 %v4950
        %v5396 = vpack.c.b16 %v5393, %v5392
        %v5397 = vpack.c.b16 %v5395, %v5394
        %5400 = vmatprep.subr.bf16.mxu0 0
        %5401 = vmatpush1.bf16.msra.mxu0 %v5396
        %5402 = vmatprep.subr.bf16.mxu0 0
        %5403 = vmatpush1.bf16.msra.mxu0 %v5397
        %5404 = vmatprep.subr.bf16.mxu0 0
        %5405 = vmatpush1.bf16.msra.mxu0 0
        %5406 = vmatprep.subr.bf16.mxu0 0
        %5407 = vmatpush1.bf16.msra.mxu0 0
        %5408 = vmatprep.subr.bf16.mxu0 0
        %5409 = vmatpush1.bf16.msra.mxu0 0
        %5410 = vmatprep.subr.bf16.mxu0 0
        %5411 = vmatpush1.bf16.msra.mxu0 0
        %5412 = vmatprep.subr.bf16.mxu0 0
        %5413 = vmatpush1.bf16.msra.mxu0 0
        %5414 = vmatprep.subr.bf16.mxu0 0
        %5415 = vmatpush1.bf16.msra.mxu0 0
        %5416 = vmatprep.subr.bf16.mxu0 0
        %5417 = vmatpush1.bf16.msra.mxu0 0
        %5418 = vmatprep.subr.bf16.mxu0 0
        %5419 = vmatpush1.bf16.msra.mxu0 0
        %5420 = vmatprep.subr.bf16.mxu0 0
        %5421 = vmatpush1.bf16.msra.mxu0 0
        %5422 = vmatprep.subr.bf16.mxu0 0
        %5423 = vmatpush1.bf16.msra.mxu0 0
        %5424 = vmatprep.subr.bf16.mxu0 0
        %5425 = vmatpush1.bf16.msra.mxu0 0
        %5426 = vmatprep.subr.bf16.mxu0 0
        %5427 = vmatpush1.bf16.msra.mxu0 0
        %5428 = vmatprep.subr.bf16.mxu0 0
        %5429 = vmatpush1.bf16.msra.mxu0 0
        %5430 = vmatprep.subr.bf16.mxu0 0
        %5431 = vmatpush1.bf16.msra.mxu0 0
        %5432 = vmatprep.mubr.bf16.mxu0 0
        %5433 = vmatmul.mubr.bf16.gmra.mrb[0].mxu0 %v4982
        %v5434 = vpop.f32.mrb[0].mxu0
        %v5435 = vadd.f32 0.0, %v5434
        %v5436 = vpop.f32.mrb[0].mxu0
        %v5437 = vpop.f32.mrb[0].mxu0
        %v5438 = vpop.f32.mrb[0].mxu0
        %5439 = vdwg.mxu0
        %v5444 = vunpack.c.l.b16 %v4951
        %v5445 = vunpack.c.l.b16 %v4952
        %v5446 = vunpack.c.l.b16 %v4953
        %v5447 = vunpack.c.l.b16 %v4954
        %v5448 = vpack.c.b16 %v5445, %v5444
        %v5449 = vpack.c.b16 %v5447, %v5446
        %5452 = vmatprep.subr.bf16.mxu0 0
        %5453 = vmatpush1.bf16.msra.mxu0 %v5448
        %5454 = vmatprep.subr.bf16.mxu0 0
        %5455 = vmatpush1.bf16.msra.mxu0 %v5449
        %5456 = vmatprep.subr.bf16.mxu0 0
        %5457 = vmatpush1.bf16.msra.mxu0 0
        %5458 = vmatprep.subr.bf16.mxu0 0
        %5459 = vmatpush1.bf16.msra.mxu0 0
        %5460 = vmatprep.subr.bf16.mxu0 0
        %5461 = vmatpush1.bf16.msra.mxu0 0
        %5462 = vmatprep.subr.bf16.mxu0 0
        %5463 = vmatpush1.bf16.msra.mxu0 0
        %5464 = vmatprep.subr.bf16.mxu0 0
        %5465 = vmatpush1.bf16.msra.mxu0 0
        %5466 = vmatprep.subr.bf16.mxu0 0
        %5467 = vmatpush1.bf16.msra.mxu0 0
        %5468 = vmatprep.subr.bf16.mxu0 0
        %5469 = vmatpush1.bf16.msra.mxu0 0
        %5470 = vmatprep.subr.bf16.mxu0 0
        %5471 = vmatpush1.bf16.msra.mxu0 0
        %5472 = vmatprep.subr.bf16.mxu0 0
        %5473 = vmatpush1.bf16.msra.mxu0 0
        %5474 = vmatprep.subr.bf16.mxu0 0
        %5475 = vmatpush1.bf16.msra.mxu0 0
        %5476 = vmatprep.subr.bf16.mxu0 0
        %5477 = vmatpush1.bf16.msra.mxu0 0
        %5478 = vmatprep.subr.bf16.mxu0 0
        %5479 = vmatpush1.bf16.msra.mxu0 0
        %5480 = vmatprep.subr.bf16.mxu0 0
        %5481 = vmatpush1.bf16.msra.mxu0 0
        %5482 = vmatprep.subr.bf16.mxu0 0
        %5483 = vmatpush1.bf16.msra.mxu0 0
        %5484 = vmatprep.mubr.bf16.mxu0 0
        %5485 = vmatmul.mubr.bf16.gmra.mrb[0].mxu0 %v4982
        %v5486 = vpop.f32.mrb[0].mxu0
        %v5487 = vadd.f32 0.0, %v5486
        %v5488 = vpop.f32.mrb[0].mxu0
        %v5489 = vpop.f32.mrb[0].mxu0
        %v5490 = vpop.f32.mrb[0].mxu0
        %5491 = vdwg.mxu0
        %v5496 = vunpack.c.l.b16 %v4955
        %v5497 = vunpack.c.l.b16 %v4956
        %v5498 = vunpack.c.l.b16 %v4957
        %v5499 = vunpack.c.l.b16 %v4958
        %v5500 = vpack.c.b16 %v5497, %v5496
        %v5501 = vpack.c.b16 %v5499, %v5498
        %5504 = vmatprep.subr.bf16.mxu0 0
        %5505 = vmatpush1.bf16.msra.mxu0 %v5500
        %5506 = vmatprep.subr.bf16.mxu0 0
        %5507 = vmatpush1.bf16.msra.mxu0 %v5501
        %5508 = vmatprep.subr.bf16.mxu0 0
        %5509 = vmatpush1.bf16.msra.mxu0 0
        %5510 = vmatprep.subr.bf16.mxu0 0
        %5511 = vmatpush1.bf16.msra.mxu0 0
        %5512 = vmatprep.subr.bf16.mxu0 0
        %5513 = vmatpush1.bf16.msra.mxu0 0
        %5514 = vmatprep.subr.bf16.mxu0 0
        %5515 = vmatpush1.bf16.msra.mxu0 0
        %5516 = vmatprep.subr.bf16.mxu0 0
        %5517 = vmatpush1.bf16.msra.mxu0 0
        %5518 = vmatprep.subr.bf16.mxu0 0
        %5519 = vmatpush1.bf16.msra.mxu0 0
        %5520 = vmatprep.subr.bf16.mxu0 0
        %5521 = vmatpush1.bf16.msra.mxu0 0
        %5522 = vmatprep.subr.bf16.mxu0 0
        %5523 = vmatpush1.bf16.msra.mxu0 0
        %5524 = vmatprep.subr.bf16.mxu0 0
        %5525 = vmatpush1.bf16.msra.mxu0 0
        %5526 = vmatprep.subr.bf16.mxu0 0
        %5527 = vmatpush1.bf16.msra.mxu0 0
        %5528 = vmatprep.subr.bf16.mxu0 0
        %5529 = vmatpush1.bf16.msra.mxu0 0
        %5530 = vmatprep.subr.bf16.mxu0 0
        %5531 = vmatpush1.bf16.msra.mxu0 0
        %5532 = vmatprep.subr.bf16.mxu0 0
        %5533 = vmatpush1.bf16.msra.mxu0 0
        %5534 = vmatprep.subr.bf16.mxu0 0
        %5535 = vmatpush1.bf16.msra.mxu0 0
        %5536 = vmatprep.mubr.bf16.mxu0 0
        %5537 = vmatmul.mubr.bf16.gmra.mrb[0].mxu0 %v4982
        %v5538 = vpop.f32.mrb[0].mxu0
        %v5539 = vadd.f32 0.0, %v5538
        %v5540 = vpop.f32.mrb[0].mxu0
        %v5541 = vpop.f32.mrb[0].mxu0
        %v5542 = vpop.f32.mrb[0].mxu0
        %5543 = vdwg.mxu0
        %v5548 = vunpack.c.l.b16 %v4959
        %v5549 = vunpack.c.l.b16 %v4960
        %v5550 = vunpack.c.l.b16 %v4961
        %v5551 = vunpack.c.l.b16 %v4962
        %v5552 = vpack.c.b16 %v5549, %v5548
        %v5553 = vpack.c.b16 %v5551, %v5550
        %5556 = vmatprep.subr.bf16.mxu0 0
        %5557 = vmatpush1.bf16.msra.mxu0 %v5552
        %5558 = vmatprep.subr.bf16.mxu0 0
        %5559 = vmatpush1.bf16.msra.mxu0 %v5553
        %5560 = vmatprep.subr.bf16.mxu0 0
        %5561 = vmatpush1.bf16.msra.mxu0 0
        %5562 = vmatprep.subr.bf16.mxu0 0
        %5563 = vmatpush1.bf16.msra.mxu0 0
        %5564 = vmatprep.subr.bf16.mxu0 0
        %5565 = vmatpush1.bf16.msra.mxu0 0
        %5566 = vmatprep.subr.bf16.mxu0 0
        %5567 = vmatpush1.bf16.msra.mxu0 0
        %5568 = vmatprep.subr.bf16.mxu0 0
        %5569 = vmatpush1.bf16.msra.mxu0 0
        %5570 = vmatprep.subr.bf16.mxu0 0
        %5571 = vmatpush1.bf16.msra.mxu0 0
        %5572 = vmatprep.subr.bf16.mxu0 0
        %5573 = vmatpush1.bf16.msra.mxu0 0
        %5574 = vmatprep.subr.bf16.mxu0 0
        %5575 = vmatpush1.bf16.msra.mxu0 0
        %5576 = vmatprep.subr.bf16.mxu0 0
        %5577 = vmatpush1.bf16.msra.mxu0 0
        %5578 = vmatprep.subr.bf16.mxu0 0
        %5579 = vmatpush1.bf16.msra.mxu0 0
        %5580 = vmatprep.subr.bf16.mxu0 0
        %5581 = vmatpush1.bf16.msra.mxu0 0
        %5582 = vmatprep.subr.bf16.mxu0 0
        %5583 = vmatpush1.bf16.msra.mxu0 0
        %5584 = vmatprep.subr.bf16.mxu0 0
        %5585 = vmatpush1.bf16.msra.mxu0 0
        %5586 = vmatprep.subr.bf16.mxu0 0
        %5587 = vmatpush1.bf16.msra.mxu0 0
        %5588 = vmatprep.mubr.bf16.mxu0 0
        %5589 = vmatmul.mubr.bf16.gmra.mrb[0].mxu0 %v4982
        %v5590 = vpop.f32.mrb[0].mxu0
        %v5591 = vadd.f32 0.0, %v5590
        %v5592 = vpop.f32.mrb[0].mxu0
        %v5593 = vpop.f32.mrb[0].mxu0
        %v5594 = vpop.f32.mrb[0].mxu0
        %5595 = vdwg.mxu0
        %v5596 = vpack.c.bf16 %v5019, %v5019
        %v5597 = vpack.c.bf16 %v5071, %v5071
        %v5598 = vpack.c.bf16 %v5123, %v5123
        %v5599 = vpack.c.bf16 %v5175, %v5175
        %v5600 = vpack.c.bf16 %v5227, %v5227
        %v5601 = vpack.c.bf16 %v5279, %v5279
        %v5602 = vpack.c.bf16 %v5331, %v5331
        %v5603 = vpack.c.bf16 %v5383, %v5383
        %v5605 = vsel %vm1358, %v5596, 0
        %v5608 = vsel %vm1358, %v5600, 0
        %5610 = vmatprep.subr.bf16.mxu0 0
        %5611 = vmatpush1.bf16.xpose.msra.mxu0 %v5608
        %5612 = vmatprep.subr.bf16.mxu0 0
        %5613 = vmatpush1.bf16.xpose.msra.mxu0 0
        %5614 = vmatprep.subr.bf16.mxu0 0
        %5615 = vmatpush1.bf16.xpose.msra.mxu0 0
        %5616 = vmatprep.subr.bf16.mxu0 0
        %5617 = vmatpush1.bf16.xpose.msra.mxu0 0
        %5618 = vmatprep.subr.bf16.mxu0 0
        %5619 = vmatpush1.bf16.xpose.msra.mxu0 0
        %5620 = vmatprep.subr.bf16.mxu0 0
        %5621 = vmatpush1.bf16.xpose.msra.mxu0 0
        %5622 = vmatprep.subr.bf16.mxu0 0
        %5623 = vmatpush1.bf16.xpose.msra.mxu0 0
        %5624 = vmatprep.subr.bf16.mxu0 0
        %5625 = vmatpush1.bf16.xpose.msra.mxu0 0
        %5626 = vmatprep.subr.bf16.mxu0 0
        %5627 = vmatpush1.bf16.xpose.msra.mxu0 0
        %5628 = vmatprep.subr.bf16.mxu0 0
        %5629 = vmatpush1.bf16.xpose.msra.mxu0 0
        %5630 = vmatprep.subr.bf16.mxu0 0
        %5631 = vmatpush1.bf16.xpose.msra.mxu0 0
        %5632 = vmatprep.subr.bf16.mxu0 0
        %5633 = vmatpush1.bf16.xpose.msra.mxu0 0
        %5634 = vmatprep.subr.bf16.mxu0 0
        %5635 = vmatpush1.bf16.xpose.msra.mxu0 0
        %5636 = vmatprep.subr.bf16.mxu0 0
        %5637 = vmatpush1.bf16.xpose.msra.mxu0 0
        %5638 = vmatprep.subr.bf16.mxu0 0
        %5639 = vmatpush1.bf16.xpose.msra.mxu0 0
        %5640 = vmatprep.subr.bf16.mxu0 0
        %5641 = vmatpush1.bf16.xpose.msra.mxu0 0
        %5642 = vmatprep.mubr.bf16.mxu0 0
        %5643 = vmatmul.mubr.bf16.gmra.mrb[0].mxu0 %v5605
        %v5644 = vpop.f32.mrb[0].mxu0
        %v5645 = vadd.f32 %v2004, %v5644
        %v5646 = vpop.f32.mrb[0].mxu0
        %v5647 = vpop.f32.mrb[0].mxu0
        %v5648 = vpop.f32.mrb[0].mxu0
        %5649 = vdwg.mxu0
        %v5651 = vsel %vm1358, %v5597, 0
        %v5654 = vsel %vm1358, %v5601, 0
        %5656 = vmatprep.subr.bf16.mxu0 0
        %5657 = vmatpush1.bf16.xpose.msra.mxu0 %v5654
        %5658 = vmatprep.subr.bf16.mxu0 0
        %5659 = vmatpush1.bf16.xpose.msra.mxu0 0
        %5660 = vmatprep.subr.bf16.mxu0 0
        %5661 = vmatpush1.bf16.xpose.msra.mxu0 0
        %5662 = vmatprep.subr.bf16.mxu0 0
        %5663 = vmatpush1.bf16.xpose.msra.mxu0 0
        %5664 = vmatprep.subr.bf16.mxu0 0
        %5665 = vmatpush1.bf16.xpose.msra.mxu0 0
        %5666 = vmatprep.subr.bf16.mxu0 0
        %5667 = vmatpush1.bf16.xpose.msra.mxu0 0
        %5668 = vmatprep.subr.bf16.mxu0 0
        %5669 = vmatpush1.bf16.xpose.msra.mxu0 0
        %5670 = vmatprep.subr.bf16.mxu0 0
        %5671 = vmatpush1.bf16.xpose.msra.mxu0 0
        %5672 = vmatprep.subr.bf16.mxu0 0
        %5673 = vmatpush1.bf16.xpose.msra.mxu0 0
        %5674 = vmatprep.subr.bf16.mxu0 0
        %5675 = vmatpush1.bf16.xpose.msra.mxu0 0
        %5676 = vmatprep.subr.bf16.mxu0 0
        %5677 = vmatpush1.bf16.xpose.msra.mxu0 0
        %5678 = vmatprep.subr.bf16.mxu0 0
        %5679 = vmatpush1.bf16.xpose.msra.mxu0 0
        %5680 = vmatprep.subr.bf16.mxu0 0
        %5681 = vmatpush1.bf16.xpose.msra.mxu0 0
        %5682 = vmatprep.subr.bf16.mxu0 0
        %5683 = vmatpush1.bf16.xpose.msra.mxu0 0
        %5684 = vmatprep.subr.bf16.mxu0 0
        %5685 = vmatpush1.bf16.xpose.msra.mxu0 0
        %5686 = vmatprep.subr.bf16.mxu0 0
        %5687 = vmatpush1.bf16.xpose.msra.mxu0 0
        %5688 = vmatprep.mubr.bf16.mxu0 0
        %5689 = vmatmul.mubr.bf16.gmra.mrb[0].mxu0 %v5651
        %v5690 = vpop.f32.mrb[0].mxu0
        %v5691 = vadd.f32 %v2004, %v5690
        %v5692 = vpop.f32.mrb[0].mxu0
        %v5693 = vpop.f32.mrb[0].mxu0
        %v5694 = vpop.f32.mrb[0].mxu0
        %5695 = vdwg.mxu0
        %v5697 = vsel %vm1358, %v5598, 0
        %v5700 = vsel %vm1358, %v5602, 0
        %5702 = vmatprep.subr.bf16.mxu0 0
        %5703 = vmatpush1.bf16.xpose.msra.mxu0 %v5700
        %5704 = vmatprep.subr.bf16.mxu0 0
        %5705 = vmatpush1.bf16.xpose.msra.mxu0 0
        %5706 = vmatprep.subr.bf16.mxu0 0
        %5707 = vmatpush1.bf16.xpose.msra.mxu0 0
        %5708 = vmatprep.subr.bf16.mxu0 0
        %5709 = vmatpush1.bf16.xpose.msra.mxu0 0
        %5710 = vmatprep.subr.bf16.mxu0 0
        %5711 = vmatpush1.bf16.xpose.msra.mxu0 0
        %5712 = vmatprep.subr.bf16.mxu0 0
        %5713 = vmatpush1.bf16.xpose.msra.mxu0 0
        %5714 = vmatprep.subr.bf16.mxu0 0
        %5715 = vmatpush1.bf16.xpose.msra.mxu0 0
        %5716 = vmatprep.subr.bf16.mxu0 0
        %5717 = vmatpush1.bf16.xpose.msra.mxu0 0
        %5718 = vmatprep.subr.bf16.mxu0 0
        %5719 = vmatpush1.bf16.xpose.msra.mxu0 0
        %5720 = vmatprep.subr.bf16.mxu0 0
        %5721 = vmatpush1.bf16.xpose.msra.mxu0 0
        %5722 = vmatprep.subr.bf16.mxu0 0
        %5723 = vmatpush1.bf16.xpose.msra.mxu0 0
        %5724 = vmatprep.subr.bf16.mxu0 0
        %5725 = vmatpush1.bf16.xpose.msra.mxu0 0
        %5726 = vmatprep.subr.bf16.mxu0 0
        %5727 = vmatpush1.bf16.xpose.msra.mxu0 0
        %5728 = vmatprep.subr.bf16.mxu0 0
        %5729 = vmatpush1.bf16.xpose.msra.mxu0 0
        %5730 = vmatprep.subr.bf16.mxu0 0
        %5731 = vmatpush1.bf16.xpose.msra.mxu0 0
        %5732 = vmatprep.subr.bf16.mxu0 0
        %5733 = vmatpush1.bf16.xpose.msra.mxu0 0
        %5734 = vmatprep.mubr.bf16.mxu0 0
        %5735 = vmatmul.mubr.bf16.gmra.mrb[0].mxu0 %v5697
        %v5736 = vpop.f32.mrb[0].mxu0
        %v5737 = vadd.f32 %v2004, %v5736
        %v5738 = vpop.f32.mrb[0].mxu0
        %v5739 = vpop.f32.mrb[0].mxu0
        %v5740 = vpop.f32.mrb[0].mxu0
        %5741 = vdwg.mxu0
        %v5743 = vsel %vm1358, %v5599, 0
        %v5746 = vsel %vm1358, %v5603, 0
        %5748 = vmatprep.subr.bf16.mxu0 0
        %5749 = vmatpush1.bf16.xpose.msra.mxu0 %v5746
        %5750 = vmatprep.subr.bf16.mxu0 0
        %5751 = vmatpush1.bf16.xpose.msra.mxu0 0
        %5752 = vmatprep.subr.bf16.mxu0 0
        %5753 = vmatpush1.bf16.xpose.msra.mxu0 0
        %5754 = vmatprep.subr.bf16.mxu0 0
        %5755 = vmatpush1.bf16.xpose.msra.mxu0 0
        %5756 = vmatprep.subr.bf16.mxu0 0
        %5757 = vmatpush1.bf16.xpose.msra.mxu0 0
        %5758 = vmatprep.subr.bf16.mxu0 0
        %5759 = vmatpush1.bf16.xpose.msra.mxu0 0
        %5760 = vmatprep.subr.bf16.mxu0 0
        %5761 = vmatpush1.bf16.xpose.msra.mxu0 0
        %5762 = vmatprep.subr.bf16.mxu0 0
        %5763 = vmatpush1.bf16.xpose.msra.mxu0 0
        %5764 = vmatprep.subr.bf16.mxu0 0
        %5765 = vmatpush1.bf16.xpose.msra.mxu0 0
        %5766 = vmatprep.subr.bf16.mxu0 0
        %5767 = vmatpush1.bf16.xpose.msra.mxu0 0
        %5768 = vmatprep.subr.bf16.mxu0 0
        %5769 = vmatpush1.bf16.xpose.msra.mxu0 0
        %5770 = vmatprep.subr.bf16.mxu0 0
        %5771 = vmatpush1.bf16.xpose.msra.mxu0 0
        %5772 = vmatprep.subr.bf16.mxu0 0
        %5773 = vmatpush1.bf16.xpose.msra.mxu0 0
        %5774 = vmatprep.subr.bf16.mxu0 0
        %5775 = vmatpush1.bf16.xpose.msra.mxu0 0
        %5776 = vmatprep.subr.bf16.mxu0 0
        %5777 = vmatpush1.bf16.xpose.msra.mxu0 0
        %5778 = vmatprep.subr.bf16.mxu0 0
        %5779 = vmatpush1.bf16.xpose.msra.mxu0 0
        %5780 = vmatprep.mubr.bf16.mxu0 0
        %5781 = vmatmul.mubr.bf16.gmra.mrb[0].mxu0 %v5743
        %v5782 = vpop.f32.mrb[0].mxu0
        %v5783 = vadd.f32 %v2004, %v5782
        %v5784 = vpop.f32.mrb[0].mxu0
        %v5785 = vpop.f32.mrb[0].mxu0
        %v5786 = vpop.f32.mrb[0].mxu0
        %5787 = vdwg.mxu0
        %v5788 = vsel %vm1358, %v5645, -inf
        %5789 = vmax.xlane.f32.xlu0 %v5788
        %v5790 = vpop.xlane.xlu0 %5789
        %v5791 = vsel %vm1358, %v5691, -inf
        %5792 = vmax.xlane.f32.xlu0 %v5791
        %v5793 = vpop.xlane.xlu0 %5792
        %v5794 = vsel %vm1358, %v5737, -inf
        %5795 = vmax.xlane.f32.xlu0 %v5794
        %v5796 = vpop.xlane.xlu0 %5795
        %v5797 = vsel %vm1358, %v5783, -inf
        %5798 = vmax.xlane.f32.xlu0 %v5797
        %v5799 = vpop.xlane.xlu0 %5798
        %v5800 = vsub.f32 %v5645, %v5790
        %v5801 = vsub.f32 %v5691, %v5793
        %v5802 = vsub.f32 %v5737, %v5796
        %v5803 = vsub.f32 %v5783, %v5799
        %v5804 = vmul.f32 %v5800, 1.442695
        %v5805 = vpow.pop %v5804
        %v5806 = vmul.f32 %v5801, 1.442695
        %v5807 = vpow.pop %v5806
        %v5808 = vmul.f32 %v5802, 1.442695
        %v5809 = vpow.pop %v5808
        %v5810 = vmul.f32 %v5803, 1.442695
        %v5811 = vpow.pop %v5810
        %v5812 = vsel %vm1358, %v5805, 0.0
        %5813 = vadd.xlane.f32.xlu0 %v5812
        %v5814 = vpop.xlane.xlu0 %5813
        %v5815 = vsel %vm1358, %v5807, 0.0
        %5816 = vadd.xlane.f32.xlu0 %v5815
        %v5817 = vpop.xlane.xlu0 %5816
        %v5818 = vsel %vm1358, %v5809, 0.0
        %5819 = vadd.xlane.f32.xlu0 %v5818
        %v5820 = vpop.xlane.xlu0 %5819
        %v5821 = vsel %vm1358, %v5811, 0.0
        %5822 = vadd.xlane.f32.xlu0 %v5821
        %v5823 = vpop.xlane.xlu0 %5822
        %v5824 = vrcp.pop %v5814
        %v5825 = vrcp.pop %v5817
        %v5826 = vrcp.pop %v5820
        %v5827 = vrcp.pop %v5823
        %v5828 = vmul.f32 %v5805, %v5824
        %v5829 = vmul.f32 %v5807, %v5825
        %v5830 = vmul.f32 %v5809, %v5826
        %v5831 = vmul.f32 %v5811, %v5827
        %v5832 = vpack.c.bf16 %v5828, %v5828
        %v5833 = vpack.c.bf16 %v5829, %v5829
        %v5834 = vpack.c.bf16 %v5830, %v5830
        %v5835 = vpack.c.bf16 %v5831, %v5831
        %v5836 = vpack.c.bf16 %v5435, %v5435
        %v5837 = vpack.c.bf16 %v5487, %v5487
        %v5838 = vpack.c.bf16 %v5539, %v5539
        %v5839 = vpack.c.bf16 %v5591, %v5591
        %v5841 = vsel %vm1358, %v5832, 0
        %v5844 = vsel %vm1788, %v5836, 0
        %5846 = vmatprep.subr.bf16.mxu0 0
        %5847 = vmatpush1.bf16.msra.mxu0 %v5844
        %5848 = vmatprep.subr.bf16.mxu0 0
        %5849 = vmatpush1.bf16.msra.mxu0 0
        %5850 = vmatprep.subr.bf16.mxu0 0
        %5851 = vmatpush1.bf16.msra.mxu0 0
        %5852 = vmatprep.subr.bf16.mxu0 0
        %5853 = vmatpush1.bf16.msra.mxu0 0
        %5854 = vmatprep.subr.bf16.mxu0 0
        %5855 = vmatpush1.bf16.msra.mxu0 0
        %5856 = vmatprep.subr.bf16.mxu0 0
        %5857 = vmatpush1.bf16.msra.mxu0 0
        %5858 = vmatprep.subr.bf16.mxu0 0
        %5859 = vmatpush1.bf16.msra.mxu0 0
        %5860 = vmatprep.subr.bf16.mxu0 0
        %5861 = vmatpush1.bf16.msra.mxu0 0
        %5862 = vmatprep.subr.bf16.mxu0 0
        %5863 = vmatpush1.bf16.msra.mxu0 0
        %5864 = vmatprep.subr.bf16.mxu0 0
        %5865 = vmatpush1.bf16.msra.mxu0 0
        %5866 = vmatprep.subr.bf16.mxu0 0
        %5867 = vmatpush1.bf16.msra.mxu0 0
        %5868 = vmatprep.subr.bf16.mxu0 0
        %5869 = vmatpush1.bf16.msra.mxu0 0
        %5870 = vmatprep.subr.bf16.mxu0 0
        %5871 = vmatpush1.bf16.msra.mxu0 0
        %5872 = vmatprep.subr.bf16.mxu0 0
        %5873 = vmatpush1.bf16.msra.mxu0 0
        %5874 = vmatprep.subr.bf16.mxu0 0
        %5875 = vmatpush1.bf16.msra.mxu0 0
        %5876 = vmatprep.subr.bf16.mxu0 0
        %5877 = vmatpush1.bf16.msra.mxu0 0
        %5878 = vmatprep.mubr.bf16.mxu0 0
        %5879 = vmatmul.mubr.bf16.gmra.mrb[0].mxu0 %v5841
        %v5880 = vpop.f32.mrb[0].mxu0
        %v5881 = vadd.f32 0.0, %v5880
        %v5882 = vpop.f32.mrb[0].mxu0
        %v5883 = vpop.f32.mrb[0].mxu0
        %v5884 = vpop.f32.mrb[0].mxu0
        %5885 = vdwg.mxu0
        %v5887 = vsel %vm1358, %v5833, 0
        %v5890 = vsel %vm1788, %v5837, 0
        %5892 = vmatprep.subr.bf16.mxu0 0
        %5893 = vmatpush1.bf16.msra.mxu0 %v5890
        %5894 = vmatprep.subr.bf16.mxu0 0
        %5895 = vmatpush1.bf16.msra.mxu0 0
        %5896 = vmatprep.subr.bf16.mxu0 0
        %5897 = vmatpush1.bf16.msra.mxu0 0
        %5898 = vmatprep.subr.bf16.mxu0 0
        %5899 = vmatpush1.bf16.msra.mxu0 0
        %5900 = vmatprep.subr.bf16.mxu0 0
        %5901 = vmatpush1.bf16.msra.mxu0 0
        %5902 = vmatprep.subr.bf16.mxu0 0
        %5903 = vmatpush1.bf16.msra.mxu0 0
        %5904 = vmatprep.subr.bf16.mxu0 0
        %5905 = vmatpush1.bf16.msra.mxu0 0
        %5906 = vmatprep.subr.bf16.mxu0 0
        %5907 = vmatpush1.bf16.msra.mxu0 0
        %5908 = vmatprep.subr.bf16.mxu0 0
        %5909 = vmatpush1.bf16.msra.mxu0 0
        %5910 = vmatprep.subr.bf16.mxu0 0
        %5911 = vmatpush1.bf16.msra.mxu0 0
        %5912 = vmatprep.subr.bf16.mxu0 0
        %5913 = vmatpush1.bf16.msra.mxu0 0
        %5914 = vmatprep.subr.bf16.mxu0 0
        %5915 = vmatpush1.bf16.msra.mxu0 0
        %5916 = vmatprep.subr.bf16.mxu0 0
        %5917 = vmatpush1.bf16.msra.mxu0 0
        %5918 = vmatprep.subr.bf16.mxu0 0
        %5919 = vmatpush1.bf16.msra.mxu0 0
        %5920 = vmatprep.subr.bf16.mxu0 0
        %5921 = vmatpush1.bf16.msra.mxu0 0
        %5922 = vmatprep.subr.bf16.mxu0 0
        %5923 = vmatpush1.bf16.msra.mxu0 0
        %5924 = vmatprep.mubr.bf16.mxu0 0
        %5925 = vmatmul.mubr.bf16.gmra.mrb[0].mxu0 %v5887
        %v5926 = vpop.f32.mrb[0].mxu0
        %v5927 = vadd.f32 0.0, %v5926
        %v5928 = vpop.f32.mrb[0].mxu0
        %v5929 = vpop.f32.mrb[0].mxu0
        %v5930 = vpop.f32.mrb[0].mxu0
        %5931 = vdwg.mxu0
        %v5933 = vsel %vm1358, %v5834, 0
        %v5936 = vsel %vm1788, %v5838, 0
        %5938 = vmatprep.subr.bf16.mxu0 0
        %5939 = vmatpush1.bf16.msra.mxu0 %v5936
        %5940 = vmatprep.subr.bf16.mxu0 0
        %5941 = vmatpush1.bf16.msra.mxu0 0
        %5942 = vmatprep.subr.bf16.mxu0 0
        %5943 = vmatpush1.bf16.msra.mxu0 0
        %5944 = vmatprep.subr.bf16.mxu0 0
        %5945 = vmatpush1.bf16.msra.mxu0 0
        %5946 = vmatprep.subr.bf16.mxu0 0
        %5947 = vmatpush1.bf16.msra.mxu0 0
        %5948 = vmatprep.subr.bf16.mxu0 0
        %5949 = vmatpush1.bf16.msra.mxu0 0
        %5950 = vmatprep.subr.bf16.mxu0 0
        %5951 = vmatpush1.bf16.msra.mxu0 0
        %5952 = vmatprep.subr.bf16.mxu0 0
        %5953 = vmatpush1.bf16.msra.mxu0 0
        %5954 = vmatprep.subr.bf16.mxu0 0
        %5955 = vmatpush1.bf16.msra.mxu0 0
        %5956 = vmatprep.subr.bf16.mxu0 0
        %5957 = vmatpush1.bf16.msra.mxu0 0
        %5958 = vmatprep.subr.bf16.mxu0 0
        %5959 = vmatpush1.bf16.msra.mxu0 0
        %5960 = vmatprep.subr.bf16.mxu0 0
        %5961 = vmatpush1.bf16.msra.mxu0 0
        %5962 = vmatprep.subr.bf16.mxu0 0
        %5963 = vmatpush1.bf16.msra.mxu0 0
        %5964 = vmatprep.subr.bf16.mxu0 0
        %5965 = vmatpush1.bf16.msra.mxu0 0
        %5966 = vmatprep.subr.bf16.mxu0 0
        %5967 = vmatpush1.bf16.msra.mxu0 0
        %5968 = vmatprep.subr.bf16.mxu0 0
        %5969 = vmatpush1.bf16.msra.mxu0 0
        %5970 = vmatprep.mubr.bf16.mxu0 0
        %5971 = vmatmul.mubr.bf16.gmra.mrb[0].mxu0 %v5933
        %v5972 = vpop.f32.mrb[0].mxu0
        %v5973 = vadd.f32 0.0, %v5972
        %v5974 = vpop.f32.mrb[0].mxu0
        %v5975 = vpop.f32.mrb[0].mxu0
        %v5976 = vpop.f32.mrb[0].mxu0
        %5977 = vdwg.mxu0
        %v5979 = vsel %vm1358, %v5835, 0
        %v5982 = vsel %vm1788, %v5839, 0
        %5984 = vmatprep.subr.bf16.mxu0 0
        %5985 = vmatpush1.bf16.msra.mxu0 %v5982
        %5986 = vmatprep.subr.bf16.mxu0 0
        %5987 = vmatpush1.bf16.msra.mxu0 0
        %5988 = vmatprep.subr.bf16.mxu0 0
        %5989 = vmatpush1.bf16.msra.mxu0 0
        %5990 = vmatprep.subr.bf16.mxu0 0
        %5991 = vmatpush1.bf16.msra.mxu0 0
        %5992 = vmatprep.subr.bf16.mxu0 0
        %5993 = vmatpush1.bf16.msra.mxu0 0
        %5994 = vmatprep.subr.bf16.mxu0 0
        %5995 = vmatpush1.bf16.msra.mxu0 0
        %5996 = vmatprep.subr.bf16.mxu0 0
        %5997 = vmatpush1.bf16.msra.mxu0 0
        %5998 = vmatprep.subr.bf16.mxu0 0
        %5999 = vmatpush1.bf16.msra.mxu0 0
        %6000 = vmatprep.subr.bf16.mxu0 0
        %6001 = vmatpush1.bf16.msra.mxu0 0
        %6002 = vmatprep.subr.bf16.mxu0 0
        %6003 = vmatpush1.bf16.msra.mxu0 0
        %6004 = vmatprep.subr.bf16.mxu0 0
        %6005 = vmatpush1.bf16.msra.mxu0 0
        %6006 = vmatprep.subr.bf16.mxu0 0
        %6007 = vmatpush1.bf16.msra.mxu0 0
        %6008 = vmatprep.subr.bf16.mxu0 0
        %6009 = vmatpush1.bf16.msra.mxu0 0
        %6010 = vmatprep.subr.bf16.mxu0 0
        %6011 = vmatpush1.bf16.msra.mxu0 0
        %6012 = vmatprep.subr.bf16.mxu0 0
        %6013 = vmatpush1.bf16.msra.mxu0 0
        %6014 = vmatprep.subr.bf16.mxu0 0
        %6015 = vmatpush1.bf16.msra.mxu0 0
        %6016 = vmatprep.mubr.bf16.mxu0 0
        %6017 = vmatmul.mubr.bf16.gmra.mrb[0].mxu0 %v5979
        %v6018 = vpop.f32.mrb[0].mxu0
        %v6019 = vadd.f32 0.0, %v6018
        %v6020 = vpop.f32.mrb[0].mxu0
        %v6021 = vpop.f32.mrb[0].mxu0
        %v6022 = vpop.f32.mrb[0].mxu0
        %6023 = vdwg.mxu0
        %v6024 = vpack.c.bf16 %v5881, %v5881
        %v6025 = vpack.c.bf16 %v5927, %v5927
        %v6026 = vpack.c.bf16 %v5973, %v5973
        %v6027 = vpack.c.bf16 %v6019, %v6019
        %v6029 = vsel %vm1358, %v6024, 0
        %v6032 = vsel %vm1788, %v4964, 0
        %6034 = vmatprep.subr.bf16.mxu0 0
        %6035 = vmatpush1.bf16.msra.mxu0 %v6032
        %6036 = vmatprep.subr.bf16.mxu0 0
        %6037 = vmatpush1.bf16.msra.mxu0 0
        %6038 = vmatprep.subr.bf16.mxu0 0
        %6039 = vmatpush1.bf16.msra.mxu0 0
        %6040 = vmatprep.subr.bf16.mxu0 0
        %6041 = vmatpush1.bf16.msra.mxu0 0
        %6042 = vmatprep.subr.bf16.mxu0 0
        %6043 = vmatpush1.bf16.msra.mxu0 0
        %6044 = vmatprep.subr.bf16.mxu0 0
        %6045 = vmatpush1.bf16.msra.mxu0 0
        %6046 = vmatprep.subr.bf16.mxu0 0
        %6047 = vmatpush1.bf16.msra.mxu0 0
        %6048 = vmatprep.subr.bf16.mxu0 0
        %6049 = vmatpush1.bf16.msra.mxu0 0
        %6050 = vmatprep.subr.bf16.mxu0 0
        %6051 = vmatpush1.bf16.msra.mxu0 0
        %6052 = vmatprep.subr.bf16.mxu0 0
        %6053 = vmatpush1.bf16.msra.mxu0 0
        %6054 = vmatprep.subr.bf16.mxu0 0
        %6055 = vmatpush1.bf16.msra.mxu0 0
        %6056 = vmatprep.subr.bf16.mxu0 0
        %6057 = vmatpush1.bf16.msra.mxu0 0
        %6058 = vmatprep.subr.bf16.mxu0 0
        %6059 = vmatpush1.bf16.msra.mxu0 0
        %6060 = vmatprep.subr.bf16.mxu0 0
        %6061 = vmatpush1.bf16.msra.mxu0 0
        %6062 = vmatprep.subr.bf16.mxu0 0
        %6063 = vmatpush1.bf16.msra.mxu0 0
        %6064 = vmatprep.subr.bf16.mxu0 0
        %6065 = vmatpush1.bf16.msra.mxu0 0
        %6066 = vmatprep.mubr.bf16.mxu0 0
        %6067 = vmatmul.mubr.bf16.gmra.mrb[0].mxu0 %v6029
        %v6068 = vpop.f32.mrb[0].mxu0
        %v6069 = vadd.f32 0.0, %v6068
        %v6070 = vpop.f32.mrb[0].mxu0
        %v6071 = vpop.f32.mrb[0].mxu0
        %v6072 = vpop.f32.mrb[0].mxu0
        %6073 = vdwg.mxu0
        %v6075 = vsel %vm1358, %v6025, 0
        %v6078 = vsel %vm1788, %v4965, 0
        %6080 = vmatprep.subr.bf16.mxu0 0
        %6081 = vmatpush1.bf16.msra.mxu0 %v6078
        %6082 = vmatprep.subr.bf16.mxu0 0
        %6083 = vmatpush1.bf16.msra.mxu0 0
        %6084 = vmatprep.subr.bf16.mxu0 0
        %6085 = vmatpush1.bf16.msra.mxu0 0
        %6086 = vmatprep.subr.bf16.mxu0 0
        %6087 = vmatpush1.bf16.msra.mxu0 0
        %6088 = vmatprep.subr.bf16.mxu0 0
        %6089 = vmatpush1.bf16.msra.mxu0 0
        %6090 = vmatprep.subr.bf16.mxu0 0
        %6091 = vmatpush1.bf16.msra.mxu0 0
        %6092 = vmatprep.subr.bf16.mxu0 0
        %6093 = vmatpush1.bf16.msra.mxu0 0
        %6094 = vmatprep.subr.bf16.mxu0 0
        %6095 = vmatpush1.bf16.msra.mxu0 0
        %6096 = vmatprep.subr.bf16.mxu0 0
        %6097 = vmatpush1.bf16.msra.mxu0 0
        %6098 = vmatprep.subr.bf16.mxu0 0
        %6099 = vmatpush1.bf16.msra.mxu0 0
        %6100 = vmatprep.subr.bf16.mxu0 0
        %6101 = vmatpush1.bf16.msra.mxu0 0
        %6102 = vmatprep.subr.bf16.mxu0 0
        %6103 = vmatpush1.bf16.msra.mxu0 0
        %6104 = vmatprep.subr.bf16.mxu0 0
        %6105 = vmatpush1.bf16.msra.mxu0 0
        %6106 = vmatprep.subr.bf16.mxu0 0
        %6107 = vmatpush1.bf16.msra.mxu0 0
        %6108 = vmatprep.subr.bf16.mxu0 0
        %6109 = vmatpush1.bf16.msra.mxu0 0
        %6110 = vmatprep.subr.bf16.mxu0 0
        %6111 = vmatpush1.bf16.msra.mxu0 0
        %6112 = vmatprep.mubr.bf16.mxu0 0
        %6113 = vmatmul.mubr.bf16.gmra.mrb[0].mxu0 %v6075
        %v6114 = vpop.f32.mrb[0].mxu0
        %v6115 = vadd.f32 0.0, %v6114
        %v6116 = vpop.f32.mrb[0].mxu0
        %v6117 = vpop.f32.mrb[0].mxu0
        %v6118 = vpop.f32.mrb[0].mxu0
        %6119 = vdwg.mxu0
        %v6121 = vsel %vm1358, %v6026, 0
        %v6124 = vsel %vm1788, %v4966, 0
        %6126 = vmatprep.subr.bf16.mxu0 0
        %6127 = vmatpush1.bf16.msra.mxu0 %v6124
        %6128 = vmatprep.subr.bf16.mxu0 0
        %6129 = vmatpush1.bf16.msra.mxu0 0
        %6130 = vmatprep.subr.bf16.mxu0 0
        %6131 = vmatpush1.bf16.msra.mxu0 0
        %6132 = vmatprep.subr.bf16.mxu0 0
        %6133 = vmatpush1.bf16.msra.mxu0 0
        %6134 = vmatprep.subr.bf16.mxu0 0
        %6135 = vmatpush1.bf16.msra.mxu0 0
        %6136 = vmatprep.subr.bf16.mxu0 0
        %6137 = vmatpush1.bf16.msra.mxu0 0
        %6138 = vmatprep.subr.bf16.mxu0 0
        %6139 = vmatpush1.bf16.msra.mxu0 0
        %6140 = vmatprep.subr.bf16.mxu0 0
        %6141 = vmatpush1.bf16.msra.mxu0 0
        %6142 = vmatprep.subr.bf16.mxu0 0
        %6143 = vmatpush1.bf16.msra.mxu0 0
        %6144 = vmatprep.subr.bf16.mxu0 0
        %6145 = vmatpush1.bf16.msra.mxu0 0
        %6146 = vmatprep.subr.bf16.mxu0 0
        %6147 = vmatpush1.bf16.msra.mxu0 0
        %6148 = vmatprep.subr.bf16.mxu0 0
        %6149 = vmatpush1.bf16.msra.mxu0 0
        %6150 = vmatprep.subr.bf16.mxu0 0
        %6151 = vmatpush1.bf16.msra.mxu0 0
        %6152 = vmatprep.subr.bf16.mxu0 0
        %6153 = vmatpush1.bf16.msra.mxu0 0
        %6154 = vmatprep.subr.bf16.mxu0 0
        %6155 = vmatpush1.bf16.msra.mxu0 0
        %6156 = vmatprep.subr.bf16.mxu0 0
        %6157 = vmatpush1.bf16.msra.mxu0 0
        %6158 = vmatprep.mubr.bf16.mxu0 0
        %6159 = vmatmul.mubr.bf16.gmra.mrb[0].mxu0 %v6121
        %v6160 = vpop.f32.mrb[0].mxu0
        %v6161 = vadd.f32 0.0, %v6160
        %v6162 = vpop.f32.mrb[0].mxu0
        %v6163 = vpop.f32.mrb[0].mxu0
        %v6164 = vpop.f32.mrb[0].mxu0
        %6165 = vdwg.mxu0
        %v6167 = vsel %vm1358, %v6027, 0
        %v6170 = vsel %vm1788, %v4967, 0
        %6172 = vmatprep.subr.bf16.mxu0 0
        %6173 = vmatpush1.bf16.msra.mxu0 %v6170
        %6174 = vmatprep.subr.bf16.mxu0 0
        %6175 = vmatpush1.bf16.msra.mxu0 0
        %6176 = vmatprep.subr.bf16.mxu0 0
        %6177 = vmatpush1.bf16.msra.mxu0 0
        %6178 = vmatprep.subr.bf16.mxu0 0
        %6179 = vmatpush1.bf16.msra.mxu0 0
        %6180 = vmatprep.subr.bf16.mxu0 0
        %6181 = vmatpush1.bf16.msra.mxu0 0
        %6182 = vmatprep.subr.bf16.mxu0 0
        %6183 = vmatpush1.bf16.msra.mxu0 0
        %6184 = vmatprep.subr.bf16.mxu0 0
        %6185 = vmatpush1.bf16.msra.mxu0 0
        %6186 = vmatprep.subr.bf16.mxu0 0
        %6187 = vmatpush1.bf16.msra.mxu0 0
        %6188 = vmatprep.subr.bf16.mxu0 0
        %6189 = vmatpush1.bf16.msra.mxu0 0
        %6190 = vmatprep.subr.bf16.mxu0 0
        %6191 = vmatpush1.bf16.msra.mxu0 0
        %6192 = vmatprep.subr.bf16.mxu0 0
        %6193 = vmatpush1.bf16.msra.mxu0 0
        %6194 = vmatprep.subr.bf16.mxu0 0
        %6195 = vmatpush1.bf16.msra.mxu0 0
        %6196 = vmatprep.subr.bf16.mxu0 0
        %6197 = vmatpush1.bf16.msra.mxu0 0
        %6198 = vmatprep.subr.bf16.mxu0 0
        %6199 = vmatpush1.bf16.msra.mxu0 0
        %6200 = vmatprep.subr.bf16.mxu0 0
        %6201 = vmatpush1.bf16.msra.mxu0 0
        %6202 = vmatprep.subr.bf16.mxu0 0
        %6203 = vmatpush1.bf16.msra.mxu0 0
        %6204 = vmatprep.mubr.bf16.mxu0 0
        %6205 = vmatmul.mubr.bf16.gmra.mrb[0].mxu0 %v6167
        %v6206 = vpop.f32.mrb[0].mxu0
        %v6207 = vadd.f32 0.0, %v6206
        %v6208 = vpop.f32.mrb[0].mxu0
        %v6209 = vpop.f32.mrb[0].mxu0
        %v6210 = vpop.f32.mrb[0].mxu0
        %6211 = vdwg.mxu0
        %v6212 = vadd.f32 %v6069, %v6115
        %v6213 = vadd.f32 %v6212, %v6161
        %v6214 = vadd.f32 %v6213, %v6207
        %v6215 = vadd.f32 %v4880, %v6214
        %s6216 = scalar_lea.vmem %s6, 5
        %v6217 = vld [vmem:[%s6216] sm:$0x1]
        %s6218 = scalar_lea.vmem %s7, 5
        %v6219 = vld [vmem:[%s6218] sm:$0x1]
        %v6220 = vsel %vm731, %v6215, 0.0
        %6221 = vadd.xlane.f32.xlu0 %v6220
        %v6222 = vpop.xlane.xlu0 %6221
        %v6223 = vmul.f32 %v6222, %v1978
        %v6224 = vsub.f32 %v6215, %v6223
        %v6225 = vmul.f32 %v6224, %v6224
        %v6226 = vsel %vm731, %v6225, 0.0
        %6227 = vadd.xlane.f32.xlu0 %v6226
        %v6228 = vpop.xlane.xlu0 %6227
        %v6229 = vmul.f32 %v6228, %v1978
        %v6230 = vadd.f32 %v6229, 1e-05
        %v6231 = vrsqrt.pop %v6230
        %v6232 = vmul.f32 %v6224, %v6231
        %v6234 = vlaneseq
        %v6235 = vshrl.u32 %v6234, 7
        %v6236 = vsub.s32 0, %v6235
        %v6237 = vrot.slane %v6217, %v6236
        %v6239 = vmul.f32 %v6232, %v6237
        %v6241 = vlaneseq
        %v6242 = vshrl.u32 %v6241, 7
        %v6243 = vsub.s32 0, %v6242
        %v6244 = vrot.slane %v6219, %v6243
        %v6246 = vadd.f32 %v6239, %v6244
        %s6247 = scalar_lea.vmem %s8, 256
        %v6248 = vld [vmem:[%s6247] sm:$0xf]
        %v6249 = vld [vmem:[%s6247 + $0x4] sm:$0xf]
        %v6250 = vld [vmem:[%s6247 + $0x8] sm:$0xf]
        %v6251 = vld [vmem:[%s6247 + $0xc] sm:$0xf]
        %v6252 = vld [vmem:[%s6247 + $0x10] sm:$0xf]
        %v6253 = vld [vmem:[%s6247 + $0x14] sm:$0xf]
        %v6254 = vld [vmem:[%s6247 + $0x18] sm:$0xf]
        %v6255 = vld [vmem:[%s6247 + $0x1c] sm:$0xf]
        %v6256 = vld [vmem:[%s6247 + $0x20] sm:$0xf]
        %v6257 = vld [vmem:[%s6247 + $0x24] sm:$0xf]
        %v6258 = vld [vmem:[%s6247 + $0x28] sm:$0xf]
        %v6259 = vld [vmem:[%s6247 + $0x2c] sm:$0xf]
        %v6260 = vld [vmem:[%s6247 + $0x30] sm:$0xf]
        %v6261 = vld [vmem:[%s6247 + $0x34] sm:$0xf]
        %v6262 = vld [vmem:[%s6247 + $0x38] sm:$0xf]
        %v6263 = vld [vmem:[%s6247 + $0x3c] sm:$0xf]
        %s6264 = scalar_lea.vmem %s9, 256
        %v6265 = vld [vmem:[%s6264] sm:$0xf]
        %v6266 = vld [vmem:[%s6264 + $0x4] sm:$0xf]
        %v6267 = vld [vmem:[%s6264 + $0x8] sm:$0xf]
        %v6268 = vld [vmem:[%s6264 + $0xc] sm:$0xf]
        %v6269 = vld [vmem:[%s6264 + $0x10] sm:$0xf]
        %v6270 = vld [vmem:[%s6264 + $0x14] sm:$0xf]
        %v6271 = vld [vmem:[%s6264 + $0x18] sm:$0xf]
        %v6272 = vld [vmem:[%s6264 + $0x1c] sm:$0xf]
        %v6273 = vld [vmem:[%s6264 + $0x20] sm:$0xf]
        %v6274 = vld [vmem:[%s6264 + $0x24] sm:$0xf]
        %v6275 = vld [vmem:[%s6264 + $0x28] sm:$0xf]
        %v6276 = vld [vmem:[%s6264 + $0x2c] sm:$0xf]
        %v6277 = vld [vmem:[%s6264 + $0x30] sm:$0xf]
        %v6278 = vld [vmem:[%s6264 + $0x34] sm:$0xf]
        %v6279 = vld [vmem:[%s6264 + $0x38] sm:$0xf]
        %v6280 = vld [vmem:[%s6264 + $0x3c] sm:$0xf]
        %s6281 = scalar_lea.vmem %s10, 256
        %v6282 = vld [vmem:[%s6281] sm:$0xf]
        %v6283 = vld [vmem:[%s6281 + $0x4] sm:$0xf]
        %v6284 = vld [vmem:[%s6281 + $0x8] sm:$0xf]
        %v6285 = vld [vmem:[%s6281 + $0xc] sm:$0xf]
        %v6286 = vld [vmem:[%s6281 + $0x10] sm:$0xf]
        %v6287 = vld [vmem:[%s6281 + $0x14] sm:$0xf]
        %v6288 = vld [vmem:[%s6281 + $0x18] sm:$0xf]
        %v6289 = vld [vmem:[%s6281 + $0x1c] sm:$0xf]
        %v6290 = vld [vmem:[%s6281 + $0x20] sm:$0xf]
        %v6291 = vld [vmem:[%s6281 + $0x24] sm:$0xf]
        %v6292 = vld [vmem:[%s6281 + $0x28] sm:$0xf]
        %v6293 = vld [vmem:[%s6281 + $0x2c] sm:$0xf]
        %v6294 = vld [vmem:[%s6281 + $0x30] sm:$0xf]
        %v6295 = vld [vmem:[%s6281 + $0x34] sm:$0xf]
        %v6296 = vld [vmem:[%s6281 + $0x38] sm:$0xf]
        %v6297 = vld [vmem:[%s6281 + $0x3c] sm:$0xf]
        %s6298 = scalar_lea.vmem %s11, 64
        %v6299 = vld [vmem:[%s6298] sm:$0xf]
        %v6300 = vld [vmem:[%s6298 + $0x4] sm:$0xf]
        %v6301 = vld [vmem:[%s6298 + $0x8] sm:$0xf]
        %v6302 = vld [vmem:[%s6298 + $0xc] sm:$0xf]
        %v6303 = vpack.c.bf16 %v6246, %v6246
        %v6308 = vunpack.c.l.b16 %v6248
        %v6309 = vunpack.c.l.b16 %v6249
        %v6310 = vunpack.c.l.b16 %v6250
        %v6311 = vunpack.c.l.b16 %v6251
        %v6312 = vpack.c.b16 %v6309, %v6308
        %v6313 = vpack.c.b16 %v6311, %v6310
        %v6317 = vsel %vm731, %v6303, 0
        %6319 = vmatprep.subr.bf16.mxu0 0
        %6320 = vmatpush1.bf16.msra.mxu0 %v6312
        %6321 = vmatprep.subr.bf16.mxu0 0
        %6322 = vmatpush1.bf16.msra.mxu0 %v6313
        %6323 = vmatprep.subr.bf16.mxu0 0
        %6324 = vmatpush1.bf16.msra.mxu0 0
        %6325 = vmatprep.subr.bf16.mxu0 0
        %6326 = vmatpush1.bf16.msra.mxu0 0
        %6327 = vmatprep.subr.bf16.mxu0 0
        %6328 = vmatpush1.bf16.msra.mxu0 0
        %6329 = vmatprep.subr.bf16.mxu0 0
        %6330 = vmatpush1.bf16.msra.mxu0 0
        %6331 = vmatprep.subr.bf16.mxu0 0
        %6332 = vmatpush1.bf16.msra.mxu0 0
        %6333 = vmatprep.subr.bf16.mxu0 0
        %6334 = vmatpush1.bf16.msra.mxu0 0
        %6335 = vmatprep.subr.bf16.mxu0 0
        %6336 = vmatpush1.bf16.msra.mxu0 0
        %6337 = vmatprep.subr.bf16.mxu0 0
        %6338 = vmatpush1.bf16.msra.mxu0 0
        %6339 = vmatprep.subr.bf16.mxu0 0
        %6340 = vmatpush1.bf16.msra.mxu0 0
        %6341 = vmatprep.subr.bf16.mxu0 0
        %6342 = vmatpush1.bf16.msra.mxu0 0
        %6343 = vmatprep.subr.bf16.mxu0 0
        %6344 = vmatpush1.bf16.msra.mxu0 0
        %6345 = vmatprep.subr.bf16.mxu0 0
        %6346 = vmatpush1.bf16.msra.mxu0 0
        %6347 = vmatprep.subr.bf16.mxu0 0
        %6348 = vmatpush1.bf16.msra.mxu0 0
        %6349 = vmatprep.subr.bf16.mxu0 0
        %6350 = vmatpush1.bf16.msra.mxu0 0
        %6351 = vmatprep.mubr.bf16.mxu0 0
        %6352 = vmatmul.mubr.bf16.gmra.mrb[0].mxu0 %v6317
        %v6353 = vpop.f32.mrb[0].mxu0
        %v6354 = vadd.f32 0.0, %v6353
        %v6355 = vpop.f32.mrb[0].mxu0
        %v6356 = vpop.f32.mrb[0].mxu0
        %v6357 = vpop.f32.mrb[0].mxu0
        %6358 = vdwg.mxu0
        %v6363 = vunpack.c.l.b16 %v6252
        %v6364 = vunpack.c.l.b16 %v6253
        %v6365 = vunpack.c.l.b16 %v6254
        %v6366 = vunpack.c.l.b16 %v6255
        %v6367 = vpack.c.b16 %v6364, %v6363
        %v6368 = vpack.c.b16 %v6366, %v6365
        %6371 = vmatprep.subr.bf16.mxu0 0
        %6372 = vmatpush1.bf16.msra.mxu0 %v6367
        %6373 = vmatprep.subr.bf16.mxu0 0
        %6374 = vmatpush1.bf16.msra.mxu0 %v6368
        %6375 = vmatprep.subr.bf16.mxu0 0
        %6376 = vmatpush1.bf16.msra.mxu0 0
        %6377 = vmatprep.subr.bf16.mxu0 0
        %6378 = vmatpush1.bf16.msra.mxu0 0
        %6379 = vmatprep.subr.bf16.mxu0 0
        %6380 = vmatpush1.bf16.msra.mxu0 0
        %6381 = vmatprep.subr.bf16.mxu0 0
        %6382 = vmatpush1.bf16.msra.mxu0 0
        %6383 = vmatprep.subr.bf16.mxu0 0
        %6384 = vmatpush1.bf16.msra.mxu0 0
        %6385 = vmatprep.subr.bf16.mxu0 0
        %6386 = vmatpush1.bf16.msra.mxu0 0
        %6387 = vmatprep.subr.bf16.mxu0 0
        %6388 = vmatpush1.bf16.msra.mxu0 0
        %6389 = vmatprep.subr.bf16.mxu0 0
        %6390 = vmatpush1.bf16.msra.mxu0 0
        %6391 = vmatprep.subr.bf16.mxu0 0
        %6392 = vmatpush1.bf16.msra.mxu0 0
        %6393 = vmatprep.subr.bf16.mxu0 0
        %6394 = vmatpush1.bf16.msra.mxu0 0
        %6395 = vmatprep.subr.bf16.mxu0 0
        %6396 = vmatpush1.bf16.msra.mxu0 0
        %6397 = vmatprep.subr.bf16.mxu0 0
        %6398 = vmatpush1.bf16.msra.mxu0 0
        %6399 = vmatprep.subr.bf16.mxu0 0
        %6400 = vmatpush1.bf16.msra.mxu0 0
        %6401 = vmatprep.subr.bf16.mxu0 0
        %6402 = vmatpush1.bf16.msra.mxu0 0
        %6403 = vmatprep.mubr.bf16.mxu0 0
        %6404 = vmatmul.mubr.bf16.gmra.mrb[0].mxu0 %v6317
        %v6405 = vpop.f32.mrb[0].mxu0
        %v6406 = vadd.f32 0.0, %v6405
        %v6407 = vpop.f32.mrb[0].mxu0
        %v6408 = vpop.f32.mrb[0].mxu0
        %v6409 = vpop.f32.mrb[0].mxu0
        %6410 = vdwg.mxu0
        %v6415 = vunpack.c.l.b16 %v6256
        %v6416 = vunpack.c.l.b16 %v6257
        %v6417 = vunpack.c.l.b16 %v6258
        %v6418 = vunpack.c.l.b16 %v6259
        %v6419 = vpack.c.b16 %v6416, %v6415
        %v6420 = vpack.c.b16 %v6418, %v6417
        %6423 = vmatprep.subr.bf16.mxu0 0
        %6424 = vmatpush1.bf16.msra.mxu0 %v6419
        %6425 = vmatprep.subr.bf16.mxu0 0
        %6426 = vmatpush1.bf16.msra.mxu0 %v6420
        %6427 = vmatprep.subr.bf16.mxu0 0
        %6428 = vmatpush1.bf16.msra.mxu0 0
        %6429 = vmatprep.subr.bf16.mxu0 0
        %6430 = vmatpush1.bf16.msra.mxu0 0
        %6431 = vmatprep.subr.bf16.mxu0 0
        %6432 = vmatpush1.bf16.msra.mxu0 0
        %6433 = vmatprep.subr.bf16.mxu0 0
        %6434 = vmatpush1.bf16.msra.mxu0 0
        %6435 = vmatprep.subr.bf16.mxu0 0
        %6436 = vmatpush1.bf16.msra.mxu0 0
        %6437 = vmatprep.subr.bf16.mxu0 0
        %6438 = vmatpush1.bf16.msra.mxu0 0
        %6439 = vmatprep.subr.bf16.mxu0 0
        %6440 = vmatpush1.bf16.msra.mxu0 0
        %6441 = vmatprep.subr.bf16.mxu0 0
        %6442 = vmatpush1.bf16.msra.mxu0 0
        %6443 = vmatprep.subr.bf16.mxu0 0
        %6444 = vmatpush1.bf16.msra.mxu0 0
        %6445 = vmatprep.subr.bf16.mxu0 0
        %6446 = vmatpush1.bf16.msra.mxu0 0
        %6447 = vmatprep.subr.bf16.mxu0 0
        %6448 = vmatpush1.bf16.msra.mxu0 0
        %6449 = vmatprep.subr.bf16.mxu0 0
        %6450 = vmatpush1.bf16.msra.mxu0 0
        %6451 = vmatprep.subr.bf16.mxu0 0
        %6452 = vmatpush1.bf16.msra.mxu0 0
        %6453 = vmatprep.subr.bf16.mxu0 0
        %6454 = vmatpush1.bf16.msra.mxu0 0
        %6455 = vmatprep.mubr.bf16.mxu0 0
        %6456 = vmatmul.mubr.bf16.gmra.mrb[0].mxu0 %v6317
        %v6457 = vpop.f32.mrb[0].mxu0
        %v6458 = vadd.f32 0.0, %v6457
        %v6459 = vpop.f32.mrb[0].mxu0
        %v6460 = vpop.f32.mrb[0].mxu0
        %v6461 = vpop.f32.mrb[0].mxu0
        %6462 = vdwg.mxu0
        %v6467 = vunpack.c.l.b16 %v6260
        %v6468 = vunpack.c.l.b16 %v6261
        %v6469 = vunpack.c.l.b16 %v6262
        %v6470 = vunpack.c.l.b16 %v6263
        %v6471 = vpack.c.b16 %v6468, %v6467
        %v6472 = vpack.c.b16 %v6470, %v6469
        %6475 = vmatprep.subr.bf16.mxu0 0
        %6476 = vmatpush1.bf16.msra.mxu0 %v6471
        %6477 = vmatprep.subr.bf16.mxu0 0
        %6478 = vmatpush1.bf16.msra.mxu0 %v6472
        %6479 = vmatprep.subr.bf16.mxu0 0
        %6480 = vmatpush1.bf16.msra.mxu0 0
        %6481 = vmatprep.subr.bf16.mxu0 0
        %6482 = vmatpush1.bf16.msra.mxu0 0
        %6483 = vmatprep.subr.bf16.mxu0 0
        %6484 = vmatpush1.bf16.msra.mxu0 0
        %6485 = vmatprep.subr.bf16.mxu0 0
        %6486 = vmatpush1.bf16.msra.mxu0 0
        %6487 = vmatprep.subr.bf16.mxu0 0
        %6488 = vmatpush1.bf16.msra.mxu0 0
        %6489 = vmatprep.subr.bf16.mxu0 0
        %6490 = vmatpush1.bf16.msra.mxu0 0
        %6491 = vmatprep.subr.bf16.mxu0 0
        %6492 = vmatpush1.bf16.msra.mxu0 0
        %6493 = vmatprep.subr.bf16.mxu0 0
        %6494 = vmatpush1.bf16.msra.mxu0 0
        %6495 = vmatprep.subr.bf16.mxu0 0
        %6496 = vmatpush1.bf16.msra.mxu0 0
        %6497 = vmatprep.subr.bf16.mxu0 0
        %6498 = vmatpush1.bf16.msra.mxu0 0
        %6499 = vmatprep.subr.bf16.mxu0 0
        %6500 = vmatpush1.bf16.msra.mxu0 0
        %6501 = vmatprep.subr.bf16.mxu0 0
        %6502 = vmatpush1.bf16.msra.mxu0 0
        %6503 = vmatprep.subr.bf16.mxu0 0
        %6504 = vmatpush1.bf16.msra.mxu0 0
        %6505 = vmatprep.subr.bf16.mxu0 0
        %6506 = vmatpush1.bf16.msra.mxu0 0
        %6507 = vmatprep.mubr.bf16.mxu0 0
        %6508 = vmatmul.mubr.bf16.gmra.mrb[0].mxu0 %v6317
        %v6509 = vpop.f32.mrb[0].mxu0
        %v6510 = vadd.f32 0.0, %v6509
        %v6511 = vpop.f32.mrb[0].mxu0
        %v6512 = vpop.f32.mrb[0].mxu0
        %v6513 = vpop.f32.mrb[0].mxu0
        %6514 = vdwg.mxu0
        %v6519 = vunpack.c.l.b16 %v6265
        %v6520 = vunpack.c.l.b16 %v6266
        %v6521 = vunpack.c.l.b16 %v6267
        %v6522 = vunpack.c.l.b16 %v6268
        %v6523 = vpack.c.b16 %v6520, %v6519
        %v6524 = vpack.c.b16 %v6522, %v6521
        %6527 = vmatprep.subr.bf16.mxu0 0
        %6528 = vmatpush1.bf16.msra.mxu0 %v6523
        %6529 = vmatprep.subr.bf16.mxu0 0
        %6530 = vmatpush1.bf16.msra.mxu0 %v6524
        %6531 = vmatprep.subr.bf16.mxu0 0
        %6532 = vmatpush1.bf16.msra.mxu0 0
        %6533 = vmatprep.subr.bf16.mxu0 0
        %6534 = vmatpush1.bf16.msra.mxu0 0
        %6535 = vmatprep.subr.bf16.mxu0 0
        %6536 = vmatpush1.bf16.msra.mxu0 0
        %6537 = vmatprep.subr.bf16.mxu0 0
        %6538 = vmatpush1.bf16.msra.mxu0 0
        %6539 = vmatprep.subr.bf16.mxu0 0
        %6540 = vmatpush1.bf16.msra.mxu0 0
        %6541 = vmatprep.subr.bf16.mxu0 0
        %6542 = vmatpush1.bf16.msra.mxu0 0
        %6543 = vmatprep.subr.bf16.mxu0 0
        %6544 = vmatpush1.bf16.msra.mxu0 0
        %6545 = vmatprep.subr.bf16.mxu0 0
        %6546 = vmatpush1.bf16.msra.mxu0 0
        %6547 = vmatprep.subr.bf16.mxu0 0
        %6548 = vmatpush1.bf16.msra.mxu0 0
        %6549 = vmatprep.subr.bf16.mxu0 0
        %6550 = vmatpush1.bf16.msra.mxu0 0
        %6551 = vmatprep.subr.bf16.mxu0 0
        %6552 = vmatpush1.bf16.msra.mxu0 0
        %6553 = vmatprep.subr.bf16.mxu0 0
        %6554 = vmatpush1.bf16.msra.mxu0 0
        %6555 = vmatprep.subr.bf16.mxu0 0
        %6556 = vmatpush1.bf16.msra.mxu0 0
        %6557 = vmatprep.subr.bf16.mxu0 0
        %6558 = vmatpush1.bf16.msra.mxu0 0
        %6559 = vmatprep.mubr.bf16.mxu0 0
        %6560 = vmatmul.mubr.bf16.gmra.mrb[0].mxu0 %v3660
        %v6561 = vpop.f32.mrb[0].mxu0
        %v6562 = vadd.f32 0.0, %v6561
        %v6563 = vpop.f32.mrb[0].mxu0
        %v6564 = vpop.f32.mrb[0].mxu0
        %v6565 = vpop.f32.mrb[0].mxu0
        %6566 = vdwg.mxu0
        %v6571 = vunpack.c.l.b16 %v6269
        %v6572 = vunpack.c.l.b16 %v6270
        %v6573 = vunpack.c.l.b16 %v6271
        %v6574 = vunpack.c.l.b16 %v6272
        %v6575 = vpack.c.b16 %v6572, %v6571
        %v6576 = vpack.c.b16 %v6574, %v6573
        %6579 = vmatprep.subr.bf16.mxu0 0
        %6580 = vmatpush1.bf16.msra.mxu0 %v6575
        %6581 = vmatprep.subr.bf16.mxu0 0
        %6582 = vmatpush1.bf16.msra.mxu0 %v6576
        %6583 = vmatprep.subr.bf16.mxu0 0
        %6584 = vmatpush1.bf16.msra.mxu0 0
        %6585 = vmatprep.subr.bf16.mxu0 0
        %6586 = vmatpush1.bf16.msra.mxu0 0
        %6587 = vmatprep.subr.bf16.mxu0 0
        %6588 = vmatpush1.bf16.msra.mxu0 0
        %6589 = vmatprep.subr.bf16.mxu0 0
        %6590 = vmatpush1.bf16.msra.mxu0 0
        %6591 = vmatprep.subr.bf16.mxu0 0
        %6592 = vmatpush1.bf16.msra.mxu0 0
        %6593 = vmatprep.subr.bf16.mxu0 0
        %6594 = vmatpush1.bf16.msra.mxu0 0
        %6595 = vmatprep.subr.bf16.mxu0 0
        %6596 = vmatpush1.bf16.msra.mxu0 0
        %6597 = vmatprep.subr.bf16.mxu0 0
        %6598 = vmatpush1.bf16.msra.mxu0 0
        %6599 = vmatprep.subr.bf16.mxu0 0
        %6600 = vmatpush1.bf16.msra.mxu0 0
        %6601 = vmatprep.subr.bf16.mxu0 0
        %6602 = vmatpush1.bf16.msra.mxu0 0
        %6603 = vmatprep.subr.bf16.mxu0 0
        %6604 = vmatpush1.bf16.msra.mxu0 0
        %6605 = vmatprep.subr.bf16.mxu0 0
        %6606 = vmatpush1.bf16.msra.mxu0 0
        %6607 = vmatprep.subr.bf16.mxu0 0
        %6608 = vmatpush1.bf16.msra.mxu0 0
        %6609 = vmatprep.subr.bf16.mxu0 0
        %6610 = vmatpush1.bf16.msra.mxu0 0
        %6611 = vmatprep.mubr.bf16.mxu0 0
        %6612 = vmatmul.mubr.bf16.gmra.mrb[0].mxu0 %v3660
        %v6613 = vpop.f32.mrb[0].mxu0
        %v6614 = vadd.f32 0.0, %v6613
        %v6615 = vpop.f32.mrb[0].mxu0
        %v6616 = vpop.f32.mrb[0].mxu0
        %v6617 = vpop.f32.mrb[0].mxu0
        %6618 = vdwg.mxu0
        %v6623 = vunpack.c.l.b16 %v6273
        %v6624 = vunpack.c.l.b16 %v6274
        %v6625 = vunpack.c.l.b16 %v6275
        %v6626 = vunpack.c.l.b16 %v6276
        %v6627 = vpack.c.b16 %v6624, %v6623
        %v6628 = vpack.c.b16 %v6626, %v6625
        %6631 = vmatprep.subr.bf16.mxu0 0
        %6632 = vmatpush1.bf16.msra.mxu0 %v6627
        %6633 = vmatprep.subr.bf16.mxu0 0
        %6634 = vmatpush1.bf16.msra.mxu0 %v6628
        %6635 = vmatprep.subr.bf16.mxu0 0
        %6636 = vmatpush1.bf16.msra.mxu0 0
        %6637 = vmatprep.subr.bf16.mxu0 0
        %6638 = vmatpush1.bf16.msra.mxu0 0
        %6639 = vmatprep.subr.bf16.mxu0 0
        %6640 = vmatpush1.bf16.msra.mxu0 0
        %6641 = vmatprep.subr.bf16.mxu0 0
        %6642 = vmatpush1.bf16.msra.mxu0 0
        %6643 = vmatprep.subr.bf16.mxu0 0
        %6644 = vmatpush1.bf16.msra.mxu0 0
        %6645 = vmatprep.subr.bf16.mxu0 0
        %6646 = vmatpush1.bf16.msra.mxu0 0
        %6647 = vmatprep.subr.bf16.mxu0 0
        %6648 = vmatpush1.bf16.msra.mxu0 0
        %6649 = vmatprep.subr.bf16.mxu0 0
        %6650 = vmatpush1.bf16.msra.mxu0 0
        %6651 = vmatprep.subr.bf16.mxu0 0
        %6652 = vmatpush1.bf16.msra.mxu0 0
        %6653 = vmatprep.subr.bf16.mxu0 0
        %6654 = vmatpush1.bf16.msra.mxu0 0
        %6655 = vmatprep.subr.bf16.mxu0 0
        %6656 = vmatpush1.bf16.msra.mxu0 0
        %6657 = vmatprep.subr.bf16.mxu0 0
        %6658 = vmatpush1.bf16.msra.mxu0 0
        %6659 = vmatprep.subr.bf16.mxu0 0
        %6660 = vmatpush1.bf16.msra.mxu0 0
        %6661 = vmatprep.subr.bf16.mxu0 0
        %6662 = vmatpush1.bf16.msra.mxu0 0
        %6663 = vmatprep.mubr.bf16.mxu0 0
        %6664 = vmatmul.mubr.bf16.gmra.mrb[0].mxu0 %v3660
        %v6665 = vpop.f32.mrb[0].mxu0
        %v6666 = vadd.f32 0.0, %v6665
        %v6667 = vpop.f32.mrb[0].mxu0
        %v6668 = vpop.f32.mrb[0].mxu0
        %v6669 = vpop.f32.mrb[0].mxu0
        %6670 = vdwg.mxu0
        %v6675 = vunpack.c.l.b16 %v6277
        %v6676 = vunpack.c.l.b16 %v6278
        %v6677 = vunpack.c.l.b16 %v6279
        %v6678 = vunpack.c.l.b16 %v6280
        %v6679 = vpack.c.b16 %v6676, %v6675
        %v6680 = vpack.c.b16 %v6678, %v6677
        %6683 = vmatprep.subr.bf16.mxu0 0
        %6684 = vmatpush1.bf16.msra.mxu0 %v6679
        %6685 = vmatprep.subr.bf16.mxu0 0
        %6686 = vmatpush1.bf16.msra.mxu0 %v6680
        %6687 = vmatprep.subr.bf16.mxu0 0
        %6688 = vmatpush1.bf16.msra.mxu0 0
        %6689 = vmatprep.subr.bf16.mxu0 0
        %6690 = vmatpush1.bf16.msra.mxu0 0
        %6691 = vmatprep.subr.bf16.mxu0 0
        %6692 = vmatpush1.bf16.msra.mxu0 0
        %6693 = vmatprep.subr.bf16.mxu0 0
        %6694 = vmatpush1.bf16.msra.mxu0 0
        %6695 = vmatprep.subr.bf16.mxu0 0
        %6696 = vmatpush1.bf16.msra.mxu0 0
        %6697 = vmatprep.subr.bf16.mxu0 0
        %6698 = vmatpush1.bf16.msra.mxu0 0
        %6699 = vmatprep.subr.bf16.mxu0 0
        %6700 = vmatpush1.bf16.msra.mxu0 0
        %6701 = vmatprep.subr.bf16.mxu0 0
        %6702 = vmatpush1.bf16.msra.mxu0 0
        %6703 = vmatprep.subr.bf16.mxu0 0
        %6704 = vmatpush1.bf16.msra.mxu0 0
        %6705 = vmatprep.subr.bf16.mxu0 0
        %6706 = vmatpush1.bf16.msra.mxu0 0
        %6707 = vmatprep.subr.bf16.mxu0 0
        %6708 = vmatpush1.bf16.msra.mxu0 0
        %6709 = vmatprep.subr.bf16.mxu0 0
        %6710 = vmatpush1.bf16.msra.mxu0 0
        %6711 = vmatprep.subr.bf16.mxu0 0
        %6712 = vmatpush1.bf16.msra.mxu0 0
        %6713 = vmatprep.subr.bf16.mxu0 0
        %6714 = vmatpush1.bf16.msra.mxu0 0
        %6715 = vmatprep.mubr.bf16.mxu0 0
        %6716 = vmatmul.mubr.bf16.gmra.mrb[0].mxu0 %v3660
        %v6717 = vpop.f32.mrb[0].mxu0
        %v6718 = vadd.f32 0.0, %v6717
        %v6719 = vpop.f32.mrb[0].mxu0
        %v6720 = vpop.f32.mrb[0].mxu0
        %v6721 = vpop.f32.mrb[0].mxu0
        %6722 = vdwg.mxu0
        %v6727 = vunpack.c.l.b16 %v6282
        %v6728 = vunpack.c.l.b16 %v6283
        %v6729 = vunpack.c.l.b16 %v6284
        %v6730 = vunpack.c.l.b16 %v6285
        %v6731 = vpack.c.b16 %v6728, %v6727
        %v6732 = vpack.c.b16 %v6730, %v6729
        %6735 = vmatprep.subr.bf16.mxu0 0
        %6736 = vmatpush1.bf16.msra.mxu0 %v6731
        %6737 = vmatprep.subr.bf16.mxu0 0
        %6738 = vmatpush1.bf16.msra.mxu0 %v6732
        %6739 = vmatprep.subr.bf16.mxu0 0
        %6740 = vmatpush1.bf16.msra.mxu0 0
        %6741 = vmatprep.subr.bf16.mxu0 0
        %6742 = vmatpush1.bf16.msra.mxu0 0
        %6743 = vmatprep.subr.bf16.mxu0 0
        %6744 = vmatpush1.bf16.msra.mxu0 0
        %6745 = vmatprep.subr.bf16.mxu0 0
        %6746 = vmatpush1.bf16.msra.mxu0 0
        %6747 = vmatprep.subr.bf16.mxu0 0
        %6748 = vmatpush1.bf16.msra.mxu0 0
        %6749 = vmatprep.subr.bf16.mxu0 0
        %6750 = vmatpush1.bf16.msra.mxu0 0
        %6751 = vmatprep.subr.bf16.mxu0 0
        %6752 = vmatpush1.bf16.msra.mxu0 0
        %6753 = vmatprep.subr.bf16.mxu0 0
        %6754 = vmatpush1.bf16.msra.mxu0 0
        %6755 = vmatprep.subr.bf16.mxu0 0
        %6756 = vmatpush1.bf16.msra.mxu0 0
        %6757 = vmatprep.subr.bf16.mxu0 0
        %6758 = vmatpush1.bf16.msra.mxu0 0
        %6759 = vmatprep.subr.bf16.mxu0 0
        %6760 = vmatpush1.bf16.msra.mxu0 0
        %6761 = vmatprep.subr.bf16.mxu0 0
        %6762 = vmatpush1.bf16.msra.mxu0 0
        %6763 = vmatprep.subr.bf16.mxu0 0
        %6764 = vmatpush1.bf16.msra.mxu0 0
        %6765 = vmatprep.subr.bf16.mxu0 0
        %6766 = vmatpush1.bf16.msra.mxu0 0
        %6767 = vmatprep.mubr.bf16.mxu0 0
        %6768 = vmatmul.mubr.bf16.gmra.mrb[0].mxu0 %v3660
        %v6769 = vpop.f32.mrb[0].mxu0
        %v6770 = vadd.f32 0.0, %v6769
        %v6771 = vpop.f32.mrb[0].mxu0
        %v6772 = vpop.f32.mrb[0].mxu0
        %v6773 = vpop.f32.mrb[0].mxu0
        %6774 = vdwg.mxu0
        %v6779 = vunpack.c.l.b16 %v6286
        %v6780 = vunpack.c.l.b16 %v6287
        %v6781 = vunpack.c.l.b16 %v6288
        %v6782 = vunpack.c.l.b16 %v6289
        %v6783 = vpack.c.b16 %v6780, %v6779
        %v6784 = vpack.c.b16 %v6782, %v6781
        %6787 = vmatprep.subr.bf16.mxu0 0
        %6788 = vmatpush1.bf16.msra.mxu0 %v6783
        %6789 = vmatprep.subr.bf16.mxu0 0
        %6790 = vmatpush1.bf16.msra.mxu0 %v6784
        %6791 = vmatprep.subr.bf16.mxu0 0
        %6792 = vmatpush1.bf16.msra.mxu0 0
        %6793 = vmatprep.subr.bf16.mxu0 0
        %6794 = vmatpush1.bf16.msra.mxu0 0
        %6795 = vmatprep.subr.bf16.mxu0 0
        %6796 = vmatpush1.bf16.msra.mxu0 0
        %6797 = vmatprep.subr.bf16.mxu0 0
        %6798 = vmatpush1.bf16.msra.mxu0 0
        %6799 = vmatprep.subr.bf16.mxu0 0
        %6800 = vmatpush1.bf16.msra.mxu0 0
        %6801 = vmatprep.subr.bf16.mxu0 0
        %6802 = vmatpush1.bf16.msra.mxu0 0
        %6803 = vmatprep.subr.bf16.mxu0 0
        %6804 = vmatpush1.bf16.msra.mxu0 0
        %6805 = vmatprep.subr.bf16.mxu0 0
        %6806 = vmatpush1.bf16.msra.mxu0 0
        %6807 = vmatprep.subr.bf16.mxu0 0
        %6808 = vmatpush1.bf16.msra.mxu0 0
        %6809 = vmatprep.subr.bf16.mxu0 0
        %6810 = vmatpush1.bf16.msra.mxu0 0
        %6811 = vmatprep.subr.bf16.mxu0 0
        %6812 = vmatpush1.bf16.msra.mxu0 0
        %6813 = vmatprep.subr.bf16.mxu0 0
        %6814 = vmatpush1.bf16.msra.mxu0 0
        %6815 = vmatprep.subr.bf16.mxu0 0
        %6816 = vmatpush1.bf16.msra.mxu0 0
        %6817 = vmatprep.subr.bf16.mxu0 0
        %6818 = vmatpush1.bf16.msra.mxu0 0
        %6819 = vmatprep.mubr.bf16.mxu0 0
        %6820 = vmatmul.mubr.bf16.gmra.mrb[0].mxu0 %v3660
        %v6821 = vpop.f32.mrb[0].mxu0
        %v6822 = vadd.f32 0.0, %v6821
        %v6823 = vpop.f32.mrb[0].mxu0
        %v6824 = vpop.f32.mrb[0].mxu0
        %v6825 = vpop.f32.mrb[0].mxu0
        %6826 = vdwg.mxu0
        %v6831 = vunpack.c.l.b16 %v6290
        %v6832 = vunpack.c.l.b16 %v6291
        %v6833 = vunpack.c.l.b16 %v6292
        %v6834 = vunpack.c.l.b16 %v6293
        %v6835 = vpack.c.b16 %v6832, %v6831
        %v6836 = vpack.c.b16 %v6834, %v6833
        %6839 = vmatprep.subr.bf16.mxu0 0
        %6840 = vmatpush1.bf16.msra.mxu0 %v6835
        %6841 = vmatprep.subr.bf16.mxu0 0
        %6842 = vmatpush1.bf16.msra.mxu0 %v6836
        %6843 = vmatprep.subr.bf16.mxu0 0
        %6844 = vmatpush1.bf16.msra.mxu0 0
        %6845 = vmatprep.subr.bf16.mxu0 0
        %6846 = vmatpush1.bf16.msra.mxu0 0
        %6847 = vmatprep.subr.bf16.mxu0 0
        %6848 = vmatpush1.bf16.msra.mxu0 0
        %6849 = vmatprep.subr.bf16.mxu0 0
        %6850 = vmatpush1.bf16.msra.mxu0 0
        %6851 = vmatprep.subr.bf16.mxu0 0
        %6852 = vmatpush1.bf16.msra.mxu0 0
        %6853 = vmatprep.subr.bf16.mxu0 0
        %6854 = vmatpush1.bf16.msra.mxu0 0
        %6855 = vmatprep.subr.bf16.mxu0 0
        %6856 = vmatpush1.bf16.msra.mxu0 0
        %6857 = vmatprep.subr.bf16.mxu0 0
        %6858 = vmatpush1.bf16.msra.mxu0 0
        %6859 = vmatprep.subr.bf16.mxu0 0
        %6860 = vmatpush1.bf16.msra.mxu0 0
        %6861 = vmatprep.subr.bf16.mxu0 0
        %6862 = vmatpush1.bf16.msra.mxu0 0
        %6863 = vmatprep.subr.bf16.mxu0 0
        %6864 = vmatpush1.bf16.msra.mxu0 0
        %6865 = vmatprep.subr.bf16.mxu0 0
        %6866 = vmatpush1.bf16.msra.mxu0 0
        %6867 = vmatprep.subr.bf16.mxu0 0
        %6868 = vmatpush1.bf16.msra.mxu0 0
        %6869 = vmatprep.subr.bf16.mxu0 0
        %6870 = vmatpush1.bf16.msra.mxu0 0
        %6871 = vmatprep.mubr.bf16.mxu0 0
        %6872 = vmatmul.mubr.bf16.gmra.mrb[0].mxu0 %v3660
        %v6873 = vpop.f32.mrb[0].mxu0
        %v6874 = vadd.f32 0.0, %v6873
        %v6875 = vpop.f32.mrb[0].mxu0
        %v6876 = vpop.f32.mrb[0].mxu0
        %v6877 = vpop.f32.mrb[0].mxu0
        %6878 = vdwg.mxu0
        %v6883 = vunpack.c.l.b16 %v6294
        %v6884 = vunpack.c.l.b16 %v6295
        %v6885 = vunpack.c.l.b16 %v6296
        %v6886 = vunpack.c.l.b16 %v6297
        %v6887 = vpack.c.b16 %v6884, %v6883
        %v6888 = vpack.c.b16 %v6886, %v6885
        %6891 = vmatprep.subr.bf16.mxu0 0
        %6892 = vmatpush1.bf16.msra.mxu0 %v6887
        %6893 = vmatprep.subr.bf16.mxu0 0
        %6894 = vmatpush1.bf16.msra.mxu0 %v6888
        %6895 = vmatprep.subr.bf16.mxu0 0
        %6896 = vmatpush1.bf16.msra.mxu0 0
        %6897 = vmatprep.subr.bf16.mxu0 0
        %6898 = vmatpush1.bf16.msra.mxu0 0
        %6899 = vmatprep.subr.bf16.mxu0 0
        %6900 = vmatpush1.bf16.msra.mxu0 0
        %6901 = vmatprep.subr.bf16.mxu0 0
        %6902 = vmatpush1.bf16.msra.mxu0 0
        %6903 = vmatprep.subr.bf16.mxu0 0
        %6904 = vmatpush1.bf16.msra.mxu0 0
        %6905 = vmatprep.subr.bf16.mxu0 0
        %6906 = vmatpush1.bf16.msra.mxu0 0
        %6907 = vmatprep.subr.bf16.mxu0 0
        %6908 = vmatpush1.bf16.msra.mxu0 0
        %6909 = vmatprep.subr.bf16.mxu0 0
        %6910 = vmatpush1.bf16.msra.mxu0 0
        %6911 = vmatprep.subr.bf16.mxu0 0
        %6912 = vmatpush1.bf16.msra.mxu0 0
        %6913 = vmatprep.subr.bf16.mxu0 0
        %6914 = vmatpush1.bf16.msra.mxu0 0
        %6915 = vmatprep.subr.bf16.mxu0 0
        %6916 = vmatpush1.bf16.msra.mxu0 0
        %6917 = vmatprep.subr.bf16.mxu0 0
        %6918 = vmatpush1.bf16.msra.mxu0 0
        %6919 = vmatprep.subr.bf16.mxu0 0
        %6920 = vmatpush1.bf16.msra.mxu0 0
        %6921 = vmatprep.subr.bf16.mxu0 0
        %6922 = vmatpush1.bf16.msra.mxu0 0
        %6923 = vmatprep.mubr.bf16.mxu0 0
        %6924 = vmatmul.mubr.bf16.gmra.mrb[0].mxu0 %v3660
        %v6925 = vpop.f32.mrb[0].mxu0
        %v6926 = vadd.f32 0.0, %v6925
        %v6927 = vpop.f32.mrb[0].mxu0
        %v6928 = vpop.f32.mrb[0].mxu0
        %v6929 = vpop.f32.mrb[0].mxu0
        %6930 = vdwg.mxu0
        %v6931 = vpack.c.bf16 %v6354, %v6354
        %v6932 = vpack.c.bf16 %v6406, %v6406
        %v6933 = vpack.c.bf16 %v6458, %v6458
        %v6934 = vpack.c.bf16 %v6510, %v6510
        %v6935 = vpack.c.bf16 %v6562, %v6562
        %v6936 = vpack.c.bf16 %v6614, %v6614
        %v6937 = vpack.c.bf16 %v6666, %v6666
        %v6938 = vpack.c.bf16 %v6718, %v6718
        %v6940 = vsel %vm1358, %v6931, 0
        %v6943 = vsel %vm1358, %v6935, 0
        %6945 = vmatprep.subr.bf16.mxu0 0
        %6946 = vmatpush1.bf16.xpose.msra.mxu0 %v6943
        %6947 = vmatprep.subr.bf16.mxu0 0
        %6948 = vmatpush1.bf16.xpose.msra.mxu0 0
        %6949 = vmatprep.subr.bf16.mxu0 0
        %6950 = vmatpush1.bf16.xpose.msra.mxu0 0
        %6951 = vmatprep.subr.bf16.mxu0 0
        %6952 = vmatpush1.bf16.xpose.msra.mxu0 0
        %6953 = vmatprep.subr.bf16.mxu0 0
        %6954 = vmatpush1.bf16.xpose.msra.mxu0 0
        %6955 = vmatprep.subr.bf16.mxu0 0
        %6956 = vmatpush1.bf16.xpose.msra.mxu0 0
        %6957 = vmatprep.subr.bf16.mxu0 0
        %6958 = vmatpush1.bf16.xpose.msra.mxu0 0
        %6959 = vmatprep.subr.bf16.mxu0 0
        %6960 = vmatpush1.bf16.xpose.msra.mxu0 0
        %6961 = vmatprep.subr.bf16.mxu0 0
        %6962 = vmatpush1.bf16.xpose.msra.mxu0 0
        %6963 = vmatprep.subr.bf16.mxu0 0
        %6964 = vmatpush1.bf16.xpose.msra.mxu0 0
        %6965 = vmatprep.subr.bf16.mxu0 0
        %6966 = vmatpush1.bf16.xpose.msra.mxu0 0
        %6967 = vmatprep.subr.bf16.mxu0 0
        %6968 = vmatpush1.bf16.xpose.msra.mxu0 0
        %6969 = vmatprep.subr.bf16.mxu0 0
        %6970 = vmatpush1.bf16.xpose.msra.mxu0 0
        %6971 = vmatprep.subr.bf16.mxu0 0
        %6972 = vmatpush1.bf16.xpose.msra.mxu0 0
        %6973 = vmatprep.subr.bf16.mxu0 0
        %6974 = vmatpush1.bf16.xpose.msra.mxu0 0
        %6975 = vmatprep.subr.bf16.mxu0 0
        %6976 = vmatpush1.bf16.xpose.msra.mxu0 0
        %6977 = vmatprep.mubr.bf16.mxu0 0
        %6978 = vmatmul.mubr.bf16.gmra.mrb[0].mxu0 %v6940
        %v6979 = vpop.f32.mrb[0].mxu0
        %v6980 = vadd.f32 0.0, %v6979
        %v6981 = vpop.f32.mrb[0].mxu0
        %v6982 = vpop.f32.mrb[0].mxu0
        %v6983 = vpop.f32.mrb[0].mxu0
        %6984 = vdwg.mxu0
        %v6986 = vsel %vm1358, %v6932, 0
        %v6989 = vsel %vm1358, %v6936, 0
        %6991 = vmatprep.subr.bf16.mxu0 0
        %6992 = vmatpush1.bf16.xpose.msra.mxu0 %v6989
        %6993 = vmatprep.subr.bf16.mxu0 0
        %6994 = vmatpush1.bf16.xpose.msra.mxu0 0
        %6995 = vmatprep.subr.bf16.mxu0 0
        %6996 = vmatpush1.bf16.xpose.msra.mxu0 0
        %6997 = vmatprep.subr.bf16.mxu0 0
        %6998 = vmatpush1.bf16.xpose.msra.mxu0 0
        %6999 = vmatprep.subr.bf16.mxu0 0
        %7000 = vmatpush1.bf16.xpose.msra.mxu0 0
        %7001 = vmatprep.subr.bf16.mxu0 0
        %7002 = vmatpush1.bf16.xpose.msra.mxu0 0
        %7003 = vmatprep.subr.bf16.mxu0 0
        %7004 = vmatpush1.bf16.xpose.msra.mxu0 0
        %7005 = vmatprep.subr.bf16.mxu0 0
        %7006 = vmatpush1.bf16.xpose.msra.mxu0 0
        %7007 = vmatprep.subr.bf16.mxu0 0
        %7008 = vmatpush1.bf16.xpose.msra.mxu0 0
        %7009 = vmatprep.subr.bf16.mxu0 0
        %7010 = vmatpush1.bf16.xpose.msra.mxu0 0
        %7011 = vmatprep.subr.bf16.mxu0 0
        %7012 = vmatpush1.bf16.xpose.msra.mxu0 0
        %7013 = vmatprep.subr.bf16.mxu0 0
        %7014 = vmatpush1.bf16.xpose.msra.mxu0 0
        %7015 = vmatprep.subr.bf16.mxu0 0
        %7016 = vmatpush1.bf16.xpose.msra.mxu0 0
        %7017 = vmatprep.subr.bf16.mxu0 0
        %7018 = vmatpush1.bf16.xpose.msra.mxu0 0
        %7019 = vmatprep.subr.bf16.mxu0 0
        %7020 = vmatpush1.bf16.xpose.msra.mxu0 0
        %7021 = vmatprep.subr.bf16.mxu0 0
        %7022 = vmatpush1.bf16.xpose.msra.mxu0 0
        %7023 = vmatprep.mubr.bf16.mxu0 0
        %7024 = vmatmul.mubr.bf16.gmra.mrb[0].mxu0 %v6986
        %v7025 = vpop.f32.mrb[0].mxu0
        %v7026 = vadd.f32 0.0, %v7025
        %v7027 = vpop.f32.mrb[0].mxu0
        %v7028 = vpop.f32.mrb[0].mxu0
        %v7029 = vpop.f32.mrb[0].mxu0
        %7030 = vdwg.mxu0
        %v7032 = vsel %vm1358, %v6933, 0
        %v7035 = vsel %vm1358, %v6937, 0
        %7037 = vmatprep.subr.bf16.mxu0 0
        %7038 = vmatpush1.bf16.xpose.msra.mxu0 %v7035
        %7039 = vmatprep.subr.bf16.mxu0 0
        %7040 = vmatpush1.bf16.xpose.msra.mxu0 0
        %7041 = vmatprep.subr.bf16.mxu0 0
        %7042 = vmatpush1.bf16.xpose.msra.mxu0 0
        %7043 = vmatprep.subr.bf16.mxu0 0
        %7044 = vmatpush1.bf16.xpose.msra.mxu0 0
        %7045 = vmatprep.subr.bf16.mxu0 0
        %7046 = vmatpush1.bf16.xpose.msra.mxu0 0
        %7047 = vmatprep.subr.bf16.mxu0 0
        %7048 = vmatpush1.bf16.xpose.msra.mxu0 0
        %7049 = vmatprep.subr.bf16.mxu0 0
        %7050 = vmatpush1.bf16.xpose.msra.mxu0 0
        %7051 = vmatprep.subr.bf16.mxu0 0
        %7052 = vmatpush1.bf16.xpose.msra.mxu0 0
        %7053 = vmatprep.subr.bf16.mxu0 0
        %7054 = vmatpush1.bf16.xpose.msra.mxu0 0
        %7055 = vmatprep.subr.bf16.mxu0 0
        %7056 = vmatpush1.bf16.xpose.msra.mxu0 0
        %7057 = vmatprep.subr.bf16.mxu0 0
        %7058 = vmatpush1.bf16.xpose.msra.mxu0 0
        %7059 = vmatprep.subr.bf16.mxu0 0
        %7060 = vmatpush1.bf16.xpose.msra.mxu0 0
        %7061 = vmatprep.subr.bf16.mxu0 0
        %7062 = vmatpush1.bf16.xpose.msra.mxu0 0
        %7063 = vmatprep.subr.bf16.mxu0 0
        %7064 = vmatpush1.bf16.xpose.msra.mxu0 0
        %7065 = vmatprep.subr.bf16.mxu0 0
        %7066 = vmatpush1.bf16.xpose.msra.mxu0 0
        %7067 = vmatprep.subr.bf16.mxu0 0
        %7068 = vmatpush1.bf16.xpose.msra.mxu0 0
        %7069 = vmatprep.mubr.bf16.mxu0 0
        %7070 = vmatmul.mubr.bf16.gmra.mrb[0].mxu0 %v7032
        %v7071 = vpop.f32.mrb[0].mxu0
        %v7072 = vadd.f32 0.0, %v7071
        %v7073 = vpop.f32.mrb[0].mxu0
        %v7074 = vpop.f32.mrb[0].mxu0
        %v7075 = vpop.f32.mrb[0].mxu0
        %7076 = vdwg.mxu0
        %v7078 = vsel %vm1358, %v6934, 0
        %v7081 = vsel %vm1358, %v6938, 0
        %7083 = vmatprep.subr.bf16.mxu0 0
        %7084 = vmatpush1.bf16.xpose.msra.mxu0 %v7081
        %7085 = vmatprep.subr.bf16.mxu0 0
        %7086 = vmatpush1.bf16.xpose.msra.mxu0 0
        %7087 = vmatprep.subr.bf16.mxu0 0
        %7088 = vmatpush1.bf16.xpose.msra.mxu0 0
        %7089 = vmatprep.subr.bf16.mxu0 0
        %7090 = vmatpush1.bf16.xpose.msra.mxu0 0
        %7091 = vmatprep.subr.bf16.mxu0 0
        %7092 = vmatpush1.bf16.xpose.msra.mxu0 0
        %7093 = vmatprep.subr.bf16.mxu0 0
        %7094 = vmatpush1.bf16.xpose.msra.mxu0 0
        %7095 = vmatprep.subr.bf16.mxu0 0
        %7096 = vmatpush1.bf16.xpose.msra.mxu0 0
        %7097 = vmatprep.subr.bf16.mxu0 0
        %7098 = vmatpush1.bf16.xpose.msra.mxu0 0
        %7099 = vmatprep.subr.bf16.mxu0 0
        %7100 = vmatpush1.bf16.xpose.msra.mxu0 0
        %7101 = vmatprep.subr.bf16.mxu0 0
        %7102 = vmatpush1.bf16.xpose.msra.mxu0 0
        %7103 = vmatprep.subr.bf16.mxu0 0
        %7104 = vmatpush1.bf16.xpose.msra.mxu0 0
        %7105 = vmatprep.subr.bf16.mxu0 0
        %7106 = vmatpush1.bf16.xpose.msra.mxu0 0
        %7107 = vmatprep.subr.bf16.mxu0 0
        %7108 = vmatpush1.bf16.xpose.msra.mxu0 0
        %7109 = vmatprep.subr.bf16.mxu0 0
        %7110 = vmatpush1.bf16.xpose.msra.mxu0 0
        %7111 = vmatprep.subr.bf16.mxu0 0
        %7112 = vmatpush1.bf16.xpose.msra.mxu0 0
        %7113 = vmatprep.subr.bf16.mxu0 0
        %7114 = vmatpush1.bf16.xpose.msra.mxu0 0
        %7115 = vmatprep.mubr.bf16.mxu0 0
        %7116 = vmatmul.mubr.bf16.gmra.mrb[0].mxu0 %v7078
        %v7117 = vpop.f32.mrb[0].mxu0
        %v7118 = vadd.f32 0.0, %v7117
        %v7119 = vpop.f32.mrb[0].mxu0
        %v7120 = vpop.f32.mrb[0].mxu0
        %v7121 = vpop.f32.mrb[0].mxu0
        %7122 = vdwg.mxu0
        %v7123 = vsel %vm4258, %v6980, -inf
        %7124 = vmax.xlane.f32.xlu0 %v7123
        %v7125 = vpop.xlane.xlu0 %7124
        %v7126 = vsel %vm4258, %v7026, -inf
        %7127 = vmax.xlane.f32.xlu0 %v7126
        %v7128 = vpop.xlane.xlu0 %7127
        %v7129 = vsel %vm4258, %v7072, -inf
        %7130 = vmax.xlane.f32.xlu0 %v7129
        %v7131 = vpop.xlane.xlu0 %7130
        %v7132 = vsel %vm4258, %v7118, -inf
        %7133 = vmax.xlane.f32.xlu0 %v7132
        %v7134 = vpop.xlane.xlu0 %7133
        %v7135 = vsub.f32 %v6980, %v7125
        %v7136 = vsub.f32 %v7026, %v7128
        %v7137 = vsub.f32 %v7072, %v7131
        %v7138 = vsub.f32 %v7118, %v7134
        %v7139 = vmul.f32 %v7135, 1.442695
        %v7140 = vpow.pop %v7139
        %v7141 = vmul.f32 %v7136, 1.442695
        %v7142 = vpow.pop %v7141
        %v7143 = vmul.f32 %v7137, 1.442695
        %v7144 = vpow.pop %v7143
        %v7145 = vmul.f32 %v7138, 1.442695
        %v7146 = vpow.pop %v7145
        %v7147 = vsel %vm4258, %v7140, 0.0
        %7148 = vadd.xlane.f32.xlu0 %v7147
        %v7149 = vpop.xlane.xlu0 %7148
        %v7150 = vsel %vm4258, %v7142, 0.0
        %7151 = vadd.xlane.f32.xlu0 %v7150
        %v7152 = vpop.xlane.xlu0 %7151
        %v7153 = vsel %vm4258, %v7144, 0.0
        %7154 = vadd.xlane.f32.xlu0 %v7153
        %v7155 = vpop.xlane.xlu0 %7154
        %v7156 = vsel %vm4258, %v7146, 0.0
        %7157 = vadd.xlane.f32.xlu0 %v7156
        %v7158 = vpop.xlane.xlu0 %7157
        %v7159 = vrcp.pop %v7149
        %v7160 = vrcp.pop %v7152
        %v7161 = vrcp.pop %v7155
        %v7162 = vrcp.pop %v7158
        %v7163 = vmul.f32 %v7140, %v7159
        %v7164 = vmul.f32 %v7142, %v7160
        %v7165 = vmul.f32 %v7144, %v7161
        %v7166 = vmul.f32 %v7146, %v7162
        %v7167 = vpack.c.bf16 %v7163, %v7163
        %v7168 = vpack.c.bf16 %v7164, %v7164
        %v7169 = vpack.c.bf16 %v7165, %v7165
        %v7170 = vpack.c.bf16 %v7166, %v7166
        %v7171 = vpack.c.bf16 %v6770, %v6770
        %v7172 = vpack.c.bf16 %v6822, %v6822
        %v7173 = vpack.c.bf16 %v6874, %v6874
        %v7174 = vpack.c.bf16 %v6926, %v6926
        %v7176 = vsel %vm4258, %v7167, 0
        %v7179 = vand.u32 %v7171, %v4316
        %7181 = vmatprep.subr.bf16.mxu0 0
        %7182 = vmatpush1.bf16.msra.mxu0 %v7179
        %7183 = vmatprep.subr.bf16.mxu0 0
        %7184 = vmatpush1.bf16.msra.mxu0 0
        %7185 = vmatprep.subr.bf16.mxu0 0
        %7186 = vmatpush1.bf16.msra.mxu0 0
        %7187 = vmatprep.subr.bf16.mxu0 0
        %7188 = vmatpush1.bf16.msra.mxu0 0
        %7189 = vmatprep.subr.bf16.mxu0 0
        %7190 = vmatpush1.bf16.msra.mxu0 0
        %7191 = vmatprep.subr.bf16.mxu0 0
        %7192 = vmatpush1.bf16.msra.mxu0 0
        %7193 = vmatprep.subr.bf16.mxu0 0
        %7194 = vmatpush1.bf16.msra.mxu0 0
        %7195 = vmatprep.subr.bf16.mxu0 0
        %7196 = vmatpush1.bf16.msra.mxu0 0
        %7197 = vmatprep.subr.bf16.mxu0 0
        %7198 = vmatpush1.bf16.msra.mxu0 0
        %7199 = vmatprep.subr.bf16.mxu0 0
        %7200 = vmatpush1.bf16.msra.mxu0 0
        %7201 = vmatprep.subr.bf16.mxu0 0
        %7202 = vmatpush1.bf16.msra.mxu0 0
        %7203 = vmatprep.subr.bf16.mxu0 0
        %7204 = vmatpush1.bf16.msra.mxu0 0
        %7205 = vmatprep.subr.bf16.mxu0 0
        %7206 = vmatpush1.bf16.msra.mxu0 0
        %7207 = vmatprep.subr.bf16.mxu0 0
        %7208 = vmatpush1.bf16.msra.mxu0 0
        %7209 = vmatprep.subr.bf16.mxu0 0
        %7210 = vmatpush1.bf16.msra.mxu0 0
        %7211 = vmatprep.subr.bf16.mxu0 0
        %7212 = vmatpush1.bf16.msra.mxu0 0
        %7213 = vmatprep.mubr.bf16.mxu0 0
        %7214 = vmatmul.mubr.bf16.gmra.mrb[0].mxu0 %v7176
        %v7215 = vpop.f32.mrb[0].mxu0
        %v7216 = vadd.f32 0.0, %v7215
        %v7217 = vpop.f32.mrb[0].mxu0
        %v7218 = vpop.f32.mrb[0].mxu0
        %v7219 = vpop.f32.mrb[0].mxu0
        %7220 = vdwg.mxu0
        %v7222 = vsel %vm4258, %v7168, 0
        %v7225 = vand.u32 %v7172, %v4316
        %7227 = vmatprep.subr.bf16.mxu0 0
        %7228 = vmatpush1.bf16.msra.mxu0 %v7225
        %7229 = vmatprep.subr.bf16.mxu0 0
        %7230 = vmatpush1.bf16.msra.mxu0 0
        %7231 = vmatprep.subr.bf16.mxu0 0
        %7232 = vmatpush1.bf16.msra.mxu0 0
        %7233 = vmatprep.subr.bf16.mxu0 0
        %7234 = vmatpush1.bf16.msra.mxu0 0
        %7235 = vmatprep.subr.bf16.mxu0 0
        %7236 = vmatpush1.bf16.msra.mxu0 0
        %7237 = vmatprep.subr.bf16.mxu0 0
        %7238 = vmatpush1.bf16.msra.mxu0 0
        %7239 = vmatprep.subr.bf16.mxu0 0
        %7240 = vmatpush1.bf16.msra.mxu0 0
        %7241 = vmatprep.subr.bf16.mxu0 0
        %7242 = vmatpush1.bf16.msra.mxu0 0
        %7243 = vmatprep.subr.bf16.mxu0 0
        %7244 = vmatpush1.bf16.msra.mxu0 0
        %7245 = vmatprep.subr.bf16.mxu0 0
        %7246 = vmatpush1.bf16.msra.mxu0 0
        %7247 = vmatprep.subr.bf16.mxu0 0
        %7248 = vmatpush1.bf16.msra.mxu0 0
        %7249 = vmatprep.subr.bf16.mxu0 0
        %7250 = vmatpush1.bf16.msra.mxu0 0
        %7251 = vmatprep.subr.bf16.mxu0 0
        %7252 = vmatpush1.bf16.msra.mxu0 0
        %7253 = vmatprep.subr.bf16.mxu0 0
        %7254 = vmatpush1.bf16.msra.mxu0 0
        %7255 = vmatprep.subr.bf16.mxu0 0
        %7256 = vmatpush1.bf16.msra.mxu0 0
        %7257 = vmatprep.subr.bf16.mxu0 0
        %7258 = vmatpush1.bf16.msra.mxu0 0
        %7259 = vmatprep.mubr.bf16.mxu0 0
        %7260 = vmatmul.mubr.bf16.gmra.mrb[0].mxu0 %v7222
        %v7261 = vpop.f32.mrb[0].mxu0
        %v7262 = vadd.f32 0.0, %v7261
        %v7263 = vpop.f32.mrb[0].mxu0
        %v7264 = vpop.f32.mrb[0].mxu0
        %v7265 = vpop.f32.mrb[0].mxu0
        %7266 = vdwg.mxu0
        %v7268 = vsel %vm4258, %v7169, 0
        %v7271 = vand.u32 %v7173, %v4316
        %7273 = vmatprep.subr.bf16.mxu0 0
        %7274 = vmatpush1.bf16.msra.mxu0 %v7271
        %7275 = vmatprep.subr.bf16.mxu0 0
        %7276 = vmatpush1.bf16.msra.mxu0 0
        %7277 = vmatprep.subr.bf16.mxu0 0
        %7278 = vmatpush1.bf16.msra.mxu0 0
        %7279 = vmatprep.subr.bf16.mxu0 0
        %7280 = vmatpush1.bf16.msra.mxu0 0
        %7281 = vmatprep.subr.bf16.mxu0 0
        %7282 = vmatpush1.bf16.msra.mxu0 0
        %7283 = vmatprep.subr.bf16.mxu0 0
        %7284 = vmatpush1.bf16.msra.mxu0 0
        %7285 = vmatprep.subr.bf16.mxu0 0
        %7286 = vmatpush1.bf16.msra.mxu0 0
        %7287 = vmatprep.subr.bf16.mxu0 0
        %7288 = vmatpush1.bf16.msra.mxu0 0
        %7289 = vmatprep.subr.bf16.mxu0 0
        %7290 = vmatpush1.bf16.msra.mxu0 0
        %7291 = vmatprep.subr.bf16.mxu0 0
        %7292 = vmatpush1.bf16.msra.mxu0 0
        %7293 = vmatprep.subr.bf16.mxu0 0
        %7294 = vmatpush1.bf16.msra.mxu0 0
        %7295 = vmatprep.subr.bf16.mxu0 0
        %7296 = vmatpush1.bf16.msra.mxu0 0
        %7297 = vmatprep.subr.bf16.mxu0 0
        %7298 = vmatpush1.bf16.msra.mxu0 0
        %7299 = vmatprep.subr.bf16.mxu0 0
        %7300 = vmatpush1.bf16.msra.mxu0 0
        %7301 = vmatprep.subr.bf16.mxu0 0
        %7302 = vmatpush1.bf16.msra.mxu0 0
        %7303 = vmatprep.subr.bf16.mxu0 0
        %7304 = vmatpush1.bf16.msra.mxu0 0
        %7305 = vmatprep.mubr.bf16.mxu0 0
        %7306 = vmatmul.mubr.bf16.gmra.mrb[0].mxu0 %v7268
        %v7307 = vpop.f32.mrb[0].mxu0
        %v7308 = vadd.f32 0.0, %v7307
        %v7309 = vpop.f32.mrb[0].mxu0
        %v7310 = vpop.f32.mrb[0].mxu0
        %v7311 = vpop.f32.mrb[0].mxu0
        %7312 = vdwg.mxu0
        %v7314 = vsel %vm4258, %v7170, 0
        %v7317 = vand.u32 %v7174, %v4316
        %7319 = vmatprep.subr.bf16.mxu0 0
        %7320 = vmatpush1.bf16.msra.mxu0 %v7317
        %7321 = vmatprep.subr.bf16.mxu0 0
        %7322 = vmatpush1.bf16.msra.mxu0 0
        %7323 = vmatprep.subr.bf16.mxu0 0
        %7324 = vmatpush1.bf16.msra.mxu0 0
        %7325 = vmatprep.subr.bf16.mxu0 0
        %7326 = vmatpush1.bf16.msra.mxu0 0
        %7327 = vmatprep.subr.bf16.mxu0 0
        %7328 = vmatpush1.bf16.msra.mxu0 0
        %7329 = vmatprep.subr.bf16.mxu0 0
        %7330 = vmatpush1.bf16.msra.mxu0 0
        %7331 = vmatprep.subr.bf16.mxu0 0
        %7332 = vmatpush1.bf16.msra.mxu0 0
        %7333 = vmatprep.subr.bf16.mxu0 0
        %7334 = vmatpush1.bf16.msra.mxu0 0
        %7335 = vmatprep.subr.bf16.mxu0 0
        %7336 = vmatpush1.bf16.msra.mxu0 0
        %7337 = vmatprep.subr.bf16.mxu0 0
        %7338 = vmatpush1.bf16.msra.mxu0 0
        %7339 = vmatprep.subr.bf16.mxu0 0
        %7340 = vmatpush1.bf16.msra.mxu0 0
        %7341 = vmatprep.subr.bf16.mxu0 0
        %7342 = vmatpush1.bf16.msra.mxu0 0
        %7343 = vmatprep.subr.bf16.mxu0 0
        %7344 = vmatpush1.bf16.msra.mxu0 0
        %7345 = vmatprep.subr.bf16.mxu0 0
        %7346 = vmatpush1.bf16.msra.mxu0 0
        %7347 = vmatprep.subr.bf16.mxu0 0
        %7348 = vmatpush1.bf16.msra.mxu0 0
        %7349 = vmatprep.subr.bf16.mxu0 0
        %7350 = vmatpush1.bf16.msra.mxu0 0
        %7351 = vmatprep.mubr.bf16.mxu0 0
        %7352 = vmatmul.mubr.bf16.gmra.mrb[0].mxu0 %v7314
        %v7353 = vpop.f32.mrb[0].mxu0
        %v7354 = vadd.f32 0.0, %v7353
        %v7355 = vpop.f32.mrb[0].mxu0
        %v7356 = vpop.f32.mrb[0].mxu0
        %v7357 = vpop.f32.mrb[0].mxu0
        %7358 = vdwg.mxu0
        %v7359 = vpack.c.bf16 %v7216, %v7216
        %v7360 = vpack.c.bf16 %v7262, %v7262
        %v7361 = vpack.c.bf16 %v7308, %v7308
        %v7362 = vpack.c.bf16 %v7354, %v7354
        %v7364 = vsel %vm1358, %v7359, 0
        %v7367 = vsel %vm1788, %v6299, 0
        %7369 = vmatprep.subr.bf16.mxu0 0
        %7370 = vmatpush1.bf16.msra.mxu0 %v7367
        %7371 = vmatprep.subr.bf16.mxu0 0
        %7372 = vmatpush1.bf16.msra.mxu0 0
        %7373 = vmatprep.subr.bf16.mxu0 0
        %7374 = vmatpush1.bf16.msra.mxu0 0
        %7375 = vmatprep.subr.bf16.mxu0 0
        %7376 = vmatpush1.bf16.msra.mxu0 0
        %7377 = vmatprep.subr.bf16.mxu0 0
        %7378 = vmatpush1.bf16.msra.mxu0 0
        %7379 = vmatprep.subr.bf16.mxu0 0
        %7380 = vmatpush1.bf16.msra.mxu0 0
        %7381 = vmatprep.subr.bf16.mxu0 0
        %7382 = vmatpush1.bf16.msra.mxu0 0
        %7383 = vmatprep.subr.bf16.mxu0 0
        %7384 = vmatpush1.bf16.msra.mxu0 0
        %7385 = vmatprep.subr.bf16.mxu0 0
        %7386 = vmatpush1.bf16.msra.mxu0 0
        %7387 = vmatprep.subr.bf16.mxu0 0
        %7388 = vmatpush1.bf16.msra.mxu0 0
        %7389 = vmatprep.subr.bf16.mxu0 0
        %7390 = vmatpush1.bf16.msra.mxu0 0
        %7391 = vmatprep.subr.bf16.mxu0 0
        %7392 = vmatpush1.bf16.msra.mxu0 0
        %7393 = vmatprep.subr.bf16.mxu0 0
        %7394 = vmatpush1.bf16.msra.mxu0 0
        %7395 = vmatprep.subr.bf16.mxu0 0
        %7396 = vmatpush1.bf16.msra.mxu0 0
        %7397 = vmatprep.subr.bf16.mxu0 0
        %7398 = vmatpush1.bf16.msra.mxu0 0
        %7399 = vmatprep.subr.bf16.mxu0 0
        %7400 = vmatpush1.bf16.msra.mxu0 0
        %7401 = vmatprep.mubr.bf16.mxu0 0
        %7402 = vmatmul.mubr.bf16.gmra.mrb[0].mxu0 %v7364
        %v7403 = vpop.f32.mrb[0].mxu0
        %v7404 = vadd.f32 0.0, %v7403
        %v7405 = vpop.f32.mrb[0].mxu0
        %v7406 = vpop.f32.mrb[0].mxu0
        %v7407 = vpop.f32.mrb[0].mxu0
        %7408 = vdwg.mxu0
        %v7410 = vsel %vm1358, %v7360, 0
        %v7413 = vsel %vm1788, %v6300, 0
        %7415 = vmatprep.subr.bf16.mxu0 0
        %7416 = vmatpush1.bf16.msra.mxu0 %v7413
        %7417 = vmatprep.subr.bf16.mxu0 0
        %7418 = vmatpush1.bf16.msra.mxu0 0
        %7419 = vmatprep.subr.bf16.mxu0 0
        %7420 = vmatpush1.bf16.msra.mxu0 0
        %7421 = vmatprep.subr.bf16.mxu0 0
        %7422 = vmatpush1.bf16.msra.mxu0 0
        %7423 = vmatprep.subr.bf16.mxu0 0
        %7424 = vmatpush1.bf16.msra.mxu0 0
        %7425 = vmatprep.subr.bf16.mxu0 0
        %7426 = vmatpush1.bf16.msra.mxu0 0
        %7427 = vmatprep.subr.bf16.mxu0 0
        %7428 = vmatpush1.bf16.msra.mxu0 0
        %7429 = vmatprep.subr.bf16.mxu0 0
        %7430 = vmatpush1.bf16.msra.mxu0 0
        %7431 = vmatprep.subr.bf16.mxu0 0
        %7432 = vmatpush1.bf16.msra.mxu0 0
        %7433 = vmatprep.subr.bf16.mxu0 0
        %7434 = vmatpush1.bf16.msra.mxu0 0
        %7435 = vmatprep.subr.bf16.mxu0 0
        %7436 = vmatpush1.bf16.msra.mxu0 0
        %7437 = vmatprep.subr.bf16.mxu0 0
        %7438 = vmatpush1.bf16.msra.mxu0 0
        %7439 = vmatprep.subr.bf16.mxu0 0
        %7440 = vmatpush1.bf16.msra.mxu0 0
        %7441 = vmatprep.subr.bf16.mxu0 0
        %7442 = vmatpush1.bf16.msra.mxu0 0
        %7443 = vmatprep.subr.bf16.mxu0 0
        %7444 = vmatpush1.bf16.msra.mxu0 0
        %7445 = vmatprep.subr.bf16.mxu0 0
        %7446 = vmatpush1.bf16.msra.mxu0 0
        %7447 = vmatprep.mubr.bf16.mxu0 0
        %7448 = vmatmul.mubr.bf16.gmra.mrb[0].mxu0 %v7410
        %v7449 = vpop.f32.mrb[0].mxu0
        %v7450 = vadd.f32 0.0, %v7449
        %v7451 = vpop.f32.mrb[0].mxu0
        %v7452 = vpop.f32.mrb[0].mxu0
        %v7453 = vpop.f32.mrb[0].mxu0
        %7454 = vdwg.mxu0
        %v7456 = vsel %vm1358, %v7361, 0
        %v7459 = vsel %vm1788, %v6301, 0
        %7461 = vmatprep.subr.bf16.mxu0 0
        %7462 = vmatpush1.bf16.msra.mxu0 %v7459
        %7463 = vmatprep.subr.bf16.mxu0 0
        %7464 = vmatpush1.bf16.msra.mxu0 0
        %7465 = vmatprep.subr.bf16.mxu0 0
        %7466 = vmatpush1.bf16.msra.mxu0 0
        %7467 = vmatprep.subr.bf16.mxu0 0
        %7468 = vmatpush1.bf16.msra.mxu0 0
        %7469 = vmatprep.subr.bf16.mxu0 0
        %7470 = vmatpush1.bf16.msra.mxu0 0
        %7471 = vmatprep.subr.bf16.mxu0 0
        %7472 = vmatpush1.bf16.msra.mxu0 0
        %7473 = vmatprep.subr.bf16.mxu0 0
        %7474 = vmatpush1.bf16.msra.mxu0 0
        %7475 = vmatprep.subr.bf16.mxu0 0
        %7476 = vmatpush1.bf16.msra.mxu0 0
        %7477 = vmatprep.subr.bf16.mxu0 0
        %7478 = vmatpush1.bf16.msra.mxu0 0
        %7479 = vmatprep.subr.bf16.mxu0 0
        %7480 = vmatpush1.bf16.msra.mxu0 0
        %7481 = vmatprep.subr.bf16.mxu0 0
        %7482 = vmatpush1.bf16.msra.mxu0 0
        %7483 = vmatprep.subr.bf16.mxu0 0
        %7484 = vmatpush1.bf16.msra.mxu0 0
        %7485 = vmatprep.subr.bf16.mxu0 0
        %7486 = vmatpush1.bf16.msra.mxu0 0
        %7487 = vmatprep.subr.bf16.mxu0 0
        %7488 = vmatpush1.bf16.msra.mxu0 0
        %7489 = vmatprep.subr.bf16.mxu0 0
        %7490 = vmatpush1.bf16.msra.mxu0 0
        %7491 = vmatprep.subr.bf16.mxu0 0
        %7492 = vmatpush1.bf16.msra.mxu0 0
        %7493 = vmatprep.mubr.bf16.mxu0 0
        %7494 = vmatmul.mubr.bf16.gmra.mrb[0].mxu0 %v7456
        %v7495 = vpop.f32.mrb[0].mxu0
        %v7496 = vadd.f32 0.0, %v7495
        %v7497 = vpop.f32.mrb[0].mxu0
        %v7498 = vpop.f32.mrb[0].mxu0
        %v7499 = vpop.f32.mrb[0].mxu0
        %7500 = vdwg.mxu0
        %v7502 = vsel %vm1358, %v7362, 0
        %v7505 = vsel %vm1788, %v6302, 0
        %7507 = vmatprep.subr.bf16.mxu0 0
        %7508 = vmatpush1.bf16.msra.mxu0 %v7505
        %7509 = vmatprep.subr.bf16.mxu0 0
        %7510 = vmatpush1.bf16.msra.mxu0 0
        %7511 = vmatprep.subr.bf16.mxu0 0
        %7512 = vmatpush1.bf16.msra.mxu0 0
        %7513 = vmatprep.subr.bf16.mxu0 0
        %7514 = vmatpush1.bf16.msra.mxu0 0
        %7515 = vmatprep.subr.bf16.mxu0 0
        %7516 = vmatpush1.bf16.msra.mxu0 0
        %7517 = vmatprep.subr.bf16.mxu0 0
        %7518 = vmatpush1.bf16.msra.mxu0 0
        %7519 = vmatprep.subr.bf16.mxu0 0
        %7520 = vmatpush1.bf16.msra.mxu0 0
        %7521 = vmatprep.subr.bf16.mxu0 0
        %7522 = vmatpush1.bf16.msra.mxu0 0
        %7523 = vmatprep.subr.bf16.mxu0 0
        %7524 = vmatpush1.bf16.msra.mxu0 0
        %7525 = vmatprep.subr.bf16.mxu0 0
        %7526 = vmatpush1.bf16.msra.mxu0 0
        %7527 = vmatprep.subr.bf16.mxu0 0
        %7528 = vmatpush1.bf16.msra.mxu0 0
        %7529 = vmatprep.subr.bf16.mxu0 0
        %7530 = vmatpush1.bf16.msra.mxu0 0
        %7531 = vmatprep.subr.bf16.mxu0 0
        %7532 = vmatpush1.bf16.msra.mxu0 0
        %7533 = vmatprep.subr.bf16.mxu0 0
        %7534 = vmatpush1.bf16.msra.mxu0 0
        %7535 = vmatprep.subr.bf16.mxu0 0
        %7536 = vmatpush1.bf16.msra.mxu0 0
        %7537 = vmatprep.subr.bf16.mxu0 0
        %7538 = vmatpush1.bf16.msra.mxu0 0
        %7539 = vmatprep.mubr.bf16.mxu0 0
        %7540 = vmatmul.mubr.bf16.gmra.mrb[0].mxu0 %v7502
        %v7541 = vpop.f32.mrb[0].mxu0
        %v7542 = vadd.f32 0.0, %v7541
        %v7543 = vpop.f32.mrb[0].mxu0
        %v7544 = vpop.f32.mrb[0].mxu0
        %v7545 = vpop.f32.mrb[0].mxu0
        %7546 = vdwg.mxu0
        %v7547 = vadd.f32 %v7404, %v7450
        %v7548 = vadd.f32 %v7547, %v7496
        %v7549 = vadd.f32 %v7548, %v7542
        %v7550 = vadd.f32 %v6215, %v7549
        %s7551 = scalar_lea.vmem %s6, 6
        %v7552 = vld [vmem:[%s7551] sm:$0x1]
        %s7553 = scalar_lea.vmem %s7, 6
        %v7554 = vld [vmem:[%s7553] sm:$0x1]
        %v7555 = vsel %vm731, %v7550, 0.0
        %7556 = vadd.xlane.f32.xlu0 %v7555
        %v7557 = vpop.xlane.xlu0 %7556
        %v7558 = vmul.f32 %v7557, %v1978
        %v7559 = vsub.f32 %v7550, %v7558
        %v7560 = vmul.f32 %v7559, %v7559
        %v7561 = vsel %vm731, %v7560, 0.0
        %7562 = vadd.xlane.f32.xlu0 %v7561
        %v7563 = vpop.xlane.xlu0 %7562
        %v7564 = vmul.f32 %v7563, %v1978
        %v7565 = vadd.f32 %v7564, 1e-05
        %v7566 = vrsqrt.pop %v7565
        %v7567 = vmul.f32 %v7559, %v7566
        %v7569 = vlaneseq
        %v7570 = vshrl.u32 %v7569, 7
        %v7571 = vsub.s32 0, %v7570
        %v7572 = vrot.slane %v7552, %v7571
        %v7574 = vmul.f32 %v7567, %v7572
        %v7576 = vlaneseq
        %v7577 = vshrl.u32 %v7576, 7
        %v7578 = vsub.s32 0, %v7577
        %v7579 = vrot.slane %v7554, %v7578
        %v7581 = vadd.f32 %v7574, %v7579
        %s7582 = scalar_lea.vmem %s12, 16
        %v7583 = vld [vmem:[%s7582] sm:$0xf]
        %v7584 = vld [vmem:[%s7582 + $0x4] sm:$0xf]
        %v7585 = vld [vmem:[%s7582 + $0x8] sm:$0xf]
        %v7586 = vld [vmem:[%s7582 + $0xc] sm:$0xf]
        %s7587 = scalar_lea.vmem %s13, 1
        %v7588 = vld [vmem:[%s7587] sm:$0x1]
        %s7589 = scalar_lea.vmem %s14, 32
        %v7590 = vld [vmem:[%s7589] sm:$0xf]
        %v7591 = vld [vmem:[%s7589 + $0x4] sm:$0xf]
        %v7592 = vld [vmem:[%s7589 + $0x8] sm:$0xf]
        %v7593 = vld [vmem:[%s7589 + $0xc] sm:$0xf]
        %v7594 = vld [vmem:[%s7589 + $0x10] sm:$0xf]
        %v7595 = vld [vmem:[%s7589 + $0x14] sm:$0xf]
        %v7596 = vld [vmem:[%s7589 + $0x18] sm:$0xf]
        %v7597 = vld [vmem:[%s7589 + $0x1c] sm:$0xf]
        %s7598 = scalar_lea.vmem %s15, 1
        %v7599 = vld [vmem:[%s7598] sm:$0x1]
        %v7600 = vpack.c.bf16 %v7581, %v7581
        %v7602 = vlaneseq
        %v7603 = vshrl.u32 %v7602, 7
        %v7604 = vsub.s32 0, %v7603
        %v7605 = vrot.slane %v7588, %v7604
        %v7611 = vunpack.c.l.b16 %v7583
        %v7612 = vunpack.c.l.b16 %v7584
        %v7613 = vunpack.c.l.b16 %v7585
        %v7614 = vunpack.c.l.b16 %v7586
        %v7615 = vpack.c.b16 %v7612, %v7611
        %v7616 = vpack.c.b16 %v7614, %v7613
        %v7620 = vsel %vm731, %v7600, 0
        %7622 = vmatprep.subr.bf16.mxu0 0
        %7623 = vmatpush1.bf16.msra.mxu0 %v7615
        %7624 = vmatprep.subr.bf16.mxu0 0
        %7625 = vmatpush1.bf16.msra.mxu0 %v7616
        %7626 = vmatprep.subr.bf16.mxu0 0
        %7627 = vmatpush1.bf16.msra.mxu0 0
        %7628 = vmatprep.subr.bf16.mxu0 0
        %7629 = vmatpush1.bf16.msra.mxu0 0
        %7630 = vmatprep.subr.bf16.mxu0 0
        %7631 = vmatpush1.bf16.msra.mxu0 0
        %7632 = vmatprep.subr.bf16.mxu0 0
        %7633 = vmatpush1.bf16.msra.mxu0 0
        %7634 = vmatprep.subr.bf16.mxu0 0
        %7635 = vmatpush1.bf16.msra.mxu0 0
        %7636 = vmatprep.subr.bf16.mxu0 0
        %7637 = vmatpush1.bf16.msra.mxu0 0
        %7638 = vmatprep.subr.bf16.mxu0 0
        %7639 = vmatpush1.bf16.msra.mxu0 0
        %7640 = vmatprep.subr.bf16.mxu0 0
        %7641 = vmatpush1.bf16.msra.mxu0 0
        %7642 = vmatprep.subr.bf16.mxu0 0
        %7643 = vmatpush1.bf16.msra.mxu0 0
        %7644 = vmatprep.subr.bf16.mxu0 0
        %7645 = vmatpush1.bf16.msra.mxu0 0
        %7646 = vmatprep.subr.bf16.mxu0 0
        %7647 = vmatpush1.bf16.msra.mxu0 0
        %7648 = vmatprep.subr.bf16.mxu0 0
        %7649 = vmatpush1.bf16.msra.mxu0 0
        %7650 = vmatprep.subr.bf16.mxu0 0
        %7651 = vmatpush1.bf16.msra.mxu0 0
        %7652 = vmatprep.subr.bf16.mxu0 0
        %7653 = vmatpush1.bf16.msra.mxu0 0
        %7654 = vmatprep.mubr.bf16.mxu0 0
        %7655 = vmatmul.mubr.bf16.gmra.mrb[0].mxu0 %v7620
        %v7656 = vpop.f32.mrb[0].mxu0
        %v7657 = vadd.f32 %v7605, %v7656
        %v7658 = vpop.f32.mrb[0].mxu0
        %v7659 = vpop.f32.mrb[0].mxu0
        %v7660 = vpop.f32.mrb[0].mxu0
        %7661 = vdwg.mxu0
        %v7662 = vmul.f32 %v7657, %v7657
        %v7663 = vmul.f32 %v7657, %v7662
        %v7664 = vmul.f32 %v7663, 0.044715
        %v7665 = vadd.f32 %v7657, %v7664
        %v7666 = vmul.f32 %v7665, 0.7978846
        %v7667 = vtanh.pop %v7666
        %v7668 = vadd.f32 %v7667, 1.0
        %v7669 = vmul.f32 %v7668, 0.5
        %v7670 = vmul.f32 %v7657, %v7669
        %v7671 = vpack.c.bf16 %v7670, %v7670
        %v7673 = vlaneseq
        %v7674 = vshrl.u32 %v7673, 7
        %v7675 = vsub.s32 0, %v7674
        %v7676 = vrot.slane %v7599, %v7675
        %v7686 = vunpack.c.l.b16 %v7590
        %v7687 = vunpack.c.l.b16 %v7591
        %v7688 = vunpack.c.l.b16 %v7592
        %v7689 = vunpack.c.l.b16 %v7593
        %v7690 = vunpack.c.l.b16 %v7594
        %v7691 = vunpack.c.l.b16 %v7595
        %v7692 = vunpack.c.l.b16 %v7596
        %v7693 = vunpack.c.l.b16 %v7597
        %v7694 = vpack.c.b16 %v7687, %v7686
        %v7695 = vpack.c.b16 %v7689, %v7688
        %v7696 = vpack.c.b16 %v7691, %v7690
        %v7697 = vpack.c.b16 %v7693, %v7692
        %v7703 = vsel %vm620, %v7671, 0
        %7705 = vmatprep.subr.bf16.mxu0 0
        %7706 = vmatpush1.bf16.msra.mxu0 %v7694
        %7707 = vmatprep.subr.bf16.mxu0 0
        %7708 = vmatpush1.bf16.msra.mxu0 %v7695
        %7709 = vmatprep.subr.bf16.mxu0 0
        %7710 = vmatpush1.bf16.msra.mxu0 %v7696
        %7711 = vmatprep.subr.bf16.mxu0 0
        %7712 = vmatpush1.bf16.msra.mxu0 %v7697
        %7713 = vmatprep.subr.bf16.mxu0 0
        %7714 = vmatpush1.bf16.msra.mxu0 0
        %7715 = vmatprep.subr.bf16.mxu0 0
        %7716 = vmatpush1.bf16.msra.mxu0 0
        %7717 = vmatprep.subr.bf16.mxu0 0
        %7718 = vmatpush1.bf16.msra.mxu0 0
        %7719 = vmatprep.subr.bf16.mxu0 0
        %7720 = vmatpush1.bf16.msra.mxu0 0
        %7721 = vmatprep.subr.bf16.mxu0 0
        %7722 = vmatpush1.bf16.msra.mxu0 0
        %7723 = vmatprep.subr.bf16.mxu0 0
        %7724 = vmatpush1.bf16.msra.mxu0 0
        %7725 = vmatprep.subr.bf16.mxu0 0
        %7726 = vmatpush1.bf16.msra.mxu0 0
        %7727 = vmatprep.subr.bf16.mxu0 0
        %7728 = vmatpush1.bf16.msra.mxu0 0
        %7729 = vmatprep.subr.bf16.mxu0 0
        %7730 = vmatpush1.bf16.msra.mxu0 0
        %7731 = vmatprep.subr.bf16.mxu0 0
        %7732 = vmatpush1.bf16.msra.mxu0 0
        %7733 = vmatprep.subr.bf16.mxu0 0
        %7734 = vmatpush1.bf16.msra.mxu0 0
        %7735 = vmatprep.subr.bf16.mxu0 0
        %7736 = vmatpush1.bf16.msra.mxu0 0
        %7737 = vmatprep.mubr.bf16.mxu0 0
        %7738 = vmatmul.mubr.bf16.gmra.mrb[0].mxu0 %v7703
        %v7739 = vpop.f32.mrb[0].mxu0
        %v7740 = vadd.f32 %v7676, %v7739
        %v7741 = vpop.f32.mrb[0].mxu0
        %v7742 = vpop.f32.mrb[0].mxu0
        %v7743 = vpop.f32.mrb[0].mxu0
        %7744 = vdwg.mxu0
        %v7745 = vadd.f32 %v7550, %v7740
        %s7746 = scalar_lea.vmem %s6, 7
        %v7747 = vld [vmem:[%s7746] sm:$0x1]
        %s7748 = scalar_lea.vmem %s7, 7
        %v7749 = vld [vmem:[%s7748] sm:$0x1]
        %v7750 = vsel %vm731, %v7745, 0.0
        %7751 = vadd.xlane.f32.xlu0 %v7750
        %v7752 = vpop.xlane.xlu0 %7751
        %v7753 = vmul.f32 %v7752, %v1978
        %v7754 = vsub.f32 %v7745, %v7753
        %v7755 = vmul.f32 %v7754, %v7754
        %v7756 = vsel %vm731, %v7755, 0.0
        %7757 = vadd.xlane.f32.xlu0 %v7756
        %v7758 = vpop.xlane.xlu0 %7757
        %v7759 = vmul.f32 %v7758, %v1978
        %v7760 = vadd.f32 %v7759, 1e-05
        %v7761 = vrsqrt.pop %v7760
        %v7762 = vmul.f32 %v7754, %v7761
        %v7764 = vlaneseq
        %v7765 = vshrl.u32 %v7764, 7
        %v7766 = vsub.s32 0, %v7765
        %v7767 = vrot.slane %v7747, %v7766
        %v7769 = vmul.f32 %v7762, %v7767
        %v7771 = vlaneseq
        %v7772 = vshrl.u32 %v7771, 7
        %v7773 = vsub.s32 0, %v7772
        %v7774 = vrot.slane %v7749, %v7773
        %v7776 = vadd.f32 %v7769, %v7774
        %v7777 = vpack.c.bf16 %v7776, %v7776
        %v7778 = vld [vmem:[%s16] sm:$0xf]
        %v7779 = vld [vmem:[%s16 + $0x4] sm:$0xf]
        %v7780 = vld [vmem:[%s16 + $0x8] sm:$0xf]
        %v7781 = vld [vmem:[%s16 + $0xc] sm:$0xf]
        %v7782 = vld [vmem:[%s16 + $0x10] sm:$0xf]
        %v7783 = vld [vmem:[%s16 + $0x14] sm:$0xf]
        %v7784 = vld [vmem:[%s16 + $0x18] sm:$0xf]
        %v7785 = vld [vmem:[%s16 + $0x1c] sm:$0xf]
        %v7786 = vld [vmem:[%s16 + $0x20] sm:$0xf]
        %v7787 = vld [vmem:[%s16 + $0x24] sm:$0xf]
        %v7788 = vld [vmem:[%s16 + $0x28] sm:$0xf]
        %v7789 = vld [vmem:[%s16 + $0x2c] sm:$0xf]
        %v7790 = vld [vmem:[%s16 + $0x30] sm:$0xf]
        %v7791 = vld [vmem:[%s16 + $0x34] sm:$0xf]
        %v7792 = vld [vmem:[%s16 + $0x38] sm:$0xf]
        %v7793 = vld [vmem:[%s16 + $0x3c] sm:$0xf]
        %v7810 = vunpack.c.l.b16 %v7778
        %v7811 = vunpack.c.l.b16 %v7779
        %v7812 = vunpack.c.l.b16 %v7780
        %v7813 = vunpack.c.l.b16 %v7781
        %v7814 = vunpack.c.l.b16 %v7782
        %v7815 = vunpack.c.l.b16 %v7783
        %v7816 = vunpack.c.l.b16 %v7784
        %v7817 = vunpack.c.l.b16 %v7785
        %v7818 = vunpack.c.l.b16 %v7786
        %v7819 = vunpack.c.l.b16 %v7787
        %v7820 = vunpack.c.l.b16 %v7788
        %v7821 = vunpack.c.l.b16 %v7789
        %v7822 = vunpack.c.l.b16 %v7790
        %v7823 = vunpack.c.l.b16 %v7791
        %v7824 = vunpack.c.l.b16 %v7792
        %v7825 = vunpack.c.l.b16 %v7793
        %v7826 = vpack.c.b16 %v7811, %v7810
        %v7827 = vpack.c.b16 %v7813, %v7812
        %v7828 = vpack.c.b16 %v7815, %v7814
        %v7829 = vpack.c.b16 %v7817, %v7816
        %v7830 = vpack.c.b16 %v7819, %v7818
        %v7831 = vpack.c.b16 %v7821, %v7820
        %v7832 = vpack.c.b16 %v7823, %v7822
        %v7833 = vpack.c.b16 %v7825, %v7824
        %v7835 = vsel %vm731, %v7777, 0
        %v7838 = vsel %vm731, %v7826, 0
        %v7841 = vsel %vm731, %v7827, 0
        %v7844 = vsel %vm731, %v7828, 0
        %v7847 = vsel %vm731, %v7829, 0
        %v7850 = vsel %vm731, %v7830, 0
        %v7853 = vsel %vm731, %v7831, 0
        %v7856 = vsel %vm731, %v7832, 0
        %v7859 = vsel %vm731, %v7833, 0
        %7861 = vmatprep.subr.bf16.mxu0 0
        %7862 = vmatpush1.bf16.xpose.msra.mxu0 %v7838
        %7863 = vmatprep.subr.bf16.mxu0 0
        %7864 = vmatpush1.bf16.xpose.msra.mxu0 %v7841
        %7865 = vmatprep.subr.bf16.mxu0 0
        %7866 = vmatpush1.bf16.xpose.msra.mxu0 %v7844
        %7867 = vmatprep.subr.bf16.mxu0 0
        %7868 = vmatpush1.bf16.xpose.msra.mxu0 %v7847
        %7869 = vmatprep.subr.bf16.mxu0 0
        %7870 = vmatpush1.bf16.xpose.msra.mxu0 %v7850
        %7871 = vmatprep.subr.bf16.mxu0 0
        %7872 = vmatpush1.bf16.xpose.msra.mxu0 %v7853
        %7873 = vmatprep.subr.bf16.mxu0 0
        %7874 = vmatpush1.bf16.xpose.msra.mxu0 %v7856
        %7875 = vmatprep.subr.bf16.mxu0 0
        %7876 = vmatpush1.bf16.xpose.msra.mxu0 %v7859
        %7877 = vmatprep.subr.bf16.mxu0 0
        %7878 = vmatpush1.bf16.xpose.msra.mxu0 0
        %7879 = vmatprep.subr.bf16.mxu0 0
        %7880 = vmatpush1.bf16.xpose.msra.mxu0 0
        %7881 = vmatprep.subr.bf16.mxu0 0
        %7882 = vmatpush1.bf16.xpose.msra.mxu0 0
        %7883 = vmatprep.subr.bf16.mxu0 0
        %7884 = vmatpush1.bf16.xpose.msra.mxu0 0
        %7885 = vmatprep.subr.bf16.mxu0 0
        %7886 = vmatpush1.bf16.xpose.msra.mxu0 0
        %7887 = vmatprep.subr.bf16.mxu0 0
        %7888 = vmatpush1.bf16.xpose.msra.mxu0 0
        %7889 = vmatprep.subr.bf16.mxu0 0
        %7890 = vmatpush1.bf16.xpose.msra.mxu0 0
        %7891 = vmatprep.subr.bf16.mxu0 0
        %7892 = vmatpush1.bf16.xpose.msra.mxu0 0
        %7893 = vmatprep.mubr.bf16.mxu0 0
        %7894 = vmatmul.mubr.bf16.gmra.mrb[0].mxu0 %v7835
        %v7895 = vpop.f32.mrb[0].mxu0
        %v7896 = vadd.f32 0.0, %v7895
        %v7897 = vpop.f32.mrb[0].mxu0
        %v7898 = vpop.f32.mrb[0].mxu0
        %v7899 = vpop.f32.mrb[0].mxu0
        %7900 = vdwg.mxu0
        %7901 = vst [vmem:[%s565] sm:$0xff] %v7896
        %s7902 = sand.u32 %s411, 1
        %s7903 = scalar_lea.sflag [#allocation3], %s7902
        %s7904 = sand.u32 %s411, 1
        %s7905 = smul.addr %s7904, 8
        %s7906 = scalar_lea.vmem [#allocation2], %s7905
        // Predicated region
        $region89: #{mammut_forward.1} parent=87 // pred_check
          %p7907 = pneg %p421
        $region90: #{mammut_forward.1} parent=87 // pred_check_branch
          %7909 = sbr.rel (%p7907) target = $region92
        $region91: #{mammut_forward.1} parent=87 // pred_region
          %s7911 = ssub.s32 128, 128
          %7912 = vsyncadd %s7903, %s7911
          %s7913 = smul.addr %s31, 128
          %s7914 = scalar_lea.hbm %s17, %s7913
          %s7916 = sshll.u32 %s7906, 4
          %s7917 = int_to_ptr.vmem [resolvable:$true] %s7916
          %7919 = dma.vmem_to_hbm [thread:$0]  %s7917, 128, %s7914, %s7903
        $region92: #{mammut_forward.1} parent=87 // pred_fallthru
          _
      $region88: #{mammut_forward.1} parent=5 // pred_fallthru
        _
      %p7920 = scmp.le.s32.totalorder 2, %s26
      // Predicated region
      $region93: #{mammut_forward.1} parent=5 // pred_check
        %p7921 = pneg %p7920
      $region94: #{mammut_forward.1} parent=5 // pred_check_branch
        %7923 = sbr.rel (%p7921) target = $region96
      $region95: #{mammut_forward.1} parent=5 // pred_region
        %s7924 = ssub.s32 %s26, 2
        // Predicated region
        $region97: #{mammut_forward.1} parent=95 // pred_check
          %p7925 = pneg %p427
        $region98: #{mammut_forward.1} parent=95 // pred_check_branch
          %7927 = sbr.rel (%p7925) target = $region100
        $region99: #{mammut_forward.1} parent=95 // pred_region
          %s7928 = sand.u32 %s412, 1
          %s7929 = scalar_lea.sflag [#allocation3], %s7928
          %s7930 = sand.u32 %s412, 1
          %s7931 = smul.addr %s7930, 8
          %s7932 = scalar_lea.vmem [#allocation2], %s7931
          %7933 = dma.done %s7929, 128
        $region100: #{mammut_forward.1} parent=95 // pred_fallthru
          _
      $region96: #{mammut_forward.1} parent=5 // pred_fallthru
        _
    $region6: #{mammut_forward.1} parent=1 // loop_footer
      %s30 = sadd.s32 1, %s26
    $region7: #{mammut_forward.1} parent=1 // loop_footer_branch
      %25 = sbr.rel target = $region3
    $region8: #{mammut_forward.1} parent=1 // loop_exit
      _
    %7934 = vsyncpa [#allocation3], 1
    %s7935 = scalar_lea.sflag [#allocation3], 1
    %7936 = vsyncpa %s7935, 1

</llo_original>
